<compile_context>
chip_gen: v7x
topology: tpu7x:2x2x1
jax: 0.10.0
libtpu: 0.0.40
codegen_flags: <defaults>
</compile_context>

<pallas_src>
import functools

import jax
import jax.numpy as jnp
import numpy as np
from jax.experimental import pallas as pl
from jax.experimental.pallas import tpu as pltpu


# ----------------------------------------------------------------------------
# Pallas kernels
# ----------------------------------------------------------------------------
def _linear_kernel(a_ref, w_ref, b_ref, o_ref, *, relu):
    """out = a @ w + b (f32 accumulate on the MXU), optional fused ReLU."""
    acc = jnp.dot(a_ref[...], w_ref[...], preferred_element_type=jnp.float32)
    acc = acc + b_ref[...]
    if relu:
        acc = jnp.maximum(acc, 0.0)
    o_ref[...] = acc.astype(o_ref.dtype)


def linear_pallas(a, w, b, *, relu=False, tn=None):
    """a:(M,K) @ w:(K,N) + b:(N,), tiled over the output-column axis.

    Activations stay resident in VMEM; only the weight/bias/output column tile
    moves each grid step.  Column tiles are independent (no reduction axis),
    so the grid axis is "parallel".
    """
    M, K = a.shape
    K2, N = w.shape
    assert K == K2
    if tn is None or tn >= N:
        tn = N
    assert N % tn == 0
    return pl.pallas_call(
        functools.partial(_linear_kernel, relu=relu),
        out_shape=jax.ShapeDtypeStruct((M, N), jnp.float32),
        grid_spec=pltpu.PrefetchScalarGridSpec(
            num_scalar_prefetch=0,
            grid=(N // tn,),
            in_specs=[
                pl.BlockSpec((M, K), lambda j: (0, 0)),    # activations (resident)
                pl.BlockSpec((K, tn), lambda j: (0, j)),   # weight column tile
                pl.BlockSpec((1, tn), lambda j: (0, j)),   # bias column tile
            ],
            out_specs=pl.BlockSpec((M, tn), lambda j: (0, j)),
        ),
        compiler_params=pltpu.CompilerParams(
            dimension_semantics=("parallel",),
        ),
    )(a, w, b.reshape(1, N))


def _tail_kernel(flat_ref, wgap_ref, bgap_ref, w12_ref, b12_ref, o_ref):
    """Fused tail on the flattened conv2 activation (NHWC flatten order).

    x1 = flat @ W_gap + b_gap   (GAP + fcGAP folded into W_gap)
    x2 = flat @ W12   + b12     (fc1 + fc2 folded into W12)
    out = x1 * x2
    """
    flat = flat_ref[...]
    x1 = jnp.dot(flat, wgap_ref[...], preferred_element_type=jnp.float32) + bgap_ref[...]
    x2 = jnp.dot(flat, w12_ref[...], preferred_element_type=jnp.float32) + b12_ref[...]
    o_ref[...] = (x1 * x2).astype(o_ref.dtype)


def tail_pallas(flat, wgap, bgap, w12, b12):
    """flat:(N,6400); wgap/w12:(6400,nc). Single-block kernel (all VMEM-resident)."""
    N = flat.shape[0]
    nc = wgap.shape[1]
    return pl.pallas_call(
        _tail_kernel,
        out_shape=jax.ShapeDtypeStruct((N, nc), jnp.float32),
    )(flat, wgap, bgap.reshape(1, nc), w12, b12.reshape(1, nc))


# ----------------------------------------------------------------------------
# Glue: im2col and parameter construction / preparation
# ----------------------------------------------------------------------------
def im2col(x_nhwc, kh, kw):
    """(N,H,W,C) -> (N*OH*OW, kh*kw*C) with feature order (ki, kj, c)."""
    N, H, W, C = x_nhwc.shape
    OH, OW = H - kh + 1, W - kw + 1
    cols = []
    for i in range(kh):
        for j in range(kw):
            cols.append(x_nhwc[:, i:i + OH, j:j + OW, :])
    patches = jnp.concatenate(cols, axis=-1)          # (N, OH, OW, kh*kw*C)
    return patches.reshape(N * OH * OW, kh * kw * C), (N, OH, OW)


def conv_weight_to_matrix(w_oihw):
    """PyTorch (O,I,kh,kw) conv weight -> (kh*kw*I, O) matching im2col order."""
    O, I, kh, kw = w_oihw.shape
    return jnp.transpose(w_oihw, (2, 3, 1, 0)).reshape(kh * kw * I, O)


def init_params(key, num_classes=10):
    ks = jax.random.split(key, 5)
    p = {}
    # conv weights: kaiming-normal-ish (fan_out, relu), biases zero
    p["conv1_w"] = (jax.random.normal(ks[0], (32, 1, 5, 5), jnp.float32)
                    * np.sqrt(2.0 / (32 * 5 * 5)))
    p["conv1_b"] = jnp.zeros((32,), jnp.float32)
    p["conv2_w"] = (jax.random.normal(ks[1], (64, 32, 3, 3), jnp.float32)
                    * np.sqrt(2.0 / (64 * 3 * 3)))
    p["conv2_b"] = jnp.zeros((64,), jnp.float32)
    # linear weights: N(0, 0.01), biases zero (PyTorch (out, in) layout)
    p["fcGAP_w"] = jax.random.normal(ks[2], (num_classes, 64), jnp.float32) * 0.01
    p["fcGAP_b"] = jnp.zeros((num_classes,), jnp.float32)
    p["fc1_w"] = jax.random.normal(ks[3], (2048, 64 * 10 * 10), jnp.float32) * 0.01
    p["fc1_b"] = jnp.zeros((2048,), jnp.float32)
    p["fc2_w"] = jax.random.normal(ks[4], (num_classes, 2048), jnp.float32) * 0.01
    p["fc2_b"] = jnp.zeros((num_classes,), jnp.float32)
    return p


def prepare_params(p):
    """One-time (outside-jit) layout conversion and algebraic folding.

    * conv weights -> im2col matrices.
    * fc1+fc2 folded into W12 (exact at inference: dropout identity, no
      nonlinearity between them).  Rows permuted to NHWC flatten order so the
      jitted forward never transposes the conv2 activation.
    * GAP (+1/100) and fcGAP folded into one (6400, nc) matrix in the same
      NHWC flatten order.
    """
    hp = jax.lax.Precision.HIGHEST
    prep = {}
    prep["conv1_wm"] = conv_weight_to_matrix(p["conv1_w"])        # (25, 32)  f32
    prep["conv1_b"] = p["conv1_b"]
    prep["conv2_wm"] = conv_weight_to_matrix(p["conv2_w"])        # (288, 64) f32
    prep["conv2_b"] = p["conv2_b"]

    nc = p["fcGAP_w"].shape[0]

    # GAP + fcGAP fold: row index (h*10 + w)*64 + c  ->  fcGAP_w.T[c] / 100
    prep["wgap_big"] = jnp.tile(jnp.transpose(p["fcGAP_w"]) / 100.0, (100, 1))  # (6400, nc)
    prep["bgap"] = p["fcGAP_b"]

    # fc1 + fc2 fold (dominant HBM stream 26 MB -> 256 KB).
    w12 = jnp.dot(jnp.transpose(p["fc1_w"]), jnp.transpose(p["fc2_w"]),
                  precision=hp)                                   # (6400, nc), NCHW rows
    # Permute rows: NCHW flatten index c*100 + h*10 + w  ->  NHWC (h*10+w)*64 + c
    w12 = w12.reshape(64, 10, 10, nc).transpose(1, 2, 0, 3).reshape(6400, nc)
    prep["w12"] = w12
    prep["b12"] = jnp.dot(p["fc1_b"], jnp.transpose(p["fc2_w"]), precision=hp) + p["fc2_b"]
    return prep


# ----------------------------------------------------------------------------
# Forward pass (Pallas-backed)
# ----------------------------------------------------------------------------
@jax.jit
def forward(prep, x_nchw):
    N = x_nchw.shape[0]
    x = jnp.transpose(x_nchw, (0, 2, 3, 1))                    # NHWC (N,28,28,1)

    # conv1 (5x5, valid) + ReLU  -> (N,24,24,32)
    p1, _ = im2col(x, 5, 5)                                     # (N*576, 25)
    y1 = linear_pallas(p1, prep["conv1_wm"], prep["conv1_b"], relu=True)
    y1 = y1.reshape(N, 24, 24, 32)

    # max_pool2d(2, 2) -> (N,12,12,32): pairwise VPU max on strided NHWC slices
    y1p = jnp.maximum(
        jnp.maximum(y1[:, 0::2, 0::2, :], y1[:, 0::2, 1::2, :]),
        jnp.maximum(y1[:, 1::2, 0::2, :], y1[:, 1::2, 1::2, :]),
    )

    # conv2 (3x3, valid) + ReLU -> (N*100, 64) == NHWC (N,10,10,64) rows
    p2, _ = im2col(y1p, 3, 3)                                   # (N*100, 288)
    y2 = linear_pallas(p2, prep["conv2_wm"], prep["conv2_b"], relu=True)

    # NHWC flatten (free reshape; weight rows were pre-permuted to match)
    flat = y2.reshape(N, 64 * 10 * 10)                          # (N, 6400) f32

    # fused tail: (GAP->fcGAP folded) and (fc1->fc2 folded), elementwise product
    out = tail_pallas(flat, prep["wgap_big"], prep["bgap"],
                      prep["w12"], prep["b12"])
    return out


# ----------------------------------------------------------------------------
# Pure-JAX reference (for verification) -- mirrors the PyTorch module exactly
# ----------------------------------------------------------------------------
def forward_ref(params, x_nchw):
    hp = jax.lax.Precision.HIGHEST
    N = x_nchw.shape[0]
    x = jax.lax.conv_general_dilated(
        x_nchw, params["conv1_w"], (1, 1), "VALID",
        dimension_numbers=("NCHW", "OIHW", "NCHW"), precision=hp)
    x = jnp.maximum(x + params["conv1_b"][None, :, None, None], 0.0)
    x = x.reshape(N, 32, 12, 2, 12, 2).max(axis=(3, 5))
    x = jax.lax.conv_general_dilated(
        x, params["conv2_w"], (1, 1), "VALID",
        dimension_numbers=("NCHW", "OIHW", "NCHW"), precision=hp)
    x = jnp.maximum(x + params["conv2_b"][None, :, None, None], 0.0)
    x1 = x.mean(axis=(2, 3))
    x1 = jnp.dot(x1, params["fcGAP_w"].T, precision=hp) + params["fcGAP_b"]
    x2 = x.reshape(N, 64 * 10 * 10)
    x2 = jnp.dot(x2, params["fc1_w"].T, precision=hp) + params["fc1_b"]
    x2 = jnp.dot(x2, params["fc2_w"].T, precision=hp) + params["fc2_b"]
    return x1 * x2


# ----------------------------------------------------------------------------
if __name__ == "__main__":
    key = jax.random.PRNGKey(0)
    k_param, k_x = jax.random.split(key)
    params = init_params(k_param, num_classes=10)
    prep = prepare_params(params)          # one-time fold / layout prep, outside jit

    # Input: batch=2, 1 channel, 28x28 (spatial size fixed by fc1 = 64*10*10)
    x = jax.random.normal(k_x, (2, 1, 28, 28), jnp.float32)

    out = jax.block_until_ready(forward(prep, x))
    assert out.shape == (2, 10), out.shape
    assert bool(jnp.all(jnp.isfinite(out)))

    ref = jax.block_until_ready(forward_ref(params, x))
    rel_err = float(jnp.max(jnp.abs(out - ref)) / (jnp.max(jnp.abs(ref)) + 1e-8))
    assert rel_err < 2e-2, f"relative error too large: {rel_err}"

    print("KERNEL_OK")
</pallas_src>

<mosaic_0001>
module attributes {stable_mosaic.version = 11 : i64} {
  func.func @_linear_kernel(%arg0: i32, %arg1: memref<1152x25xf32, #tpu.memory_space<vmem>>, %arg2: memref<25x32xf32, #tpu.memory_space<vmem>>, %arg3: memref<1x32xf32, #tpu.memory_space<vmem>>, %arg4: memref<1152x32xf32, #tpu.memory_space<vmem>>) attributes {dimension_semantics = [#tpu.dimension_semantics<parallel>], iteration_bounds = array<i64: 1>, scalar_prefetch = 0 : i64, scratch_operands = 0 : i64, tpu.core_type = #tpu.core_type<tc>, window_params = [{pipeline_mode = #tpu.pipeline_mode<synchronous>, transform_indices = @transform_0, window_bounds = array<i64: 1152, 25>}, {transform_indices = @transform_1, window_bounds = array<i64: 25, 32>}, {transform_indices = @transform_2, window_bounds = array<i64: 1, 32>}, {transform_indices = @transform_3, window_bounds = array<i64: 1152, 32>}]} {
    %c0 = arith.constant 0 : index
    %c0_0 = arith.constant 0 : index
    %0 = vector.load %arg1[%c0, %c0_0] : memref<1152x25xf32, #tpu.memory_space<vmem>>, vector<1152x25xf32>
    %c0_1 = arith.constant 0 : index
    %c0_2 = arith.constant 0 : index
    %1 = vector.load %arg2[%c0_1, %c0_2] : memref<25x32xf32, #tpu.memory_space<vmem>>, vector<25x32xf32>
    %cst = arith.constant dense<0.000000e+00> : vector<1152x32xf32>
    %2 = tpu.matmul %0, %1, %cst {dimension_numbers = #tpu.dot_dimension_numbers<[1], [0], [0], [1], [0, 0, 1, 1], [], []>} : vector<1152x25xf32>, vector<25x32xf32>, vector<1152x32xf32> -> vector<1152x32xf32>
    %c0_3 = arith.constant 0 : index
    %c0_4 = arith.constant 0 : index
    %3 = vector.load %arg3[%c0_3, %c0_4] : memref<1x32xf32, #tpu.memory_space<vmem>>, vector<1x32xf32>
    %4 = vector.broadcast %3 : vector<1x32xf32> to vector<1152x32xf32>
    %5 = arith.addf %2, %4 : vector<1152x32xf32>
    %cst_5 = arith.constant 0.000000e+00 : f32
    %6 = vector.broadcast %cst_5 : f32 to vector<1152x32xf32>
    %7 = arith.maximumf %5, %6 : vector<1152x32xf32>
    %c0_6 = arith.constant 0 : index
    %c0_7 = arith.constant 0 : index
    %8 = vector.load %arg4[%c0_6, %c0_7] : memref<1152x32xf32, #tpu.memory_space<vmem>>, vector<1152x32xf32>
    tpu.vector_store %arg4[%c0_6, %c0_7], %7 {strides = array<i32>} : memref<1152x32xf32, #tpu.memory_space<vmem>>, vector<1152x32xf32>,
    return
  }
  func.func @transform_0(%arg0: i32) -> (i32, i32) {
    %c0_i32 = arith.constant 0 : i32
    %c0_i32_0 = arith.constant 0 : i32
    %c0_i32_1 = arith.constant 0 : i32
    return %c0_i32, %c0_i32_0 : i32, i32
  }
  func.func @transform_1(%arg0: i32) -> (i32, i32) {
    %c0_i32 = arith.constant 0 : i32
    %c0_i32_0 = arith.constant 0 : i32
    return %c0_i32, %arg0 : i32, i32
  }
  func.func @transform_2(%arg0: i32) -> (i32, i32) {
    %c0_i32 = arith.constant 0 : i32
    %c0_i32_0 = arith.constant 0 : i32
    return %c0_i32, %arg0 : i32, i32
  }
  func.func @transform_3(%arg0: i32) -> (i32, i32) {
    %c0_i32 = arith.constant 0 : i32
    %c0_i32_0 = arith.constant 0 : i32
    return %c0_i32, %arg0 : i32, i32
  }
}

module attributes {stable_mosaic.version = 11 : i64} {
  func.func @_linear_kernel(%arg0: i32, %arg1: memref<200x288xf32, #tpu.memory_space<vmem>>, %arg2: memref<288x64xf32, #tpu.memory_space<vmem>>, %arg3: memref<1x64xf32, #tpu.memory_space<vmem>>, %arg4: memref<200x64xf32, #tpu.memory_space<vmem>>) attributes {dimension_semantics = [#tpu.dimension_semantics<parallel>], iteration_bounds = array<i64: 1>, scalar_prefetch = 0 : i64, scratch_operands = 0 : i64, tpu.core_type = #tpu.core_type<tc>, window_params = [{pipeline_mode = #tpu.pipeline_mode<synchronous>, transform_indices = @transform_0, window_bounds = array<i64: 200, 288>}, {transform_indices = @transform_1, window_bounds = array<i64: 288, 64>}, {transform_indices = @transform_2, window_bounds = array<i64: 1, 64>}, {transform_indices = @transform_3, window_bounds = array<i64: 200, 64>}]} {
    %c0 = arith.constant 0 : index
    %c0_0 = arith.constant 0 : index
    %0 = vector.load %arg1[%c0, %c0_0] : memref<200x288xf32, #tpu.memory_space<vmem>>, vector<200x288xf32>
    %c0_1 = arith.constant 0 : index
    %c0_2 = arith.constant 0 : index
    %1 = vector.load %arg2[%c0_1, %c0_2] : memref<288x64xf32, #tpu.memory_space<vmem>>, vector<288x64xf32>
    %cst = arith.constant dense<0.000000e+00> : vector<200x64xf32>
    %2 = tpu.matmul %0, %1, %cst {dimension_numbers = #tpu.dot_dimension_numbers<[1], [0], [0], [1], [0, 0, 1, 1], [], []>} : vector<200x288xf32>, vector<288x64xf32>, vector<200x64xf32> -> vector<200x64xf32>
    %c0_3 = arith.constant 0 : index
    %c0_4 = arith.constant 0 : index
    %3 = vector.load %arg3[%c0_3, %c0_4] : memref<1x64xf32, #tpu.memory_space<vmem>>, vector<1x64xf32>
    %4 = vector.broadcast %3 : vector<1x64xf32> to vector<200x64xf32>
    %5 = arith.addf %2, %4 : vector<200x64xf32>
    %cst_5 = arith.constant 0.000000e+00 : f32
    %6 = vector.broadcast %cst_5 : f32 to vector<200x64xf32>
    %7 = arith.maximumf %5, %6 : vector<200x64xf32>
    %c0_6 = arith.constant 0 : index
    %c0_7 = arith.constant 0 : index
    %8 = vector.load %arg4[%c0_6, %c0_7] : memref<200x64xf32, #tpu.memory_space<vmem>>, vector<200x64xf32>
    tpu.vector_store %arg4[%c0_6, %c0_7], %7 {strides = array<i32>} : memref<200x64xf32, #tpu.memory_space<vmem>>, vector<200x64xf32>,
    return
  }
  func.func @transform_0(%arg0: i32) -> (i32, i32) {
    %c0_i32 = arith.constant 0 : i32
    %c0_i32_0 = arith.constant 0 : i32
    %c0_i32_1 = arith.constant 0 : i32
    return %c0_i32, %c0_i32_0 : i32, i32
  }
  func.func @transform_1(%arg0: i32) -> (i32, i32) {
    %c0_i32 = arith.constant 0 : i32
    %c0_i32_0 = arith.constant 0 : i32
    return %c0_i32, %arg0 : i32, i32
  }
  func.func @transform_2(%arg0: i32) -> (i32, i32) {
    %c0_i32 = arith.constant 0 : i32
    %c0_i32_0 = arith.constant 0 : i32
    return %c0_i32, %arg0 : i32, i32
  }
  func.func @transform_3(%arg0: i32) -> (i32, i32) {
    %c0_i32 = arith.constant 0 : i32
    %c0_i32_0 = arith.constant 0 : i32
    return %c0_i32, %arg0 : i32, i32
  }
}

module attributes {stable_mosaic.version = 11 : i64} {
  func.func @_tail_kernel(%arg0: memref<2x6400xf32, #tpu.memory_space<vmem>>, %arg1: memref<6400x10xf32, #tpu.memory_space<vmem>>, %arg2: memref<1x10xf32, #tpu.memory_space<vmem>>, %arg3: memref<6400x10xf32, #tpu.memory_space<vmem>>, %arg4: memref<1x10xf32, #tpu.memory_space<vmem>>, %arg5: memref<2x10xf32, #tpu.memory_space<vmem>>) attributes {dimension_semantics = [], scalar_prefetch = 0 : i64, scratch_operands = 0 : i64, tpu.core_type = #tpu.core_type<tc>} {
    %c0 = arith.constant 0 : index
    %c0_0 = arith.constant 0 : index
    %0 = vector.load %arg0[%c0, %c0_0] : memref<2x6400xf32, #tpu.memory_space<vmem>>, vector<2x6400xf32>
    %c0_1 = arith.constant 0 : index
    %c0_2 = arith.constant 0 : index
    %1 = vector.load %arg1[%c0_1, %c0_2] : memref<6400x10xf32, #tpu.memory_space<vmem>>, vector<6400x10xf32>
    %cst = arith.constant dense<0.000000e+00> : vector<2x10xf32>
    %2 = tpu.matmul %0, %1, %cst {dimension_numbers = #tpu.dot_dimension_numbers<[1], [0], [0], [1], [0, 0, 1, 1], [], []>} : vector<2x6400xf32>, vector<6400x10xf32>, vector<2x10xf32> -> vector<2x10xf32>
    %c0_3 = arith.constant 0 : index
    %c0_4 = arith.constant 0 : index
    %3 = vector.load %arg2[%c0_3, %c0_4] : memref<1x10xf32, #tpu.memory_space<vmem>>, vector<1x10xf32>
    %4 = vector.broadcast %3 : vector<1x10xf32> to vector<2x10xf32>
    %5 = arith.addf %2, %4 : vector<2x10xf32>
    %c0_5 = arith.constant 0 : index
    %c0_6 = arith.constant 0 : index
    %6 = vector.load %arg3[%c0_5, %c0_6] : memref<6400x10xf32, #tpu.memory_space<vmem>>, vector<6400x10xf32>
    %cst_7 = arith.constant dense<0.000000e+00> : vector<2x10xf32>
    %7 = tpu.matmul %0, %6, %cst_7 {dimension_numbers = #tpu.dot_dimension_numbers<[1], [0], [0], [1], [0, 0, 1, 1], [], []>} : vector<2x6400xf32>, vector<6400x10xf32>, vector<2x10xf32> -> vector<2x10xf32>
    %c0_8 = arith.constant 0 : index
    %c0_9 = arith.constant 0 : index
    %8 = vector.load %arg4[%c0_8, %c0_9] : memref<1x10xf32, #tpu.memory_space<vmem>>, vector<1x10xf32>
    %9 = vector.broadcast %8 : vector<1x10xf32> to vector<2x10xf32>
    %10 = arith.addf %7, %9 : vector<2x10xf32>
    %11 = arith.mulf %5, %10 : vector<2x10xf32>
    %c0_10 = arith.constant 0 : index
    %c0_11 = arith.constant 0 : index
    %12 = vector.load %arg5[%c0_10, %c0_11] : memref<2x10xf32, #tpu.memory_space<vmem>>, vector<2x10xf32>
    tpu.vector_store %arg5[%c0_10, %c0_11], %11 {strides = array<i32>} : memref<2x10xf32, #tpu.memory_space<vmem>>, vector<2x10xf32>,
    return
  }
}

</mosaic_0001>

<llo_original>
// kernel: forward.3
$region0: #{forward.3}
  #allocation0 [shape = 'u32[]', space=smem, size = 0x4, offset = 0x4, fixed_abs, tag = 'smem constant byte address 0x4 - core index']
  #allocation1 [shape = 'u32[144,128]{1,0:T(1,128)}', space=vmem, size = 0x12000, scoped, tag = 'internal scratch']
  %s0 = inlined_call_operand.vmem [shape: f32[1152,25], index: 0, kind: input, shape index: {}]
  %s1 = inlined_call_operand.vmem [shape: f32[25,32], index: 1, kind: input, shape index: {}]
  %s2 = inlined_call_operand.vmem [shape: f32[1,32], index: 2, kind: input, shape index: {}]
  %s3 = inlined_call_operand.vmem [shape: f32[1152,32], index: 3, kind: output, shape index: {}]
  %s4 = sld [smem:[#allocation0]]
  $region22: #{forward.3} parent=0
    _
  %s6 = ssub.s32 1, %s4
  %s7 = scalar_select 0, %s6, %s4
  // Predicated region
  $region2: #{forward.3} parent=0 // pred_check
    _
  $region3: #{forward.3} parent=0 // pred_check_branch
    %9 = sbr.rel (0) target = $region5
  $region4: #{forward.3} parent=0 // pred_region
    _
  $region5: #{forward.3} parent=0 // pred_fallthru
    _
  // Predicated region
  $region6: #{forward.3} parent=0 // pred_check
    _
  $region7: #{forward.3} parent=0 // pred_check_branch
    %11 = sbr.rel (0) target = $region9
  $region8: #{forward.3} parent=0 // pred_region
    _
  $region9: #{forward.3} parent=0 // pred_fallthru
    _
  // Predicated region
  $region10: #{forward.3} parent=0 // pred_check
    _
  $region11: #{forward.3} parent=0 // pred_check_branch
    %13 = sbr.rel (0) target = $region13
  $region12: #{forward.3} parent=0 // pred_region
    _
  $region13: #{forward.3} parent=0 // pred_fallthru
    _
  %v14 = vld [vmem:[%s0] sm:$0xff]
  %v15 = vld [vmem:[%s0 + $0x8] sm:$0xff]
  %v16 = vld [vmem:[%s0 + $0x10] sm:$0xff]
  %v17 = vld [vmem:[%s0 + $0x18] sm:$0xff]
  %v18 = vld [vmem:[%s0 + $0x20] sm:$0xff]
  %v19 = vld [vmem:[%s0 + $0x28] sm:$0xff]
  %v20 = vld [vmem:[%s0 + $0x30] sm:$0xff]
  %v21 = vld [vmem:[%s0 + $0x38] sm:$0xff]
  %v22 = vld [vmem:[%s0 + $0x40] sm:$0xff]
  %v23 = vld [vmem:[%s0 + $0x48] sm:$0xff]
  %v24 = vld [vmem:[%s0 + $0x50] sm:$0xff]
  %v25 = vld [vmem:[%s0 + $0x58] sm:$0xff]
  %v26 = vld [vmem:[%s0 + $0x60] sm:$0xff]
  %v27 = vld [vmem:[%s0 + $0x68] sm:$0xff]
  %v28 = vld [vmem:[%s0 + $0x70] sm:$0xff]
  %v29 = vld [vmem:[%s0 + $0x78] sm:$0xff]
  %v30 = vld [vmem:[%s0 + $0x80] sm:$0xff]
  %v31 = vld [vmem:[%s0 + $0x88] sm:$0xff]
  %v32 = vld [vmem:[%s0 + $0x90] sm:$0xff]
  %v33 = vld [vmem:[%s0 + $0x98] sm:$0xff]
  %v34 = vld [vmem:[%s0 + $0xa0] sm:$0xff]
  %v35 = vld [vmem:[%s0 + $0xa8] sm:$0xff]
  %v36 = vld [vmem:[%s0 + $0xb0] sm:$0xff]
  %v37 = vld [vmem:[%s0 + $0xb8] sm:$0xff]
  %v38 = vld [vmem:[%s0 + $0xc0] sm:$0xff]
  %v39 = vld [vmem:[%s0 + $0xc8] sm:$0xff]
  %v40 = vld [vmem:[%s0 + $0xd0] sm:$0xff]
  %v41 = vld [vmem:[%s0 + $0xd8] sm:$0xff]
  %v42 = vld [vmem:[%s0 + $0xe0] sm:$0xff]
  %v43 = vld [vmem:[%s0 + $0xe8] sm:$0xff]
  %v44 = vld [vmem:[%s0 + $0xf0] sm:$0xff]
  %v45 = vld [vmem:[%s0 + $0xf8] sm:$0xff]
  %v46 = vld [vmem:[%s0 + $0x100] sm:$0xff]
  %v47 = vld [vmem:[%s0 + $0x108] sm:$0xff]
  %v48 = vld [vmem:[%s0 + $0x110] sm:$0xff]
  %v49 = vld [vmem:[%s0 + $0x118] sm:$0xff]
  %v50 = vld [vmem:[%s0 + $0x120] sm:$0xff]
  %v51 = vld [vmem:[%s0 + $0x128] sm:$0xff]
  %v52 = vld [vmem:[%s0 + $0x130] sm:$0xff]
  %v53 = vld [vmem:[%s0 + $0x138] sm:$0xff]
  %v54 = vld [vmem:[%s0 + $0x140] sm:$0xff]
  %v55 = vld [vmem:[%s0 + $0x148] sm:$0xff]
  %v56 = vld [vmem:[%s0 + $0x150] sm:$0xff]
  %v57 = vld [vmem:[%s0 + $0x158] sm:$0xff]
  %v58 = vld [vmem:[%s0 + $0x160] sm:$0xff]
  %v59 = vld [vmem:[%s0 + $0x168] sm:$0xff]
  %v60 = vld [vmem:[%s0 + $0x170] sm:$0xff]
  %v61 = vld [vmem:[%s0 + $0x178] sm:$0xff]
  %v62 = vld [vmem:[%s0 + $0x180] sm:$0xff]
  %v63 = vld [vmem:[%s0 + $0x188] sm:$0xff]
  %v64 = vld [vmem:[%s0 + $0x190] sm:$0xff]
  %v65 = vld [vmem:[%s0 + $0x198] sm:$0xff]
  %v66 = vld [vmem:[%s0 + $0x1a0] sm:$0xff]
  %v67 = vld [vmem:[%s0 + $0x1a8] sm:$0xff]
  %v68 = vld [vmem:[%s0 + $0x1b0] sm:$0xff]
  %v69 = vld [vmem:[%s0 + $0x1b8] sm:$0xff]
  %v70 = vld [vmem:[%s0 + $0x1c0] sm:$0xff]
  %v71 = vld [vmem:[%s0 + $0x1c8] sm:$0xff]
  %v72 = vld [vmem:[%s0 + $0x1d0] sm:$0xff]
  %v73 = vld [vmem:[%s0 + $0x1d8] sm:$0xff]
  %v74 = vld [vmem:[%s0 + $0x1e0] sm:$0xff]
  %v75 = vld [vmem:[%s0 + $0x1e8] sm:$0xff]
  %v76 = vld [vmem:[%s0 + $0x1f0] sm:$0xff]
  %v77 = vld [vmem:[%s0 + $0x1f8] sm:$0xff]
  %v78 = vld [vmem:[%s0 + $0x200] sm:$0xff]
  %v79 = vld [vmem:[%s0 + $0x208] sm:$0xff]
  %v80 = vld [vmem:[%s0 + $0x210] sm:$0xff]
  %v81 = vld [vmem:[%s0 + $0x218] sm:$0xff]
  %v82 = vld [vmem:[%s0 + $0x220] sm:$0xff]
  %v83 = vld [vmem:[%s0 + $0x228] sm:$0xff]
  %v84 = vld [vmem:[%s0 + $0x230] sm:$0xff]
  %v85 = vld [vmem:[%s0 + $0x238] sm:$0xff]
  %v86 = vld [vmem:[%s0 + $0x240] sm:$0xff]
  %v87 = vld [vmem:[%s0 + $0x248] sm:$0xff]
  %v88 = vld [vmem:[%s0 + $0x250] sm:$0xff]
  %v89 = vld [vmem:[%s0 + $0x258] sm:$0xff]
  %v90 = vld [vmem:[%s0 + $0x260] sm:$0xff]
  %v91 = vld [vmem:[%s0 + $0x268] sm:$0xff]
  %v92 = vld [vmem:[%s0 + $0x270] sm:$0xff]
  %v93 = vld [vmem:[%s0 + $0x278] sm:$0xff]
  %v94 = vld [vmem:[%s0 + $0x280] sm:$0xff]
  %v95 = vld [vmem:[%s0 + $0x288] sm:$0xff]
  %v96 = vld [vmem:[%s0 + $0x290] sm:$0xff]
  %v97 = vld [vmem:[%s0 + $0x298] sm:$0xff]
  %v98 = vld [vmem:[%s0 + $0x2a0] sm:$0xff]
  %v99 = vld [vmem:[%s0 + $0x2a8] sm:$0xff]
  %v100 = vld [vmem:[%s0 + $0x2b0] sm:$0xff]
  %v101 = vld [vmem:[%s0 + $0x2b8] sm:$0xff]
  %v102 = vld [vmem:[%s0 + $0x2c0] sm:$0xff]
  %v103 = vld [vmem:[%s0 + $0x2c8] sm:$0xff]
  %v104 = vld [vmem:[%s0 + $0x2d0] sm:$0xff]
  %v105 = vld [vmem:[%s0 + $0x2d8] sm:$0xff]
  %v106 = vld [vmem:[%s0 + $0x2e0] sm:$0xff]
  %v107 = vld [vmem:[%s0 + $0x2e8] sm:$0xff]
  %v108 = vld [vmem:[%s0 + $0x2f0] sm:$0xff]
  %v109 = vld [vmem:[%s0 + $0x2f8] sm:$0xff]
  %v110 = vld [vmem:[%s0 + $0x300] sm:$0xff]
  %v111 = vld [vmem:[%s0 + $0x308] sm:$0xff]
  %v112 = vld [vmem:[%s0 + $0x310] sm:$0xff]
  %v113 = vld [vmem:[%s0 + $0x318] sm:$0xff]
  %v114 = vld [vmem:[%s0 + $0x320] sm:$0xff]
  %v115 = vld [vmem:[%s0 + $0x328] sm:$0xff]
  %v116 = vld [vmem:[%s0 + $0x330] sm:$0xff]
  %v117 = vld [vmem:[%s0 + $0x338] sm:$0xff]
  %v118 = vld [vmem:[%s0 + $0x340] sm:$0xff]
  %v119 = vld [vmem:[%s0 + $0x348] sm:$0xff]
  %v120 = vld [vmem:[%s0 + $0x350] sm:$0xff]
  %v121 = vld [vmem:[%s0 + $0x358] sm:$0xff]
  %v122 = vld [vmem:[%s0 + $0x360] sm:$0xff]
  %v123 = vld [vmem:[%s0 + $0x368] sm:$0xff]
  %v124 = vld [vmem:[%s0 + $0x370] sm:$0xff]
  %v125 = vld [vmem:[%s0 + $0x378] sm:$0xff]
  %v126 = vld [vmem:[%s0 + $0x380] sm:$0xff]
  %v127 = vld [vmem:[%s0 + $0x388] sm:$0xff]
  %v128 = vld [vmem:[%s0 + $0x390] sm:$0xff]
  %v129 = vld [vmem:[%s0 + $0x398] sm:$0xff]
  %v130 = vld [vmem:[%s0 + $0x3a0] sm:$0xff]
  %v131 = vld [vmem:[%s0 + $0x3a8] sm:$0xff]
  %v132 = vld [vmem:[%s0 + $0x3b0] sm:$0xff]
  %v133 = vld [vmem:[%s0 + $0x3b8] sm:$0xff]
  %v134 = vld [vmem:[%s0 + $0x3c0] sm:$0xff]
  %v135 = vld [vmem:[%s0 + $0x3c8] sm:$0xff]
  %v136 = vld [vmem:[%s0 + $0x3d0] sm:$0xff]
  %v137 = vld [vmem:[%s0 + $0x3d8] sm:$0xff]
  %v138 = vld [vmem:[%s0 + $0x3e0] sm:$0xff]
  %v139 = vld [vmem:[%s0 + $0x3e8] sm:$0xff]
  %v140 = vld [vmem:[%s0 + $0x3f0] sm:$0xff]
  %v141 = vld [vmem:[%s0 + $0x3f8] sm:$0xff]
  %v142 = vld [vmem:[%s0 + $0x400] sm:$0xff]
  %v143 = vld [vmem:[%s0 + $0x408] sm:$0xff]
  %v144 = vld [vmem:[%s0 + $0x410] sm:$0xff]
  %v145 = vld [vmem:[%s0 + $0x418] sm:$0xff]
  %v146 = vld [vmem:[%s0 + $0x420] sm:$0xff]
  %v147 = vld [vmem:[%s0 + $0x428] sm:$0xff]
  %v148 = vld [vmem:[%s0 + $0x430] sm:$0xff]
  %v149 = vld [vmem:[%s0 + $0x438] sm:$0xff]
  %v150 = vld [vmem:[%s0 + $0x440] sm:$0xff]
  %v151 = vld [vmem:[%s0 + $0x448] sm:$0xff]
  %v152 = vld [vmem:[%s0 + $0x450] sm:$0xff]
  %v153 = vld [vmem:[%s0 + $0x458] sm:$0xff]
  %v154 = vld [vmem:[%s0 + $0x460] sm:$0xff]
  %v155 = vld [vmem:[%s0 + $0x468] sm:$0xff]
  %v156 = vld [vmem:[%s0 + $0x470] sm:$0xff]
  %v157 = vld [vmem:[%s0 + $0x478] sm:$0xff]
  %v158 = vld [vmem:[%s1] sm:$0xff]
  %v159 = vld [vmem:[%s1 + $0x8] sm:$0xff]
  %v160 = vld [vmem:[%s1 + $0x10] sm:$0xff]
  %v161 = vld [vmem:[%s1 + $0x18] sm:$0x1]
  %v162 = vld [vmem:[%s2] sm:$0x1]
  %v164 = vlaneseq
  %v165 = vshrl.u32 %v164, 7
  %v166 = vsub.s32 0, %v165
  %v167 = vrot.slane %v162, %v166
  %vm169 = vcmask 203776
  %v171 = vsel %vm169, %v14, 0
  %v174 = vsel %vm169, %v15, 0
  %v177 = vsel %vm169, %v16, 0
  %v180 = vsel %vm169, %v17, 0
  %v183 = vsel %vm169, %v18, 0
  %v186 = vsel %vm169, %v19, 0
  %v189 = vsel %vm169, %v20, 0
  %v192 = vsel %vm169, %v21, 0
  %v195 = vsel %vm169, %v22, 0
  %v198 = vsel %vm169, %v23, 0
  %v201 = vsel %vm169, %v24, 0
  %v204 = vsel %vm169, %v25, 0
  %v207 = vsel %vm169, %v26, 0
  %v210 = vsel %vm169, %v27, 0
  %v213 = vsel %vm169, %v28, 0
  %v216 = vsel %vm169, %v29, 0
  %v219 = vsel %vm169, %v30, 0
  %v222 = vsel %vm169, %v31, 0
  %v225 = vsel %vm169, %v32, 0
  %v228 = vsel %vm169, %v33, 0
  %v231 = vsel %vm169, %v34, 0
  %v234 = vsel %vm169, %v35, 0
  %v237 = vsel %vm169, %v36, 0
  %v240 = vsel %vm169, %v37, 0
  %v243 = vsel %vm169, %v38, 0
  %v246 = vsel %vm169, %v39, 0
  %v249 = vsel %vm169, %v40, 0
  %v252 = vsel %vm169, %v41, 0
  %v255 = vsel %vm169, %v42, 0
  %v258 = vsel %vm169, %v43, 0
  %v261 = vsel %vm169, %v44, 0
  %v264 = vsel %vm169, %v45, 0
  %v267 = vsel %vm169, %v46, 0
  %v270 = vsel %vm169, %v47, 0
  %v273 = vsel %vm169, %v48, 0
  %v276 = vsel %vm169, %v49, 0
  %v279 = vsel %vm169, %v50, 0
  %v282 = vsel %vm169, %v51, 0
  %v285 = vsel %vm169, %v52, 0
  %v288 = vsel %vm169, %v53, 0
  %v291 = vsel %vm169, %v54, 0
  %v294 = vsel %vm169, %v55, 0
  %v297 = vsel %vm169, %v56, 0
  %v300 = vsel %vm169, %v57, 0
  %v303 = vsel %vm169, %v58, 0
  %v306 = vsel %vm169, %v59, 0
  %v309 = vsel %vm169, %v60, 0
  %v312 = vsel %vm169, %v61, 0
  %v315 = vsel %vm169, %v62, 0
  %v318 = vsel %vm169, %v63, 0
  %v321 = vsel %vm169, %v64, 0
  %v324 = vsel %vm169, %v65, 0
  %v327 = vsel %vm169, %v66, 0
  %v330 = vsel %vm169, %v67, 0
  %v333 = vsel %vm169, %v68, 0
  %v336 = vsel %vm169, %v69, 0
  %v339 = vsel %vm169, %v70, 0
  %v342 = vsel %vm169, %v71, 0
  %v345 = vsel %vm169, %v72, 0
  %v348 = vsel %vm169, %v73, 0
  %v351 = vsel %vm169, %v74, 0
  %v354 = vsel %vm169, %v75, 0
  %v357 = vsel %vm169, %v76, 0
  %v360 = vsel %vm169, %v77, 0
  %v363 = vsel %vm169, %v78, 0
  %v366 = vsel %vm169, %v79, 0
  %v369 = vsel %vm169, %v80, 0
  %v372 = vsel %vm169, %v81, 0
  %v375 = vsel %vm169, %v82, 0
  %v378 = vsel %vm169, %v83, 0
  %v381 = vsel %vm169, %v84, 0
  %v384 = vsel %vm169, %v85, 0
  %v387 = vsel %vm169, %v86, 0
  %v390 = vsel %vm169, %v87, 0
  %v393 = vsel %vm169, %v88, 0
  %v396 = vsel %vm169, %v89, 0
  %v399 = vsel %vm169, %v90, 0
  %v402 = vsel %vm169, %v91, 0
  %v405 = vsel %vm169, %v92, 0
  %v408 = vsel %vm169, %v93, 0
  %v411 = vsel %vm169, %v94, 0
  %v414 = vsel %vm169, %v95, 0
  %v417 = vsel %vm169, %v96, 0
  %v420 = vsel %vm169, %v97, 0
  %v423 = vsel %vm169, %v98, 0
  %v426 = vsel %vm169, %v99, 0
  %v429 = vsel %vm169, %v100, 0
  %v432 = vsel %vm169, %v101, 0
  %v435 = vsel %vm169, %v102, 0
  %v438 = vsel %vm169, %v103, 0
  %v441 = vsel %vm169, %v104, 0
  %v444 = vsel %vm169, %v105, 0
  %v447 = vsel %vm169, %v106, 0
  %v450 = vsel %vm169, %v107, 0
  %v453 = vsel %vm169, %v108, 0
  %v456 = vsel %vm169, %v109, 0
  %v459 = vsel %vm169, %v110, 0
  %v462 = vsel %vm169, %v111, 0
  %v465 = vsel %vm169, %v112, 0
  %v468 = vsel %vm169, %v113, 0
  %v471 = vsel %vm169, %v114, 0
  %v474 = vsel %vm169, %v115, 0
  %v477 = vsel %vm169, %v116, 0
  %v480 = vsel %vm169, %v117, 0
  %v483 = vsel %vm169, %v118, 0
  %v486 = vsel %vm169, %v119, 0
  %v489 = vsel %vm169, %v120, 0
  %v492 = vsel %vm169, %v121, 0
  %v495 = vsel %vm169, %v122, 0
  %v498 = vsel %vm169, %v123, 0
  %v501 = vsel %vm169, %v124, 0
  %v504 = vsel %vm169, %v125, 0
  %v507 = vsel %vm169, %v126, 0
  %v510 = vsel %vm169, %v127, 0
  %v513 = vsel %vm169, %v128, 0
  %v516 = vsel %vm169, %v129, 0
  %v519 = vsel %vm169, %v130, 0
  %v522 = vsel %vm169, %v131, 0
  %v525 = vsel %vm169, %v132, 0
  %v528 = vsel %vm169, %v133, 0
  %v531 = vsel %vm169, %v134, 0
  %v534 = vsel %vm169, %v135, 0
  %v537 = vsel %vm169, %v136, 0
  %v540 = vsel %vm169, %v137, 0
  %v543 = vsel %vm169, %v138, 0
  %v546 = vsel %vm169, %v139, 0
  %v549 = vsel %vm169, %v140, 0
  %v552 = vsel %vm169, %v141, 0
  %v555 = vsel %vm169, %v142, 0
  %v558 = vsel %vm169, %v143, 0
  %v561 = vsel %vm169, %v144, 0
  %v564 = vsel %vm169, %v145, 0
  %v567 = vsel %vm169, %v146, 0
  %v570 = vsel %vm169, %v147, 0
  %v573 = vsel %vm169, %v148, 0
  %v576 = vsel %vm169, %v149, 0
  %v579 = vsel %vm169, %v150, 0
  %v582 = vsel %vm169, %v151, 0
  %v585 = vsel %vm169, %v152, 0
  %v588 = vsel %vm169, %v153, 0
  %v591 = vsel %vm169, %v154, 0
  %v594 = vsel %vm169, %v155, 0
  %v597 = vsel %vm169, %v156, 0
  %v600 = vsel %vm169, %v157, 0
  %vm602 = vcmask 1040384
  %v604 = vsel %vm602, %v161, 0
  %606 = vmatprep.subr.mxu0 0.0
  %607 = vmatpush1.msra.mxu0 %v158
  %608 = vmatprep.subr.mxu0 0.0
  %609 = vmatpush1.msra.mxu0 %v159
  %610 = vmatprep.subr.mxu0 0.0
  %611 = vmatpush1.msra.mxu0 %v160
  %612 = vmatprep.subr.mxu0 0.0
  %613 = vmatpush1.msra.mxu0 %v604
  %614 = vmatprep.subr.mxu0 0.0
  %615 = vmatpush1.msra.mxu0 0.0
  %616 = vmatprep.subr.mxu0 0.0
  %617 = vmatpush1.msra.mxu0 0.0
  %618 = vmatprep.subr.mxu0 0.0
  %619 = vmatpush1.msra.mxu0 0.0
  %620 = vmatprep.subr.mxu0 0.0
  %621 = vmatpush1.msra.mxu0 0.0
  %622 = vmatprep.subr.mxu0 0.0
  %623 = vmatpush1.msra.mxu0 0.0
  %624 = vmatprep.subr.mxu0 0.0
  %625 = vmatpush1.msra.mxu0 0.0
  %626 = vmatprep.subr.mxu0 0.0
  %627 = vmatpush1.msra.mxu0 0.0
  %628 = vmatprep.subr.mxu0 0.0
  %629 = vmatpush1.msra.mxu0 0.0
  %630 = vmatprep.subr.mxu0 0.0
  %631 = vmatpush1.msra.mxu0 0.0
  %632 = vmatprep.subr.mxu0 0.0
  %633 = vmatpush1.msra.mxu0 0.0
  %634 = vmatprep.subr.mxu0 0.0
  %635 = vmatpush1.msra.mxu0 0.0
  %636 = vmatprep.subr.mxu0 0.0
  %637 = vmatpush1.msra.mxu0 0.0
  %638 = vmatprep.subr.mxu0 0.0
  %639 = vmatpush1.msra.mxu0 0.0
  %640 = vmatprep.subr.mxu0 0.0
  %641 = vmatpush1.msra.mxu0 0.0
  %642 = vmatprep.subr.mxu0 0.0
  %643 = vmatpush1.msra.mxu0 0.0
  %644 = vmatprep.subr.mxu0 0.0
  %645 = vmatpush1.msra.mxu0 0.0
  %646 = vmatprep.subr.mxu0 0.0
  %647 = vmatpush1.msra.mxu0 0.0
  %648 = vmatprep.subr.mxu0 0.0
  %649 = vmatpush1.msra.mxu0 0.0
  %650 = vmatprep.subr.mxu0 0.0
  %651 = vmatpush1.msra.mxu0 0.0
  %652 = vmatprep.subr.mxu0 0.0
  %653 = vmatpush1.msra.mxu0 0.0
  %654 = vmatprep.subr.mxu0 0.0
  %655 = vmatpush1.msra.mxu0 0.0
  %656 = vmatprep.subr.mxu0 0.0
  %657 = vmatpush1.msra.mxu0 0.0
  %658 = vmatprep.subr.mxu0 0.0
  %659 = vmatpush1.msra.mxu0 0.0
  %660 = vmatprep.subr.mxu0 0.0
  %661 = vmatpush1.msra.mxu0 0.0
  %662 = vmatprep.subr.mxu0 0.0
  %663 = vmatpush1.msra.mxu0 0.0
  %664 = vmatprep.subr.mxu0 0.0
  %665 = vmatpush1.msra.mxu0 0.0
  %666 = vmatprep.subr.mxu0 0.0
  %667 = vmatpush1.msra.mxu0 0.0
  %668 = vmatprep.subr.mxu0 0.0
  %669 = vmatpush1.msra.mxu0 0.0
  %670 = vmatprep.mubr.f32.mxu0 0.0
  %671 = vmatmul.mubr.f32.gmra.mrb[0].mxu0 %v171
  %v672 = vpop.f32.mrb[0].mxu0
  %v673 = vadd.f32 %v167, %v672
  %v674 = vpop.f32.mrb[0].mxu0
  %675 = vmatprep.mubr.f32.mxu0 0.0
  %676 = vmatmul.mubr.f32.gmra.mrb[0].mxu0 %v174
  %v677 = vpop.f32.mrb[0].mxu0
  %v678 = vadd.f32 %v167, %v677
  %v679 = vpop.f32.mrb[0].mxu0
  %680 = vmatprep.mubr.f32.mxu0 0.0
  %681 = vmatmul.mubr.f32.gmra.mrb[0].mxu0 %v177
  %v682 = vpop.f32.mrb[0].mxu0
  %v683 = vadd.f32 %v167, %v682
  %v684 = vpop.f32.mrb[0].mxu0
  %685 = vmatprep.mubr.f32.mxu0 0.0
  %686 = vmatmul.mubr.f32.gmra.mrb[0].mxu0 %v180
  %v687 = vpop.f32.mrb[0].mxu0
  %v688 = vadd.f32 %v167, %v687
  %v689 = vpop.f32.mrb[0].mxu0
  %690 = vmatprep.mubr.f32.mxu0 0.0
  %691 = vmatmul.mubr.f32.gmra.mrb[0].mxu0 %v183
  %v692 = vpop.f32.mrb[0].mxu0
  %v693 = vadd.f32 %v167, %v692
  %v694 = vpop.f32.mrb[0].mxu0
  %695 = vmatprep.mubr.f32.mxu0 0.0
  %696 = vmatmul.mubr.f32.gmra.mrb[0].mxu0 %v186
  %v697 = vpop.f32.mrb[0].mxu0
  %v698 = vadd.f32 %v167, %v697
  %v699 = vpop.f32.mrb[0].mxu0
  %700 = vmatprep.mubr.f32.mxu0 0.0
  %701 = vmatmul.mubr.f32.gmra.mrb[0].mxu0 %v189
  %v702 = vpop.f32.mrb[0].mxu0
  %v703 = vadd.f32 %v167, %v702
  %v704 = vpop.f32.mrb[0].mxu0
  %705 = vmatprep.mubr.f32.mxu0 0.0
  %706 = vmatmul.mubr.f32.gmra.mrb[0].mxu0 %v192
  %v707 = vpop.f32.mrb[0].mxu0
  %v708 = vadd.f32 %v167, %v707
  %v709 = vpop.f32.mrb[0].mxu0
  %710 = vmatprep.mubr.f32.mxu0 0.0
  %711 = vmatmul.mubr.f32.gmra.mrb[0].mxu0 %v195
  %v712 = vpop.f32.mrb[0].mxu0
  %v713 = vadd.f32 %v167, %v712
  %v714 = vpop.f32.mrb[0].mxu0
  %715 = vmatprep.mubr.f32.mxu0 0.0
  %716 = vmatmul.mubr.f32.gmra.mrb[0].mxu0 %v198
  %v717 = vpop.f32.mrb[0].mxu0
  %v718 = vadd.f32 %v167, %v717
  %v719 = vpop.f32.mrb[0].mxu0
  %720 = vmatprep.mubr.f32.mxu0 0.0
  %721 = vmatmul.mubr.f32.gmra.mrb[0].mxu0 %v201
  %v722 = vpop.f32.mrb[0].mxu0
  %v723 = vadd.f32 %v167, %v722
  %v724 = vpop.f32.mrb[0].mxu0
  %725 = vmatprep.mubr.f32.mxu0 0.0
  %726 = vmatmul.mubr.f32.gmra.mrb[0].mxu0 %v204
  %v727 = vpop.f32.mrb[0].mxu0
  %v728 = vadd.f32 %v167, %v727
  %v729 = vpop.f32.mrb[0].mxu0
  %730 = vmatprep.mubr.f32.mxu0 0.0
  %731 = vmatmul.mubr.f32.gmra.mrb[0].mxu0 %v207
  %v732 = vpop.f32.mrb[0].mxu0
  %v733 = vadd.f32 %v167, %v732
  %v734 = vpop.f32.mrb[0].mxu0
  %735 = vmatprep.mubr.f32.mxu0 0.0
  %736 = vmatmul.mubr.f32.gmra.mrb[0].mxu0 %v210
  %v737 = vpop.f32.mrb[0].mxu0
  %v738 = vadd.f32 %v167, %v737
  %v739 = vpop.f32.mrb[0].mxu0
  %740 = vmatprep.mubr.f32.mxu0 0.0
  %741 = vmatmul.mubr.f32.gmra.mrb[0].mxu0 %v213
  %v742 = vpop.f32.mrb[0].mxu0
  %v743 = vadd.f32 %v167, %v742
  %v744 = vpop.f32.mrb[0].mxu0
  %745 = vmatprep.mubr.f32.mxu0 0.0
  %746 = vmatmul.mubr.f32.gmra.mrb[0].mxu0 %v216
  %v747 = vpop.f32.mrb[0].mxu0
  %v748 = vadd.f32 %v167, %v747
  %v749 = vpop.f32.mrb[0].mxu0
  %750 = vmatprep.mubr.f32.mxu0 0.0
  %751 = vmatmul.mubr.f32.gmra.mrb[0].mxu0 %v219
  %v752 = vpop.f32.mrb[0].mxu0
  %v753 = vadd.f32 %v167, %v752
  %v754 = vpop.f32.mrb[0].mxu0
  %755 = vmatprep.mubr.f32.mxu0 0.0
  %756 = vmatmul.mubr.f32.gmra.mrb[0].mxu0 %v222
  %v757 = vpop.f32.mrb[0].mxu0
  %v758 = vadd.f32 %v167, %v757
  %v759 = vpop.f32.mrb[0].mxu0
  %760 = vmatprep.mubr.f32.mxu0 0.0
  %761 = vmatmul.mubr.f32.gmra.mrb[0].mxu0 %v225
  %v762 = vpop.f32.mrb[0].mxu0
  %v763 = vadd.f32 %v167, %v762
  %v764 = vpop.f32.mrb[0].mxu0
  %765 = vmatprep.mubr.f32.mxu0 0.0
  %766 = vmatmul.mubr.f32.gmra.mrb[0].mxu0 %v228
  %v767 = vpop.f32.mrb[0].mxu0
  %v768 = vadd.f32 %v167, %v767
  %v769 = vpop.f32.mrb[0].mxu0
  %770 = vmatprep.mubr.f32.mxu0 0.0
  %771 = vmatmul.mubr.f32.gmra.mrb[0].mxu0 %v231
  %v772 = vpop.f32.mrb[0].mxu0
  %v773 = vadd.f32 %v167, %v772
  %v774 = vpop.f32.mrb[0].mxu0
  %775 = vmatprep.mubr.f32.mxu0 0.0
  %776 = vmatmul.mubr.f32.gmra.mrb[0].mxu0 %v234
  %v777 = vpop.f32.mrb[0].mxu0
  %v778 = vadd.f32 %v167, %v777
  %v779 = vpop.f32.mrb[0].mxu0
  %780 = vmatprep.mubr.f32.mxu0 0.0
  %781 = vmatmul.mubr.f32.gmra.mrb[0].mxu0 %v237
  %v782 = vpop.f32.mrb[0].mxu0
  %v783 = vadd.f32 %v167, %v782
  %v784 = vpop.f32.mrb[0].mxu0
  %785 = vmatprep.mubr.f32.mxu0 0.0
  %786 = vmatmul.mubr.f32.gmra.mrb[0].mxu0 %v240
  %v787 = vpop.f32.mrb[0].mxu0
  %v788 = vadd.f32 %v167, %v787
  %v789 = vpop.f32.mrb[0].mxu0
  %790 = vmatprep.mubr.f32.mxu0 0.0
  %791 = vmatmul.mubr.f32.gmra.mrb[0].mxu0 %v243
  %v792 = vpop.f32.mrb[0].mxu0
  %v793 = vadd.f32 %v167, %v792
  %v794 = vpop.f32.mrb[0].mxu0
  %795 = vmatprep.mubr.f32.mxu0 0.0
  %796 = vmatmul.mubr.f32.gmra.mrb[0].mxu0 %v246
  %v797 = vpop.f32.mrb[0].mxu0
  %v798 = vadd.f32 %v167, %v797
  %v799 = vpop.f32.mrb[0].mxu0
  %800 = vmatprep.mubr.f32.mxu0 0.0
  %801 = vmatmul.mubr.f32.gmra.mrb[0].mxu0 %v249
  %v802 = vpop.f32.mrb[0].mxu0
  %v803 = vadd.f32 %v167, %v802
  %v804 = vpop.f32.mrb[0].mxu0
  %805 = vmatprep.mubr.f32.mxu0 0.0
  %806 = vmatmul.mubr.f32.gmra.mrb[0].mxu0 %v252
  %v807 = vpop.f32.mrb[0].mxu0
  %v808 = vadd.f32 %v167, %v807
  %v809 = vpop.f32.mrb[0].mxu0
  %810 = vmatprep.mubr.f32.mxu0 0.0
  %811 = vmatmul.mubr.f32.gmra.mrb[0].mxu0 %v255
  %v812 = vpop.f32.mrb[0].mxu0
  %v813 = vadd.f32 %v167, %v812
  %v814 = vpop.f32.mrb[0].mxu0
  %815 = vmatprep.mubr.f32.mxu0 0.0
  %816 = vmatmul.mubr.f32.gmra.mrb[0].mxu0 %v258
  %v817 = vpop.f32.mrb[0].mxu0
  %v818 = vadd.f32 %v167, %v817
  %v819 = vpop.f32.mrb[0].mxu0
  %820 = vmatprep.mubr.f32.mxu0 0.0
  %821 = vmatmul.mubr.f32.gmra.mrb[0].mxu0 %v261
  %v822 = vpop.f32.mrb[0].mxu0
  %v823 = vadd.f32 %v167, %v822
  %v824 = vpop.f32.mrb[0].mxu0
  %825 = vmatprep.mubr.f32.mxu0 0.0
  %826 = vmatmul.mubr.f32.gmra.mrb[0].mxu0 %v264
  %v827 = vpop.f32.mrb[0].mxu0
  %v828 = vadd.f32 %v167, %v827
  %v829 = vpop.f32.mrb[0].mxu0
  %830 = vmatprep.mubr.f32.mxu0 0.0
  %831 = vmatmul.mubr.f32.gmra.mrb[0].mxu0 %v267
  %v832 = vpop.f32.mrb[0].mxu0
  %v833 = vadd.f32 %v167, %v832
  %v834 = vpop.f32.mrb[0].mxu0
  %835 = vmatprep.mubr.f32.mxu0 0.0
  %836 = vmatmul.mubr.f32.gmra.mrb[0].mxu0 %v270
  %v837 = vpop.f32.mrb[0].mxu0
  %v838 = vadd.f32 %v167, %v837
  %v839 = vpop.f32.mrb[0].mxu0
  %840 = vmatprep.mubr.f32.mxu0 0.0
  %841 = vmatmul.mubr.f32.gmra.mrb[0].mxu0 %v273
  %v842 = vpop.f32.mrb[0].mxu0
  %v843 = vadd.f32 %v167, %v842
  %v844 = vpop.f32.mrb[0].mxu0
  %845 = vmatprep.mubr.f32.mxu0 0.0
  %846 = vmatmul.mubr.f32.gmra.mrb[0].mxu0 %v276
  %v847 = vpop.f32.mrb[0].mxu0
  %v848 = vadd.f32 %v167, %v847
  %v849 = vpop.f32.mrb[0].mxu0
  %850 = vmatprep.mubr.f32.mxu0 0.0
  %851 = vmatmul.mubr.f32.gmra.mrb[0].mxu0 %v279
  %v852 = vpop.f32.mrb[0].mxu0
  %v853 = vadd.f32 %v167, %v852
  %v854 = vpop.f32.mrb[0].mxu0
  %855 = vmatprep.mubr.f32.mxu0 0.0
  %856 = vmatmul.mubr.f32.gmra.mrb[0].mxu0 %v282
  %v857 = vpop.f32.mrb[0].mxu0
  %v858 = vadd.f32 %v167, %v857
  %v859 = vpop.f32.mrb[0].mxu0
  %860 = vmatprep.mubr.f32.mxu0 0.0
  %861 = vmatmul.mubr.f32.gmra.mrb[0].mxu0 %v285
  %v862 = vpop.f32.mrb[0].mxu0
  %v863 = vadd.f32 %v167, %v862
  %v864 = vpop.f32.mrb[0].mxu0
  %865 = vmatprep.mubr.f32.mxu0 0.0
  %866 = vmatmul.mubr.f32.gmra.mrb[0].mxu0 %v288
  %v867 = vpop.f32.mrb[0].mxu0
  %v868 = vadd.f32 %v167, %v867
  %v869 = vpop.f32.mrb[0].mxu0
  %870 = vmatprep.mubr.f32.mxu0 0.0
  %871 = vmatmul.mubr.f32.gmra.mrb[0].mxu0 %v291
  %v872 = vpop.f32.mrb[0].mxu0
  %v873 = vadd.f32 %v167, %v872
  %v874 = vpop.f32.mrb[0].mxu0
  %875 = vmatprep.mubr.f32.mxu0 0.0
  %876 = vmatmul.mubr.f32.gmra.mrb[0].mxu0 %v294
  %v877 = vpop.f32.mrb[0].mxu0
  %v878 = vadd.f32 %v167, %v877
  %v879 = vpop.f32.mrb[0].mxu0
  %880 = vmatprep.mubr.f32.mxu0 0.0
  %881 = vmatmul.mubr.f32.gmra.mrb[0].mxu0 %v297
  %v882 = vpop.f32.mrb[0].mxu0
  %v883 = vadd.f32 %v167, %v882
  %v884 = vpop.f32.mrb[0].mxu0
  %885 = vmatprep.mubr.f32.mxu0 0.0
  %886 = vmatmul.mubr.f32.gmra.mrb[0].mxu0 %v300
  %v887 = vpop.f32.mrb[0].mxu0
  %v888 = vadd.f32 %v167, %v887
  %v889 = vpop.f32.mrb[0].mxu0
  %890 = vmatprep.mubr.f32.mxu0 0.0
  %891 = vmatmul.mubr.f32.gmra.mrb[0].mxu0 %v303
  %v892 = vpop.f32.mrb[0].mxu0
  %v893 = vadd.f32 %v167, %v892
  %v894 = vpop.f32.mrb[0].mxu0
  %895 = vmatprep.mubr.f32.mxu0 0.0
  %896 = vmatmul.mubr.f32.gmra.mrb[0].mxu0 %v306
  %v897 = vpop.f32.mrb[0].mxu0
  %v898 = vadd.f32 %v167, %v897
  %v899 = vpop.f32.mrb[0].mxu0
  %900 = vmatprep.mubr.f32.mxu0 0.0
  %901 = vmatmul.mubr.f32.gmra.mrb[0].mxu0 %v309
  %v902 = vpop.f32.mrb[0].mxu0
  %v903 = vadd.f32 %v167, %v902
  %v904 = vpop.f32.mrb[0].mxu0
  %905 = vmatprep.mubr.f32.mxu0 0.0
  %906 = vmatmul.mubr.f32.gmra.mrb[0].mxu0 %v312
  %v907 = vpop.f32.mrb[0].mxu0
  %v908 = vadd.f32 %v167, %v907
  %v909 = vpop.f32.mrb[0].mxu0
  %910 = vmatprep.mubr.f32.mxu0 0.0
  %911 = vmatmul.mubr.f32.gmra.mrb[0].mxu0 %v315
  %v912 = vpop.f32.mrb[0].mxu0
  %v913 = vadd.f32 %v167, %v912
  %v914 = vpop.f32.mrb[0].mxu0
  %915 = vmatprep.mubr.f32.mxu0 0.0
  %916 = vmatmul.mubr.f32.gmra.mrb[0].mxu0 %v318
  %v917 = vpop.f32.mrb[0].mxu0
  %v918 = vadd.f32 %v167, %v917
  %v919 = vpop.f32.mrb[0].mxu0
  %920 = vmatprep.mubr.f32.mxu0 0.0
  %921 = vmatmul.mubr.f32.gmra.mrb[0].mxu0 %v321
  %v922 = vpop.f32.mrb[0].mxu0
  %v923 = vadd.f32 %v167, %v922
  %v924 = vpop.f32.mrb[0].mxu0
  %925 = vmatprep.mubr.f32.mxu0 0.0
  %926 = vmatmul.mubr.f32.gmra.mrb[0].mxu0 %v324
  %v927 = vpop.f32.mrb[0].mxu0
  %v928 = vadd.f32 %v167, %v927
  %v929 = vpop.f32.mrb[0].mxu0
  %930 = vmatprep.mubr.f32.mxu0 0.0
  %931 = vmatmul.mubr.f32.gmra.mrb[0].mxu0 %v327
  %v932 = vpop.f32.mrb[0].mxu0
  %v933 = vadd.f32 %v167, %v932
  %v934 = vpop.f32.mrb[0].mxu0
  %935 = vmatprep.mubr.f32.mxu0 0.0
  %936 = vmatmul.mubr.f32.gmra.mrb[0].mxu0 %v330
  %v937 = vpop.f32.mrb[0].mxu0
  %v938 = vadd.f32 %v167, %v937
  %v939 = vpop.f32.mrb[0].mxu0
  %940 = vmatprep.mubr.f32.mxu0 0.0
  %941 = vmatmul.mubr.f32.gmra.mrb[0].mxu0 %v333
  %v942 = vpop.f32.mrb[0].mxu0
  %v943 = vadd.f32 %v167, %v942
  %v944 = vpop.f32.mrb[0].mxu0
  %945 = vmatprep.mubr.f32.mxu0 0.0
  %946 = vmatmul.mubr.f32.gmra.mrb[0].mxu0 %v336
  %v947 = vpop.f32.mrb[0].mxu0
  %v948 = vadd.f32 %v167, %v947
  %v949 = vpop.f32.mrb[0].mxu0
  %950 = vmatprep.mubr.f32.mxu0 0.0
  %951 = vmatmul.mubr.f32.gmra.mrb[0].mxu0 %v339
  %v952 = vpop.f32.mrb[0].mxu0
  %v953 = vadd.f32 %v167, %v952
  %v954 = vpop.f32.mrb[0].mxu0
  %955 = vmatprep.mubr.f32.mxu0 0.0
  %956 = vmatmul.mubr.f32.gmra.mrb[0].mxu0 %v342
  %v957 = vpop.f32.mrb[0].mxu0
  %v958 = vadd.f32 %v167, %v957
  %v959 = vpop.f32.mrb[0].mxu0
  %960 = vmatprep.mubr.f32.mxu0 0.0
  %961 = vmatmul.mubr.f32.gmra.mrb[0].mxu0 %v345
  %v962 = vpop.f32.mrb[0].mxu0
  %v963 = vadd.f32 %v167, %v962
  %v964 = vpop.f32.mrb[0].mxu0
  %965 = vmatprep.mubr.f32.mxu0 0.0
  %966 = vmatmul.mubr.f32.gmra.mrb[0].mxu0 %v348
  %v967 = vpop.f32.mrb[0].mxu0
  %v968 = vadd.f32 %v167, %v967
  %v969 = vpop.f32.mrb[0].mxu0
  %970 = vmatprep.mubr.f32.mxu0 0.0
  %971 = vmatmul.mubr.f32.gmra.mrb[0].mxu0 %v351
  %v972 = vpop.f32.mrb[0].mxu0
  %v973 = vadd.f32 %v167, %v972
  %v974 = vpop.f32.mrb[0].mxu0
  %975 = vmatprep.mubr.f32.mxu0 0.0
  %976 = vmatmul.mubr.f32.gmra.mrb[0].mxu0 %v354
  %v977 = vpop.f32.mrb[0].mxu0
  %v978 = vadd.f32 %v167, %v977
  %v979 = vpop.f32.mrb[0].mxu0
  %980 = vmatprep.mubr.f32.mxu0 0.0
  %981 = vmatmul.mubr.f32.gmra.mrb[0].mxu0 %v357
  %v982 = vpop.f32.mrb[0].mxu0
  %v983 = vadd.f32 %v167, %v982
  %v984 = vpop.f32.mrb[0].mxu0
  %985 = vmatprep.mubr.f32.mxu0 0.0
  %986 = vmatmul.mubr.f32.gmra.mrb[0].mxu0 %v360
  %v987 = vpop.f32.mrb[0].mxu0
  %v988 = vadd.f32 %v167, %v987
  %v989 = vpop.f32.mrb[0].mxu0
  %990 = vmatprep.mubr.f32.mxu0 0.0
  %991 = vmatmul.mubr.f32.gmra.mrb[0].mxu0 %v363
  %v992 = vpop.f32.mrb[0].mxu0
  %v993 = vadd.f32 %v167, %v992
  %v994 = vpop.f32.mrb[0].mxu0
  %995 = vmatprep.mubr.f32.mxu0 0.0
  %996 = vmatmul.mubr.f32.gmra.mrb[0].mxu0 %v366
  %v997 = vpop.f32.mrb[0].mxu0
  %v998 = vadd.f32 %v167, %v997
  %v999 = vpop.f32.mrb[0].mxu0
  %1000 = vmatprep.mubr.f32.mxu0 0.0
  %1001 = vmatmul.mubr.f32.gmra.mrb[0].mxu0 %v369
  %v1002 = vpop.f32.mrb[0].mxu0
  %v1003 = vadd.f32 %v167, %v1002
  %v1004 = vpop.f32.mrb[0].mxu0
  %1005 = vmatprep.mubr.f32.mxu0 0.0
  %1006 = vmatmul.mubr.f32.gmra.mrb[0].mxu0 %v372
  %v1007 = vpop.f32.mrb[0].mxu0
  %v1008 = vadd.f32 %v167, %v1007
  %v1009 = vpop.f32.mrb[0].mxu0
  %1010 = vmatprep.mubr.f32.mxu0 0.0
  %1011 = vmatmul.mubr.f32.gmra.mrb[0].mxu0 %v375
  %v1012 = vpop.f32.mrb[0].mxu0
  %v1013 = vadd.f32 %v167, %v1012
  %v1014 = vpop.f32.mrb[0].mxu0
  %1015 = vmatprep.mubr.f32.mxu0 0.0
  %1016 = vmatmul.mubr.f32.gmra.mrb[0].mxu0 %v378
  %v1017 = vpop.f32.mrb[0].mxu0
  %v1018 = vadd.f32 %v167, %v1017
  %v1019 = vpop.f32.mrb[0].mxu0
  %1020 = vmatprep.mubr.f32.mxu0 0.0
  %1021 = vmatmul.mubr.f32.gmra.mrb[0].mxu0 %v381
  %v1022 = vpop.f32.mrb[0].mxu0
  %v1023 = vadd.f32 %v167, %v1022
  %v1024 = vpop.f32.mrb[0].mxu0
  %1025 = vmatprep.mubr.f32.mxu0 0.0
  %1026 = vmatmul.mubr.f32.gmra.mrb[0].mxu0 %v384
  %v1027 = vpop.f32.mrb[0].mxu0
  %v1028 = vadd.f32 %v167, %v1027
  %v1029 = vpop.f32.mrb[0].mxu0
  %1030 = vmatprep.mubr.f32.mxu0 0.0
  %1031 = vmatmul.mubr.f32.gmra.mrb[0].mxu0 %v387
  %v1032 = vpop.f32.mrb[0].mxu0
  %v1033 = vadd.f32 %v167, %v1032
  %v1034 = vpop.f32.mrb[0].mxu0
  %1035 = vmatprep.mubr.f32.mxu0 0.0
  %1036 = vmatmul.mubr.f32.gmra.mrb[0].mxu0 %v390
  %v1037 = vpop.f32.mrb[0].mxu0
  %v1038 = vadd.f32 %v167, %v1037
  %v1039 = vpop.f32.mrb[0].mxu0
  %1040 = vmatprep.mubr.f32.mxu0 0.0
  %1041 = vmatmul.mubr.f32.gmra.mrb[0].mxu0 %v393
  %v1042 = vpop.f32.mrb[0].mxu0
  %v1043 = vadd.f32 %v167, %v1042
  %v1044 = vpop.f32.mrb[0].mxu0
  %1045 = vmatprep.mubr.f32.mxu0 0.0
  %1046 = vmatmul.mubr.f32.gmra.mrb[0].mxu0 %v396
  %v1047 = vpop.f32.mrb[0].mxu0
  %v1048 = vadd.f32 %v167, %v1047
  %v1049 = vpop.f32.mrb[0].mxu0
  %1050 = vmatprep.mubr.f32.mxu0 0.0
  %1051 = vmatmul.mubr.f32.gmra.mrb[0].mxu0 %v399
  %v1052 = vpop.f32.mrb[0].mxu0
  %v1053 = vadd.f32 %v167, %v1052
  %v1054 = vpop.f32.mrb[0].mxu0
  %1055 = vmatprep.mubr.f32.mxu0 0.0
  %1056 = vmatmul.mubr.f32.gmra.mrb[0].mxu0 %v402
  %v1057 = vpop.f32.mrb[0].mxu0
  %v1058 = vadd.f32 %v167, %v1057
  %v1059 = vpop.f32.mrb[0].mxu0
  %1060 = vmatprep.mubr.f32.mxu0 0.0
  %1061 = vmatmul.mubr.f32.gmra.mrb[0].mxu0 %v405
  %v1062 = vpop.f32.mrb[0].mxu0
  %v1063 = vadd.f32 %v167, %v1062
  %v1064 = vpop.f32.mrb[0].mxu0
  %1065 = vmatprep.mubr.f32.mxu0 0.0
  %1066 = vmatmul.mubr.f32.gmra.mrb[0].mxu0 %v408
  %v1067 = vpop.f32.mrb[0].mxu0
  %v1068 = vadd.f32 %v167, %v1067
  %v1069 = vpop.f32.mrb[0].mxu0
  %1070 = vmatprep.mubr.f32.mxu0 0.0
  %1071 = vmatmul.mubr.f32.gmra.mrb[0].mxu0 %v411
  %v1072 = vpop.f32.mrb[0].mxu0
  %v1073 = vadd.f32 %v167, %v1072
  %v1074 = vpop.f32.mrb[0].mxu0
  %1075 = vmatprep.mubr.f32.mxu0 0.0
  %1076 = vmatmul.mubr.f32.gmra.mrb[0].mxu0 %v414
  %v1077 = vpop.f32.mrb[0].mxu0
  %v1078 = vadd.f32 %v167, %v1077
  %v1079 = vpop.f32.mrb[0].mxu0
  %1080 = vmatprep.mubr.f32.mxu0 0.0
  %1081 = vmatmul.mubr.f32.gmra.mrb[0].mxu0 %v417
  %v1082 = vpop.f32.mrb[0].mxu0
  %v1083 = vadd.f32 %v167, %v1082
  %v1084 = vpop.f32.mrb[0].mxu0
  %1085 = vmatprep.mubr.f32.mxu0 0.0
  %1086 = vmatmul.mubr.f32.gmra.mrb[0].mxu0 %v420
  %v1087 = vpop.f32.mrb[0].mxu0
  %v1088 = vadd.f32 %v167, %v1087
  %v1089 = vpop.f32.mrb[0].mxu0
  %1090 = vmatprep.mubr.f32.mxu0 0.0
  %1091 = vmatmul.mubr.f32.gmra.mrb[0].mxu0 %v423
  %v1092 = vpop.f32.mrb[0].mxu0
  %v1093 = vadd.f32 %v167, %v1092
  %v1094 = vpop.f32.mrb[0].mxu0
  %1095 = vmatprep.mubr.f32.mxu0 0.0
  %1096 = vmatmul.mubr.f32.gmra.mrb[0].mxu0 %v426
  %v1097 = vpop.f32.mrb[0].mxu0
  %v1098 = vadd.f32 %v167, %v1097
  %v1099 = vpop.f32.mrb[0].mxu0
  %1100 = vmatprep.mubr.f32.mxu0 0.0
  %1101 = vmatmul.mubr.f32.gmra.mrb[0].mxu0 %v429
  %v1102 = vpop.f32.mrb[0].mxu0
  %v1103 = vadd.f32 %v167, %v1102
  %v1104 = vpop.f32.mrb[0].mxu0
  %1105 = vmatprep.mubr.f32.mxu0 0.0
  %1106 = vmatmul.mubr.f32.gmra.mrb[0].mxu0 %v432
  %v1107 = vpop.f32.mrb[0].mxu0
  %v1108 = vadd.f32 %v167, %v1107
  %v1109 = vpop.f32.mrb[0].mxu0
  %1110 = vmatprep.mubr.f32.mxu0 0.0
  %1111 = vmatmul.mubr.f32.gmra.mrb[0].mxu0 %v435
  %v1112 = vpop.f32.mrb[0].mxu0
  %v1113 = vadd.f32 %v167, %v1112
  %v1114 = vpop.f32.mrb[0].mxu0
  %1115 = vmatprep.mubr.f32.mxu0 0.0
  %1116 = vmatmul.mubr.f32.gmra.mrb[0].mxu0 %v438
  %v1117 = vpop.f32.mrb[0].mxu0
  %v1118 = vadd.f32 %v167, %v1117
  %v1119 = vpop.f32.mrb[0].mxu0
  %1120 = vmatprep.mubr.f32.mxu0 0.0
  %1121 = vmatmul.mubr.f32.gmra.mrb[0].mxu0 %v441
  %v1122 = vpop.f32.mrb[0].mxu0
  %v1123 = vadd.f32 %v167, %v1122
  %v1124 = vpop.f32.mrb[0].mxu0
  %1125 = vmatprep.mubr.f32.mxu0 0.0
  %1126 = vmatmul.mubr.f32.gmra.mrb[0].mxu0 %v444
  %v1127 = vpop.f32.mrb[0].mxu0
  %v1128 = vadd.f32 %v167, %v1127
  %v1129 = vpop.f32.mrb[0].mxu0
  %1130 = vmatprep.mubr.f32.mxu0 0.0
  %1131 = vmatmul.mubr.f32.gmra.mrb[0].mxu0 %v447
  %v1132 = vpop.f32.mrb[0].mxu0
  %v1133 = vadd.f32 %v167, %v1132
  %v1134 = vpop.f32.mrb[0].mxu0
  %1135 = vmatprep.mubr.f32.mxu0 0.0
  %1136 = vmatmul.mubr.f32.gmra.mrb[0].mxu0 %v450
  %v1137 = vpop.f32.mrb[0].mxu0
  %v1138 = vadd.f32 %v167, %v1137
  %v1139 = vpop.f32.mrb[0].mxu0
  %1140 = vmatprep.mubr.f32.mxu0 0.0
  %1141 = vmatmul.mubr.f32.gmra.mrb[0].mxu0 %v453
  %v1142 = vpop.f32.mrb[0].mxu0
  %v1143 = vadd.f32 %v167, %v1142
  %v1144 = vpop.f32.mrb[0].mxu0
  %1145 = vmatprep.mubr.f32.mxu0 0.0
  %1146 = vmatmul.mubr.f32.gmra.mrb[0].mxu0 %v456
  %v1147 = vpop.f32.mrb[0].mxu0
  %v1148 = vadd.f32 %v167, %v1147
  %v1149 = vpop.f32.mrb[0].mxu0
  %1150 = vmatprep.mubr.f32.mxu0 0.0
  %1151 = vmatmul.mubr.f32.gmra.mrb[0].mxu0 %v459
  %v1152 = vpop.f32.mrb[0].mxu0
  %v1153 = vadd.f32 %v167, %v1152
  %v1154 = vpop.f32.mrb[0].mxu0
  %1155 = vmatprep.mubr.f32.mxu0 0.0
  %1156 = vmatmul.mubr.f32.gmra.mrb[0].mxu0 %v462
  %v1157 = vpop.f32.mrb[0].mxu0
  %v1158 = vadd.f32 %v167, %v1157
  %v1159 = vpop.f32.mrb[0].mxu0
  %1160 = vmatprep.mubr.f32.mxu0 0.0
  %1161 = vmatmul.mubr.f32.gmra.mrb[0].mxu0 %v465
  %v1162 = vpop.f32.mrb[0].mxu0
  %v1163 = vadd.f32 %v167, %v1162
  %v1164 = vpop.f32.mrb[0].mxu0
  %1165 = vmatprep.mubr.f32.mxu0 0.0
  %1166 = vmatmul.mubr.f32.gmra.mrb[0].mxu0 %v468
  %v1167 = vpop.f32.mrb[0].mxu0
  %v1168 = vadd.f32 %v167, %v1167
  %v1169 = vpop.f32.mrb[0].mxu0
  %1170 = vmatprep.mubr.f32.mxu0 0.0
  %1171 = vmatmul.mubr.f32.gmra.mrb[0].mxu0 %v471
  %v1172 = vpop.f32.mrb[0].mxu0
  %v1173 = vadd.f32 %v167, %v1172
  %v1174 = vpop.f32.mrb[0].mxu0
  %1175 = vmatprep.mubr.f32.mxu0 0.0
  %1176 = vmatmul.mubr.f32.gmra.mrb[0].mxu0 %v474
  %v1177 = vpop.f32.mrb[0].mxu0
  %v1178 = vadd.f32 %v167, %v1177
  %v1179 = vpop.f32.mrb[0].mxu0
  %1180 = vmatprep.mubr.f32.mxu0 0.0
  %1181 = vmatmul.mubr.f32.gmra.mrb[0].mxu0 %v477
  %v1182 = vpop.f32.mrb[0].mxu0
  %v1183 = vadd.f32 %v167, %v1182
  %v1184 = vpop.f32.mrb[0].mxu0
  %1185 = vmatprep.mubr.f32.mxu0 0.0
  %1186 = vmatmul.mubr.f32.gmra.mrb[0].mxu0 %v480
  %v1187 = vpop.f32.mrb[0].mxu0
  %v1188 = vadd.f32 %v167, %v1187
  %v1189 = vpop.f32.mrb[0].mxu0
  %1190 = vmatprep.mubr.f32.mxu0 0.0
  %1191 = vmatmul.mubr.f32.gmra.mrb[0].mxu0 %v483
  %v1192 = vpop.f32.mrb[0].mxu0
  %v1193 = vadd.f32 %v167, %v1192
  %v1194 = vpop.f32.mrb[0].mxu0
  %1195 = vmatprep.mubr.f32.mxu0 0.0
  %1196 = vmatmul.mubr.f32.gmra.mrb[0].mxu0 %v486
  %v1197 = vpop.f32.mrb[0].mxu0
  %v1198 = vadd.f32 %v167, %v1197
  %v1199 = vpop.f32.mrb[0].mxu0
  %1200 = vmatprep.mubr.f32.mxu0 0.0
  %1201 = vmatmul.mubr.f32.gmra.mrb[0].mxu0 %v489
  %v1202 = vpop.f32.mrb[0].mxu0
  %v1203 = vadd.f32 %v167, %v1202
  %v1204 = vpop.f32.mrb[0].mxu0
  %1205 = vmatprep.mubr.f32.mxu0 0.0
  %1206 = vmatmul.mubr.f32.gmra.mrb[0].mxu0 %v492
  %v1207 = vpop.f32.mrb[0].mxu0
  %v1208 = vadd.f32 %v167, %v1207
  %v1209 = vpop.f32.mrb[0].mxu0
  %1210 = vmatprep.mubr.f32.mxu0 0.0
  %1211 = vmatmul.mubr.f32.gmra.mrb[0].mxu0 %v495
  %v1212 = vpop.f32.mrb[0].mxu0
  %v1213 = vadd.f32 %v167, %v1212
  %v1214 = vpop.f32.mrb[0].mxu0
  %1215 = vmatprep.mubr.f32.mxu0 0.0
  %1216 = vmatmul.mubr.f32.gmra.mrb[0].mxu0 %v498
  %v1217 = vpop.f32.mrb[0].mxu0
  %v1218 = vadd.f32 %v167, %v1217
  %v1219 = vpop.f32.mrb[0].mxu0
  %1220 = vmatprep.mubr.f32.mxu0 0.0
  %1221 = vmatmul.mubr.f32.gmra.mrb[0].mxu0 %v501
  %v1222 = vpop.f32.mrb[0].mxu0
  %v1223 = vadd.f32 %v167, %v1222
  %v1224 = vpop.f32.mrb[0].mxu0
  %1225 = vmatprep.mubr.f32.mxu0 0.0
  %1226 = vmatmul.mubr.f32.gmra.mrb[0].mxu0 %v504
  %v1227 = vpop.f32.mrb[0].mxu0
  %v1228 = vadd.f32 %v167, %v1227
  %v1229 = vpop.f32.mrb[0].mxu0
  %1230 = vmatprep.mubr.f32.mxu0 0.0
  %1231 = vmatmul.mubr.f32.gmra.mrb[0].mxu0 %v507
  %v1232 = vpop.f32.mrb[0].mxu0
  %v1233 = vadd.f32 %v167, %v1232
  %v1234 = vpop.f32.mrb[0].mxu0
  %1235 = vmatprep.mubr.f32.mxu0 0.0
  %1236 = vmatmul.mubr.f32.gmra.mrb[0].mxu0 %v510
  %v1237 = vpop.f32.mrb[0].mxu0
  %v1238 = vadd.f32 %v167, %v1237
  %v1239 = vpop.f32.mrb[0].mxu0
  %1240 = vmatprep.mubr.f32.mxu0 0.0
  %1241 = vmatmul.mubr.f32.gmra.mrb[0].mxu0 %v513
  %v1242 = vpop.f32.mrb[0].mxu0
  %v1243 = vadd.f32 %v167, %v1242
  %v1244 = vpop.f32.mrb[0].mxu0
  %1245 = vmatprep.mubr.f32.mxu0 0.0
  %1246 = vmatmul.mubr.f32.gmra.mrb[0].mxu0 %v516
  %v1247 = vpop.f32.mrb[0].mxu0
  %v1248 = vadd.f32 %v167, %v1247
  %v1249 = vpop.f32.mrb[0].mxu0
  %1250 = vmatprep.mubr.f32.mxu0 0.0
  %1251 = vmatmul.mubr.f32.gmra.mrb[0].mxu0 %v519
  %v1252 = vpop.f32.mrb[0].mxu0
  %v1253 = vadd.f32 %v167, %v1252
  %v1254 = vpop.f32.mrb[0].mxu0
  %1255 = vmatprep.mubr.f32.mxu0 0.0
  %1256 = vmatmul.mubr.f32.gmra.mrb[0].mxu0 %v522
  %v1257 = vpop.f32.mrb[0].mxu0
  %v1258 = vadd.f32 %v167, %v1257
  %v1259 = vpop.f32.mrb[0].mxu0
  %1260 = vmatprep.mubr.f32.mxu0 0.0
  %1261 = vmatmul.mubr.f32.gmra.mrb[0].mxu0 %v525
  %v1262 = vpop.f32.mrb[0].mxu0
  %v1263 = vadd.f32 %v167, %v1262
  %v1264 = vpop.f32.mrb[0].mxu0
  %1265 = vmatprep.mubr.f32.mxu0 0.0
  %1266 = vmatmul.mubr.f32.gmra.mrb[0].mxu0 %v528
  %v1267 = vpop.f32.mrb[0].mxu0
  %v1268 = vadd.f32 %v167, %v1267
  %v1269 = vpop.f32.mrb[0].mxu0
  %1270 = vmatprep.mubr.f32.mxu0 0.0
  %1271 = vmatmul.mubr.f32.gmra.mrb[0].mxu0 %v531
  %v1272 = vpop.f32.mrb[0].mxu0
  %v1273 = vadd.f32 %v167, %v1272
  %v1274 = vpop.f32.mrb[0].mxu0
  %1275 = vmatprep.mubr.f32.mxu0 0.0
  %1276 = vmatmul.mubr.f32.gmra.mrb[0].mxu0 %v534
  %v1277 = vpop.f32.mrb[0].mxu0
  %v1278 = vadd.f32 %v167, %v1277
  %v1279 = vpop.f32.mrb[0].mxu0
  %1280 = vmatprep.mubr.f32.mxu0 0.0
  %1281 = vmatmul.mubr.f32.gmra.mrb[0].mxu0 %v537
  %v1282 = vpop.f32.mrb[0].mxu0
  %v1283 = vadd.f32 %v167, %v1282
  %v1284 = vpop.f32.mrb[0].mxu0
  %1285 = vmatprep.mubr.f32.mxu0 0.0
  %1286 = vmatmul.mubr.f32.gmra.mrb[0].mxu0 %v540
  %v1287 = vpop.f32.mrb[0].mxu0
  %v1288 = vadd.f32 %v167, %v1287
  %v1289 = vpop.f32.mrb[0].mxu0
  %1290 = vmatprep.mubr.f32.mxu0 0.0
  %1291 = vmatmul.mubr.f32.gmra.mrb[0].mxu0 %v543
  %v1292 = vpop.f32.mrb[0].mxu0
  %v1293 = vadd.f32 %v167, %v1292
  %v1294 = vpop.f32.mrb[0].mxu0
  %1295 = vmatprep.mubr.f32.mxu0 0.0
  %1296 = vmatmul.mubr.f32.gmra.mrb[0].mxu0 %v546
  %v1297 = vpop.f32.mrb[0].mxu0
  %v1298 = vadd.f32 %v167, %v1297
  %v1299 = vpop.f32.mrb[0].mxu0
  %1300 = vmatprep.mubr.f32.mxu0 0.0
  %1301 = vmatmul.mubr.f32.gmra.mrb[0].mxu0 %v549
  %v1302 = vpop.f32.mrb[0].mxu0
  %v1303 = vadd.f32 %v167, %v1302
  %v1304 = vpop.f32.mrb[0].mxu0
  %1305 = vmatprep.mubr.f32.mxu0 0.0
  %1306 = vmatmul.mubr.f32.gmra.mrb[0].mxu0 %v552
  %v1307 = vpop.f32.mrb[0].mxu0
  %v1308 = vadd.f32 %v167, %v1307
  %v1309 = vpop.f32.mrb[0].mxu0
  %1310 = vmatprep.mubr.f32.mxu0 0.0
  %1311 = vmatmul.mubr.f32.gmra.mrb[0].mxu0 %v555
  %v1312 = vpop.f32.mrb[0].mxu0
  %v1313 = vadd.f32 %v167, %v1312
  %v1314 = vpop.f32.mrb[0].mxu0
  %1315 = vmatprep.mubr.f32.mxu0 0.0
  %1316 = vmatmul.mubr.f32.gmra.mrb[0].mxu0 %v558
  %v1317 = vpop.f32.mrb[0].mxu0
  %v1318 = vadd.f32 %v167, %v1317
  %v1319 = vpop.f32.mrb[0].mxu0
  %1320 = vmatprep.mubr.f32.mxu0 0.0
  %1321 = vmatmul.mubr.f32.gmra.mrb[0].mxu0 %v561
  %v1322 = vpop.f32.mrb[0].mxu0
  %v1323 = vadd.f32 %v167, %v1322
  %v1324 = vpop.f32.mrb[0].mxu0
  %1325 = vmatprep.mubr.f32.mxu0 0.0
  %1326 = vmatmul.mubr.f32.gmra.mrb[0].mxu0 %v564
  %v1327 = vpop.f32.mrb[0].mxu0
  %v1328 = vadd.f32 %v167, %v1327
  %v1329 = vpop.f32.mrb[0].mxu0
  %1330 = vmatprep.mubr.f32.mxu0 0.0
  %1331 = vmatmul.mubr.f32.gmra.mrb[0].mxu0 %v567
  %v1332 = vpop.f32.mrb[0].mxu0
  %v1333 = vadd.f32 %v167, %v1332
  %v1334 = vpop.f32.mrb[0].mxu0
  %1335 = vmatprep.mubr.f32.mxu0 0.0
  %1336 = vmatmul.mubr.f32.gmra.mrb[0].mxu0 %v570
  %v1337 = vpop.f32.mrb[0].mxu0
  %v1338 = vadd.f32 %v167, %v1337
  %v1339 = vpop.f32.mrb[0].mxu0
  %1340 = vmatprep.mubr.f32.mxu0 0.0
  %1341 = vmatmul.mubr.f32.gmra.mrb[0].mxu0 %v573
  %v1342 = vpop.f32.mrb[0].mxu0
  %v1343 = vadd.f32 %v167, %v1342
  %v1344 = vpop.f32.mrb[0].mxu0
  %1345 = vmatprep.mubr.f32.mxu0 0.0
  %1346 = vmatmul.mubr.f32.gmra.mrb[0].mxu0 %v576
  %v1347 = vpop.f32.mrb[0].mxu0
  %v1348 = vadd.f32 %v167, %v1347
  %v1349 = vpop.f32.mrb[0].mxu0
  %1350 = vmatprep.mubr.f32.mxu0 0.0
  %1351 = vmatmul.mubr.f32.gmra.mrb[0].mxu0 %v579
  %v1352 = vpop.f32.mrb[0].mxu0
  %v1353 = vadd.f32 %v167, %v1352
  %v1354 = vpop.f32.mrb[0].mxu0
  %1355 = vmatprep.mubr.f32.mxu0 0.0
  %1356 = vmatmul.mubr.f32.gmra.mrb[0].mxu0 %v582
  %v1357 = vpop.f32.mrb[0].mxu0
  %v1358 = vadd.f32 %v167, %v1357
  %v1359 = vpop.f32.mrb[0].mxu0
  %1360 = vmatprep.mubr.f32.mxu0 0.0
  %1361 = vmatmul.mubr.f32.gmra.mrb[0].mxu0 %v585
  %v1362 = vpop.f32.mrb[0].mxu0
  %v1363 = vadd.f32 %v167, %v1362
  %v1364 = vpop.f32.mrb[0].mxu0
  %1365 = vmatprep.mubr.f32.mxu0 0.0
  %1366 = vmatmul.mubr.f32.gmra.mrb[0].mxu0 %v588
  %v1367 = vpop.f32.mrb[0].mxu0
  %v1368 = vadd.f32 %v167, %v1367
  %v1369 = vpop.f32.mrb[0].mxu0
  %1370 = vmatprep.mubr.f32.mxu0 0.0
  %1371 = vmatmul.mubr.f32.gmra.mrb[0].mxu0 %v591
  %v1372 = vpop.f32.mrb[0].mxu0
  %v1373 = vadd.f32 %v167, %v1372
  %v1374 = vpop.f32.mrb[0].mxu0
  %1375 = vmatprep.mubr.f32.mxu0 0.0
  %1376 = vmatmul.mubr.f32.gmra.mrb[0].mxu0 %v594
  %v1377 = vpop.f32.mrb[0].mxu0
  %v1378 = vadd.f32 %v167, %v1377
  %v1379 = vpop.f32.mrb[0].mxu0
  %1380 = vmatprep.mubr.f32.mxu0 0.0
  %1381 = vmatmul.mubr.f32.gmra.mrb[0].mxu0 %v597
  %v1382 = vpop.f32.mrb[0].mxu0
  %v1383 = vadd.f32 %v167, %v1382
  %v1384 = vpop.f32.mrb[0].mxu0
  %1385 = vmatprep.mubr.f32.mxu0 0.0
  %1386 = vmatmul.mubr.f32.gmra.mrb[0].mxu0 %v600
  %v1387 = vpop.f32.mrb[0].mxu0
  %v1388 = vadd.f32 %v167, %v1387
  %v1389 = vpop.f32.mrb[0].mxu0
  %1390 = vdwg.mxu0
  %v1391 = vmax.f32 %v673, 0.0
  %v1392 = vmax.f32 %v678, 0.0
  %v1393 = vmax.f32 %v683, 0.0
  %v1394 = vmax.f32 %v688, 0.0
  %v1395 = vmax.f32 %v693, 0.0
  %v1396 = vmax.f32 %v698, 0.0
  %v1397 = vmax.f32 %v703, 0.0
  %v1398 = vmax.f32 %v708, 0.0
  %v1399 = vmax.f32 %v713, 0.0
  %v1400 = vmax.f32 %v718, 0.0
  %v1401 = vmax.f32 %v723, 0.0
  %v1402 = vmax.f32 %v728, 0.0
  %v1403 = vmax.f32 %v733, 0.0
  %v1404 = vmax.f32 %v738, 0.0
  %v1405 = vmax.f32 %v743, 0.0
  %v1406 = vmax.f32 %v748, 0.0
  %v1407 = vmax.f32 %v753, 0.0
  %v1408 = vmax.f32 %v758, 0.0
  %v1409 = vmax.f32 %v763, 0.0
  %v1410 = vmax.f32 %v768, 0.0
  %v1411 = vmax.f32 %v773, 0.0
  %v1412 = vmax.f32 %v778, 0.0
  %v1413 = vmax.f32 %v783, 0.0
  %v1414 = vmax.f32 %v788, 0.0
  %v1415 = vmax.f32 %v793, 0.0
  %v1416 = vmax.f32 %v798, 0.0
  %v1417 = vmax.f32 %v803, 0.0
  %v1418 = vmax.f32 %v808, 0.0
  %v1419 = vmax.f32 %v813, 0.0
  %v1420 = vmax.f32 %v818, 0.0
  %v1421 = vmax.f32 %v823, 0.0
  %v1422 = vmax.f32 %v828, 0.0
  %v1423 = vmax.f32 %v833, 0.0
  %v1424 = vmax.f32 %v838, 0.0
  %v1425 = vmax.f32 %v843, 0.0
  %v1426 = vmax.f32 %v848, 0.0
  %v1427 = vmax.f32 %v853, 0.0
  %v1428 = vmax.f32 %v858, 0.0
  %v1429 = vmax.f32 %v863, 0.0
  %v1430 = vmax.f32 %v868, 0.0
  %v1431 = vmax.f32 %v873, 0.0
  %v1432 = vmax.f32 %v878, 0.0
  %v1433 = vmax.f32 %v883, 0.0
  %v1434 = vmax.f32 %v888, 0.0
  %v1435 = vmax.f32 %v893, 0.0
  %v1436 = vmax.f32 %v898, 0.0
  %v1437 = vmax.f32 %v903, 0.0
  %v1438 = vmax.f32 %v908, 0.0
  %v1439 = vmax.f32 %v913, 0.0
  %v1440 = vmax.f32 %v918, 0.0
  %v1441 = vmax.f32 %v923, 0.0
  %v1442 = vmax.f32 %v928, 0.0
  %v1443 = vmax.f32 %v933, 0.0
  %v1444 = vmax.f32 %v938, 0.0
  %v1445 = vmax.f32 %v943, 0.0
  %v1446 = vmax.f32 %v948, 0.0
  %v1447 = vmax.f32 %v953, 0.0
  %v1448 = vmax.f32 %v958, 0.0
  %v1449 = vmax.f32 %v963, 0.0
  %v1450 = vmax.f32 %v968, 0.0
  %v1451 = vmax.f32 %v973, 0.0
  %v1452 = vmax.f32 %v978, 0.0
  %v1453 = vmax.f32 %v983, 0.0
  %v1454 = vmax.f32 %v988, 0.0
  %v1455 = vmax.f32 %v993, 0.0
  %v1456 = vmax.f32 %v998, 0.0
  %v1457 = vmax.f32 %v1003, 0.0
  %v1458 = vmax.f32 %v1008, 0.0
  %v1459 = vmax.f32 %v1013, 0.0
  %v1460 = vmax.f32 %v1018, 0.0
  %v1461 = vmax.f32 %v1023, 0.0
  %v1462 = vmax.f32 %v1028, 0.0
  %v1463 = vmax.f32 %v1033, 0.0
  %v1464 = vmax.f32 %v1038, 0.0
  %v1465 = vmax.f32 %v1043, 0.0
  %v1466 = vmax.f32 %v1048, 0.0
  %v1467 = vmax.f32 %v1053, 0.0
  %v1468 = vmax.f32 %v1058, 0.0
  %v1469 = vmax.f32 %v1063, 0.0
  %v1470 = vmax.f32 %v1068, 0.0
  %v1471 = vmax.f32 %v1073, 0.0
  %v1472 = vmax.f32 %v1078, 0.0
  %v1473 = vmax.f32 %v1083, 0.0
  %v1474 = vmax.f32 %v1088, 0.0
  %v1475 = vmax.f32 %v1093, 0.0
  %v1476 = vmax.f32 %v1098, 0.0
  %v1477 = vmax.f32 %v1103, 0.0
  %v1478 = vmax.f32 %v1108, 0.0
  %v1479 = vmax.f32 %v1113, 0.0
  %v1480 = vmax.f32 %v1118, 0.0
  %v1481 = vmax.f32 %v1123, 0.0
  %v1482 = vmax.f32 %v1128, 0.0
  %v1483 = vmax.f32 %v1133, 0.0
  %v1484 = vmax.f32 %v1138, 0.0
  %v1485 = vmax.f32 %v1143, 0.0
  %v1486 = vmax.f32 %v1148, 0.0
  %v1487 = vmax.f32 %v1153, 0.0
  %v1488 = vmax.f32 %v1158, 0.0
  %v1489 = vmax.f32 %v1163, 0.0
  %v1490 = vmax.f32 %v1168, 0.0
  %v1491 = vmax.f32 %v1173, 0.0
  %v1492 = vmax.f32 %v1178, 0.0
  %v1493 = vmax.f32 %v1183, 0.0
  %v1494 = vmax.f32 %v1188, 0.0
  %v1495 = vmax.f32 %v1193, 0.0
  %v1496 = vmax.f32 %v1198, 0.0
  %v1497 = vmax.f32 %v1203, 0.0
  %v1498 = vmax.f32 %v1208, 0.0
  %v1499 = vmax.f32 %v1213, 0.0
  %v1500 = vmax.f32 %v1218, 0.0
  %v1501 = vmax.f32 %v1223, 0.0
  %v1502 = vmax.f32 %v1228, 0.0
  %v1503 = vmax.f32 %v1233, 0.0
  %v1504 = vmax.f32 %v1238, 0.0
  %v1505 = vmax.f32 %v1243, 0.0
  %v1506 = vmax.f32 %v1248, 0.0
  %v1507 = vmax.f32 %v1253, 0.0
  %v1508 = vmax.f32 %v1258, 0.0
  %v1509 = vmax.f32 %v1263, 0.0
  %v1510 = vmax.f32 %v1268, 0.0
  %v1511 = vmax.f32 %v1273, 0.0
  %v1512 = vmax.f32 %v1278, 0.0
  %v1513 = vmax.f32 %v1283, 0.0
  %v1514 = vmax.f32 %v1288, 0.0
  %v1515 = vmax.f32 %v1293, 0.0
  %v1516 = vmax.f32 %v1298, 0.0
  %v1517 = vmax.f32 %v1303, 0.0
  %v1518 = vmax.f32 %v1308, 0.0
  %v1519 = vmax.f32 %v1313, 0.0
  %v1520 = vmax.f32 %v1318, 0.0
  %v1521 = vmax.f32 %v1323, 0.0
  %v1522 = vmax.f32 %v1328, 0.0
  %v1523 = vmax.f32 %v1333, 0.0
  %v1524 = vmax.f32 %v1338, 0.0
  %v1525 = vmax.f32 %v1343, 0.0
  %v1526 = vmax.f32 %v1348, 0.0
  %v1527 = vmax.f32 %v1353, 0.0
  %v1528 = vmax.f32 %v1358, 0.0
  %v1529 = vmax.f32 %v1363, 0.0
  %v1530 = vmax.f32 %v1368, 0.0
  %v1531 = vmax.f32 %v1373, 0.0
  %v1532 = vmax.f32 %v1378, 0.0
  %v1533 = vmax.f32 %v1383, 0.0
  %v1534 = vmax.f32 %v1388, 0.0
  %vm1535 = vcmask 261120
  %1536 = vst.msk [vmem:[%s3] sm:$0xff] %vm1535, %v1391
  %1537 = vst.msk [vmem:[%s3 + $0x8] sm:$0xff] %vm1535, %v1392
  %1538 = vst.msk [vmem:[%s3 + $0x10] sm:$0xff] %vm1535, %v1393
  %1539 = vst.msk [vmem:[%s3 + $0x18] sm:$0xff] %vm1535, %v1394
  %1540 = vst.msk [vmem:[%s3 + $0x20] sm:$0xff] %vm1535, %v1395
  %1541 = vst.msk [vmem:[%s3 + $0x28] sm:$0xff] %vm1535, %v1396
  %1542 = vst.msk [vmem:[%s3 + $0x30] sm:$0xff] %vm1535, %v1397
  %1543 = vst.msk [vmem:[%s3 + $0x38] sm:$0xff] %vm1535, %v1398
  %1544 = vst.msk [vmem:[%s3 + $0x40] sm:$0xff] %vm1535, %v1399
  %1545 = vst.msk [vmem:[%s3 + $0x48] sm:$0xff] %vm1535, %v1400
  %1546 = vst.msk [vmem:[%s3 + $0x50] sm:$0xff] %vm1535, %v1401
  %1547 = vst.msk [vmem:[%s3 + $0x58] sm:$0xff] %vm1535, %v1402
  %1548 = vst.msk [vmem:[%s3 + $0x60] sm:$0xff] %vm1535, %v1403
  %1549 = vst.msk [vmem:[%s3 + $0x68] sm:$0xff] %vm1535, %v1404
  %1550 = vst.msk [vmem:[%s3 + $0x70] sm:$0xff] %vm1535, %v1405
  %1551 = vst.msk [vmem:[%s3 + $0x78] sm:$0xff] %vm1535, %v1406
  %1552 = vst.msk [vmem:[%s3 + $0x80] sm:$0xff] %vm1535, %v1407
  %1553 = vst.msk [vmem:[%s3 + $0x88] sm:$0xff] %vm1535, %v1408
  %1554 = vst.msk [vmem:[%s3 + $0x90] sm:$0xff] %vm1535, %v1409
  %1555 = vst.msk [vmem:[%s3 + $0x98] sm:$0xff] %vm1535, %v1410
  %1556 = vst.msk [vmem:[%s3 + $0xa0] sm:$0xff] %vm1535, %v1411
  %1557 = vst.msk [vmem:[%s3 + $0xa8] sm:$0xff] %vm1535, %v1412
  %1558 = vst.msk [vmem:[%s3 + $0xb0] sm:$0xff] %vm1535, %v1413
  %1559 = vst.msk [vmem:[%s3 + $0xb8] sm:$0xff] %vm1535, %v1414
  %1560 = vst.msk [vmem:[%s3 + $0xc0] sm:$0xff] %vm1535, %v1415
  %1561 = vst.msk [vmem:[%s3 + $0xc8] sm:$0xff] %vm1535, %v1416
  %1562 = vst.msk [vmem:[%s3 + $0xd0] sm:$0xff] %vm1535, %v1417
  %1563 = vst.msk [vmem:[%s3 + $0xd8] sm:$0xff] %vm1535, %v1418
  %1564 = vst.msk [vmem:[%s3 + $0xe0] sm:$0xff] %vm1535, %v1419
  %1565 = vst.msk [vmem:[%s3 + $0xe8] sm:$0xff] %vm1535, %v1420
  %1566 = vst.msk [vmem:[%s3 + $0xf0] sm:$0xff] %vm1535, %v1421
  %1567 = vst.msk [vmem:[%s3 + $0xf8] sm:$0xff] %vm1535, %v1422
  %1568 = vst.msk [vmem:[%s3 + $0x100] sm:$0xff] %vm1535, %v1423
  %1569 = vst.msk [vmem:[%s3 + $0x108] sm:$0xff] %vm1535, %v1424
  %1570 = vst.msk [vmem:[%s3 + $0x110] sm:$0xff] %vm1535, %v1425
  %1571 = vst.msk [vmem:[%s3 + $0x118] sm:$0xff] %vm1535, %v1426
  %1572 = vst.msk [vmem:[%s3 + $0x120] sm:$0xff] %vm1535, %v1427
  %1573 = vst.msk [vmem:[%s3 + $0x128] sm:$0xff] %vm1535, %v1428
  %1574 = vst.msk [vmem:[%s3 + $0x130] sm:$0xff] %vm1535, %v1429
  %1575 = vst.msk [vmem:[%s3 + $0x138] sm:$0xff] %vm1535, %v1430
  %1576 = vst.msk [vmem:[%s3 + $0x140] sm:$0xff] %vm1535, %v1431
  %1577 = vst.msk [vmem:[%s3 + $0x148] sm:$0xff] %vm1535, %v1432
  %1578 = vst.msk [vmem:[%s3 + $0x150] sm:$0xff] %vm1535, %v1433
  %1579 = vst.msk [vmem:[%s3 + $0x158] sm:$0xff] %vm1535, %v1434
  %1580 = vst.msk [vmem:[%s3 + $0x160] sm:$0xff] %vm1535, %v1435
  %1581 = vst.msk [vmem:[%s3 + $0x168] sm:$0xff] %vm1535, %v1436
  %1582 = vst.msk [vmem:[%s3 + $0x170] sm:$0xff] %vm1535, %v1437
  %1583 = vst.msk [vmem:[%s3 + $0x178] sm:$0xff] %vm1535, %v1438
  %1584 = vst.msk [vmem:[%s3 + $0x180] sm:$0xff] %vm1535, %v1439
  %1585 = vst.msk [vmem:[%s3 + $0x188] sm:$0xff] %vm1535, %v1440
  %1586 = vst.msk [vmem:[%s3 + $0x190] sm:$0xff] %vm1535, %v1441
  %1587 = vst.msk [vmem:[%s3 + $0x198] sm:$0xff] %vm1535, %v1442
  %1588 = vst.msk [vmem:[%s3 + $0x1a0] sm:$0xff] %vm1535, %v1443
  %1589 = vst.msk [vmem:[%s3 + $0x1a8] sm:$0xff] %vm1535, %v1444
  %1590 = vst.msk [vmem:[%s3 + $0x1b0] sm:$0xff] %vm1535, %v1445
  %1591 = vst.msk [vmem:[%s3 + $0x1b8] sm:$0xff] %vm1535, %v1446
  %1592 = vst.msk [vmem:[%s3 + $0x1c0] sm:$0xff] %vm1535, %v1447
  %1593 = vst.msk [vmem:[%s3 + $0x1c8] sm:$0xff] %vm1535, %v1448
  %1594 = vst.msk [vmem:[%s3 + $0x1d0] sm:$0xff] %vm1535, %v1449
  %1595 = vst.msk [vmem:[%s3 + $0x1d8] sm:$0xff] %vm1535, %v1450
  %1596 = vst.msk [vmem:[%s3 + $0x1e0] sm:$0xff] %vm1535, %v1451
  %1597 = vst.msk [vmem:[%s3 + $0x1e8] sm:$0xff] %vm1535, %v1452
  %1598 = vst.msk [vmem:[%s3 + $0x1f0] sm:$0xff] %vm1535, %v1453
  %1599 = vst.msk [vmem:[%s3 + $0x1f8] sm:$0xff] %vm1535, %v1454
  %1600 = vst.msk [vmem:[%s3 + $0x200] sm:$0xff] %vm1535, %v1455
  %1601 = vst.msk [vmem:[%s3 + $0x208] sm:$0xff] %vm1535, %v1456
  %1602 = vst.msk [vmem:[%s3 + $0x210] sm:$0xff] %vm1535, %v1457
  %1603 = vst.msk [vmem:[%s3 + $0x218] sm:$0xff] %vm1535, %v1458
  %1604 = vst.msk [vmem:[%s3 + $0x220] sm:$0xff] %vm1535, %v1459
  %1605 = vst.msk [vmem:[%s3 + $0x228] sm:$0xff] %vm1535, %v1460
  %1606 = vst.msk [vmem:[%s3 + $0x230] sm:$0xff] %vm1535, %v1461
  %1607 = vst.msk [vmem:[%s3 + $0x238] sm:$0xff] %vm1535, %v1462
  %1608 = vst.msk [vmem:[%s3 + $0x240] sm:$0xff] %vm1535, %v1463
  %1609 = vst.msk [vmem:[%s3 + $0x248] sm:$0xff] %vm1535, %v1464
  %1610 = vst.msk [vmem:[%s3 + $0x250] sm:$0xff] %vm1535, %v1465
  %1611 = vst.msk [vmem:[%s3 + $0x258] sm:$0xff] %vm1535, %v1466
  %1612 = vst.msk [vmem:[%s3 + $0x260] sm:$0xff] %vm1535, %v1467
  %1613 = vst.msk [vmem:[%s3 + $0x268] sm:$0xff] %vm1535, %v1468
  %1614 = vst.msk [vmem:[%s3 + $0x270] sm:$0xff] %vm1535, %v1469
  %1615 = vst.msk [vmem:[%s3 + $0x278] sm:$0xff] %vm1535, %v1470
  %1616 = vst.msk [vmem:[%s3 + $0x280] sm:$0xff] %vm1535, %v1471
  %1617 = vst.msk [vmem:[%s3 + $0x288] sm:$0xff] %vm1535, %v1472
  %1618 = vst.msk [vmem:[%s3 + $0x290] sm:$0xff] %vm1535, %v1473
  %1619 = vst.msk [vmem:[%s3 + $0x298] sm:$0xff] %vm1535, %v1474
  %1620 = vst.msk [vmem:[%s3 + $0x2a0] sm:$0xff] %vm1535, %v1475
  %1621 = vst.msk [vmem:[%s3 + $0x2a8] sm:$0xff] %vm1535, %v1476
  %1622 = vst.msk [vmem:[%s3 + $0x2b0] sm:$0xff] %vm1535, %v1477
  %1623 = vst.msk [vmem:[%s3 + $0x2b8] sm:$0xff] %vm1535, %v1478
  %1624 = vst.msk [vmem:[%s3 + $0x2c0] sm:$0xff] %vm1535, %v1479
  %1625 = vst.msk [vmem:[%s3 + $0x2c8] sm:$0xff] %vm1535, %v1480
  %1626 = vst.msk [vmem:[%s3 + $0x2d0] sm:$0xff] %vm1535, %v1481
  %1627 = vst.msk [vmem:[%s3 + $0x2d8] sm:$0xff] %vm1535, %v1482
  %1628 = vst.msk [vmem:[%s3 + $0x2e0] sm:$0xff] %vm1535, %v1483
  %1629 = vst.msk [vmem:[%s3 + $0x2e8] sm:$0xff] %vm1535, %v1484
  %1630 = vst.msk [vmem:[%s3 + $0x2f0] sm:$0xff] %vm1535, %v1485
  %1631 = vst.msk [vmem:[%s3 + $0x2f8] sm:$0xff] %vm1535, %v1486
  %1632 = vst.msk [vmem:[%s3 + $0x300] sm:$0xff] %vm1535, %v1487
  %1633 = vst.msk [vmem:[%s3 + $0x308] sm:$0xff] %vm1535, %v1488
  %1634 = vst.msk [vmem:[%s3 + $0x310] sm:$0xff] %vm1535, %v1489
  %1635 = vst.msk [vmem:[%s3 + $0x318] sm:$0xff] %vm1535, %v1490
  %1636 = vst.msk [vmem:[%s3 + $0x320] sm:$0xff] %vm1535, %v1491
  %1637 = vst.msk [vmem:[%s3 + $0x328] sm:$0xff] %vm1535, %v1492
  %1638 = vst.msk [vmem:[%s3 + $0x330] sm:$0xff] %vm1535, %v1493
  %1639 = vst.msk [vmem:[%s3 + $0x338] sm:$0xff] %vm1535, %v1494
  %1640 = vst.msk [vmem:[%s3 + $0x340] sm:$0xff] %vm1535, %v1495
  %1641 = vst.msk [vmem:[%s3 + $0x348] sm:$0xff] %vm1535, %v1496
  %1642 = vst.msk [vmem:[%s3 + $0x350] sm:$0xff] %vm1535, %v1497
  %1643 = vst.msk [vmem:[%s3 + $0x358] sm:$0xff] %vm1535, %v1498
  %1644 = vst.msk [vmem:[%s3 + $0x360] sm:$0xff] %vm1535, %v1499
  %1645 = vst.msk [vmem:[%s3 + $0x368] sm:$0xff] %vm1535, %v1500
  %1646 = vst.msk [vmem:[%s3 + $0x370] sm:$0xff] %vm1535, %v1501
  %1647 = vst.msk [vmem:[%s3 + $0x378] sm:$0xff] %vm1535, %v1502
  %1648 = vst.msk [vmem:[%s3 + $0x380] sm:$0xff] %vm1535, %v1503
  %1649 = vst.msk [vmem:[%s3 + $0x388] sm:$0xff] %vm1535, %v1504
  %1650 = vst.msk [vmem:[%s3 + $0x390] sm:$0xff] %vm1535, %v1505
  %1651 = vst.msk [vmem:[%s3 + $0x398] sm:$0xff] %vm1535, %v1506
  %1652 = vst.msk [vmem:[%s3 + $0x3a0] sm:$0xff] %vm1535, %v1507
  %1653 = vst.msk [vmem:[%s3 + $0x3a8] sm:$0xff] %vm1535, %v1508
  %1654 = vst.msk [vmem:[%s3 + $0x3b0] sm:$0xff] %vm1535, %v1509
  %1655 = vst.msk [vmem:[%s3 + $0x3b8] sm:$0xff] %vm1535, %v1510
  %1656 = vst.msk [vmem:[%s3 + $0x3c0] sm:$0xff] %vm1535, %v1511
  %1657 = vst.msk [vmem:[%s3 + $0x3c8] sm:$0xff] %vm1535, %v1512
  %1658 = vst.msk [vmem:[%s3 + $0x3d0] sm:$0xff] %vm1535, %v1513
  %1659 = vst.msk [vmem:[%s3 + $0x3d8] sm:$0xff] %vm1535, %v1514
  %1660 = vst.msk [vmem:[%s3 + $0x3e0] sm:$0xff] %vm1535, %v1515
  %1661 = vst.msk [vmem:[%s3 + $0x3e8] sm:$0xff] %vm1535, %v1516
  %1662 = vst.msk [vmem:[%s3 + $0x3f0] sm:$0xff] %vm1535, %v1517
  %1663 = vst.msk [vmem:[%s3 + $0x3f8] sm:$0xff] %vm1535, %v1518
  %1664 = vst.msk [vmem:[%s3 + $0x400] sm:$0xff] %vm1535, %v1519
  %1665 = vst.msk [vmem:[%s3 + $0x408] sm:$0xff] %vm1535, %v1520
  %1666 = vst.msk [vmem:[%s3 + $0x410] sm:$0xff] %vm1535, %v1521
  %1667 = vst.msk [vmem:[%s3 + $0x418] sm:$0xff] %vm1535, %v1522
  %1668 = vst.msk [vmem:[%s3 + $0x420] sm:$0xff] %vm1535, %v1523
  %1669 = vst.msk [vmem:[%s3 + $0x428] sm:$0xff] %vm1535, %v1524
  %1670 = vst.msk [vmem:[%s3 + $0x430] sm:$0xff] %vm1535, %v1525
  %1671 = vst.msk [vmem:[%s3 + $0x438] sm:$0xff] %vm1535, %v1526
  %1672 = vst.msk [vmem:[%s3 + $0x440] sm:$0xff] %vm1535, %v1527
  %1673 = vst.msk [vmem:[%s3 + $0x448] sm:$0xff] %vm1535, %v1528
  %1674 = vst.msk [vmem:[%s3 + $0x450] sm:$0xff] %vm1535, %v1529
  %1675 = vst.msk [vmem:[%s3 + $0x458] sm:$0xff] %vm1535, %v1530
  %1676 = vst.msk [vmem:[%s3 + $0x460] sm:$0xff] %vm1535, %v1531
  %1677 = vst.msk [vmem:[%s3 + $0x468] sm:$0xff] %vm1535, %v1532
  %1678 = vst.msk [vmem:[%s3 + $0x470] sm:$0xff] %vm1535, %v1533
  %1679 = vst.msk [vmem:[%s3 + $0x478] sm:$0xff] %vm1535, %v1534
  // Predicated region
  $region14: #{forward.3} parent=0 // pred_check
    _
  $region15: #{forward.3} parent=0 // pred_check_branch
    %1681 = sbr.rel (0) target = $region17
  $region16: #{forward.3} parent=0 // pred_region
    _
  $region17: #{forward.3} parent=0 // pred_fallthru
    _
  // Predicated region
  $region18: #{forward.3} parent=0 // pred_check
    _
  $region19: #{forward.3} parent=0 // pred_check_branch
    %1683 = sbr.rel (0) target = $region21
  $region20: #{forward.3} parent=0 // pred_region
    _
  $region21: #{forward.3} parent=0 // pred_fallthru
    _

// kernel: forward.4
$region0: #{forward.4}
  #allocation0 [shape = 'u32[]', space=smem, size = 0x4, offset = 0x4, fixed_abs, tag = 'smem constant byte address 0x4 - core index']
  #allocation1 [shape = 'u32[144,128]{1,0:T(1,128)}', space=vmem, size = 0x12000, scoped, tag = 'internal scratch']
  %s0 = inlined_call_operand.vmem [shape: f32[200,288], index: 0, kind: input, shape index: {}]
  %s1 = inlined_call_operand.vmem [shape: f32[288,64], index: 1, kind: input, shape index: {}]
  %s2 = inlined_call_operand.vmem [shape: f32[1,64], index: 2, kind: input, shape index: {}]
  %s3 = inlined_call_operand.vmem [shape: f32[200,64], index: 3, kind: output, shape index: {}]
  %s4 = sld [smem:[#allocation0]]
  $region22: #{forward.4} parent=0
    _
  %s6 = ssub.s32 1, %s4
  %s7 = scalar_select 0, %s6, %s4
  // Predicated region
  $region2: #{forward.4} parent=0 // pred_check
    _
  $region3: #{forward.4} parent=0 // pred_check_branch
    %9 = sbr.rel (0) target = $region5
  $region4: #{forward.4} parent=0 // pred_region
    _
  $region5: #{forward.4} parent=0 // pred_fallthru
    _
  // Predicated region
  $region6: #{forward.4} parent=0 // pred_check
    _
  $region7: #{forward.4} parent=0 // pred_check_branch
    %11 = sbr.rel (0) target = $region9
  $region8: #{forward.4} parent=0 // pred_region
    _
  $region9: #{forward.4} parent=0 // pred_fallthru
    _
  // Predicated region
  $region10: #{forward.4} parent=0 // pred_check
    _
  $region11: #{forward.4} parent=0 // pred_check_branch
    %13 = sbr.rel (0) target = $region13
  $region12: #{forward.4} parent=0 // pred_region
    _
  $region13: #{forward.4} parent=0 // pred_fallthru
    _
  %v14 = vld [vmem:[%s0] sm:$0xff]
  %v15 = vld [vmem:[%s0 + $0x8] sm:$0xff]
  %v16 = vld [vmem:[%s0 + $0x10] sm:$0xff]
  %v17 = vld [vmem:[%s0 + $0x18] sm:$0xff]
  %v18 = vld [vmem:[%s0 + $0x20] sm:$0xff]
  %v19 = vld [vmem:[%s0 + $0x28] sm:$0xff]
  %v20 = vld [vmem:[%s0 + $0x30] sm:$0xff]
  %v21 = vld [vmem:[%s0 + $0x38] sm:$0xff]
  %v22 = vld [vmem:[%s0 + $0x40] sm:$0xff]
  %v23 = vld [vmem:[%s0 + $0x48] sm:$0xff]
  %v24 = vld [vmem:[%s0 + $0x50] sm:$0xff]
  %v25 = vld [vmem:[%s0 + $0x58] sm:$0xff]
  %v26 = vld [vmem:[%s0 + $0x60] sm:$0xff]
  %v27 = vld [vmem:[%s0 + $0x68] sm:$0xff]
  %v28 = vld [vmem:[%s0 + $0x70] sm:$0xff]
  %v29 = vld [vmem:[%s0 + $0x78] sm:$0xff]
  %v30 = vld [vmem:[%s0 + $0x80] sm:$0xff]
  %v31 = vld [vmem:[%s0 + $0x88] sm:$0xff]
  %v32 = vld [vmem:[%s0 + $0x90] sm:$0xff]
  %v33 = vld [vmem:[%s0 + $0x98] sm:$0xff]
  %v34 = vld [vmem:[%s0 + $0xa0] sm:$0xff]
  %v35 = vld [vmem:[%s0 + $0xa8] sm:$0xff]
  %v36 = vld [vmem:[%s0 + $0xb0] sm:$0xff]
  %v37 = vld [vmem:[%s0 + $0xb8] sm:$0xff]
  %v38 = vld [vmem:[%s0 + $0xc0] sm:$0xff]
  %v39 = vld [vmem:[%s0 + $0xc8] sm:$0xff]
  %v40 = vld [vmem:[%s0 + $0xd0] sm:$0xff]
  %v41 = vld [vmem:[%s0 + $0xd8] sm:$0xff]
  %v42 = vld [vmem:[%s0 + $0xe0] sm:$0xff]
  %v43 = vld [vmem:[%s0 + $0xe8] sm:$0xff]
  %v44 = vld [vmem:[%s0 + $0xf0] sm:$0xff]
  %v45 = vld [vmem:[%s0 + $0xf8] sm:$0xff]
  %v46 = vld [vmem:[%s0 + $0x100] sm:$0xff]
  %v47 = vld [vmem:[%s0 + $0x108] sm:$0xff]
  %v48 = vld [vmem:[%s0 + $0x110] sm:$0xff]
  %v49 = vld [vmem:[%s0 + $0x118] sm:$0xff]
  %v50 = vld [vmem:[%s0 + $0x120] sm:$0xff]
  %v51 = vld [vmem:[%s0 + $0x128] sm:$0xff]
  %v52 = vld [vmem:[%s0 + $0x130] sm:$0xff]
  %v53 = vld [vmem:[%s0 + $0x138] sm:$0xff]
  %v54 = vld [vmem:[%s0 + $0x140] sm:$0xff]
  %v55 = vld [vmem:[%s0 + $0x148] sm:$0xff]
  %v56 = vld [vmem:[%s0 + $0x150] sm:$0xff]
  %v57 = vld [vmem:[%s0 + $0x158] sm:$0xff]
  %v58 = vld [vmem:[%s0 + $0x160] sm:$0xff]
  %v59 = vld [vmem:[%s0 + $0x168] sm:$0xff]
  %v60 = vld [vmem:[%s0 + $0x170] sm:$0xff]
  %v61 = vld [vmem:[%s0 + $0x178] sm:$0xff]
  %v62 = vld [vmem:[%s0 + $0x180] sm:$0xff]
  %v63 = vld [vmem:[%s0 + $0x188] sm:$0xff]
  %v64 = vld [vmem:[%s0 + $0x190] sm:$0xff]
  %v65 = vld [vmem:[%s0 + $0x198] sm:$0xff]
  %v66 = vld [vmem:[%s0 + $0x1a0] sm:$0xff]
  %v67 = vld [vmem:[%s0 + $0x1a8] sm:$0xff]
  %v68 = vld [vmem:[%s0 + $0x1b0] sm:$0xff]
  %v69 = vld [vmem:[%s0 + $0x1b8] sm:$0xff]
  %v70 = vld [vmem:[%s0 + $0x1c0] sm:$0xff]
  %v71 = vld [vmem:[%s0 + $0x1c8] sm:$0xff]
  %v72 = vld [vmem:[%s0 + $0x1d0] sm:$0xff]
  %v73 = vld [vmem:[%s0 + $0x1d8] sm:$0xff]
  %v74 = vld [vmem:[%s0 + $0x1e0] sm:$0xff]
  %v75 = vld [vmem:[%s0 + $0x1e8] sm:$0xff]
  %v76 = vld [vmem:[%s0 + $0x1f0] sm:$0xff]
  %v77 = vld [vmem:[%s0 + $0x1f8] sm:$0xff]
  %v78 = vld [vmem:[%s0 + $0x200] sm:$0xff]
  %v79 = vld [vmem:[%s0 + $0x208] sm:$0xff]
  %v80 = vld [vmem:[%s0 + $0x210] sm:$0xff]
  %v81 = vld [vmem:[%s0 + $0x218] sm:$0xff]
  %v82 = vld [vmem:[%s0 + $0x220] sm:$0xff]
  %v83 = vld [vmem:[%s0 + $0x228] sm:$0xff]
  %v84 = vld [vmem:[%s0 + $0x230] sm:$0xff]
  %v85 = vld [vmem:[%s0 + $0x238] sm:$0xff]
  %v86 = vld [vmem:[%s0 + $0x240] sm:$0xff]
  %v87 = vld [vmem:[%s0 + $0x248] sm:$0xff]
  %v88 = vld [vmem:[%s0 + $0x250] sm:$0xff]
  %v89 = vld [vmem:[%s1] sm:$0xff]
  %v90 = vld [vmem:[%s1 + $0x8] sm:$0xff]
  %v91 = vld [vmem:[%s1 + $0x10] sm:$0xff]
  %v92 = vld [vmem:[%s1 + $0x18] sm:$0xff]
  %v93 = vld [vmem:[%s1 + $0x20] sm:$0xff]
  %v94 = vld [vmem:[%s1 + $0x28] sm:$0xff]
  %v95 = vld [vmem:[%s1 + $0x30] sm:$0xff]
  %v96 = vld [vmem:[%s1 + $0x38] sm:$0xff]
  %v97 = vld [vmem:[%s1 + $0x40] sm:$0xff]
  %v98 = vld [vmem:[%s1 + $0x48] sm:$0xff]
  %v99 = vld [vmem:[%s1 + $0x50] sm:$0xff]
  %v100 = vld [vmem:[%s1 + $0x58] sm:$0xff]
  %v101 = vld [vmem:[%s1 + $0x60] sm:$0xff]
  %v102 = vld [vmem:[%s1 + $0x68] sm:$0xff]
  %v103 = vld [vmem:[%s1 + $0x70] sm:$0xff]
  %v104 = vld [vmem:[%s1 + $0x78] sm:$0xff]
  %v105 = vld [vmem:[%s1 + $0x80] sm:$0xff]
  %v106 = vld [vmem:[%s1 + $0x88] sm:$0xff]
  %v107 = vld [vmem:[%s1 + $0x90] sm:$0xff]
  %v108 = vld [vmem:[%s1 + $0x98] sm:$0xff]
  %v109 = vld [vmem:[%s1 + $0xa0] sm:$0xff]
  %v110 = vld [vmem:[%s1 + $0xa8] sm:$0xff]
  %v111 = vld [vmem:[%s1 + $0xb0] sm:$0xff]
  %v112 = vld [vmem:[%s1 + $0xb8] sm:$0xff]
  %v113 = vld [vmem:[%s1 + $0xc0] sm:$0xff]
  %v114 = vld [vmem:[%s1 + $0xc8] sm:$0xff]
  %v115 = vld [vmem:[%s1 + $0xd0] sm:$0xff]
  %v116 = vld [vmem:[%s1 + $0xd8] sm:$0xff]
  %v117 = vld [vmem:[%s1 + $0xe0] sm:$0xff]
  %v118 = vld [vmem:[%s1 + $0xe8] sm:$0xff]
  %v119 = vld [vmem:[%s1 + $0xf0] sm:$0xff]
  %v120 = vld [vmem:[%s1 + $0xf8] sm:$0xff]
  %v121 = vld [vmem:[%s1 + $0x100] sm:$0xff]
  %v122 = vld [vmem:[%s1 + $0x108] sm:$0xff]
  %v123 = vld [vmem:[%s1 + $0x110] sm:$0xff]
  %v124 = vld [vmem:[%s1 + $0x118] sm:$0xff]
  %v125 = vld [vmem:[%s2] sm:$0x1]
  %v127 = vlaneseq
  %v128 = vshrl.u32 %v127, 7
  %v129 = vsub.s32 0, %v128
  %v130 = vrot.slane %v125, %v129
  %vm132 = vcmask 261120
  %v134 = vsel %vm132, %v16, 0
  %v137 = vsel %vm132, %v19, 0
  %v140 = vsel %vm132, %v22, 0
  %v143 = vsel %vm132, %v25, 0
  %v146 = vsel %vm132, %v28, 0
  %v149 = vsel %vm132, %v31, 0
  %v152 = vsel %vm132, %v34, 0
  %v155 = vsel %vm132, %v37, 0
  %v158 = vsel %vm132, %v40, 0
  %v161 = vsel %vm132, %v43, 0
  %v164 = vsel %vm132, %v46, 0
  %v167 = vsel %vm132, %v49, 0
  %v170 = vsel %vm132, %v52, 0
  %v173 = vsel %vm132, %v55, 0
  %v176 = vsel %vm132, %v58, 0
  %v179 = vsel %vm132, %v61, 0
  %v182 = vsel %vm132, %v64, 0
  %v185 = vsel %vm132, %v67, 0
  %v188 = vsel %vm132, %v70, 0
  %v191 = vsel %vm132, %v73, 0
  %v194 = vsel %vm132, %v76, 0
  %v197 = vsel %vm132, %v79, 0
  %v200 = vsel %vm132, %v82, 0
  %v203 = vsel %vm132, %v85, 0
  %v206 = vsel %vm132, %v88, 0
  %208 = vmatprep.subr.mxu0 0.0
  %209 = vmatpush1.msra.mxu0 %v89
  %210 = vmatprep.subr.mxu0 0.0
  %211 = vmatpush1.msra.mxu0 %v90
  %212 = vmatprep.subr.mxu0 0.0
  %213 = vmatpush1.msra.mxu0 %v91
  %214 = vmatprep.subr.mxu0 0.0
  %215 = vmatpush1.msra.mxu0 %v92
  %216 = vmatprep.subr.mxu0 0.0
  %217 = vmatpush1.msra.mxu0 %v93
  %218 = vmatprep.subr.mxu0 0.0
  %219 = vmatpush1.msra.mxu0 %v94
  %220 = vmatprep.subr.mxu0 0.0
  %221 = vmatpush1.msra.mxu0 %v95
  %222 = vmatprep.subr.mxu0 0.0
  %223 = vmatpush1.msra.mxu0 %v96
  %224 = vmatprep.subr.mxu0 0.0
  %225 = vmatpush1.msra.mxu0 %v97
  %226 = vmatprep.subr.mxu0 0.0
  %227 = vmatpush1.msra.mxu0 %v98
  %228 = vmatprep.subr.mxu0 0.0
  %229 = vmatpush1.msra.mxu0 %v99
  %230 = vmatprep.subr.mxu0 0.0
  %231 = vmatpush1.msra.mxu0 %v100
  %232 = vmatprep.subr.mxu0 0.0
  %233 = vmatpush1.msra.mxu0 %v101
  %234 = vmatprep.subr.mxu0 0.0
  %235 = vmatpush1.msra.mxu0 %v102
  %236 = vmatprep.subr.mxu0 0.0
  %237 = vmatpush1.msra.mxu0 %v103
  %238 = vmatprep.subr.mxu0 0.0
  %239 = vmatpush1.msra.mxu0 %v104
  %240 = vmatprep.subr.mxu0 0.0
  %241 = vmatpush1.msra.mxu0 %v105
  %242 = vmatprep.subr.mxu0 0.0
  %243 = vmatpush1.msra.mxu0 %v106
  %244 = vmatprep.subr.mxu0 0.0
  %245 = vmatpush1.msra.mxu0 %v107
  %246 = vmatprep.subr.mxu0 0.0
  %247 = vmatpush1.msra.mxu0 %v108
  %248 = vmatprep.subr.mxu0 0.0
  %249 = vmatpush1.msra.mxu0 %v109
  %250 = vmatprep.subr.mxu0 0.0
  %251 = vmatpush1.msra.mxu0 %v110
  %252 = vmatprep.subr.mxu0 0.0
  %253 = vmatpush1.msra.mxu0 %v111
  %254 = vmatprep.subr.mxu0 0.0
  %255 = vmatpush1.msra.mxu0 %v112
  %256 = vmatprep.subr.mxu0 0.0
  %257 = vmatpush1.msra.mxu0 %v113
  %258 = vmatprep.subr.mxu0 0.0
  %259 = vmatpush1.msra.mxu0 %v114
  %260 = vmatprep.subr.mxu0 0.0
  %261 = vmatpush1.msra.mxu0 %v115
  %262 = vmatprep.subr.mxu0 0.0
  %263 = vmatpush1.msra.mxu0 %v116
  %264 = vmatprep.subr.mxu0 0.0
  %265 = vmatpush1.msra.mxu0 %v117
  %266 = vmatprep.subr.mxu0 0.0
  %267 = vmatpush1.msra.mxu0 %v118
  %268 = vmatprep.subr.mxu0 0.0
  %269 = vmatpush1.msra.mxu0 %v119
  %270 = vmatprep.subr.mxu0 0.0
  %271 = vmatpush1.msra.mxu0 %v120
  %272 = vmatprep.mubr.f32.mxu0 %v15
  %273 = vmatmul.mubr.f32.gmra.mrb[0].mxu0 %v14
  %v274 = vpop.f32.mrb[0].mxu0
  %v275 = vadd.f32 %v130, %v274
  %v276 = vpop.f32.mrb[0].mxu0
  %277 = vmatprep.mubr.f32.mxu0 %v18
  %278 = vmatmul.mubr.f32.gmra.mrb[0].mxu0 %v17
  %v279 = vpop.f32.mrb[0].mxu0
  %v280 = vadd.f32 %v130, %v279
  %v281 = vpop.f32.mrb[0].mxu0
  %282 = vmatprep.mubr.f32.mxu0 %v21
  %283 = vmatmul.mubr.f32.gmra.mrb[0].mxu0 %v20
  %v284 = vpop.f32.mrb[0].mxu0
  %v285 = vadd.f32 %v130, %v284
  %v286 = vpop.f32.mrb[0].mxu0
  %287 = vmatprep.mubr.f32.mxu0 %v24
  %288 = vmatmul.mubr.f32.gmra.mrb[0].mxu0 %v23
  %v289 = vpop.f32.mrb[0].mxu0
  %v290 = vadd.f32 %v130, %v289
  %v291 = vpop.f32.mrb[0].mxu0
  %292 = vmatprep.mubr.f32.mxu0 %v27
  %293 = vmatmul.mubr.f32.gmra.mrb[0].mxu0 %v26
  %v294 = vpop.f32.mrb[0].mxu0
  %v295 = vadd.f32 %v130, %v294
  %v296 = vpop.f32.mrb[0].mxu0
  %297 = vmatprep.mubr.f32.mxu0 %v30
  %298 = vmatmul.mubr.f32.gmra.mrb[0].mxu0 %v29
  %v299 = vpop.f32.mrb[0].mxu0
  %v300 = vadd.f32 %v130, %v299
  %v301 = vpop.f32.mrb[0].mxu0
  %302 = vmatprep.mubr.f32.mxu0 %v33
  %303 = vmatmul.mubr.f32.gmra.mrb[0].mxu0 %v32
  %v304 = vpop.f32.mrb[0].mxu0
  %v305 = vadd.f32 %v130, %v304
  %v306 = vpop.f32.mrb[0].mxu0
  %307 = vmatprep.mubr.f32.mxu0 %v36
  %308 = vmatmul.mubr.f32.gmra.mrb[0].mxu0 %v35
  %v309 = vpop.f32.mrb[0].mxu0
  %v310 = vadd.f32 %v130, %v309
  %v311 = vpop.f32.mrb[0].mxu0
  %312 = vmatprep.mubr.f32.mxu0 %v39
  %313 = vmatmul.mubr.f32.gmra.mrb[0].mxu0 %v38
  %v314 = vpop.f32.mrb[0].mxu0
  %v315 = vadd.f32 %v130, %v314
  %v316 = vpop.f32.mrb[0].mxu0
  %317 = vmatprep.mubr.f32.mxu0 %v42
  %318 = vmatmul.mubr.f32.gmra.mrb[0].mxu0 %v41
  %v319 = vpop.f32.mrb[0].mxu0
  %v320 = vadd.f32 %v130, %v319
  %v321 = vpop.f32.mrb[0].mxu0
  %322 = vmatprep.mubr.f32.mxu0 %v45
  %323 = vmatmul.mubr.f32.gmra.mrb[0].mxu0 %v44
  %v324 = vpop.f32.mrb[0].mxu0
  %v325 = vadd.f32 %v130, %v324
  %v326 = vpop.f32.mrb[0].mxu0
  %327 = vmatprep.mubr.f32.mxu0 %v48
  %328 = vmatmul.mubr.f32.gmra.mrb[0].mxu0 %v47
  %v329 = vpop.f32.mrb[0].mxu0
  %v330 = vadd.f32 %v130, %v329
  %v331 = vpop.f32.mrb[0].mxu0
  %332 = vmatprep.mubr.f32.mxu0 %v51
  %333 = vmatmul.mubr.f32.gmra.mrb[0].mxu0 %v50
  %v334 = vpop.f32.mrb[0].mxu0
  %v335 = vadd.f32 %v130, %v334
  %v336 = vpop.f32.mrb[0].mxu0
  %337 = vmatprep.mubr.f32.mxu0 %v54
  %338 = vmatmul.mubr.f32.gmra.mrb[0].mxu0 %v53
  %v339 = vpop.f32.mrb[0].mxu0
  %v340 = vadd.f32 %v130, %v339
  %v341 = vpop.f32.mrb[0].mxu0
  %342 = vmatprep.mubr.f32.mxu0 %v57
  %343 = vmatmul.mubr.f32.gmra.mrb[0].mxu0 %v56
  %v344 = vpop.f32.mrb[0].mxu0
  %v345 = vadd.f32 %v130, %v344
  %v346 = vpop.f32.mrb[0].mxu0
  %347 = vmatprep.mubr.f32.mxu0 %v60
  %348 = vmatmul.mubr.f32.gmra.mrb[0].mxu0 %v59
  %v349 = vpop.f32.mrb[0].mxu0
  %v350 = vadd.f32 %v130, %v349
  %v351 = vpop.f32.mrb[0].mxu0
  %352 = vmatprep.mubr.f32.mxu0 %v63
  %353 = vmatmul.mubr.f32.gmra.mrb[0].mxu0 %v62
  %v354 = vpop.f32.mrb[0].mxu0
  %v355 = vadd.f32 %v130, %v354
  %v356 = vpop.f32.mrb[0].mxu0
  %357 = vmatprep.mubr.f32.mxu0 %v66
  %358 = vmatmul.mubr.f32.gmra.mrb[0].mxu0 %v65
  %v359 = vpop.f32.mrb[0].mxu0
  %v360 = vadd.f32 %v130, %v359
  %v361 = vpop.f32.mrb[0].mxu0
  %362 = vmatprep.mubr.f32.mxu0 %v69
  %363 = vmatmul.mubr.f32.gmra.mrb[0].mxu0 %v68
  %v364 = vpop.f32.mrb[0].mxu0
  %v365 = vadd.f32 %v130, %v364
  %v366 = vpop.f32.mrb[0].mxu0
  %367 = vmatprep.mubr.f32.mxu0 %v72
  %368 = vmatmul.mubr.f32.gmra.mrb[0].mxu0 %v71
  %v369 = vpop.f32.mrb[0].mxu0
  %v370 = vadd.f32 %v130, %v369
  %v371 = vpop.f32.mrb[0].mxu0
  %372 = vmatprep.mubr.f32.mxu0 %v75
  %373 = vmatmul.mubr.f32.gmra.mrb[0].mxu0 %v74
  %v374 = vpop.f32.mrb[0].mxu0
  %v375 = vadd.f32 %v130, %v374
  %v376 = vpop.f32.mrb[0].mxu0
  %377 = vmatprep.mubr.f32.mxu0 %v78
  %378 = vmatmul.mubr.f32.gmra.mrb[0].mxu0 %v77
  %v379 = vpop.f32.mrb[0].mxu0
  %v380 = vadd.f32 %v130, %v379
  %v381 = vpop.f32.mrb[0].mxu0
  %382 = vmatprep.mubr.f32.mxu0 %v81
  %383 = vmatmul.mubr.f32.gmra.mrb[0].mxu0 %v80
  %v384 = vpop.f32.mrb[0].mxu0
  %v385 = vadd.f32 %v130, %v384
  %v386 = vpop.f32.mrb[0].mxu0
  %387 = vmatprep.mubr.f32.mxu0 %v84
  %388 = vmatmul.mubr.f32.gmra.mrb[0].mxu0 %v83
  %v389 = vpop.f32.mrb[0].mxu0
  %v390 = vadd.f32 %v130, %v389
  %v391 = vpop.f32.mrb[0].mxu0
  %392 = vmatprep.mubr.f32.mxu0 %v87
  %393 = vmatmul.mubr.f32.gmra.mrb[0].mxu0 %v86
  %v394 = vpop.f32.mrb[0].mxu0
  %v395 = vadd.f32 %v130, %v394
  %v396 = vpop.f32.mrb[0].mxu0
  %397 = vdwg.mxu0
  %398 = vmatprep.subr.mxu0 0.0
  %399 = vmatpush1.msra.mxu0 %v121
  %400 = vmatprep.subr.mxu0 0.0
  %401 = vmatpush1.msra.mxu0 %v122
  %402 = vmatprep.subr.mxu0 0.0
  %403 = vmatpush1.msra.mxu0 %v123
  %404 = vmatprep.subr.mxu0 0.0
  %405 = vmatpush1.msra.mxu0 %v124
  %406 = vmatprep.subr.mxu0 0.0
  %407 = vmatpush1.msra.mxu0 0.0
  %408 = vmatprep.subr.mxu0 0.0
  %409 = vmatpush1.msra.mxu0 0.0
  %410 = vmatprep.subr.mxu0 0.0
  %411 = vmatpush1.msra.mxu0 0.0
  %412 = vmatprep.subr.mxu0 0.0
  %413 = vmatpush1.msra.mxu0 0.0
  %414 = vmatprep.subr.mxu0 0.0
  %415 = vmatpush1.msra.mxu0 0.0
  %416 = vmatprep.subr.mxu0 0.0
  %417 = vmatpush1.msra.mxu0 0.0
  %418 = vmatprep.subr.mxu0 0.0
  %419 = vmatpush1.msra.mxu0 0.0
  %420 = vmatprep.subr.mxu0 0.0
  %421 = vmatpush1.msra.mxu0 0.0
  %422 = vmatprep.subr.mxu0 0.0
  %423 = vmatpush1.msra.mxu0 0.0
  %424 = vmatprep.subr.mxu0 0.0
  %425 = vmatpush1.msra.mxu0 0.0
  %426 = vmatprep.subr.mxu0 0.0
  %427 = vmatpush1.msra.mxu0 0.0
  %428 = vmatprep.subr.mxu0 0.0
  %429 = vmatpush1.msra.mxu0 0.0
  %430 = vmatprep.subr.mxu0 0.0
  %431 = vmatpush1.msra.mxu0 0.0
  %432 = vmatprep.subr.mxu0 0.0
  %433 = vmatpush1.msra.mxu0 0.0
  %434 = vmatprep.subr.mxu0 0.0
  %435 = vmatpush1.msra.mxu0 0.0
  %436 = vmatprep.subr.mxu0 0.0
  %437 = vmatpush1.msra.mxu0 0.0
  %438 = vmatprep.subr.mxu0 0.0
  %439 = vmatpush1.msra.mxu0 0.0
  %440 = vmatprep.subr.mxu0 0.0
  %441 = vmatpush1.msra.mxu0 0.0
  %442 = vmatprep.subr.mxu0 0.0
  %443 = vmatpush1.msra.mxu0 0.0
  %444 = vmatprep.subr.mxu0 0.0
  %445 = vmatpush1.msra.mxu0 0.0
  %446 = vmatprep.subr.mxu0 0.0
  %447 = vmatpush1.msra.mxu0 0.0
  %448 = vmatprep.subr.mxu0 0.0
  %449 = vmatpush1.msra.mxu0 0.0
  %450 = vmatprep.subr.mxu0 0.0
  %451 = vmatpush1.msra.mxu0 0.0
  %452 = vmatprep.subr.mxu0 0.0
  %453 = vmatpush1.msra.mxu0 0.0
  %454 = vmatprep.subr.mxu0 0.0
  %455 = vmatpush1.msra.mxu0 0.0
  %456 = vmatprep.subr.mxu0 0.0
  %457 = vmatpush1.msra.mxu0 0.0
  %458 = vmatprep.subr.mxu0 0.0
  %459 = vmatpush1.msra.mxu0 0.0
  %460 = vmatprep.subr.mxu0 0.0
  %461 = vmatpush1.msra.mxu0 0.0
  %462 = vmatprep.mubr.f32.mxu0 0.0
  %463 = vmatmul.mubr.f32.gmra.mrb[0].mxu0 %v134
  %v464 = vpop.f32.mrb[0].mxu0
  %v465 = vadd.f32 %v275, %v464
  %v466 = vpop.f32.mrb[0].mxu0
  %467 = vmatprep.mubr.f32.mxu0 0.0
  %468 = vmatmul.mubr.f32.gmra.mrb[0].mxu0 %v137
  %v469 = vpop.f32.mrb[0].mxu0
  %v470 = vadd.f32 %v280, %v469
  %v471 = vpop.f32.mrb[0].mxu0
  %472 = vmatprep.mubr.f32.mxu0 0.0
  %473 = vmatmul.mubr.f32.gmra.mrb[0].mxu0 %v140
  %v474 = vpop.f32.mrb[0].mxu0
  %v475 = vadd.f32 %v285, %v474
  %v476 = vpop.f32.mrb[0].mxu0
  %477 = vmatprep.mubr.f32.mxu0 0.0
  %478 = vmatmul.mubr.f32.gmra.mrb[0].mxu0 %v143
  %v479 = vpop.f32.mrb[0].mxu0
  %v480 = vadd.f32 %v290, %v479
  %v481 = vpop.f32.mrb[0].mxu0
  %482 = vmatprep.mubr.f32.mxu0 0.0
  %483 = vmatmul.mubr.f32.gmra.mrb[0].mxu0 %v146
  %v484 = vpop.f32.mrb[0].mxu0
  %v485 = vadd.f32 %v295, %v484
  %v486 = vpop.f32.mrb[0].mxu0
  %487 = vmatprep.mubr.f32.mxu0 0.0
  %488 = vmatmul.mubr.f32.gmra.mrb[0].mxu0 %v149
  %v489 = vpop.f32.mrb[0].mxu0
  %v490 = vadd.f32 %v300, %v489
  %v491 = vpop.f32.mrb[0].mxu0
  %492 = vmatprep.mubr.f32.mxu0 0.0
  %493 = vmatmul.mubr.f32.gmra.mrb[0].mxu0 %v152
  %v494 = vpop.f32.mrb[0].mxu0
  %v495 = vadd.f32 %v305, %v494
  %v496 = vpop.f32.mrb[0].mxu0
  %497 = vmatprep.mubr.f32.mxu0 0.0
  %498 = vmatmul.mubr.f32.gmra.mrb[0].mxu0 %v155
  %v499 = vpop.f32.mrb[0].mxu0
  %v500 = vadd.f32 %v310, %v499
  %v501 = vpop.f32.mrb[0].mxu0
  %502 = vmatprep.mubr.f32.mxu0 0.0
  %503 = vmatmul.mubr.f32.gmra.mrb[0].mxu0 %v158
  %v504 = vpop.f32.mrb[0].mxu0
  %v505 = vadd.f32 %v315, %v504
  %v506 = vpop.f32.mrb[0].mxu0
  %507 = vmatprep.mubr.f32.mxu0 0.0
  %508 = vmatmul.mubr.f32.gmra.mrb[0].mxu0 %v161
  %v509 = vpop.f32.mrb[0].mxu0
  %v510 = vadd.f32 %v320, %v509
  %v511 = vpop.f32.mrb[0].mxu0
  %512 = vmatprep.mubr.f32.mxu0 0.0
  %513 = vmatmul.mubr.f32.gmra.mrb[0].mxu0 %v164
  %v514 = vpop.f32.mrb[0].mxu0
  %v515 = vadd.f32 %v325, %v514
  %v516 = vpop.f32.mrb[0].mxu0
  %517 = vmatprep.mubr.f32.mxu0 0.0
  %518 = vmatmul.mubr.f32.gmra.mrb[0].mxu0 %v167
  %v519 = vpop.f32.mrb[0].mxu0
  %v520 = vadd.f32 %v330, %v519
  %v521 = vpop.f32.mrb[0].mxu0
  %522 = vmatprep.mubr.f32.mxu0 0.0
  %523 = vmatmul.mubr.f32.gmra.mrb[0].mxu0 %v170
  %v524 = vpop.f32.mrb[0].mxu0
  %v525 = vadd.f32 %v335, %v524
  %v526 = vpop.f32.mrb[0].mxu0
  %527 = vmatprep.mubr.f32.mxu0 0.0
  %528 = vmatmul.mubr.f32.gmra.mrb[0].mxu0 %v173
  %v529 = vpop.f32.mrb[0].mxu0
  %v530 = vadd.f32 %v340, %v529
  %v531 = vpop.f32.mrb[0].mxu0
  %532 = vmatprep.mubr.f32.mxu0 0.0
  %533 = vmatmul.mubr.f32.gmra.mrb[0].mxu0 %v176
  %v534 = vpop.f32.mrb[0].mxu0
  %v535 = vadd.f32 %v345, %v534
  %v536 = vpop.f32.mrb[0].mxu0
  %537 = vmatprep.mubr.f32.mxu0 0.0
  %538 = vmatmul.mubr.f32.gmra.mrb[0].mxu0 %v179
  %v539 = vpop.f32.mrb[0].mxu0
  %v540 = vadd.f32 %v350, %v539
  %v541 = vpop.f32.mrb[0].mxu0
  %542 = vmatprep.mubr.f32.mxu0 0.0
  %543 = vmatmul.mubr.f32.gmra.mrb[0].mxu0 %v182
  %v544 = vpop.f32.mrb[0].mxu0
  %v545 = vadd.f32 %v355, %v544
  %v546 = vpop.f32.mrb[0].mxu0
  %547 = vmatprep.mubr.f32.mxu0 0.0
  %548 = vmatmul.mubr.f32.gmra.mrb[0].mxu0 %v185
  %v549 = vpop.f32.mrb[0].mxu0
  %v550 = vadd.f32 %v360, %v549
  %v551 = vpop.f32.mrb[0].mxu0
  %552 = vmatprep.mubr.f32.mxu0 0.0
  %553 = vmatmul.mubr.f32.gmra.mrb[0].mxu0 %v188
  %v554 = vpop.f32.mrb[0].mxu0
  %v555 = vadd.f32 %v365, %v554
  %v556 = vpop.f32.mrb[0].mxu0
  %557 = vmatprep.mubr.f32.mxu0 0.0
  %558 = vmatmul.mubr.f32.gmra.mrb[0].mxu0 %v191
  %v559 = vpop.f32.mrb[0].mxu0
  %v560 = vadd.f32 %v370, %v559
  %v561 = vpop.f32.mrb[0].mxu0
  %562 = vmatprep.mubr.f32.mxu0 0.0
  %563 = vmatmul.mubr.f32.gmra.mrb[0].mxu0 %v194
  %v564 = vpop.f32.mrb[0].mxu0
  %v565 = vadd.f32 %v375, %v564
  %v566 = vpop.f32.mrb[0].mxu0
  %567 = vmatprep.mubr.f32.mxu0 0.0
  %568 = vmatmul.mubr.f32.gmra.mrb[0].mxu0 %v197
  %v569 = vpop.f32.mrb[0].mxu0
  %v570 = vadd.f32 %v380, %v569
  %v571 = vpop.f32.mrb[0].mxu0
  %572 = vmatprep.mubr.f32.mxu0 0.0
  %573 = vmatmul.mubr.f32.gmra.mrb[0].mxu0 %v200
  %v574 = vpop.f32.mrb[0].mxu0
  %v575 = vadd.f32 %v385, %v574
  %v576 = vpop.f32.mrb[0].mxu0
  %577 = vmatprep.mubr.f32.mxu0 0.0
  %578 = vmatmul.mubr.f32.gmra.mrb[0].mxu0 %v203
  %v579 = vpop.f32.mrb[0].mxu0
  %v580 = vadd.f32 %v390, %v579
  %v581 = vpop.f32.mrb[0].mxu0
  %582 = vmatprep.mubr.f32.mxu0 0.0
  %583 = vmatmul.mubr.f32.gmra.mrb[0].mxu0 %v206
  %v584 = vpop.f32.mrb[0].mxu0
  %v585 = vadd.f32 %v395, %v584
  %v586 = vpop.f32.mrb[0].mxu0
  %587 = vdwg.mxu0
  %v588 = vmax.f32 %v465, 0.0
  %v589 = vmax.f32 %v470, 0.0
  %v590 = vmax.f32 %v475, 0.0
  %v591 = vmax.f32 %v480, 0.0
  %v592 = vmax.f32 %v485, 0.0
  %v593 = vmax.f32 %v490, 0.0
  %v594 = vmax.f32 %v495, 0.0
  %v595 = vmax.f32 %v500, 0.0
  %v596 = vmax.f32 %v505, 0.0
  %v597 = vmax.f32 %v510, 0.0
  %v598 = vmax.f32 %v515, 0.0
  %v599 = vmax.f32 %v520, 0.0
  %v600 = vmax.f32 %v525, 0.0
  %v601 = vmax.f32 %v530, 0.0
  %v602 = vmax.f32 %v535, 0.0
  %v603 = vmax.f32 %v540, 0.0
  %v604 = vmax.f32 %v545, 0.0
  %v605 = vmax.f32 %v550, 0.0
  %v606 = vmax.f32 %v555, 0.0
  %v607 = vmax.f32 %v560, 0.0
  %v608 = vmax.f32 %v565, 0.0
  %v609 = vmax.f32 %v570, 0.0
  %v610 = vmax.f32 %v575, 0.0
  %v611 = vmax.f32 %v580, 0.0
  %v612 = vmax.f32 %v585, 0.0
  %vm613 = vcmask 523264
  %614 = vst.msk [vmem:[%s3] sm:$0xff] %vm613, %v588
  %615 = vst.msk [vmem:[%s3 + $0x8] sm:$0xff] %vm613, %v589
  %616 = vst.msk [vmem:[%s3 + $0x10] sm:$0xff] %vm613, %v590
  %617 = vst.msk [vmem:[%s3 + $0x18] sm:$0xff] %vm613, %v591
  %618 = vst.msk [vmem:[%s3 + $0x20] sm:$0xff] %vm613, %v592
  %619 = vst.msk [vmem:[%s3 + $0x28] sm:$0xff] %vm613, %v593
  %620 = vst.msk [vmem:[%s3 + $0x30] sm:$0xff] %vm613, %v594
  %621 = vst.msk [vmem:[%s3 + $0x38] sm:$0xff] %vm613, %v595
  %622 = vst.msk [vmem:[%s3 + $0x40] sm:$0xff] %vm613, %v596
  %623 = vst.msk [vmem:[%s3 + $0x48] sm:$0xff] %vm613, %v597
  %624 = vst.msk [vmem:[%s3 + $0x50] sm:$0xff] %vm613, %v598
  %625 = vst.msk [vmem:[%s3 + $0x58] sm:$0xff] %vm613, %v599
  %626 = vst.msk [vmem:[%s3 + $0x60] sm:$0xff] %vm613, %v600
  %627 = vst.msk [vmem:[%s3 + $0x68] sm:$0xff] %vm613, %v601
  %628 = vst.msk [vmem:[%s3 + $0x70] sm:$0xff] %vm613, %v602
  %629 = vst.msk [vmem:[%s3 + $0x78] sm:$0xff] %vm613, %v603
  %630 = vst.msk [vmem:[%s3 + $0x80] sm:$0xff] %vm613, %v604
  %631 = vst.msk [vmem:[%s3 + $0x88] sm:$0xff] %vm613, %v605
  %632 = vst.msk [vmem:[%s3 + $0x90] sm:$0xff] %vm613, %v606
  %633 = vst.msk [vmem:[%s3 + $0x98] sm:$0xff] %vm613, %v607
  %634 = vst.msk [vmem:[%s3 + $0xa0] sm:$0xff] %vm613, %v608
  %635 = vst.msk [vmem:[%s3 + $0xa8] sm:$0xff] %vm613, %v609
  %636 = vst.msk [vmem:[%s3 + $0xb0] sm:$0xff] %vm613, %v610
  %637 = vst.msk [vmem:[%s3 + $0xb8] sm:$0xff] %vm613, %v611
  %638 = vst.msk [vmem:[%s3 + $0xc0] sm:$0xff] %vm613, %v612
  // Predicated region
  $region14: #{forward.4} parent=0 // pred_check
    _
  $region15: #{forward.4} parent=0 // pred_check_branch
    %640 = sbr.rel (0) target = $region17
  $region16: #{forward.4} parent=0 // pred_region
    _
  $region17: #{forward.4} parent=0 // pred_fallthru
    _
  // Predicated region
  $region18: #{forward.4} parent=0 // pred_check
    _
  $region19: #{forward.4} parent=0 // pred_check_branch
    %642 = sbr.rel (0) target = $region21
  $region20: #{forward.4} parent=0 // pred_region
    _
  $region21: #{forward.4} parent=0 // pred_fallthru
    _

// kernel: forward.5
$region0: #{forward.5}
  #allocation0 [shape = 'u32[]', space=smem, size = 0x4, offset = 0x4, fixed_abs, tag = 'smem constant byte address 0x4 - core index']
  #allocation1 [shape = 'u32[144,128]{1,0:T(1,128)}', space=vmem, size = 0x12000, scoped, tag = 'internal scratch']
  %s0 = inlined_call_operand.vmem [shape: f32[2,6400], index: 0, kind: input, shape index: {}]
  %s1 = inlined_call_operand.vmem [shape: f32[6400,10], index: 1, kind: input, shape index: {}]
  %s2 = inlined_call_operand.vmem [shape: f32[1,10], index: 2, kind: input, shape index: {}]
  %s3 = inlined_call_operand.vmem [shape: f32[6400,10], index: 3, kind: input, shape index: {}]
  %s4 = inlined_call_operand.vmem [shape: f32[1,10], index: 4, kind: input, shape index: {}]
  %s5 = inlined_call_operand.hbm [shape: f32[2,10], index: 5, kind: output, shape index: {}]
  %s6 = sld [smem:[#allocation0]]
  $region30: #{forward.5} parent=0
    _
  %s8 = ssub.s32 1, %s6
  %s9 = scalar_select 0, %s8, %s6
  $region1: #{forward.5} parent=0
    #allocation2 [shape = 'u8[1024]{0}', space=vmem, size = 0x400, scoped, tag = 'output window, operand 0, single buffered']
    #allocation3 [shape = 's32[1]{0}', space=sflag, size = 0x4, scoped, tag = 'scoped memory for forward.5']
    %10 = vsyncpa [#allocation3], 0
    // Predicated region
    $region2: #{forward.5} parent=1 // pred_check
      _
    $region3: #{forward.5} parent=1 // pred_check_branch
      %12 = sbr.rel (0) target = $region5
    $region4: #{forward.5} parent=1 // pred_region
      _
    $region5: #{forward.5} parent=1 // pred_fallthru
      _
    // Predicated region
    $region6: #{forward.5} parent=1 // pred_check
      _
    $region7: #{forward.5} parent=1 // pred_check_branch
      %14 = sbr.rel (0) target = $region9
    $region8: #{forward.5} parent=1 // pred_region
      _
    $region9: #{forward.5} parent=1 // pred_fallthru
      _
    // Predicated region
    $region10: #{forward.5} parent=1 // pred_check
      _
    $region11: #{forward.5} parent=1 // pred_check_branch
      %16 = sbr.rel (0) target = $region13
    $region12: #{forward.5} parent=1 // pred_region
      _
    $region13: #{forward.5} parent=1 // pred_fallthru
      _
    // Predicated region
    $region14: #{forward.5} parent=1 // pred_check
      _
    $region15: #{forward.5} parent=1 // pred_check_branch
      %18 = sbr.rel (0) target = $region17
    $region16: #{forward.5} parent=1 // pred_region
      _
    $region17: #{forward.5} parent=1 // pred_fallthru
      _
    // Predicated region
    $region18: #{forward.5} parent=1 // pred_check
      _
    $region19: #{forward.5} parent=1 // pred_check_branch
      %20 = sbr.rel (0) target = $region21
    $region20: #{forward.5} parent=1 // pred_region
      _
    $region21: #{forward.5} parent=1 // pred_fallthru
      _
    %v21 = vld [vmem:[%s0] sm:$0xff]
    %v22 = vld [vmem:[%s0 + $0x8] sm:$0xff]
    %v23 = vld [vmem:[%s0 + $0x10] sm:$0xff]
    %v24 = vld [vmem:[%s0 + $0x18] sm:$0xff]
    %v25 = vld [vmem:[%s0 + $0x20] sm:$0xff]
    %v26 = vld [vmem:[%s0 + $0x28] sm:$0xff]
    %v27 = vld [vmem:[%s0 + $0x30] sm:$0xff]
    %v28 = vld [vmem:[%s0 + $0x38] sm:$0xff]
    %v29 = vld [vmem:[%s0 + $0x40] sm:$0xff]
    %v30 = vld [vmem:[%s0 + $0x48] sm:$0xff]
    %v31 = vld [vmem:[%s0 + $0x50] sm:$0xff]
    %v32 = vld [vmem:[%s0 + $0x58] sm:$0xff]
    %v33 = vld [vmem:[%s0 + $0x60] sm:$0xf]
    %v34 = vld [vmem:[%s1] sm:$0xff]
    %v35 = vld [vmem:[%s1 + $0x8] sm:$0xff]
    %v36 = vld [vmem:[%s1 + $0x10] sm:$0xff]
    %v37 = vld [vmem:[%s1 + $0x18] sm:$0xff]
    %v38 = vld [vmem:[%s1 + $0x20] sm:$0xff]
    %v39 = vld [vmem:[%s1 + $0x28] sm:$0xff]
    %v40 = vld [vmem:[%s1 + $0x30] sm:$0xff]
    %v41 = vld [vmem:[%s1 + $0x38] sm:$0xff]
    %v42 = vld [vmem:[%s1 + $0x40] sm:$0xff]
    %v43 = vld [vmem:[%s1 + $0x48] sm:$0xff]
    %v44 = vld [vmem:[%s1 + $0x50] sm:$0xff]
    %v45 = vld [vmem:[%s1 + $0x58] sm:$0xff]
    %v46 = vld [vmem:[%s1 + $0x60] sm:$0xff]
    %v47 = vld [vmem:[%s1 + $0x68] sm:$0xff]
    %v48 = vld [vmem:[%s1 + $0x70] sm:$0xff]
    %v49 = vld [vmem:[%s1 + $0x78] sm:$0xff]
    %v50 = vld [vmem:[%s1 + $0x80] sm:$0xff]
    %v51 = vld [vmem:[%s1 + $0x88] sm:$0xff]
    %v52 = vld [vmem:[%s1 + $0x90] sm:$0xff]
    %v53 = vld [vmem:[%s1 + $0x98] sm:$0xff]
    %v54 = vld [vmem:[%s1 + $0xa0] sm:$0xff]
    %v55 = vld [vmem:[%s1 + $0xa8] sm:$0xff]
    %v56 = vld [vmem:[%s1 + $0xb0] sm:$0xff]
    %v57 = vld [vmem:[%s1 + $0xb8] sm:$0xff]
    %v58 = vld [vmem:[%s1 + $0xc0] sm:$0xff]
    %v59 = vld [vmem:[%s1 + $0xc8] sm:$0xff]
    %v60 = vld [vmem:[%s1 + $0xd0] sm:$0xff]
    %v61 = vld [vmem:[%s1 + $0xd8] sm:$0xff]
    %v62 = vld [vmem:[%s1 + $0xe0] sm:$0xff]
    %v63 = vld [vmem:[%s1 + $0xe8] sm:$0xff]
    %v64 = vld [vmem:[%s1 + $0xf0] sm:$0xff]
    %v65 = vld [vmem:[%s1 + $0xf8] sm:$0xff]
    %v66 = vld [vmem:[%s1 + $0x100] sm:$0xff]
    %v67 = vld [vmem:[%s1 + $0x108] sm:$0xff]
    %v68 = vld [vmem:[%s1 + $0x110] sm:$0xff]
    %v69 = vld [vmem:[%s1 + $0x118] sm:$0xff]
    %v70 = vld [vmem:[%s1 + $0x120] sm:$0xff]
    %v71 = vld [vmem:[%s1 + $0x128] sm:$0xff]
    %v72 = vld [vmem:[%s1 + $0x130] sm:$0xff]
    %v73 = vld [vmem:[%s1 + $0x138] sm:$0xff]
    %v74 = vld [vmem:[%s1 + $0x140] sm:$0xff]
    %v75 = vld [vmem:[%s1 + $0x148] sm:$0xff]
    %v76 = vld [vmem:[%s1 + $0x150] sm:$0xff]
    %v77 = vld [vmem:[%s1 + $0x158] sm:$0xff]
    %v78 = vld [vmem:[%s1 + $0x160] sm:$0xff]
    %v79 = vld [vmem:[%s1 + $0x168] sm:$0xff]
    %v80 = vld [vmem:[%s1 + $0x170] sm:$0xff]
    %v81 = vld [vmem:[%s1 + $0x178] sm:$0xff]
    %v82 = vld [vmem:[%s1 + $0x180] sm:$0xff]
    %v83 = vld [vmem:[%s1 + $0x188] sm:$0xff]
    %v84 = vld [vmem:[%s1 + $0x190] sm:$0xff]
    %v85 = vld [vmem:[%s1 + $0x198] sm:$0xff]
    %v86 = vld [vmem:[%s1 + $0x1a0] sm:$0xff]
    %v87 = vld [vmem:[%s1 + $0x1a8] sm:$0xff]
    %v88 = vld [vmem:[%s1 + $0x1b0] sm:$0xff]
    %v89 = vld [vmem:[%s1 + $0x1b8] sm:$0xff]
    %v90 = vld [vmem:[%s1 + $0x1c0] sm:$0xff]
    %v91 = vld [vmem:[%s1 + $0x1c8] sm:$0xff]
    %v92 = vld [vmem:[%s1 + $0x1d0] sm:$0xff]
    %v93 = vld [vmem:[%s1 + $0x1d8] sm:$0xff]
    %v94 = vld [vmem:[%s1 + $0x1e0] sm:$0xff]
    %v95 = vld [vmem:[%s1 + $0x1e8] sm:$0xff]
    %v96 = vld [vmem:[%s1 + $0x1f0] sm:$0xff]
    %v97 = vld [vmem:[%s1 + $0x1f8] sm:$0xff]
    %v98 = vld [vmem:[%s1 + $0x200] sm:$0xff]
    %v99 = vld [vmem:[%s1 + $0x208] sm:$0xff]
    %v100 = vld [vmem:[%s1 + $0x210] sm:$0xff]
    %v101 = vld [vmem:[%s1 + $0x218] sm:$0xff]
    %v102 = vld [vmem:[%s1 + $0x220] sm:$0xff]
    %v103 = vld [vmem:[%s1 + $0x228] sm:$0xff]
    %v104 = vld [vmem:[%s1 + $0x230] sm:$0xff]
    %v105 = vld [vmem:[%s1 + $0x238] sm:$0xff]
    %v106 = vld [vmem:[%s1 + $0x240] sm:$0xff]
    %v107 = vld [vmem:[%s1 + $0x248] sm:$0xff]
    %v108 = vld [vmem:[%s1 + $0x250] sm:$0xff]
    %v109 = vld [vmem:[%s1 + $0x258] sm:$0xff]
    %v110 = vld [vmem:[%s1 + $0x260] sm:$0xff]
    %v111 = vld [vmem:[%s1 + $0x268] sm:$0xff]
    %v112 = vld [vmem:[%s1 + $0x270] sm:$0xff]
    %v113 = vld [vmem:[%s1 + $0x278] sm:$0xff]
    %v114 = vld [vmem:[%s1 + $0x280] sm:$0xff]
    %v115 = vld [vmem:[%s1 + $0x288] sm:$0xff]
    %v116 = vld [vmem:[%s1 + $0x290] sm:$0xff]
    %v117 = vld [vmem:[%s1 + $0x298] sm:$0xff]
    %v118 = vld [vmem:[%s1 + $0x2a0] sm:$0xff]
    %v119 = vld [vmem:[%s1 + $0x2a8] sm:$0xff]
    %v120 = vld [vmem:[%s1 + $0x2b0] sm:$0xff]
    %v121 = vld [vmem:[%s1 + $0x2b8] sm:$0xff]
    %v122 = vld [vmem:[%s1 + $0x2c0] sm:$0xff]
    %v123 = vld [vmem:[%s1 + $0x2c8] sm:$0xff]
    %v124 = vld [vmem:[%s1 + $0x2d0] sm:$0xff]
    %v125 = vld [vmem:[%s1 + $0x2d8] sm:$0xff]
    %v126 = vld [vmem:[%s1 + $0x2e0] sm:$0xff]
    %v127 = vld [vmem:[%s1 + $0x2e8] sm:$0xff]
    %v128 = vld [vmem:[%s1 + $0x2f0] sm:$0xff]
    %v129 = vld [vmem:[%s1 + $0x2f8] sm:$0xff]
    %v130 = vld [vmem:[%s1 + $0x300] sm:$0xff]
    %v131 = vld [vmem:[%s1 + $0x308] sm:$0xff]
    %v132 = vld [vmem:[%s1 + $0x310] sm:$0xff]
    %v133 = vld [vmem:[%s1 + $0x318] sm:$0xff]
    %v134 = vld [vmem:[%s1 + $0x320] sm:$0xff]
    %v135 = vld [vmem:[%s1 + $0x328] sm:$0xff]
    %v136 = vld [vmem:[%s1 + $0x330] sm:$0xff]
    %v137 = vld [vmem:[%s1 + $0x338] sm:$0xff]
    %v138 = vld [vmem:[%s1 + $0x340] sm:$0xff]
    %v139 = vld [vmem:[%s1 + $0x348] sm:$0xff]
    %v140 = vld [vmem:[%s1 + $0x350] sm:$0xff]
    %v141 = vld [vmem:[%s1 + $0x358] sm:$0xff]
    %v142 = vld [vmem:[%s1 + $0x360] sm:$0xff]
    %v143 = vld [vmem:[%s1 + $0x368] sm:$0xff]
    %v144 = vld [vmem:[%s1 + $0x370] sm:$0xff]
    %v145 = vld [vmem:[%s1 + $0x378] sm:$0xff]
    %v146 = vld [vmem:[%s1 + $0x380] sm:$0xff]
    %v147 = vld [vmem:[%s1 + $0x388] sm:$0xff]
    %v148 = vld [vmem:[%s1 + $0x390] sm:$0xff]
    %v149 = vld [vmem:[%s1 + $0x398] sm:$0xff]
    %v150 = vld [vmem:[%s1 + $0x3a0] sm:$0xff]
    %v151 = vld [vmem:[%s1 + $0x3a8] sm:$0xff]
    %v152 = vld [vmem:[%s1 + $0x3b0] sm:$0xff]
    %v153 = vld [vmem:[%s1 + $0x3b8] sm:$0xff]
    %v154 = vld [vmem:[%s1 + $0x3c0] sm:$0xff]
    %v155 = vld [vmem:[%s1 + $0x3c8] sm:$0xff]
    %v156 = vld [vmem:[%s1 + $0x3d0] sm:$0xff]
    %v157 = vld [vmem:[%s1 + $0x3d8] sm:$0xff]
    %v158 = vld [vmem:[%s1 + $0x3e0] sm:$0xff]
    %v159 = vld [vmem:[%s1 + $0x3e8] sm:$0xff]
    %v160 = vld [vmem:[%s1 + $0x3f0] sm:$0xff]
    %v161 = vld [vmem:[%s1 + $0x3f8] sm:$0xff]
    %v162 = vld [vmem:[%s1 + $0x400] sm:$0xff]
    %v163 = vld [vmem:[%s1 + $0x408] sm:$0xff]
    %v164 = vld [vmem:[%s1 + $0x410] sm:$0xff]
    %v165 = vld [vmem:[%s1 + $0x418] sm:$0xff]
    %v166 = vld [vmem:[%s1 + $0x420] sm:$0xff]
    %v167 = vld [vmem:[%s1 + $0x428] sm:$0xff]
    %v168 = vld [vmem:[%s1 + $0x430] sm:$0xff]
    %v169 = vld [vmem:[%s1 + $0x438] sm:$0xff]
    %v170 = vld [vmem:[%s1 + $0x440] sm:$0xff]
    %v171 = vld [vmem:[%s1 + $0x448] sm:$0xff]
    %v172 = vld [vmem:[%s1 + $0x450] sm:$0xff]
    %v173 = vld [vmem:[%s1 + $0x458] sm:$0xff]
    %v174 = vld [vmem:[%s1 + $0x460] sm:$0xff]
    %v175 = vld [vmem:[%s1 + $0x468] sm:$0xff]
    %v176 = vld [vmem:[%s1 + $0x470] sm:$0xff]
    %v177 = vld [vmem:[%s1 + $0x478] sm:$0xff]
    %v178 = vld [vmem:[%s1 + $0x480] sm:$0xff]
    %v179 = vld [vmem:[%s1 + $0x488] sm:$0xff]
    %v180 = vld [vmem:[%s1 + $0x490] sm:$0xff]
    %v181 = vld [vmem:[%s1 + $0x498] sm:$0xff]
    %v182 = vld [vmem:[%s1 + $0x4a0] sm:$0xff]
    %v183 = vld [vmem:[%s1 + $0x4a8] sm:$0xff]
    %v184 = vld [vmem:[%s1 + $0x4b0] sm:$0xff]
    %v185 = vld [vmem:[%s1 + $0x4b8] sm:$0xff]
    %v186 = vld [vmem:[%s1 + $0x4c0] sm:$0xff]
    %v187 = vld [vmem:[%s1 + $0x4c8] sm:$0xff]
    %v188 = vld [vmem:[%s1 + $0x4d0] sm:$0xff]
    %v189 = vld [vmem:[%s1 + $0x4d8] sm:$0xff]
    %v190 = vld [vmem:[%s1 + $0x4e0] sm:$0xff]
    %v191 = vld [vmem:[%s1 + $0x4e8] sm:$0xff]
    %v192 = vld [vmem:[%s1 + $0x4f0] sm:$0xff]
    %v193 = vld [vmem:[%s1 + $0x4f8] sm:$0xff]
    %v194 = vld [vmem:[%s1 + $0x500] sm:$0xff]
    %v195 = vld [vmem:[%s1 + $0x508] sm:$0xff]
    %v196 = vld [vmem:[%s1 + $0x510] sm:$0xff]
    %v197 = vld [vmem:[%s1 + $0x518] sm:$0xff]
    %v198 = vld [vmem:[%s1 + $0x520] sm:$0xff]
    %v199 = vld [vmem:[%s1 + $0x528] sm:$0xff]
    %v200 = vld [vmem:[%s1 + $0x530] sm:$0xff]
    %v201 = vld [vmem:[%s1 + $0x538] sm:$0xff]
    %v202 = vld [vmem:[%s1 + $0x540] sm:$0xff]
    %v203 = vld [vmem:[%s1 + $0x548] sm:$0xff]
    %v204 = vld [vmem:[%s1 + $0x550] sm:$0xff]
    %v205 = vld [vmem:[%s1 + $0x558] sm:$0xff]
    %v206 = vld [vmem:[%s1 + $0x560] sm:$0xff]
    %v207 = vld [vmem:[%s1 + $0x568] sm:$0xff]
    %v208 = vld [vmem:[%s1 + $0x570] sm:$0xff]
    %v209 = vld [vmem:[%s1 + $0x578] sm:$0xff]
    %v210 = vld [vmem:[%s1 + $0x580] sm:$0xff]
    %v211 = vld [vmem:[%s1 + $0x588] sm:$0xff]
    %v212 = vld [vmem:[%s1 + $0x590] sm:$0xff]
    %v213 = vld [vmem:[%s1 + $0x598] sm:$0xff]
    %v214 = vld [vmem:[%s1 + $0x5a0] sm:$0xff]
    %v215 = vld [vmem:[%s1 + $0x5a8] sm:$0xff]
    %v216 = vld [vmem:[%s1 + $0x5b0] sm:$0xff]
    %v217 = vld [vmem:[%s1 + $0x5b8] sm:$0xff]
    %v218 = vld [vmem:[%s1 + $0x5c0] sm:$0xff]
    %v219 = vld [vmem:[%s1 + $0x5c8] sm:$0xff]
    %v220 = vld [vmem:[%s1 + $0x5d0] sm:$0xff]
    %v221 = vld [vmem:[%s1 + $0x5d8] sm:$0xff]
    %v222 = vld [vmem:[%s1 + $0x5e0] sm:$0xff]
    %v223 = vld [vmem:[%s1 + $0x5e8] sm:$0xff]
    %v224 = vld [vmem:[%s1 + $0x5f0] sm:$0xff]
    %v225 = vld [vmem:[%s1 + $0x5f8] sm:$0xff]
    %v226 = vld [vmem:[%s1 + $0x600] sm:$0xff]
    %v227 = vld [vmem:[%s1 + $0x608] sm:$0xff]
    %v228 = vld [vmem:[%s1 + $0x610] sm:$0xff]
    %v229 = vld [vmem:[%s1 + $0x618] sm:$0xff]
    %v230 = vld [vmem:[%s1 + $0x620] sm:$0xff]
    %v231 = vld [vmem:[%s1 + $0x628] sm:$0xff]
    %v232 = vld [vmem:[%s1 + $0x630] sm:$0xff]
    %v233 = vld [vmem:[%s1 + $0x638] sm:$0xff]
    %v234 = vld [vmem:[%s1 + $0x640] sm:$0xff]
    %v235 = vld [vmem:[%s1 + $0x648] sm:$0xff]
    %v236 = vld [vmem:[%s1 + $0x650] sm:$0xff]
    %v237 = vld [vmem:[%s1 + $0x658] sm:$0xff]
    %v238 = vld [vmem:[%s1 + $0x660] sm:$0xff]
    %v239 = vld [vmem:[%s1 + $0x668] sm:$0xff]
    %v240 = vld [vmem:[%s1 + $0x670] sm:$0xff]
    %v241 = vld [vmem:[%s1 + $0x678] sm:$0xff]
    %v242 = vld [vmem:[%s1 + $0x680] sm:$0xff]
    %v243 = vld [vmem:[%s1 + $0x688] sm:$0xff]
    %v244 = vld [vmem:[%s1 + $0x690] sm:$0xff]
    %v245 = vld [vmem:[%s1 + $0x698] sm:$0xff]
    %v246 = vld [vmem:[%s1 + $0x6a0] sm:$0xff]
    %v247 = vld [vmem:[%s1 + $0x6a8] sm:$0xff]
    %v248 = vld [vmem:[%s1 + $0x6b0] sm:$0xff]
    %v249 = vld [vmem:[%s1 + $0x6b8] sm:$0xff]
    %v250 = vld [vmem:[%s1 + $0x6c0] sm:$0xff]
    %v251 = vld [vmem:[%s1 + $0x6c8] sm:$0xff]
    %v252 = vld [vmem:[%s1 + $0x6d0] sm:$0xff]
    %v253 = vld [vmem:[%s1 + $0x6d8] sm:$0xff]
    %v254 = vld [vmem:[%s1 + $0x6e0] sm:$0xff]
    %v255 = vld [vmem:[%s1 + $0x6e8] sm:$0xff]
    %v256 = vld [vmem:[%s1 + $0x6f0] sm:$0xff]
    %v257 = vld [vmem:[%s1 + $0x6f8] sm:$0xff]
    %v258 = vld [vmem:[%s1 + $0x700] sm:$0xff]
    %v259 = vld [vmem:[%s1 + $0x708] sm:$0xff]
    %v260 = vld [vmem:[%s1 + $0x710] sm:$0xff]
    %v261 = vld [vmem:[%s1 + $0x718] sm:$0xff]
    %v262 = vld [vmem:[%s1 + $0x720] sm:$0xff]
    %v263 = vld [vmem:[%s1 + $0x728] sm:$0xff]
    %v264 = vld [vmem:[%s1 + $0x730] sm:$0xff]
    %v265 = vld [vmem:[%s1 + $0x738] sm:$0xff]
    %v266 = vld [vmem:[%s1 + $0x740] sm:$0xff]
    %v267 = vld [vmem:[%s1 + $0x748] sm:$0xff]
    %v268 = vld [vmem:[%s1 + $0x750] sm:$0xff]
    %v269 = vld [vmem:[%s1 + $0x758] sm:$0xff]
    %v270 = vld [vmem:[%s1 + $0x760] sm:$0xff]
    %v271 = vld [vmem:[%s1 + $0x768] sm:$0xff]
    %v272 = vld [vmem:[%s1 + $0x770] sm:$0xff]
    %v273 = vld [vmem:[%s1 + $0x778] sm:$0xff]
    %v274 = vld [vmem:[%s1 + $0x780] sm:$0xff]
    %v275 = vld [vmem:[%s1 + $0x788] sm:$0xff]
    %v276 = vld [vmem:[%s1 + $0x790] sm:$0xff]
    %v277 = vld [vmem:[%s1 + $0x798] sm:$0xff]
    %v278 = vld [vmem:[%s1 + $0x7a0] sm:$0xff]
    %v279 = vld [vmem:[%s1 + $0x7a8] sm:$0xff]
    %v280 = vld [vmem:[%s1 + $0x7b0] sm:$0xff]
    %v281 = vld [vmem:[%s1 + $0x7b8] sm:$0xff]
    %v282 = vld [vmem:[%s1 + $0x7c0] sm:$0xff]
    %v283 = vld [vmem:[%s1 + $0x7c8] sm:$0xff]
    %v284 = vld [vmem:[%s1 + $0x7d0] sm:$0xff]
    %v285 = vld [vmem:[%s1 + $0x7d8] sm:$0xff]
    %v286 = vld [vmem:[%s1 + $0x7e0] sm:$0xff]
    %v287 = vld [vmem:[%s1 + $0x7e8] sm:$0xff]
    %v288 = vld [vmem:[%s1 + $0x7f0] sm:$0xff]
    %v289 = vld [vmem:[%s1 + $0x7f8] sm:$0xff]
    %v290 = vld [vmem:[%s1 + $0x800] sm:$0xff]
    %v291 = vld [vmem:[%s1 + $0x808] sm:$0xff]
    %v292 = vld [vmem:[%s1 + $0x810] sm:$0xff]
    %v293 = vld [vmem:[%s1 + $0x818] sm:$0xff]
    %v294 = vld [vmem:[%s1 + $0x820] sm:$0xff]
    %v295 = vld [vmem:[%s1 + $0x828] sm:$0xff]
    %v296 = vld [vmem:[%s1 + $0x830] sm:$0xff]
    %v297 = vld [vmem:[%s1 + $0x838] sm:$0xff]
    %v298 = vld [vmem:[%s1 + $0x840] sm:$0xff]
    %v299 = vld [vmem:[%s1 + $0x848] sm:$0xff]
    %v300 = vld [vmem:[%s1 + $0x850] sm:$0xff]
    %v301 = vld [vmem:[%s1 + $0x858] sm:$0xff]
    %v302 = vld [vmem:[%s1 + $0x860] sm:$0xff]
    %v303 = vld [vmem:[%s1 + $0x868] sm:$0xff]
    %v304 = vld [vmem:[%s1 + $0x870] sm:$0xff]
    %v305 = vld [vmem:[%s1 + $0x878] sm:$0xff]
    %v306 = vld [vmem:[%s1 + $0x880] sm:$0xff]
    %v307 = vld [vmem:[%s1 + $0x888] sm:$0xff]
    %v308 = vld [vmem:[%s1 + $0x890] sm:$0xff]
    %v309 = vld [vmem:[%s1 + $0x898] sm:$0xff]
    %v310 = vld [vmem:[%s1 + $0x8a0] sm:$0xff]
    %v311 = vld [vmem:[%s1 + $0x8a8] sm:$0xff]
    %v312 = vld [vmem:[%s1 + $0x8b0] sm:$0xff]
    %v313 = vld [vmem:[%s1 + $0x8b8] sm:$0xff]
    %v314 = vld [vmem:[%s1 + $0x8c0] sm:$0xff]
    %v315 = vld [vmem:[%s1 + $0x8c8] sm:$0xff]
    %v316 = vld [vmem:[%s1 + $0x8d0] sm:$0xff]
    %v317 = vld [vmem:[%s1 + $0x8d8] sm:$0xff]
    %v318 = vld [vmem:[%s1 + $0x8e0] sm:$0xff]
    %v319 = vld [vmem:[%s1 + $0x8e8] sm:$0xff]
    %v320 = vld [vmem:[%s1 + $0x8f0] sm:$0xff]
    %v321 = vld [vmem:[%s1 + $0x8f8] sm:$0xff]
    %v322 = vld [vmem:[%s1 + $0x900] sm:$0xff]
    %v323 = vld [vmem:[%s1 + $0x908] sm:$0xff]
    %v324 = vld [vmem:[%s1 + $0x910] sm:$0xff]
    %v325 = vld [vmem:[%s1 + $0x918] sm:$0xff]
    %v326 = vld [vmem:[%s1 + $0x920] sm:$0xff]
    %v327 = vld [vmem:[%s1 + $0x928] sm:$0xff]
    %v328 = vld [vmem:[%s1 + $0x930] sm:$0xff]
    %v329 = vld [vmem:[%s1 + $0x938] sm:$0xff]
    %v330 = vld [vmem:[%s1 + $0x940] sm:$0xff]
    %v331 = vld [vmem:[%s1 + $0x948] sm:$0xff]
    %v332 = vld [vmem:[%s1 + $0x950] sm:$0xff]
    %v333 = vld [vmem:[%s1 + $0x958] sm:$0xff]
    %v334 = vld [vmem:[%s1 + $0x960] sm:$0xff]
    %v335 = vld [vmem:[%s1 + $0x968] sm:$0xff]
    %v336 = vld [vmem:[%s1 + $0x970] sm:$0xff]
    %v337 = vld [vmem:[%s1 + $0x978] sm:$0xff]
    %v338 = vld [vmem:[%s1 + $0x980] sm:$0xff]
    %v339 = vld [vmem:[%s1 + $0x988] sm:$0xff]
    %v340 = vld [vmem:[%s1 + $0x990] sm:$0xff]
    %v341 = vld [vmem:[%s1 + $0x998] sm:$0xff]
    %v342 = vld [vmem:[%s1 + $0x9a0] sm:$0xff]
    %v343 = vld [vmem:[%s1 + $0x9a8] sm:$0xff]
    %v344 = vld [vmem:[%s1 + $0x9b0] sm:$0xff]
    %v345 = vld [vmem:[%s1 + $0x9b8] sm:$0xff]
    %v346 = vld [vmem:[%s1 + $0x9c0] sm:$0xff]
    %v347 = vld [vmem:[%s1 + $0x9c8] sm:$0xff]
    %v348 = vld [vmem:[%s1 + $0x9d0] sm:$0xff]
    %v349 = vld [vmem:[%s1 + $0x9d8] sm:$0xff]
    %v350 = vld [vmem:[%s1 + $0x9e0] sm:$0xff]
    %v351 = vld [vmem:[%s1 + $0x9e8] sm:$0xff]
    %v352 = vld [vmem:[%s1 + $0x9f0] sm:$0xff]
    %v353 = vld [vmem:[%s1 + $0x9f8] sm:$0xff]
    %v354 = vld [vmem:[%s1 + $0xa00] sm:$0xff]
    %v355 = vld [vmem:[%s1 + $0xa08] sm:$0xff]
    %v356 = vld [vmem:[%s1 + $0xa10] sm:$0xff]
    %v357 = vld [vmem:[%s1 + $0xa18] sm:$0xff]
    %v358 = vld [vmem:[%s1 + $0xa20] sm:$0xff]
    %v359 = vld [vmem:[%s1 + $0xa28] sm:$0xff]
    %v360 = vld [vmem:[%s1 + $0xa30] sm:$0xff]
    %v361 = vld [vmem:[%s1 + $0xa38] sm:$0xff]
    %v362 = vld [vmem:[%s1 + $0xa40] sm:$0xff]
    %v363 = vld [vmem:[%s1 + $0xa48] sm:$0xff]
    %v364 = vld [vmem:[%s1 + $0xa50] sm:$0xff]
    %v365 = vld [vmem:[%s1 + $0xa58] sm:$0xff]
    %v366 = vld [vmem:[%s1 + $0xa60] sm:$0xff]
    %v367 = vld [vmem:[%s1 + $0xa68] sm:$0xff]
    %v368 = vld [vmem:[%s1 + $0xa70] sm:$0xff]
    %v369 = vld [vmem:[%s1 + $0xa78] sm:$0xff]
    %v370 = vld [vmem:[%s1 + $0xa80] sm:$0xff]
    %v371 = vld [vmem:[%s1 + $0xa88] sm:$0xff]
    %v372 = vld [vmem:[%s1 + $0xa90] sm:$0xff]
    %v373 = vld [vmem:[%s1 + $0xa98] sm:$0xff]
    %v374 = vld [vmem:[%s1 + $0xaa0] sm:$0xff]
    %v375 = vld [vmem:[%s1 + $0xaa8] sm:$0xff]
    %v376 = vld [vmem:[%s1 + $0xab0] sm:$0xff]
    %v377 = vld [vmem:[%s1 + $0xab8] sm:$0xff]
    %v378 = vld [vmem:[%s1 + $0xac0] sm:$0xff]
    %v379 = vld [vmem:[%s1 + $0xac8] sm:$0xff]
    %v380 = vld [vmem:[%s1 + $0xad0] sm:$0xff]
    %v381 = vld [vmem:[%s1 + $0xad8] sm:$0xff]
    %v382 = vld [vmem:[%s1 + $0xae0] sm:$0xff]
    %v383 = vld [vmem:[%s1 + $0xae8] sm:$0xff]
    %v384 = vld [vmem:[%s1 + $0xaf0] sm:$0xff]
    %v385 = vld [vmem:[%s1 + $0xaf8] sm:$0xff]
    %v386 = vld [vmem:[%s1 + $0xb00] sm:$0xff]
    %v387 = vld [vmem:[%s1 + $0xb08] sm:$0xff]
    %v388 = vld [vmem:[%s1 + $0xb10] sm:$0xff]
    %v389 = vld [vmem:[%s1 + $0xb18] sm:$0xff]
    %v390 = vld [vmem:[%s1 + $0xb20] sm:$0xff]
    %v391 = vld [vmem:[%s1 + $0xb28] sm:$0xff]
    %v392 = vld [vmem:[%s1 + $0xb30] sm:$0xff]
    %v393 = vld [vmem:[%s1 + $0xb38] sm:$0xff]
    %v394 = vld [vmem:[%s1 + $0xb40] sm:$0xff]
    %v395 = vld [vmem:[%s1 + $0xb48] sm:$0xff]
    %v396 = vld [vmem:[%s1 + $0xb50] sm:$0xff]
    %v397 = vld [vmem:[%s1 + $0xb58] sm:$0xff]
    %v398 = vld [vmem:[%s1 + $0xb60] sm:$0xff]
    %v399 = vld [vmem:[%s1 + $0xb68] sm:$0xff]
    %v400 = vld [vmem:[%s1 + $0xb70] sm:$0xff]
    %v401 = vld [vmem:[%s1 + $0xb78] sm:$0xff]
    %v402 = vld [vmem:[%s1 + $0xb80] sm:$0xff]
    %v403 = vld [vmem:[%s1 + $0xb88] sm:$0xff]
    %v404 = vld [vmem:[%s1 + $0xb90] sm:$0xff]
    %v405 = vld [vmem:[%s1 + $0xb98] sm:$0xff]
    %v406 = vld [vmem:[%s1 + $0xba0] sm:$0xff]
    %v407 = vld [vmem:[%s1 + $0xba8] sm:$0xff]
    %v408 = vld [vmem:[%s1 + $0xbb0] sm:$0xff]
    %v409 = vld [vmem:[%s1 + $0xbb8] sm:$0xff]
    %v410 = vld [vmem:[%s1 + $0xbc0] sm:$0xff]
    %v411 = vld [vmem:[%s1 + $0xbc8] sm:$0xff]
    %v412 = vld [vmem:[%s1 + $0xbd0] sm:$0xff]
    %v413 = vld [vmem:[%s1 + $0xbd8] sm:$0xff]
    %v414 = vld [vmem:[%s1 + $0xbe0] sm:$0xff]
    %v415 = vld [vmem:[%s1 + $0xbe8] sm:$0xff]
    %v416 = vld [vmem:[%s1 + $0xbf0] sm:$0xff]
    %v417 = vld [vmem:[%s1 + $0xbf8] sm:$0xff]
    %v418 = vld [vmem:[%s1 + $0xc00] sm:$0xff]
    %v419 = vld [vmem:[%s1 + $0xc08] sm:$0xff]
    %v420 = vld [vmem:[%s1 + $0xc10] sm:$0xff]
    %v421 = vld [vmem:[%s1 + $0xc18] sm:$0xff]
    %v422 = vld [vmem:[%s1 + $0xc20] sm:$0xff]
    %v423 = vld [vmem:[%s1 + $0xc28] sm:$0xff]
    %v424 = vld [vmem:[%s1 + $0xc30] sm:$0xff]
    %v425 = vld [vmem:[%s1 + $0xc38] sm:$0xff]
    %v426 = vld [vmem:[%s1 + $0xc40] sm:$0xff]
    %v427 = vld [vmem:[%s1 + $0xc48] sm:$0xff]
    %v428 = vld [vmem:[%s1 + $0xc50] sm:$0xff]
    %v429 = vld [vmem:[%s1 + $0xc58] sm:$0xff]
    %v430 = vld [vmem:[%s1 + $0xc60] sm:$0xff]
    %v431 = vld [vmem:[%s1 + $0xc68] sm:$0xff]
    %v432 = vld [vmem:[%s1 + $0xc70] sm:$0xff]
    %v433 = vld [vmem:[%s1 + $0xc78] sm:$0xff]
    %v434 = vld [vmem:[%s1 + $0xc80] sm:$0xff]
    %v435 = vld [vmem:[%s1 + $0xc88] sm:$0xff]
    %v436 = vld [vmem:[%s1 + $0xc90] sm:$0xff]
    %v437 = vld [vmem:[%s1 + $0xc98] sm:$0xff]
    %v438 = vld [vmem:[%s1 + $0xca0] sm:$0xff]
    %v439 = vld [vmem:[%s1 + $0xca8] sm:$0xff]
    %v440 = vld [vmem:[%s1 + $0xcb0] sm:$0xff]
    %v441 = vld [vmem:[%s1 + $0xcb8] sm:$0xff]
    %v442 = vld [vmem:[%s1 + $0xcc0] sm:$0xff]
    %v443 = vld [vmem:[%s1 + $0xcc8] sm:$0xff]
    %v444 = vld [vmem:[%s1 + $0xcd0] sm:$0xff]
    %v445 = vld [vmem:[%s1 + $0xcd8] sm:$0xff]
    %v446 = vld [vmem:[%s1 + $0xce0] sm:$0xff]
    %v447 = vld [vmem:[%s1 + $0xce8] sm:$0xff]
    %v448 = vld [vmem:[%s1 + $0xcf0] sm:$0xff]
    %v449 = vld [vmem:[%s1 + $0xcf8] sm:$0xff]
    %v450 = vld [vmem:[%s1 + $0xd00] sm:$0xff]
    %v451 = vld [vmem:[%s1 + $0xd08] sm:$0xff]
    %v452 = vld [vmem:[%s1 + $0xd10] sm:$0xff]
    %v453 = vld [vmem:[%s1 + $0xd18] sm:$0xff]
    %v454 = vld [vmem:[%s1 + $0xd20] sm:$0xff]
    %v455 = vld [vmem:[%s1 + $0xd28] sm:$0xff]
    %v456 = vld [vmem:[%s1 + $0xd30] sm:$0xff]
    %v457 = vld [vmem:[%s1 + $0xd38] sm:$0xff]
    %v458 = vld [vmem:[%s1 + $0xd40] sm:$0xff]
    %v459 = vld [vmem:[%s1 + $0xd48] sm:$0xff]
    %v460 = vld [vmem:[%s1 + $0xd50] sm:$0xff]
    %v461 = vld [vmem:[%s1 + $0xd58] sm:$0xff]
    %v462 = vld [vmem:[%s1 + $0xd60] sm:$0xff]
    %v463 = vld [vmem:[%s1 + $0xd68] sm:$0xff]
    %v464 = vld [vmem:[%s1 + $0xd70] sm:$0xff]
    %v465 = vld [vmem:[%s1 + $0xd78] sm:$0xff]
    %v466 = vld [vmem:[%s1 + $0xd80] sm:$0xff]
    %v467 = vld [vmem:[%s1 + $0xd88] sm:$0xff]
    %v468 = vld [vmem:[%s1 + $0xd90] sm:$0xff]
    %v469 = vld [vmem:[%s1 + $0xd98] sm:$0xff]
    %v470 = vld [vmem:[%s1 + $0xda0] sm:$0xff]
    %v471 = vld [vmem:[%s1 + $0xda8] sm:$0xff]
    %v472 = vld [vmem:[%s1 + $0xdb0] sm:$0xff]
    %v473 = vld [vmem:[%s1 + $0xdb8] sm:$0xff]
    %v474 = vld [vmem:[%s1 + $0xdc0] sm:$0xff]
    %v475 = vld [vmem:[%s1 + $0xdc8] sm:$0xff]
    %v476 = vld [vmem:[%s1 + $0xdd0] sm:$0xff]
    %v477 = vld [vmem:[%s1 + $0xdd8] sm:$0xff]
    %v478 = vld [vmem:[%s1 + $0xde0] sm:$0xff]
    %v479 = vld [vmem:[%s1 + $0xde8] sm:$0xff]
    %v480 = vld [vmem:[%s1 + $0xdf0] sm:$0xff]
    %v481 = vld [vmem:[%s1 + $0xdf8] sm:$0xff]
    %v482 = vld [vmem:[%s1 + $0xe00] sm:$0xff]
    %v483 = vld [vmem:[%s1 + $0xe08] sm:$0xff]
    %v484 = vld [vmem:[%s1 + $0xe10] sm:$0xff]
    %v485 = vld [vmem:[%s1 + $0xe18] sm:$0xff]
    %v486 = vld [vmem:[%s1 + $0xe20] sm:$0xff]
    %v487 = vld [vmem:[%s1 + $0xe28] sm:$0xff]
    %v488 = vld [vmem:[%s1 + $0xe30] sm:$0xff]
    %v489 = vld [vmem:[%s1 + $0xe38] sm:$0xff]
    %v490 = vld [vmem:[%s1 + $0xe40] sm:$0xff]
    %v491 = vld [vmem:[%s1 + $0xe48] sm:$0xff]
    %v492 = vld [vmem:[%s1 + $0xe50] sm:$0xff]
    %v493 = vld [vmem:[%s1 + $0xe58] sm:$0xff]
    %v494 = vld [vmem:[%s1 + $0xe60] sm:$0xff]
    %v495 = vld [vmem:[%s1 + $0xe68] sm:$0xff]
    %v496 = vld [vmem:[%s1 + $0xe70] sm:$0xff]
    %v497 = vld [vmem:[%s1 + $0xe78] sm:$0xff]
    %v498 = vld [vmem:[%s1 + $0xe80] sm:$0xff]
    %v499 = vld [vmem:[%s1 + $0xe88] sm:$0xff]
    %v500 = vld [vmem:[%s1 + $0xe90] sm:$0xff]
    %v501 = vld [vmem:[%s1 + $0xe98] sm:$0xff]
    %v502 = vld [vmem:[%s1 + $0xea0] sm:$0xff]
    %v503 = vld [vmem:[%s1 + $0xea8] sm:$0xff]
    %v504 = vld [vmem:[%s1 + $0xeb0] sm:$0xff]
    %v505 = vld [vmem:[%s1 + $0xeb8] sm:$0xff]
    %v506 = vld [vmem:[%s1 + $0xec0] sm:$0xff]
    %v507 = vld [vmem:[%s1 + $0xec8] sm:$0xff]
    %v508 = vld [vmem:[%s1 + $0xed0] sm:$0xff]
    %v509 = vld [vmem:[%s1 + $0xed8] sm:$0xff]
    %v510 = vld [vmem:[%s1 + $0xee0] sm:$0xff]
    %v511 = vld [vmem:[%s1 + $0xee8] sm:$0xff]
    %v512 = vld [vmem:[%s1 + $0xef0] sm:$0xff]
    %v513 = vld [vmem:[%s1 + $0xef8] sm:$0xff]
    %v514 = vld [vmem:[%s1 + $0xf00] sm:$0xff]
    %v515 = vld [vmem:[%s1 + $0xf08] sm:$0xff]
    %v516 = vld [vmem:[%s1 + $0xf10] sm:$0xff]
    %v517 = vld [vmem:[%s1 + $0xf18] sm:$0xff]
    %v518 = vld [vmem:[%s1 + $0xf20] sm:$0xff]
    %v519 = vld [vmem:[%s1 + $0xf28] sm:$0xff]
    %v520 = vld [vmem:[%s1 + $0xf30] sm:$0xff]
    %v521 = vld [vmem:[%s1 + $0xf38] sm:$0xff]
    %v522 = vld [vmem:[%s1 + $0xf40] sm:$0xff]
    %v523 = vld [vmem:[%s1 + $0xf48] sm:$0xff]
    %v524 = vld [vmem:[%s1 + $0xf50] sm:$0xff]
    %v525 = vld [vmem:[%s1 + $0xf58] sm:$0xff]
    %v526 = vld [vmem:[%s1 + $0xf60] sm:$0xff]
    %v527 = vld [vmem:[%s1 + $0xf68] sm:$0xff]
    %v528 = vld [vmem:[%s1 + $0xf70] sm:$0xff]
    %v529 = vld [vmem:[%s1 + $0xf78] sm:$0xff]
    %v530 = vld [vmem:[%s1 + $0xf80] sm:$0xff]
    %v531 = vld [vmem:[%s1 + $0xf88] sm:$0xff]
    %v532 = vld [vmem:[%s1 + $0xf90] sm:$0xff]
    %v533 = vld [vmem:[%s1 + $0xf98] sm:$0xff]
    %v534 = vld [vmem:[%s1 + $0xfa0] sm:$0xff]
    %v535 = vld [vmem:[%s1 + $0xfa8] sm:$0xff]
    %v536 = vld [vmem:[%s1 + $0xfb0] sm:$0xff]
    %v537 = vld [vmem:[%s1 + $0xfb8] sm:$0xff]
    %v538 = vld [vmem:[%s1 + $0xfc0] sm:$0xff]
    %v539 = vld [vmem:[%s1 + $0xfc8] sm:$0xff]
    %v540 = vld [vmem:[%s1 + $0xfd0] sm:$0xff]
    %v541 = vld [vmem:[%s1 + $0xfd8] sm:$0xff]
    %v542 = vld [vmem:[%s1 + $0xfe0] sm:$0xff]
    %v543 = vld [vmem:[%s1 + $0xfe8] sm:$0xff]
    %v544 = vld [vmem:[%s1 + $0xff0] sm:$0xff]
    %v545 = vld [vmem:[%s1 + $0xff8] sm:$0xff]
    %v546 = vld [vmem:[%s1 + $0x1000] sm:$0xff]
    %v547 = vld [vmem:[%s1 + $0x1008] sm:$0xff]
    %v548 = vld [vmem:[%s1 + $0x1010] sm:$0xff]
    %v549 = vld [vmem:[%s1 + $0x1018] sm:$0xff]
    %v550 = vld [vmem:[%s1 + $0x1020] sm:$0xff]
    %v551 = vld [vmem:[%s1 + $0x1028] sm:$0xff]
    %v552 = vld [vmem:[%s1 + $0x1030] sm:$0xff]
    %v553 = vld [vmem:[%s1 + $0x1038] sm:$0xff]
    %v554 = vld [vmem:[%s1 + $0x1040] sm:$0xff]
    %v555 = vld [vmem:[%s1 + $0x1048] sm:$0xff]
    %v556 = vld [vmem:[%s1 + $0x1050] sm:$0xff]
    %v557 = vld [vmem:[%s1 + $0x1058] sm:$0xff]
    %v558 = vld [vmem:[%s1 + $0x1060] sm:$0xff]
    %v559 = vld [vmem:[%s1 + $0x1068] sm:$0xff]
    %v560 = vld [vmem:[%s1 + $0x1070] sm:$0xff]
    %v561 = vld [vmem:[%s1 + $0x1078] sm:$0xff]
    %v562 = vld [vmem:[%s1 + $0x1080] sm:$0xff]
    %v563 = vld [vmem:[%s1 + $0x1088] sm:$0xff]
    %v564 = vld [vmem:[%s1 + $0x1090] sm:$0xff]
    %v565 = vld [vmem:[%s1 + $0x1098] sm:$0xff]
    %v566 = vld [vmem:[%s1 + $0x10a0] sm:$0xff]
    %v567 = vld [vmem:[%s1 + $0x10a8] sm:$0xff]
    %v568 = vld [vmem:[%s1 + $0x10b0] sm:$0xff]
    %v569 = vld [vmem:[%s1 + $0x10b8] sm:$0xff]
    %v570 = vld [vmem:[%s1 + $0x10c0] sm:$0xff]
    %v571 = vld [vmem:[%s1 + $0x10c8] sm:$0xff]
    %v572 = vld [vmem:[%s1 + $0x10d0] sm:$0xff]
    %v573 = vld [vmem:[%s1 + $0x10d8] sm:$0xff]
    %v574 = vld [vmem:[%s1 + $0x10e0] sm:$0xff]
    %v575 = vld [vmem:[%s1 + $0x10e8] sm:$0xff]
    %v576 = vld [vmem:[%s1 + $0x10f0] sm:$0xff]
    %v577 = vld [vmem:[%s1 + $0x10f8] sm:$0xff]
    %v578 = vld [vmem:[%s1 + $0x1100] sm:$0xff]
    %v579 = vld [vmem:[%s1 + $0x1108] sm:$0xff]
    %v580 = vld [vmem:[%s1 + $0x1110] sm:$0xff]
    %v581 = vld [vmem:[%s1 + $0x1118] sm:$0xff]
    %v582 = vld [vmem:[%s1 + $0x1120] sm:$0xff]
    %v583 = vld [vmem:[%s1 + $0x1128] sm:$0xff]
    %v584 = vld [vmem:[%s1 + $0x1130] sm:$0xff]
    %v585 = vld [vmem:[%s1 + $0x1138] sm:$0xff]
    %v586 = vld [vmem:[%s1 + $0x1140] sm:$0xff]
    %v587 = vld [vmem:[%s1 + $0x1148] sm:$0xff]
    %v588 = vld [vmem:[%s1 + $0x1150] sm:$0xff]
    %v589 = vld [vmem:[%s1 + $0x1158] sm:$0xff]
    %v590 = vld [vmem:[%s1 + $0x1160] sm:$0xff]
    %v591 = vld [vmem:[%s1 + $0x1168] sm:$0xff]
    %v592 = vld [vmem:[%s1 + $0x1170] sm:$0xff]
    %v593 = vld [vmem:[%s1 + $0x1178] sm:$0xff]
    %v594 = vld [vmem:[%s1 + $0x1180] sm:$0xff]
    %v595 = vld [vmem:[%s1 + $0x1188] sm:$0xff]
    %v596 = vld [vmem:[%s1 + $0x1190] sm:$0xff]
    %v597 = vld [vmem:[%s1 + $0x1198] sm:$0xff]
    %v598 = vld [vmem:[%s1 + $0x11a0] sm:$0xff]
    %v599 = vld [vmem:[%s1 + $0x11a8] sm:$0xff]
    %v600 = vld [vmem:[%s1 + $0x11b0] sm:$0xff]
    %v601 = vld [vmem:[%s1 + $0x11b8] sm:$0xff]
    %v602 = vld [vmem:[%s1 + $0x11c0] sm:$0xff]
    %v603 = vld [vmem:[%s1 + $0x11c8] sm:$0xff]
    %v604 = vld [vmem:[%s1 + $0x11d0] sm:$0xff]
    %v605 = vld [vmem:[%s1 + $0x11d8] sm:$0xff]
    %v606 = vld [vmem:[%s1 + $0x11e0] sm:$0xff]
    %v607 = vld [vmem:[%s1 + $0x11e8] sm:$0xff]
    %v608 = vld [vmem:[%s1 + $0x11f0] sm:$0xff]
    %v609 = vld [vmem:[%s1 + $0x11f8] sm:$0xff]
    %v610 = vld [vmem:[%s1 + $0x1200] sm:$0xff]
    %v611 = vld [vmem:[%s1 + $0x1208] sm:$0xff]
    %v612 = vld [vmem:[%s1 + $0x1210] sm:$0xff]
    %v613 = vld [vmem:[%s1 + $0x1218] sm:$0xff]
    %v614 = vld [vmem:[%s1 + $0x1220] sm:$0xff]
    %v615 = vld [vmem:[%s1 + $0x1228] sm:$0xff]
    %v616 = vld [vmem:[%s1 + $0x1230] sm:$0xff]
    %v617 = vld [vmem:[%s1 + $0x1238] sm:$0xff]
    %v618 = vld [vmem:[%s1 + $0x1240] sm:$0xff]
    %v619 = vld [vmem:[%s1 + $0x1248] sm:$0xff]
    %v620 = vld [vmem:[%s1 + $0x1250] sm:$0xff]
    %v621 = vld [vmem:[%s1 + $0x1258] sm:$0xff]
    %v622 = vld [vmem:[%s1 + $0x1260] sm:$0xff]
    %v623 = vld [vmem:[%s1 + $0x1268] sm:$0xff]
    %v624 = vld [vmem:[%s1 + $0x1270] sm:$0xff]
    %v625 = vld [vmem:[%s1 + $0x1278] sm:$0xff]
    %v626 = vld [vmem:[%s1 + $0x1280] sm:$0xff]
    %v627 = vld [vmem:[%s1 + $0x1288] sm:$0xff]
    %v628 = vld [vmem:[%s1 + $0x1290] sm:$0xff]
    %v629 = vld [vmem:[%s1 + $0x1298] sm:$0xff]
    %v630 = vld [vmem:[%s1 + $0x12a0] sm:$0xff]
    %v631 = vld [vmem:[%s1 + $0x12a8] sm:$0xff]
    %v632 = vld [vmem:[%s1 + $0x12b0] sm:$0xff]
    %v633 = vld [vmem:[%s1 + $0x12b8] sm:$0xff]
    %v634 = vld [vmem:[%s1 + $0x12c0] sm:$0xff]
    %v635 = vld [vmem:[%s1 + $0x12c8] sm:$0xff]
    %v636 = vld [vmem:[%s1 + $0x12d0] sm:$0xff]
    %v637 = vld [vmem:[%s1 + $0x12d8] sm:$0xff]
    %v638 = vld [vmem:[%s1 + $0x12e0] sm:$0xff]
    %v639 = vld [vmem:[%s1 + $0x12e8] sm:$0xff]
    %v640 = vld [vmem:[%s1 + $0x12f0] sm:$0xff]
    %v641 = vld [vmem:[%s1 + $0x12f8] sm:$0xff]
    %v642 = vld [vmem:[%s1 + $0x1300] sm:$0xff]
    %v643 = vld [vmem:[%s1 + $0x1308] sm:$0xff]
    %v644 = vld [vmem:[%s1 + $0x1310] sm:$0xff]
    %v645 = vld [vmem:[%s1 + $0x1318] sm:$0xff]
    %v646 = vld [vmem:[%s1 + $0x1320] sm:$0xff]
    %v647 = vld [vmem:[%s1 + $0x1328] sm:$0xff]
    %v648 = vld [vmem:[%s1 + $0x1330] sm:$0xff]
    %v649 = vld [vmem:[%s1 + $0x1338] sm:$0xff]
    %v650 = vld [vmem:[%s1 + $0x1340] sm:$0xff]
    %v651 = vld [vmem:[%s1 + $0x1348] sm:$0xff]
    %v652 = vld [vmem:[%s1 + $0x1350] sm:$0xff]
    %v653 = vld [vmem:[%s1 + $0x1358] sm:$0xff]
    %v654 = vld [vmem:[%s1 + $0x1360] sm:$0xff]
    %v655 = vld [vmem:[%s1 + $0x1368] sm:$0xff]
    %v656 = vld [vmem:[%s1 + $0x1370] sm:$0xff]
    %v657 = vld [vmem:[%s1 + $0x1378] sm:$0xff]
    %v658 = vld [vmem:[%s1 + $0x1380] sm:$0xff]
    %v659 = vld [vmem:[%s1 + $0x1388] sm:$0xff]
    %v660 = vld [vmem:[%s1 + $0x1390] sm:$0xff]
    %v661 = vld [vmem:[%s1 + $0x1398] sm:$0xff]
    %v662 = vld [vmem:[%s1 + $0x13a0] sm:$0xff]
    %v663 = vld [vmem:[%s1 + $0x13a8] sm:$0xff]
    %v664 = vld [vmem:[%s1 + $0x13b0] sm:$0xff]
    %v665 = vld [vmem:[%s1 + $0x13b8] sm:$0xff]
    %v666 = vld [vmem:[%s1 + $0x13c0] sm:$0xff]
    %v667 = vld [vmem:[%s1 + $0x13c8] sm:$0xff]
    %v668 = vld [vmem:[%s1 + $0x13d0] sm:$0xff]
    %v669 = vld [vmem:[%s1 + $0x13d8] sm:$0xff]
    %v670 = vld [vmem:[%s1 + $0x13e0] sm:$0xff]
    %v671 = vld [vmem:[%s1 + $0x13e8] sm:$0xff]
    %v672 = vld [vmem:[%s1 + $0x13f0] sm:$0xff]
    %v673 = vld [vmem:[%s1 + $0x13f8] sm:$0xff]
    %v674 = vld [vmem:[%s1 + $0x1400] sm:$0xff]
    %v675 = vld [vmem:[%s1 + $0x1408] sm:$0xff]
    %v676 = vld [vmem:[%s1 + $0x1410] sm:$0xff]
    %v677 = vld [vmem:[%s1 + $0x1418] sm:$0xff]
    %v678 = vld [vmem:[%s1 + $0x1420] sm:$0xff]
    %v679 = vld [vmem:[%s1 + $0x1428] sm:$0xff]
    %v680 = vld [vmem:[%s1 + $0x1430] sm:$0xff]
    %v681 = vld [vmem:[%s1 + $0x1438] sm:$0xff]
    %v682 = vld [vmem:[%s1 + $0x1440] sm:$0xff]
    %v683 = vld [vmem:[%s1 + $0x1448] sm:$0xff]
    %v684 = vld [vmem:[%s1 + $0x1450] sm:$0xff]
    %v685 = vld [vmem:[%s1 + $0x1458] sm:$0xff]
    %v686 = vld [vmem:[%s1 + $0x1460] sm:$0xff]
    %v687 = vld [vmem:[%s1 + $0x1468] sm:$0xff]
    %v688 = vld [vmem:[%s1 + $0x1470] sm:$0xff]
    %v689 = vld [vmem:[%s1 + $0x1478] sm:$0xff]
    %v690 = vld [vmem:[%s1 + $0x1480] sm:$0xff]
    %v691 = vld [vmem:[%s1 + $0x1488] sm:$0xff]
    %v692 = vld [vmem:[%s1 + $0x1490] sm:$0xff]
    %v693 = vld [vmem:[%s1 + $0x1498] sm:$0xff]
    %v694 = vld [vmem:[%s1 + $0x14a0] sm:$0xff]
    %v695 = vld [vmem:[%s1 + $0x14a8] sm:$0xff]
    %v696 = vld [vmem:[%s1 + $0x14b0] sm:$0xff]
    %v697 = vld [vmem:[%s1 + $0x14b8] sm:$0xff]
    %v698 = vld [vmem:[%s1 + $0x14c0] sm:$0xff]
    %v699 = vld [vmem:[%s1 + $0x14c8] sm:$0xff]
    %v700 = vld [vmem:[%s1 + $0x14d0] sm:$0xff]
    %v701 = vld [vmem:[%s1 + $0x14d8] sm:$0xff]
    %v702 = vld [vmem:[%s1 + $0x14e0] sm:$0xff]
    %v703 = vld [vmem:[%s1 + $0x14e8] sm:$0xff]
    %v704 = vld [vmem:[%s1 + $0x14f0] sm:$0xff]
    %v705 = vld [vmem:[%s1 + $0x14f8] sm:$0xff]
    %v706 = vld [vmem:[%s1 + $0x1500] sm:$0xff]
    %v707 = vld [vmem:[%s1 + $0x1508] sm:$0xff]
    %v708 = vld [vmem:[%s1 + $0x1510] sm:$0xff]
    %v709 = vld [vmem:[%s1 + $0x1518] sm:$0xff]
    %v710 = vld [vmem:[%s1 + $0x1520] sm:$0xff]
    %v711 = vld [vmem:[%s1 + $0x1528] sm:$0xff]
    %v712 = vld [vmem:[%s1 + $0x1530] sm:$0xff]
    %v713 = vld [vmem:[%s1 + $0x1538] sm:$0xff]
    %v714 = vld [vmem:[%s1 + $0x1540] sm:$0xff]
    %v715 = vld [vmem:[%s1 + $0x1548] sm:$0xff]
    %v716 = vld [vmem:[%s1 + $0x1550] sm:$0xff]
    %v717 = vld [vmem:[%s1 + $0x1558] sm:$0xff]
    %v718 = vld [vmem:[%s1 + $0x1560] sm:$0xff]
    %v719 = vld [vmem:[%s1 + $0x1568] sm:$0xff]
    %v720 = vld [vmem:[%s1 + $0x1570] sm:$0xff]
    %v721 = vld [vmem:[%s1 + $0x1578] sm:$0xff]
    %v722 = vld [vmem:[%s1 + $0x1580] sm:$0xff]
    %v723 = vld [vmem:[%s1 + $0x1588] sm:$0xff]
    %v724 = vld [vmem:[%s1 + $0x1590] sm:$0xff]
    %v725 = vld [vmem:[%s1 + $0x1598] sm:$0xff]
    %v726 = vld [vmem:[%s1 + $0x15a0] sm:$0xff]
    %v727 = vld [vmem:[%s1 + $0x15a8] sm:$0xff]
    %v728 = vld [vmem:[%s1 + $0x15b0] sm:$0xff]
    %v729 = vld [vmem:[%s1 + $0x15b8] sm:$0xff]
    %v730 = vld [vmem:[%s1 + $0x15c0] sm:$0xff]
    %v731 = vld [vmem:[%s1 + $0x15c8] sm:$0xff]
    %v732 = vld [vmem:[%s1 + $0x15d0] sm:$0xff]
    %v733 = vld [vmem:[%s1 + $0x15d8] sm:$0xff]
    %v734 = vld [vmem:[%s1 + $0x15e0] sm:$0xff]
    %v735 = vld [vmem:[%s1 + $0x15e8] sm:$0xff]
    %v736 = vld [vmem:[%s1 + $0x15f0] sm:$0xff]
    %v737 = vld [vmem:[%s1 + $0x15f8] sm:$0xff]
    %v738 = vld [vmem:[%s1 + $0x1600] sm:$0xff]
    %v739 = vld [vmem:[%s1 + $0x1608] sm:$0xff]
    %v740 = vld [vmem:[%s1 + $0x1610] sm:$0xff]
    %v741 = vld [vmem:[%s1 + $0x1618] sm:$0xff]
    %v742 = vld [vmem:[%s1 + $0x1620] sm:$0xff]
    %v743 = vld [vmem:[%s1 + $0x1628] sm:$0xff]
    %v744 = vld [vmem:[%s1 + $0x1630] sm:$0xff]
    %v745 = vld [vmem:[%s1 + $0x1638] sm:$0xff]
    %v746 = vld [vmem:[%s1 + $0x1640] sm:$0xff]
    %v747 = vld [vmem:[%s1 + $0x1648] sm:$0xff]
    %v748 = vld [vmem:[%s1 + $0x1650] sm:$0xff]
    %v749 = vld [vmem:[%s1 + $0x1658] sm:$0xff]
    %v750 = vld [vmem:[%s1 + $0x1660] sm:$0xff]
    %v751 = vld [vmem:[%s1 + $0x1668] sm:$0xff]
    %v752 = vld [vmem:[%s1 + $0x1670] sm:$0xff]
    %v753 = vld [vmem:[%s1 + $0x1678] sm:$0xff]
    %v754 = vld [vmem:[%s1 + $0x1680] sm:$0xff]
    %v755 = vld [vmem:[%s1 + $0x1688] sm:$0xff]
    %v756 = vld [vmem:[%s1 + $0x1690] sm:$0xff]
    %v757 = vld [vmem:[%s1 + $0x1698] sm:$0xff]
    %v758 = vld [vmem:[%s1 + $0x16a0] sm:$0xff]
    %v759 = vld [vmem:[%s1 + $0x16a8] sm:$0xff]
    %v760 = vld [vmem:[%s1 + $0x16b0] sm:$0xff]
    %v761 = vld [vmem:[%s1 + $0x16b8] sm:$0xff]
    %v762 = vld [vmem:[%s1 + $0x16c0] sm:$0xff]
    %v763 = vld [vmem:[%s1 + $0x16c8] sm:$0xff]
    %v764 = vld [vmem:[%s1 + $0x16d0] sm:$0xff]
    %v765 = vld [vmem:[%s1 + $0x16d8] sm:$0xff]
    %v766 = vld [vmem:[%s1 + $0x16e0] sm:$0xff]
    %v767 = vld [vmem:[%s1 + $0x16e8] sm:$0xff]
    %v768 = vld [vmem:[%s1 + $0x16f0] sm:$0xff]
    %v769 = vld [vmem:[%s1 + $0x16f8] sm:$0xff]
    %v770 = vld [vmem:[%s1 + $0x1700] sm:$0xff]
    %v771 = vld [vmem:[%s1 + $0x1708] sm:$0xff]
    %v772 = vld [vmem:[%s1 + $0x1710] sm:$0xff]
    %v773 = vld [vmem:[%s1 + $0x1718] sm:$0xff]
    %v774 = vld [vmem:[%s1 + $0x1720] sm:$0xff]
    %v775 = vld [vmem:[%s1 + $0x1728] sm:$0xff]
    %v776 = vld [vmem:[%s1 + $0x1730] sm:$0xff]
    %v777 = vld [vmem:[%s1 + $0x1738] sm:$0xff]
    %v778 = vld [vmem:[%s1 + $0x1740] sm:$0xff]
    %v779 = vld [vmem:[%s1 + $0x1748] sm:$0xff]
    %v780 = vld [vmem:[%s1 + $0x1750] sm:$0xff]
    %v781 = vld [vmem:[%s1 + $0x1758] sm:$0xff]
    %v782 = vld [vmem:[%s1 + $0x1760] sm:$0xff]
    %v783 = vld [vmem:[%s1 + $0x1768] sm:$0xff]
    %v784 = vld [vmem:[%s1 + $0x1770] sm:$0xff]
    %v785 = vld [vmem:[%s1 + $0x1778] sm:$0xff]
    %v786 = vld [vmem:[%s1 + $0x1780] sm:$0xff]
    %v787 = vld [vmem:[%s1 + $0x1788] sm:$0xff]
    %v788 = vld [vmem:[%s1 + $0x1790] sm:$0xff]
    %v789 = vld [vmem:[%s1 + $0x1798] sm:$0xff]
    %v790 = vld [vmem:[%s1 + $0x17a0] sm:$0xff]
    %v791 = vld [vmem:[%s1 + $0x17a8] sm:$0xff]
    %v792 = vld [vmem:[%s1 + $0x17b0] sm:$0xff]
    %v793 = vld [vmem:[%s1 + $0x17b8] sm:$0xff]
    %v794 = vld [vmem:[%s1 + $0x17c0] sm:$0xff]
    %v795 = vld [vmem:[%s1 + $0x17c8] sm:$0xff]
    %v796 = vld [vmem:[%s1 + $0x17d0] sm:$0xff]
    %v797 = vld [vmem:[%s1 + $0x17d8] sm:$0xff]
    %v798 = vld [vmem:[%s1 + $0x17e0] sm:$0xff]
    %v799 = vld [vmem:[%s1 + $0x17e8] sm:$0xff]
    %v800 = vld [vmem:[%s1 + $0x17f0] sm:$0xff]
    %v801 = vld [vmem:[%s1 + $0x17f8] sm:$0xff]
    %v802 = vld [vmem:[%s1 + $0x1800] sm:$0xff]
    %v803 = vld [vmem:[%s1 + $0x1808] sm:$0xff]
    %v804 = vld [vmem:[%s1 + $0x1810] sm:$0xff]
    %v805 = vld [vmem:[%s1 + $0x1818] sm:$0xff]
    %v806 = vld [vmem:[%s1 + $0x1820] sm:$0xff]
    %v807 = vld [vmem:[%s1 + $0x1828] sm:$0xff]
    %v808 = vld [vmem:[%s1 + $0x1830] sm:$0xff]
    %v809 = vld [vmem:[%s1 + $0x1838] sm:$0xff]
    %v810 = vld [vmem:[%s1 + $0x1840] sm:$0xff]
    %v811 = vld [vmem:[%s1 + $0x1848] sm:$0xff]
    %v812 = vld [vmem:[%s1 + $0x1850] sm:$0xff]
    %v813 = vld [vmem:[%s1 + $0x1858] sm:$0xff]
    %v814 = vld [vmem:[%s1 + $0x1860] sm:$0xff]
    %v815 = vld [vmem:[%s1 + $0x1868] sm:$0xff]
    %v816 = vld [vmem:[%s1 + $0x1870] sm:$0xff]
    %v817 = vld [vmem:[%s1 + $0x1878] sm:$0xff]
    %v818 = vld [vmem:[%s1 + $0x1880] sm:$0xff]
    %v819 = vld [vmem:[%s1 + $0x1888] sm:$0xff]
    %v820 = vld [vmem:[%s1 + $0x1890] sm:$0xff]
    %v821 = vld [vmem:[%s1 + $0x1898] sm:$0xff]
    %v822 = vld [vmem:[%s1 + $0x18a0] sm:$0xff]
    %v823 = vld [vmem:[%s1 + $0x18a8] sm:$0xff]
    %v824 = vld [vmem:[%s1 + $0x18b0] sm:$0xff]
    %v825 = vld [vmem:[%s1 + $0x18b8] sm:$0xff]
    %v826 = vld [vmem:[%s1 + $0x18c0] sm:$0xff]
    %v827 = vld [vmem:[%s1 + $0x18c8] sm:$0xff]
    %v828 = vld [vmem:[%s1 + $0x18d0] sm:$0xff]
    %v829 = vld [vmem:[%s1 + $0x18d8] sm:$0xff]
    %v830 = vld [vmem:[%s1 + $0x18e0] sm:$0xff]
    %v831 = vld [vmem:[%s1 + $0x18e8] sm:$0xff]
    %v832 = vld [vmem:[%s1 + $0x18f0] sm:$0xff]
    %v833 = vld [vmem:[%s1 + $0x18f8] sm:$0xff]
    %v834 = vld [vmem:[%s2] sm:$0x1]
    %v836 = vlaneseq
    %v837 = vshrl.u32 %v836, 7
    %v838 = vsub.s32 0, %v837
    %v839 = vrot.slane %v834, %v838
    %v854 = vcombine.high %v21, %v21
    %v856 = vunpack.c.l.s4 1983009808
    %v857 = vunpack.c.0.s8 %v856
    %v858 = vlaneseq
    %v859 = vshrl.u32 %v858, 7
    %v860 = vsub.s32 %v857, %v859
    %v861 = vrot.slane %v21, %v860
    %v863 = vunpack.c.l.s4 1983009808
    %v864 = vunpack.c.0.s8 %v863
    %v865 = vlaneseq
    %v866 = vshrl.u32 %v865, 7
    %v867 = vsub.s32 %v864, %v866
    %v868 = vrot.slane %v854, %v867
    %v869 = vcombine.high %v861, %v861
    %v870 = vcombine.high %v868, %v868
    %v871 = vcombine.high %v22, %v22
    %v873 = vunpack.c.l.s4 1983009808
    %v874 = vunpack.c.0.s8 %v873
    %v875 = vlaneseq
    %v876 = vshrl.u32 %v875, 7
    %v877 = vsub.s32 %v874, %v876
    %v878 = vrot.slane %v22, %v877
    %v880 = vunpack.c.l.s4 1983009808
    %v881 = vunpack.c.0.s8 %v880
    %v882 = vlaneseq
    %v883 = vshrl.u32 %v882, 7
    %v884 = vsub.s32 %v881, %v883
    %v885 = vrot.slane %v871, %v884
    %v886 = vcombine.high %v878, %v878
    %v887 = vcombine.high %v885, %v885
    %v888 = vcombine.high %v23, %v23
    %v890 = vunpack.c.l.s4 1983009808
    %v891 = vunpack.c.0.s8 %v890
    %v892 = vlaneseq
    %v893 = vshrl.u32 %v892, 7
    %v894 = vsub.s32 %v891, %v893
    %v895 = vrot.slane %v23, %v894
    %v897 = vunpack.c.l.s4 1983009808
    %v898 = vunpack.c.0.s8 %v897
    %v899 = vlaneseq
    %v900 = vshrl.u32 %v899, 7
    %v901 = vsub.s32 %v898, %v900
    %v902 = vrot.slane %v888, %v901
    %v903 = vcombine.high %v895, %v895
    %v904 = vcombine.high %v902, %v902
    %v905 = vcombine.high %v24, %v24
    %v907 = vunpack.c.l.s4 1983009808
    %v908 = vunpack.c.0.s8 %v907
    %v909 = vlaneseq
    %v910 = vshrl.u32 %v909, 7
    %v911 = vsub.s32 %v908, %v910
    %v912 = vrot.slane %v24, %v911
    %v914 = vunpack.c.l.s4 1983009808
    %v915 = vunpack.c.0.s8 %v914
    %v916 = vlaneseq
    %v917 = vshrl.u32 %v916, 7
    %v918 = vsub.s32 %v915, %v917
    %v919 = vrot.slane %v905, %v918
    %v920 = vcombine.high %v912, %v912
    %v921 = vcombine.high %v919, %v919
    %v922 = vcombine.high %v25, %v25
    %v924 = vunpack.c.l.s4 1983009808
    %v925 = vunpack.c.0.s8 %v924
    %v926 = vlaneseq
    %v927 = vshrl.u32 %v926, 7
    %v928 = vsub.s32 %v925, %v927
    %v929 = vrot.slane %v25, %v928
    %v931 = vunpack.c.l.s4 1983009808
    %v932 = vunpack.c.0.s8 %v931
    %v933 = vlaneseq
    %v934 = vshrl.u32 %v933, 7
    %v935 = vsub.s32 %v932, %v934
    %v936 = vrot.slane %v922, %v935
    %v937 = vcombine.high %v929, %v929
    %v938 = vcombine.high %v936, %v936
    %v939 = vcombine.high %v26, %v26
    %v941 = vunpack.c.l.s4 1983009808
    %v942 = vunpack.c.0.s8 %v941
    %v943 = vlaneseq
    %v944 = vshrl.u32 %v943, 7
    %v945 = vsub.s32 %v942, %v944
    %v946 = vrot.slane %v26, %v945
    %v948 = vunpack.c.l.s4 1983009808
    %v949 = vunpack.c.0.s8 %v948
    %v950 = vlaneseq
    %v951 = vshrl.u32 %v950, 7
    %v952 = vsub.s32 %v949, %v951
    %v953 = vrot.slane %v939, %v952
    %v954 = vcombine.high %v946, %v946
    %v955 = vcombine.high %v953, %v953
    %v956 = vcombine.high %v27, %v27
    %v958 = vunpack.c.l.s4 1983009808
    %v959 = vunpack.c.0.s8 %v958
    %v960 = vlaneseq
    %v961 = vshrl.u32 %v960, 7
    %v962 = vsub.s32 %v959, %v961
    %v963 = vrot.slane %v27, %v962
    %v965 = vunpack.c.l.s4 1983009808
    %v966 = vunpack.c.0.s8 %v965
    %v967 = vlaneseq
    %v968 = vshrl.u32 %v967, 7
    %v969 = vsub.s32 %v966, %v968
    %v970 = vrot.slane %v956, %v969
    %v971 = vcombine.high %v963, %v963
    %v972 = vcombine.high %v970, %v970
    %v973 = vcombine.high %v28, %v28
    %v975 = vunpack.c.l.s4 1983009808
    %v976 = vunpack.c.0.s8 %v975
    %v977 = vlaneseq
    %v978 = vshrl.u32 %v977, 7
    %v979 = vsub.s32 %v976, %v978
    %v980 = vrot.slane %v28, %v979
    %v982 = vunpack.c.l.s4 1983009808
    %v983 = vunpack.c.0.s8 %v982
    %v984 = vlaneseq
    %v985 = vshrl.u32 %v984, 7
    %v986 = vsub.s32 %v983, %v985
    %v987 = vrot.slane %v973, %v986
    %v988 = vcombine.high %v980, %v980
    %v989 = vcombine.high %v987, %v987
    %v990 = vcombine.high %v29, %v29
    %v992 = vunpack.c.l.s4 1983009808
    %v993 = vunpack.c.0.s8 %v992
    %v994 = vlaneseq
    %v995 = vshrl.u32 %v994, 7
    %v996 = vsub.s32 %v993, %v995
    %v997 = vrot.slane %v29, %v996
    %v999 = vunpack.c.l.s4 1983009808
    %v1000 = vunpack.c.0.s8 %v999
    %v1001 = vlaneseq
    %v1002 = vshrl.u32 %v1001, 7
    %v1003 = vsub.s32 %v1000, %v1002
    %v1004 = vrot.slane %v990, %v1003
    %v1005 = vcombine.high %v997, %v997
    %v1006 = vcombine.high %v1004, %v1004
    %v1007 = vcombine.high %v30, %v30
    %v1009 = vunpack.c.l.s4 1983009808
    %v1010 = vunpack.c.0.s8 %v1009
    %v1011 = vlaneseq
    %v1012 = vshrl.u32 %v1011, 7
    %v1013 = vsub.s32 %v1010, %v1012
    %v1014 = vrot.slane %v30, %v1013
    %v1016 = vunpack.c.l.s4 1983009808
    %v1017 = vunpack.c.0.s8 %v1016
    %v1018 = vlaneseq
    %v1019 = vshrl.u32 %v1018, 7
    %v1020 = vsub.s32 %v1017, %v1019
    %v1021 = vrot.slane %v1007, %v1020
    %v1022 = vcombine.high %v1014, %v1014
    %v1023 = vcombine.high %v1021, %v1021
    %v1024 = vcombine.high %v31, %v31
    %v1026 = vunpack.c.l.s4 1983009808
    %v1027 = vunpack.c.0.s8 %v1026
    %v1028 = vlaneseq
    %v1029 = vshrl.u32 %v1028, 7
    %v1030 = vsub.s32 %v1027, %v1029
    %v1031 = vrot.slane %v31, %v1030
    %v1033 = vunpack.c.l.s4 1983009808
    %v1034 = vunpack.c.0.s8 %v1033
    %v1035 = vlaneseq
    %v1036 = vshrl.u32 %v1035, 7
    %v1037 = vsub.s32 %v1034, %v1036
    %v1038 = vrot.slane %v1024, %v1037
    %v1039 = vcombine.high %v1031, %v1031
    %v1040 = vcombine.high %v1038, %v1038
    %v1041 = vcombine.high %v32, %v32
    %v1043 = vunpack.c.l.s4 1983009808
    %v1044 = vunpack.c.0.s8 %v1043
    %v1045 = vlaneseq
    %v1046 = vshrl.u32 %v1045, 7
    %v1047 = vsub.s32 %v1044, %v1046
    %v1048 = vrot.slane %v32, %v1047
    %v1050 = vunpack.c.l.s4 1983009808
    %v1051 = vunpack.c.0.s8 %v1050
    %v1052 = vlaneseq
    %v1053 = vshrl.u32 %v1052, 7
    %v1054 = vsub.s32 %v1051, %v1053
    %v1055 = vrot.slane %v1041, %v1054
    %v1056 = vcombine.high %v1048, %v1048
    %v1057 = vcombine.high %v1055, %v1055
    %v1059 = vunpack.c.l.s4 1983009808
    %v1060 = vunpack.c.0.s8 %v1059
    %v1061 = vlaneseq
    %v1062 = vshrl.u32 %v1061, 7
    %v1063 = vsub.s32 %v1060, %v1062
    %v1064 = vrot.slane %v33, %v1063
    %v1065 = vcombine.high %v1064, %v1064
    %1116 = vmatprep.subr.mxu0 0.0
    %1117 = vmatpush1.msra.mxu0 %v34
    %1118 = vmatprep.subr.mxu0 0.0
    %1119 = vmatpush1.msra.mxu0 %v35
    %1120 = vmatprep.subr.mxu0 0.0
    %1121 = vmatpush1.msra.mxu0 %v36
    %1122 = vmatprep.subr.mxu0 0.0
    %1123 = vmatpush1.msra.mxu0 %v37
    %1124 = vmatprep.subr.mxu0 0.0
    %1125 = vmatpush1.msra.mxu0 %v38
    %1126 = vmatprep.subr.mxu0 0.0
    %1127 = vmatpush1.msra.mxu0 %v39
    %1128 = vmatprep.subr.mxu0 0.0
    %1129 = vmatpush1.msra.mxu0 %v40
    %1130 = vmatprep.subr.mxu0 0.0
    %1131 = vmatpush1.msra.mxu0 %v41
    %1132 = vmatprep.subr.mxu0 0.0
    %1133 = vmatpush1.msra.mxu0 %v42
    %1134 = vmatprep.subr.mxu0 0.0
    %1135 = vmatpush1.msra.mxu0 %v43
    %1136 = vmatprep.subr.mxu0 0.0
    %1137 = vmatpush1.msra.mxu0 %v44
    %1138 = vmatprep.subr.mxu0 0.0
    %1139 = vmatpush1.msra.mxu0 %v45
    %1140 = vmatprep.subr.mxu0 0.0
    %1141 = vmatpush1.msra.mxu0 %v46
    %1142 = vmatprep.subr.mxu0 0.0
    %1143 = vmatpush1.msra.mxu0 %v47
    %1144 = vmatprep.subr.mxu0 0.0
    %1145 = vmatpush1.msra.mxu0 %v48
    %1146 = vmatprep.subr.mxu0 0.0
    %1147 = vmatpush1.msra.mxu0 %v49
    %1148 = vmatprep.subr.mxu0 0.0
    %1149 = vmatpush1.msra.mxu0 %v50
    %1150 = vmatprep.subr.mxu0 0.0
    %1151 = vmatpush1.msra.mxu0 %v51
    %1152 = vmatprep.subr.mxu0 0.0
    %1153 = vmatpush1.msra.mxu0 %v52
    %1154 = vmatprep.subr.mxu0 0.0
    %1155 = vmatpush1.msra.mxu0 %v53
    %1156 = vmatprep.subr.mxu0 0.0
    %1157 = vmatpush1.msra.mxu0 %v54
    %1158 = vmatprep.subr.mxu0 0.0
    %1159 = vmatpush1.msra.mxu0 %v55
    %1160 = vmatprep.subr.mxu0 0.0
    %1161 = vmatpush1.msra.mxu0 %v56
    %1162 = vmatprep.subr.mxu0 0.0
    %1163 = vmatpush1.msra.mxu0 %v57
    %1164 = vmatprep.subr.mxu0 0.0
    %1165 = vmatpush1.msra.mxu0 %v58
    %1166 = vmatprep.subr.mxu0 0.0
    %1167 = vmatpush1.msra.mxu0 %v59
    %1168 = vmatprep.subr.mxu0 0.0
    %1169 = vmatpush1.msra.mxu0 %v60
    %1170 = vmatprep.subr.mxu0 0.0
    %1171 = vmatpush1.msra.mxu0 %v61
    %1172 = vmatprep.subr.mxu0 0.0
    %1173 = vmatpush1.msra.mxu0 %v62
    %1174 = vmatprep.subr.mxu0 0.0
    %1175 = vmatpush1.msra.mxu0 %v63
    %1176 = vmatprep.subr.mxu0 0.0
    %1177 = vmatpush1.msra.mxu0 %v64
    %1178 = vmatprep.subr.mxu0 0.0
    %1179 = vmatpush1.msra.mxu0 %v65
    %1180 = vmatprep.mubr.f32.mxu0 %v869
    %1181 = vmatmul.mubr.f32.gmra.mrb[0].mxu0 %v861
    %v1182 = vpop.f32.mrb[0].mxu0
    %v1183 = vadd.f32 %v839, %v1182
    %v1184 = vpop.f32.mrb[0].mxu0
    %1185 = vdwg.mxu0
    %1186 = vmatprep.subr.mxu0 0.0
    %1187 = vmatpush1.msra.mxu0 %v66
    %1188 = vmatprep.subr.mxu0 0.0
    %1189 = vmatpush1.msra.mxu0 %v67
    %1190 = vmatprep.subr.mxu0 0.0
    %1191 = vmatpush1.msra.mxu0 %v68
    %1192 = vmatprep.subr.mxu0 0.0
    %1193 = vmatpush1.msra.mxu0 %v69
    %1194 = vmatprep.subr.mxu0 0.0
    %1195 = vmatpush1.msra.mxu0 %v70
    %1196 = vmatprep.subr.mxu0 0.0
    %1197 = vmatpush1.msra.mxu0 %v71
    %1198 = vmatprep.subr.mxu0 0.0
    %1199 = vmatpush1.msra.mxu0 %v72
    %1200 = vmatprep.subr.mxu0 0.0
    %1201 = vmatpush1.msra.mxu0 %v73
    %1202 = vmatprep.subr.mxu0 0.0
    %1203 = vmatpush1.msra.mxu0 %v74
    %1204 = vmatprep.subr.mxu0 0.0
    %1205 = vmatpush1.msra.mxu0 %v75
    %1206 = vmatprep.subr.mxu0 0.0
    %1207 = vmatpush1.msra.mxu0 %v76
    %1208 = vmatprep.subr.mxu0 0.0
    %1209 = vmatpush1.msra.mxu0 %v77
    %1210 = vmatprep.subr.mxu0 0.0
    %1211 = vmatpush1.msra.mxu0 %v78
    %1212 = vmatprep.subr.mxu0 0.0
    %1213 = vmatpush1.msra.mxu0 %v79
    %1214 = vmatprep.subr.mxu0 0.0
    %1215 = vmatpush1.msra.mxu0 %v80
    %1216 = vmatprep.subr.mxu0 0.0
    %1217 = vmatpush1.msra.mxu0 %v81
    %1218 = vmatprep.subr.mxu0 0.0
    %1219 = vmatpush1.msra.mxu0 %v82
    %1220 = vmatprep.subr.mxu0 0.0
    %1221 = vmatpush1.msra.mxu0 %v83
    %1222 = vmatprep.subr.mxu0 0.0
    %1223 = vmatpush1.msra.mxu0 %v84
    %1224 = vmatprep.subr.mxu0 0.0
    %1225 = vmatpush1.msra.mxu0 %v85
    %1226 = vmatprep.subr.mxu0 0.0
    %1227 = vmatpush1.msra.mxu0 %v86
    %1228 = vmatprep.subr.mxu0 0.0
    %1229 = vmatpush1.msra.mxu0 %v87
    %1230 = vmatprep.subr.mxu0 0.0
    %1231 = vmatpush1.msra.mxu0 %v88
    %1232 = vmatprep.subr.mxu0 0.0
    %1233 = vmatpush1.msra.mxu0 %v89
    %1234 = vmatprep.subr.mxu0 0.0
    %1235 = vmatpush1.msra.mxu0 %v90
    %1236 = vmatprep.subr.mxu0 0.0
    %1237 = vmatpush1.msra.mxu0 %v91
    %1238 = vmatprep.subr.mxu0 0.0
    %1239 = vmatpush1.msra.mxu0 %v92
    %1240 = vmatprep.subr.mxu0 0.0
    %1241 = vmatpush1.msra.mxu0 %v93
    %1242 = vmatprep.subr.mxu0 0.0
    %1243 = vmatpush1.msra.mxu0 %v94
    %1244 = vmatprep.subr.mxu0 0.0
    %1245 = vmatpush1.msra.mxu0 %v95
    %1246 = vmatprep.subr.mxu0 0.0
    %1247 = vmatpush1.msra.mxu0 %v96
    %1248 = vmatprep.subr.mxu0 0.0
    %1249 = vmatpush1.msra.mxu0 %v97
    %1250 = vmatprep.mubr.f32.mxu0 %v870
    %1251 = vmatmul.mubr.f32.gmra.mrb[0].mxu0 %v868
    %v1252 = vpop.f32.mrb[0].mxu0
    %v1253 = vadd.f32 %v1183, %v1252
    %v1254 = vpop.f32.mrb[0].mxu0
    %1255 = vdwg.mxu0
    %1256 = vmatprep.subr.mxu0 0.0
    %1257 = vmatpush1.msra.mxu0 %v98
    %1258 = vmatprep.subr.mxu0 0.0
    %1259 = vmatpush1.msra.mxu0 %v99
    %1260 = vmatprep.subr.mxu0 0.0
    %1261 = vmatpush1.msra.mxu0 %v100
    %1262 = vmatprep.subr.mxu0 0.0
    %1263 = vmatpush1.msra.mxu0 %v101
    %1264 = vmatprep.subr.mxu0 0.0
    %1265 = vmatpush1.msra.mxu0 %v102
    %1266 = vmatprep.subr.mxu0 0.0
    %1267 = vmatpush1.msra.mxu0 %v103
    %1268 = vmatprep.subr.mxu0 0.0
    %1269 = vmatpush1.msra.mxu0 %v104
    %1270 = vmatprep.subr.mxu0 0.0
    %1271 = vmatpush1.msra.mxu0 %v105
    %1272 = vmatprep.subr.mxu0 0.0
    %1273 = vmatpush1.msra.mxu0 %v106
    %1274 = vmatprep.subr.mxu0 0.0
    %1275 = vmatpush1.msra.mxu0 %v107
    %1276 = vmatprep.subr.mxu0 0.0
    %1277 = vmatpush1.msra.mxu0 %v108
    %1278 = vmatprep.subr.mxu0 0.0
    %1279 = vmatpush1.msra.mxu0 %v109
    %1280 = vmatprep.subr.mxu0 0.0
    %1281 = vmatpush1.msra.mxu0 %v110
    %1282 = vmatprep.subr.mxu0 0.0
    %1283 = vmatpush1.msra.mxu0 %v111
    %1284 = vmatprep.subr.mxu0 0.0
    %1285 = vmatpush1.msra.mxu0 %v112
    %1286 = vmatprep.subr.mxu0 0.0
    %1287 = vmatpush1.msra.mxu0 %v113
    %1288 = vmatprep.subr.mxu0 0.0
    %1289 = vmatpush1.msra.mxu0 %v114
    %1290 = vmatprep.subr.mxu0 0.0
    %1291 = vmatpush1.msra.mxu0 %v115
    %1292 = vmatprep.subr.mxu0 0.0
    %1293 = vmatpush1.msra.mxu0 %v116
    %1294 = vmatprep.subr.mxu0 0.0
    %1295 = vmatpush1.msra.mxu0 %v117
    %1296 = vmatprep.subr.mxu0 0.0
    %1297 = vmatpush1.msra.mxu0 %v118
    %1298 = vmatprep.subr.mxu0 0.0
    %1299 = vmatpush1.msra.mxu0 %v119
    %1300 = vmatprep.subr.mxu0 0.0
    %1301 = vmatpush1.msra.mxu0 %v120
    %1302 = vmatprep.subr.mxu0 0.0
    %1303 = vmatpush1.msra.mxu0 %v121
    %1304 = vmatprep.subr.mxu0 0.0
    %1305 = vmatpush1.msra.mxu0 %v122
    %1306 = vmatprep.subr.mxu0 0.0
    %1307 = vmatpush1.msra.mxu0 %v123
    %1308 = vmatprep.subr.mxu0 0.0
    %1309 = vmatpush1.msra.mxu0 %v124
    %1310 = vmatprep.subr.mxu0 0.0
    %1311 = vmatpush1.msra.mxu0 %v125
    %1312 = vmatprep.subr.mxu0 0.0
    %1313 = vmatpush1.msra.mxu0 %v126
    %1314 = vmatprep.subr.mxu0 0.0
    %1315 = vmatpush1.msra.mxu0 %v127
    %1316 = vmatprep.subr.mxu0 0.0
    %1317 = vmatpush1.msra.mxu0 %v128
    %1318 = vmatprep.subr.mxu0 0.0
    %1319 = vmatpush1.msra.mxu0 %v129
    %1320 = vmatprep.mubr.f32.mxu0 %v886
    %1321 = vmatmul.mubr.f32.gmra.mrb[0].mxu0 %v878
    %v1322 = vpop.f32.mrb[0].mxu0
    %v1323 = vadd.f32 %v1253, %v1322
    %v1324 = vpop.f32.mrb[0].mxu0
    %1325 = vdwg.mxu0
    %1326 = vmatprep.subr.mxu0 0.0
    %1327 = vmatpush1.msra.mxu0 %v130
    %1328 = vmatprep.subr.mxu0 0.0
    %1329 = vmatpush1.msra.mxu0 %v131
    %1330 = vmatprep.subr.mxu0 0.0
    %1331 = vmatpush1.msra.mxu0 %v132
    %1332 = vmatprep.subr.mxu0 0.0
    %1333 = vmatpush1.msra.mxu0 %v133
    %1334 = vmatprep.subr.mxu0 0.0
    %1335 = vmatpush1.msra.mxu0 %v134
    %1336 = vmatprep.subr.mxu0 0.0
    %1337 = vmatpush1.msra.mxu0 %v135
    %1338 = vmatprep.subr.mxu0 0.0
    %1339 = vmatpush1.msra.mxu0 %v136
    %1340 = vmatprep.subr.mxu0 0.0
    %1341 = vmatpush1.msra.mxu0 %v137
    %1342 = vmatprep.subr.mxu0 0.0
    %1343 = vmatpush1.msra.mxu0 %v138
    %1344 = vmatprep.subr.mxu0 0.0
    %1345 = vmatpush1.msra.mxu0 %v139
    %1346 = vmatprep.subr.mxu0 0.0
    %1347 = vmatpush1.msra.mxu0 %v140
    %1348 = vmatprep.subr.mxu0 0.0
    %1349 = vmatpush1.msra.mxu0 %v141
    %1350 = vmatprep.subr.mxu0 0.0
    %1351 = vmatpush1.msra.mxu0 %v142
    %1352 = vmatprep.subr.mxu0 0.0
    %1353 = vmatpush1.msra.mxu0 %v143
    %1354 = vmatprep.subr.mxu0 0.0
    %1355 = vmatpush1.msra.mxu0 %v144
    %1356 = vmatprep.subr.mxu0 0.0
    %1357 = vmatpush1.msra.mxu0 %v145
    %1358 = vmatprep.subr.mxu0 0.0
    %1359 = vmatpush1.msra.mxu0 %v146
    %1360 = vmatprep.subr.mxu0 0.0
    %1361 = vmatpush1.msra.mxu0 %v147
    %1362 = vmatprep.subr.mxu0 0.0
    %1363 = vmatpush1.msra.mxu0 %v148
    %1364 = vmatprep.subr.mxu0 0.0
    %1365 = vmatpush1.msra.mxu0 %v149
    %1366 = vmatprep.subr.mxu0 0.0
    %1367 = vmatpush1.msra.mxu0 %v150
    %1368 = vmatprep.subr.mxu0 0.0
    %1369 = vmatpush1.msra.mxu0 %v151
    %1370 = vmatprep.subr.mxu0 0.0
    %1371 = vmatpush1.msra.mxu0 %v152
    %1372 = vmatprep.subr.mxu0 0.0
    %1373 = vmatpush1.msra.mxu0 %v153
    %1374 = vmatprep.subr.mxu0 0.0
    %1375 = vmatpush1.msra.mxu0 %v154
    %1376 = vmatprep.subr.mxu0 0.0
    %1377 = vmatpush1.msra.mxu0 %v155
    %1378 = vmatprep.subr.mxu0 0.0
    %1379 = vmatpush1.msra.mxu0 %v156
    %1380 = vmatprep.subr.mxu0 0.0
    %1381 = vmatpush1.msra.mxu0 %v157
    %1382 = vmatprep.subr.mxu0 0.0
    %1383 = vmatpush1.msra.mxu0 %v158
    %1384 = vmatprep.subr.mxu0 0.0
    %1385 = vmatpush1.msra.mxu0 %v159
    %1386 = vmatprep.subr.mxu0 0.0
    %1387 = vmatpush1.msra.mxu0 %v160
    %1388 = vmatprep.subr.mxu0 0.0
    %1389 = vmatpush1.msra.mxu0 %v161
    %1390 = vmatprep.mubr.f32.mxu0 %v887
    %1391 = vmatmul.mubr.f32.gmra.mrb[0].mxu0 %v885
    %v1392 = vpop.f32.mrb[0].mxu0
    %v1393 = vadd.f32 %v1323, %v1392
    %v1394 = vpop.f32.mrb[0].mxu0
    %1395 = vdwg.mxu0
    %1396 = vmatprep.subr.mxu0 0.0
    %1397 = vmatpush1.msra.mxu0 %v162
    %1398 = vmatprep.subr.mxu0 0.0
    %1399 = vmatpush1.msra.mxu0 %v163
    %1400 = vmatprep.subr.mxu0 0.0
    %1401 = vmatpush1.msra.mxu0 %v164
    %1402 = vmatprep.subr.mxu0 0.0
    %1403 = vmatpush1.msra.mxu0 %v165
    %1404 = vmatprep.subr.mxu0 0.0
    %1405 = vmatpush1.msra.mxu0 %v166
    %1406 = vmatprep.subr.mxu0 0.0
    %1407 = vmatpush1.msra.mxu0 %v167
    %1408 = vmatprep.subr.mxu0 0.0
    %1409 = vmatpush1.msra.mxu0 %v168
    %1410 = vmatprep.subr.mxu0 0.0
    %1411 = vmatpush1.msra.mxu0 %v169
    %1412 = vmatprep.subr.mxu0 0.0
    %1413 = vmatpush1.msra.mxu0 %v170
    %1414 = vmatprep.subr.mxu0 0.0
    %1415 = vmatpush1.msra.mxu0 %v171
    %1416 = vmatprep.subr.mxu0 0.0
    %1417 = vmatpush1.msra.mxu0 %v172
    %1418 = vmatprep.subr.mxu0 0.0
    %1419 = vmatpush1.msra.mxu0 %v173
    %1420 = vmatprep.subr.mxu0 0.0
    %1421 = vmatpush1.msra.mxu0 %v174
    %1422 = vmatprep.subr.mxu0 0.0
    %1423 = vmatpush1.msra.mxu0 %v175
    %1424 = vmatprep.subr.mxu0 0.0
    %1425 = vmatpush1.msra.mxu0 %v176
    %1426 = vmatprep.subr.mxu0 0.0
    %1427 = vmatpush1.msra.mxu0 %v177
    %1428 = vmatprep.subr.mxu0 0.0
    %1429 = vmatpush1.msra.mxu0 %v178
    %1430 = vmatprep.subr.mxu0 0.0
    %1431 = vmatpush1.msra.mxu0 %v179
    %1432 = vmatprep.subr.mxu0 0.0
    %1433 = vmatpush1.msra.mxu0 %v180
    %1434 = vmatprep.subr.mxu0 0.0
    %1435 = vmatpush1.msra.mxu0 %v181
    %1436 = vmatprep.subr.mxu0 0.0
    %1437 = vmatpush1.msra.mxu0 %v182
    %1438 = vmatprep.subr.mxu0 0.0
    %1439 = vmatpush1.msra.mxu0 %v183
    %1440 = vmatprep.subr.mxu0 0.0
    %1441 = vmatpush1.msra.mxu0 %v184
    %1442 = vmatprep.subr.mxu0 0.0
    %1443 = vmatpush1.msra.mxu0 %v185
    %1444 = vmatprep.subr.mxu0 0.0
    %1445 = vmatpush1.msra.mxu0 %v186
    %1446 = vmatprep.subr.mxu0 0.0
    %1447 = vmatpush1.msra.mxu0 %v187
    %1448 = vmatprep.subr.mxu0 0.0
    %1449 = vmatpush1.msra.mxu0 %v188
    %1450 = vmatprep.subr.mxu0 0.0
    %1451 = vmatpush1.msra.mxu0 %v189
    %1452 = vmatprep.subr.mxu0 0.0
    %1453 = vmatpush1.msra.mxu0 %v190
    %1454 = vmatprep.subr.mxu0 0.0
    %1455 = vmatpush1.msra.mxu0 %v191
    %1456 = vmatprep.subr.mxu0 0.0
    %1457 = vmatpush1.msra.mxu0 %v192
    %1458 = vmatprep.subr.mxu0 0.0
    %1459 = vmatpush1.msra.mxu0 %v193
    %1460 = vmatprep.mubr.f32.mxu0 %v903
    %1461 = vmatmul.mubr.f32.gmra.mrb[0].mxu0 %v895
    %v1462 = vpop.f32.mrb[0].mxu0
    %v1463 = vadd.f32 %v1393, %v1462
    %v1464 = vpop.f32.mrb[0].mxu0
    %1465 = vdwg.mxu0
    %1466 = vmatprep.subr.mxu0 0.0
    %1467 = vmatpush1.msra.mxu0 %v194
    %1468 = vmatprep.subr.mxu0 0.0
    %1469 = vmatpush1.msra.mxu0 %v195
    %1470 = vmatprep.subr.mxu0 0.0
    %1471 = vmatpush1.msra.mxu0 %v196
    %1472 = vmatprep.subr.mxu0 0.0
    %1473 = vmatpush1.msra.mxu0 %v197
    %1474 = vmatprep.subr.mxu0 0.0
    %1475 = vmatpush1.msra.mxu0 %v198
    %1476 = vmatprep.subr.mxu0 0.0
    %1477 = vmatpush1.msra.mxu0 %v199
    %1478 = vmatprep.subr.mxu0 0.0
    %1479 = vmatpush1.msra.mxu0 %v200
    %1480 = vmatprep.subr.mxu0 0.0
    %1481 = vmatpush1.msra.mxu0 %v201
    %1482 = vmatprep.subr.mxu0 0.0
    %1483 = vmatpush1.msra.mxu0 %v202
    %1484 = vmatprep.subr.mxu0 0.0
    %1485 = vmatpush1.msra.mxu0 %v203
    %1486 = vmatprep.subr.mxu0 0.0
    %1487 = vmatpush1.msra.mxu0 %v204
    %1488 = vmatprep.subr.mxu0 0.0
    %1489 = vmatpush1.msra.mxu0 %v205
    %1490 = vmatprep.subr.mxu0 0.0
    %1491 = vmatpush1.msra.mxu0 %v206
    %1492 = vmatprep.subr.mxu0 0.0
    %1493 = vmatpush1.msra.mxu0 %v207
    %1494 = vmatprep.subr.mxu0 0.0
    %1495 = vmatpush1.msra.mxu0 %v208
    %1496 = vmatprep.subr.mxu0 0.0
    %1497 = vmatpush1.msra.mxu0 %v209
    %1498 = vmatprep.subr.mxu0 0.0
    %1499 = vmatpush1.msra.mxu0 %v210
    %1500 = vmatprep.subr.mxu0 0.0
    %1501 = vmatpush1.msra.mxu0 %v211
    %1502 = vmatprep.subr.mxu0 0.0
    %1503 = vmatpush1.msra.mxu0 %v212
    %1504 = vmatprep.subr.mxu0 0.0
    %1505 = vmatpush1.msra.mxu0 %v213
    %1506 = vmatprep.subr.mxu0 0.0
    %1507 = vmatpush1.msra.mxu0 %v214
    %1508 = vmatprep.subr.mxu0 0.0
    %1509 = vmatpush1.msra.mxu0 %v215
    %1510 = vmatprep.subr.mxu0 0.0
    %1511 = vmatpush1.msra.mxu0 %v216
    %1512 = vmatprep.subr.mxu0 0.0
    %1513 = vmatpush1.msra.mxu0 %v217
    %1514 = vmatprep.subr.mxu0 0.0
    %1515 = vmatpush1.msra.mxu0 %v218
    %1516 = vmatprep.subr.mxu0 0.0
    %1517 = vmatpush1.msra.mxu0 %v219
    %1518 = vmatprep.subr.mxu0 0.0
    %1519 = vmatpush1.msra.mxu0 %v220
    %1520 = vmatprep.subr.mxu0 0.0
    %1521 = vmatpush1.msra.mxu0 %v221
    %1522 = vmatprep.subr.mxu0 0.0
    %1523 = vmatpush1.msra.mxu0 %v222
    %1524 = vmatprep.subr.mxu0 0.0
    %1525 = vmatpush1.msra.mxu0 %v223
    %1526 = vmatprep.subr.mxu0 0.0
    %1527 = vmatpush1.msra.mxu0 %v224
    %1528 = vmatprep.subr.mxu0 0.0
    %1529 = vmatpush1.msra.mxu0 %v225
    %1530 = vmatprep.mubr.f32.mxu0 %v904
    %1531 = vmatmul.mubr.f32.gmra.mrb[0].mxu0 %v902
    %v1532 = vpop.f32.mrb[0].mxu0
    %v1533 = vadd.f32 %v1463, %v1532
    %v1534 = vpop.f32.mrb[0].mxu0
    %1535 = vdwg.mxu0
    %1536 = vmatprep.subr.mxu0 0.0
    %1537 = vmatpush1.msra.mxu0 %v226
    %1538 = vmatprep.subr.mxu0 0.0
    %1539 = vmatpush1.msra.mxu0 %v227
    %1540 = vmatprep.subr.mxu0 0.0
    %1541 = vmatpush1.msra.mxu0 %v228
    %1542 = vmatprep.subr.mxu0 0.0
    %1543 = vmatpush1.msra.mxu0 %v229
    %1544 = vmatprep.subr.mxu0 0.0
    %1545 = vmatpush1.msra.mxu0 %v230
    %1546 = vmatprep.subr.mxu0 0.0
    %1547 = vmatpush1.msra.mxu0 %v231
    %1548 = vmatprep.subr.mxu0 0.0
    %1549 = vmatpush1.msra.mxu0 %v232
    %1550 = vmatprep.subr.mxu0 0.0
    %1551 = vmatpush1.msra.mxu0 %v233
    %1552 = vmatprep.subr.mxu0 0.0
    %1553 = vmatpush1.msra.mxu0 %v234
    %1554 = vmatprep.subr.mxu0 0.0
    %1555 = vmatpush1.msra.mxu0 %v235
    %1556 = vmatprep.subr.mxu0 0.0
    %1557 = vmatpush1.msra.mxu0 %v236
    %1558 = vmatprep.subr.mxu0 0.0
    %1559 = vmatpush1.msra.mxu0 %v237
    %1560 = vmatprep.subr.mxu0 0.0
    %1561 = vmatpush1.msra.mxu0 %v238
    %1562 = vmatprep.subr.mxu0 0.0
    %1563 = vmatpush1.msra.mxu0 %v239
    %1564 = vmatprep.subr.mxu0 0.0
    %1565 = vmatpush1.msra.mxu0 %v240
    %1566 = vmatprep.subr.mxu0 0.0
    %1567 = vmatpush1.msra.mxu0 %v241
    %1568 = vmatprep.subr.mxu0 0.0
    %1569 = vmatpush1.msra.mxu0 %v242
    %1570 = vmatprep.subr.mxu0 0.0
    %1571 = vmatpush1.msra.mxu0 %v243
    %1572 = vmatprep.subr.mxu0 0.0
    %1573 = vmatpush1.msra.mxu0 %v244
    %1574 = vmatprep.subr.mxu0 0.0
    %1575 = vmatpush1.msra.mxu0 %v245
    %1576 = vmatprep.subr.mxu0 0.0
    %1577 = vmatpush1.msra.mxu0 %v246
    %1578 = vmatprep.subr.mxu0 0.0
    %1579 = vmatpush1.msra.mxu0 %v247
    %1580 = vmatprep.subr.mxu0 0.0
    %1581 = vmatpush1.msra.mxu0 %v248
    %1582 = vmatprep.subr.mxu0 0.0
    %1583 = vmatpush1.msra.mxu0 %v249
    %1584 = vmatprep.subr.mxu0 0.0
    %1585 = vmatpush1.msra.mxu0 %v250
    %1586 = vmatprep.subr.mxu0 0.0
    %1587 = vmatpush1.msra.mxu0 %v251
    %1588 = vmatprep.subr.mxu0 0.0
    %1589 = vmatpush1.msra.mxu0 %v252
    %1590 = vmatprep.subr.mxu0 0.0
    %1591 = vmatpush1.msra.mxu0 %v253
    %1592 = vmatprep.subr.mxu0 0.0
    %1593 = vmatpush1.msra.mxu0 %v254
    %1594 = vmatprep.subr.mxu0 0.0
    %1595 = vmatpush1.msra.mxu0 %v255
    %1596 = vmatprep.subr.mxu0 0.0
    %1597 = vmatpush1.msra.mxu0 %v256
    %1598 = vmatprep.subr.mxu0 0.0
    %1599 = vmatpush1.msra.mxu0 %v257
    %1600 = vmatprep.mubr.f32.mxu0 %v920
    %1601 = vmatmul.mubr.f32.gmra.mrb[0].mxu0 %v912
    %v1602 = vpop.f32.mrb[0].mxu0
    %v1603 = vadd.f32 %v1533, %v1602
    %v1604 = vpop.f32.mrb[0].mxu0
    %1605 = vdwg.mxu0
    %1606 = vmatprep.subr.mxu0 0.0
    %1607 = vmatpush1.msra.mxu0 %v258
    %1608 = vmatprep.subr.mxu0 0.0
    %1609 = vmatpush1.msra.mxu0 %v259
    %1610 = vmatprep.subr.mxu0 0.0
    %1611 = vmatpush1.msra.mxu0 %v260
    %1612 = vmatprep.subr.mxu0 0.0
    %1613 = vmatpush1.msra.mxu0 %v261
    %1614 = vmatprep.subr.mxu0 0.0
    %1615 = vmatpush1.msra.mxu0 %v262
    %1616 = vmatprep.subr.mxu0 0.0
    %1617 = vmatpush1.msra.mxu0 %v263
    %1618 = vmatprep.subr.mxu0 0.0
    %1619 = vmatpush1.msra.mxu0 %v264
    %1620 = vmatprep.subr.mxu0 0.0
    %1621 = vmatpush1.msra.mxu0 %v265
    %1622 = vmatprep.subr.mxu0 0.0
    %1623 = vmatpush1.msra.mxu0 %v266
    %1624 = vmatprep.subr.mxu0 0.0
    %1625 = vmatpush1.msra.mxu0 %v267
    %1626 = vmatprep.subr.mxu0 0.0
    %1627 = vmatpush1.msra.mxu0 %v268
    %1628 = vmatprep.subr.mxu0 0.0
    %1629 = vmatpush1.msra.mxu0 %v269
    %1630 = vmatprep.subr.mxu0 0.0
    %1631 = vmatpush1.msra.mxu0 %v270
    %1632 = vmatprep.subr.mxu0 0.0
    %1633 = vmatpush1.msra.mxu0 %v271
    %1634 = vmatprep.subr.mxu0 0.0
    %1635 = vmatpush1.msra.mxu0 %v272
    %1636 = vmatprep.subr.mxu0 0.0
    %1637 = vmatpush1.msra.mxu0 %v273
    %1638 = vmatprep.subr.mxu0 0.0
    %1639 = vmatpush1.msra.mxu0 %v274
    %1640 = vmatprep.subr.mxu0 0.0
    %1641 = vmatpush1.msra.mxu0 %v275
    %1642 = vmatprep.subr.mxu0 0.0
    %1643 = vmatpush1.msra.mxu0 %v276
    %1644 = vmatprep.subr.mxu0 0.0
    %1645 = vmatpush1.msra.mxu0 %v277
    %1646 = vmatprep.subr.mxu0 0.0
    %1647 = vmatpush1.msra.mxu0 %v278
    %1648 = vmatprep.subr.mxu0 0.0
    %1649 = vmatpush1.msra.mxu0 %v279
    %1650 = vmatprep.subr.mxu0 0.0
    %1651 = vmatpush1.msra.mxu0 %v280
    %1652 = vmatprep.subr.mxu0 0.0
    %1653 = vmatpush1.msra.mxu0 %v281
    %1654 = vmatprep.subr.mxu0 0.0
    %1655 = vmatpush1.msra.mxu0 %v282
    %1656 = vmatprep.subr.mxu0 0.0
    %1657 = vmatpush1.msra.mxu0 %v283
    %1658 = vmatprep.subr.mxu0 0.0
    %1659 = vmatpush1.msra.mxu0 %v284
    %1660 = vmatprep.subr.mxu0 0.0
    %1661 = vmatpush1.msra.mxu0 %v285
    %1662 = vmatprep.subr.mxu0 0.0
    %1663 = vmatpush1.msra.mxu0 %v286
    %1664 = vmatprep.subr.mxu0 0.0
    %1665 = vmatpush1.msra.mxu0 %v287
    %1666 = vmatprep.subr.mxu0 0.0
    %1667 = vmatpush1.msra.mxu0 %v288
    %1668 = vmatprep.subr.mxu0 0.0
    %1669 = vmatpush1.msra.mxu0 %v289
    %1670 = vmatprep.mubr.f32.mxu0 %v921
    %1671 = vmatmul.mubr.f32.gmra.mrb[0].mxu0 %v919
    %v1672 = vpop.f32.mrb[0].mxu0
    %v1673 = vadd.f32 %v1603, %v1672
    %v1674 = vpop.f32.mrb[0].mxu0
    %1675 = vdwg.mxu0
    %1676 = vmatprep.subr.mxu0 0.0
    %1677 = vmatpush1.msra.mxu0 %v290
    %1678 = vmatprep.subr.mxu0 0.0
    %1679 = vmatpush1.msra.mxu0 %v291
    %1680 = vmatprep.subr.mxu0 0.0
    %1681 = vmatpush1.msra.mxu0 %v292
    %1682 = vmatprep.subr.mxu0 0.0
    %1683 = vmatpush1.msra.mxu0 %v293
    %1684 = vmatprep.subr.mxu0 0.0
    %1685 = vmatpush1.msra.mxu0 %v294
    %1686 = vmatprep.subr.mxu0 0.0
    %1687 = vmatpush1.msra.mxu0 %v295
    %1688 = vmatprep.subr.mxu0 0.0
    %1689 = vmatpush1.msra.mxu0 %v296
    %1690 = vmatprep.subr.mxu0 0.0
    %1691 = vmatpush1.msra.mxu0 %v297
    %1692 = vmatprep.subr.mxu0 0.0
    %1693 = vmatpush1.msra.mxu0 %v298
    %1694 = vmatprep.subr.mxu0 0.0
    %1695 = vmatpush1.msra.mxu0 %v299
    %1696 = vmatprep.subr.mxu0 0.0
    %1697 = vmatpush1.msra.mxu0 %v300
    %1698 = vmatprep.subr.mxu0 0.0
    %1699 = vmatpush1.msra.mxu0 %v301
    %1700 = vmatprep.subr.mxu0 0.0
    %1701 = vmatpush1.msra.mxu0 %v302
    %1702 = vmatprep.subr.mxu0 0.0
    %1703 = vmatpush1.msra.mxu0 %v303
    %1704 = vmatprep.subr.mxu0 0.0
    %1705 = vmatpush1.msra.mxu0 %v304
    %1706 = vmatprep.subr.mxu0 0.0
    %1707 = vmatpush1.msra.mxu0 %v305
    %1708 = vmatprep.subr.mxu0 0.0
    %1709 = vmatpush1.msra.mxu0 %v306
    %1710 = vmatprep.subr.mxu0 0.0
    %1711 = vmatpush1.msra.mxu0 %v307
    %1712 = vmatprep.subr.mxu0 0.0
    %1713 = vmatpush1.msra.mxu0 %v308
    %1714 = vmatprep.subr.mxu0 0.0
    %1715 = vmatpush1.msra.mxu0 %v309
    %1716 = vmatprep.subr.mxu0 0.0
    %1717 = vmatpush1.msra.mxu0 %v310
    %1718 = vmatprep.subr.mxu0 0.0
    %1719 = vmatpush1.msra.mxu0 %v311
    %1720 = vmatprep.subr.mxu0 0.0
    %1721 = vmatpush1.msra.mxu0 %v312
    %1722 = vmatprep.subr.mxu0 0.0
    %1723 = vmatpush1.msra.mxu0 %v313
    %1724 = vmatprep.subr.mxu0 0.0
    %1725 = vmatpush1.msra.mxu0 %v314
    %1726 = vmatprep.subr.mxu0 0.0
    %1727 = vmatpush1.msra.mxu0 %v315
    %1728 = vmatprep.subr.mxu0 0.0
    %1729 = vmatpush1.msra.mxu0 %v316
    %1730 = vmatprep.subr.mxu0 0.0
    %1731 = vmatpush1.msra.mxu0 %v317
    %1732 = vmatprep.subr.mxu0 0.0
    %1733 = vmatpush1.msra.mxu0 %v318
    %1734 = vmatprep.subr.mxu0 0.0
    %1735 = vmatpush1.msra.mxu0 %v319
    %1736 = vmatprep.subr.mxu0 0.0
    %1737 = vmatpush1.msra.mxu0 %v320
    %1738 = vmatprep.subr.mxu0 0.0
    %1739 = vmatpush1.msra.mxu0 %v321
    %1740 = vmatprep.mubr.f32.mxu0 %v937
    %1741 = vmatmul.mubr.f32.gmra.mrb[0].mxu0 %v929
    %v1742 = vpop.f32.mrb[0].mxu0
    %v1743 = vadd.f32 %v1673, %v1742
    %v1744 = vpop.f32.mrb[0].mxu0
    %1745 = vdwg.mxu0
    %1746 = vmatprep.subr.mxu0 0.0
    %1747 = vmatpush1.msra.mxu0 %v322
    %1748 = vmatprep.subr.mxu0 0.0
    %1749 = vmatpush1.msra.mxu0 %v323
    %1750 = vmatprep.subr.mxu0 0.0
    %1751 = vmatpush1.msra.mxu0 %v324
    %1752 = vmatprep.subr.mxu0 0.0
    %1753 = vmatpush1.msra.mxu0 %v325
    %1754 = vmatprep.subr.mxu0 0.0
    %1755 = vmatpush1.msra.mxu0 %v326
    %1756 = vmatprep.subr.mxu0 0.0
    %1757 = vmatpush1.msra.mxu0 %v327
    %1758 = vmatprep.subr.mxu0 0.0
    %1759 = vmatpush1.msra.mxu0 %v328
    %1760 = vmatprep.subr.mxu0 0.0
    %1761 = vmatpush1.msra.mxu0 %v329
    %1762 = vmatprep.subr.mxu0 0.0
    %1763 = vmatpush1.msra.mxu0 %v330
    %1764 = vmatprep.subr.mxu0 0.0
    %1765 = vmatpush1.msra.mxu0 %v331
    %1766 = vmatprep.subr.mxu0 0.0
    %1767 = vmatpush1.msra.mxu0 %v332
    %1768 = vmatprep.subr.mxu0 0.0
    %1769 = vmatpush1.msra.mxu0 %v333
    %1770 = vmatprep.subr.mxu0 0.0
    %1771 = vmatpush1.msra.mxu0 %v334
    %1772 = vmatprep.subr.mxu0 0.0
    %1773 = vmatpush1.msra.mxu0 %v335
    %1774 = vmatprep.subr.mxu0 0.0
    %1775 = vmatpush1.msra.mxu0 %v336
    %1776 = vmatprep.subr.mxu0 0.0
    %1777 = vmatpush1.msra.mxu0 %v337
    %1778 = vmatprep.subr.mxu0 0.0
    %1779 = vmatpush1.msra.mxu0 %v338
    %1780 = vmatprep.subr.mxu0 0.0
    %1781 = vmatpush1.msra.mxu0 %v339
    %1782 = vmatprep.subr.mxu0 0.0
    %1783 = vmatpush1.msra.mxu0 %v340
    %1784 = vmatprep.subr.mxu0 0.0
    %1785 = vmatpush1.msra.mxu0 %v341
    %1786 = vmatprep.subr.mxu0 0.0
    %1787 = vmatpush1.msra.mxu0 %v342
    %1788 = vmatprep.subr.mxu0 0.0
    %1789 = vmatpush1.msra.mxu0 %v343
    %1790 = vmatprep.subr.mxu0 0.0
    %1791 = vmatpush1.msra.mxu0 %v344
    %1792 = vmatprep.subr.mxu0 0.0
    %1793 = vmatpush1.msra.mxu0 %v345
    %1794 = vmatprep.subr.mxu0 0.0
    %1795 = vmatpush1.msra.mxu0 %v346
    %1796 = vmatprep.subr.mxu0 0.0
    %1797 = vmatpush1.msra.mxu0 %v347
    %1798 = vmatprep.subr.mxu0 0.0
    %1799 = vmatpush1.msra.mxu0 %v348
    %1800 = vmatprep.subr.mxu0 0.0
    %1801 = vmatpush1.msra.mxu0 %v349
    %1802 = vmatprep.subr.mxu0 0.0
    %1803 = vmatpush1.msra.mxu0 %v350
    %1804 = vmatprep.subr.mxu0 0.0
    %1805 = vmatpush1.msra.mxu0 %v351
    %1806 = vmatprep.subr.mxu0 0.0
    %1807 = vmatpush1.msra.mxu0 %v352
    %1808 = vmatprep.subr.mxu0 0.0
    %1809 = vmatpush1.msra.mxu0 %v353
    %1810 = vmatprep.mubr.f32.mxu0 %v938
    %1811 = vmatmul.mubr.f32.gmra.mrb[0].mxu0 %v936
    %v1812 = vpop.f32.mrb[0].mxu0
    %v1813 = vadd.f32 %v1743, %v1812
    %v1814 = vpop.f32.mrb[0].mxu0
    %1815 = vdwg.mxu0
    %1816 = vmatprep.subr.mxu0 0.0
    %1817 = vmatpush1.msra.mxu0 %v354
    %1818 = vmatprep.subr.mxu0 0.0
    %1819 = vmatpush1.msra.mxu0 %v355
    %1820 = vmatprep.subr.mxu0 0.0
    %1821 = vmatpush1.msra.mxu0 %v356
    %1822 = vmatprep.subr.mxu0 0.0
    %1823 = vmatpush1.msra.mxu0 %v357
    %1824 = vmatprep.subr.mxu0 0.0
    %1825 = vmatpush1.msra.mxu0 %v358
    %1826 = vmatprep.subr.mxu0 0.0
    %1827 = vmatpush1.msra.mxu0 %v359
    %1828 = vmatprep.subr.mxu0 0.0
    %1829 = vmatpush1.msra.mxu0 %v360
    %1830 = vmatprep.subr.mxu0 0.0
    %1831 = vmatpush1.msra.mxu0 %v361
    %1832 = vmatprep.subr.mxu0 0.0
    %1833 = vmatpush1.msra.mxu0 %v362
    %1834 = vmatprep.subr.mxu0 0.0
    %1835 = vmatpush1.msra.mxu0 %v363
    %1836 = vmatprep.subr.mxu0 0.0
    %1837 = vmatpush1.msra.mxu0 %v364
    %1838 = vmatprep.subr.mxu0 0.0
    %1839 = vmatpush1.msra.mxu0 %v365
    %1840 = vmatprep.subr.mxu0 0.0
    %1841 = vmatpush1.msra.mxu0 %v366
    %1842 = vmatprep.subr.mxu0 0.0
    %1843 = vmatpush1.msra.mxu0 %v367
    %1844 = vmatprep.subr.mxu0 0.0
    %1845 = vmatpush1.msra.mxu0 %v368
    %1846 = vmatprep.subr.mxu0 0.0
    %1847 = vmatpush1.msra.mxu0 %v369
    %1848 = vmatprep.subr.mxu0 0.0
    %1849 = vmatpush1.msra.mxu0 %v370
    %1850 = vmatprep.subr.mxu0 0.0
    %1851 = vmatpush1.msra.mxu0 %v371
    %1852 = vmatprep.subr.mxu0 0.0
    %1853 = vmatpush1.msra.mxu0 %v372
    %1854 = vmatprep.subr.mxu0 0.0
    %1855 = vmatpush1.msra.mxu0 %v373
    %1856 = vmatprep.subr.mxu0 0.0
    %1857 = vmatpush1.msra.mxu0 %v374
    %1858 = vmatprep.subr.mxu0 0.0
    %1859 = vmatpush1.msra.mxu0 %v375
    %1860 = vmatprep.subr.mxu0 0.0
    %1861 = vmatpush1.msra.mxu0 %v376
    %1862 = vmatprep.subr.mxu0 0.0
    %1863 = vmatpush1.msra.mxu0 %v377
    %1864 = vmatprep.subr.mxu0 0.0
    %1865 = vmatpush1.msra.mxu0 %v378
    %1866 = vmatprep.subr.mxu0 0.0
    %1867 = vmatpush1.msra.mxu0 %v379
    %1868 = vmatprep.subr.mxu0 0.0
    %1869 = vmatpush1.msra.mxu0 %v380
    %1870 = vmatprep.subr.mxu0 0.0
    %1871 = vmatpush1.msra.mxu0 %v381
    %1872 = vmatprep.subr.mxu0 0.0
    %1873 = vmatpush1.msra.mxu0 %v382
    %1874 = vmatprep.subr.mxu0 0.0
    %1875 = vmatpush1.msra.mxu0 %v383
    %1876 = vmatprep.subr.mxu0 0.0
    %1877 = vmatpush1.msra.mxu0 %v384
    %1878 = vmatprep.subr.mxu0 0.0
    %1879 = vmatpush1.msra.mxu0 %v385
    %1880 = vmatprep.mubr.f32.mxu0 %v954
    %1881 = vmatmul.mubr.f32.gmra.mrb[0].mxu0 %v946
    %v1882 = vpop.f32.mrb[0].mxu0
    %v1883 = vadd.f32 %v1813, %v1882
    %v1884 = vpop.f32.mrb[0].mxu0
    %1885 = vdwg.mxu0
    %1886 = vmatprep.subr.mxu0 0.0
    %1887 = vmatpush1.msra.mxu0 %v386
    %1888 = vmatprep.subr.mxu0 0.0
    %1889 = vmatpush1.msra.mxu0 %v387
    %1890 = vmatprep.subr.mxu0 0.0
    %1891 = vmatpush1.msra.mxu0 %v388
    %1892 = vmatprep.subr.mxu0 0.0
    %1893 = vmatpush1.msra.mxu0 %v389
    %1894 = vmatprep.subr.mxu0 0.0
    %1895 = vmatpush1.msra.mxu0 %v390
    %1896 = vmatprep.subr.mxu0 0.0
    %1897 = vmatpush1.msra.mxu0 %v391
    %1898 = vmatprep.subr.mxu0 0.0
    %1899 = vmatpush1.msra.mxu0 %v392
    %1900 = vmatprep.subr.mxu0 0.0
    %1901 = vmatpush1.msra.mxu0 %v393
    %1902 = vmatprep.subr.mxu0 0.0
    %1903 = vmatpush1.msra.mxu0 %v394
    %1904 = vmatprep.subr.mxu0 0.0
    %1905 = vmatpush1.msra.mxu0 %v395
    %1906 = vmatprep.subr.mxu0 0.0
    %1907 = vmatpush1.msra.mxu0 %v396
    %1908 = vmatprep.subr.mxu0 0.0
    %1909 = vmatpush1.msra.mxu0 %v397
    %1910 = vmatprep.subr.mxu0 0.0
    %1911 = vmatpush1.msra.mxu0 %v398
    %1912 = vmatprep.subr.mxu0 0.0
    %1913 = vmatpush1.msra.mxu0 %v399
    %1914 = vmatprep.subr.mxu0 0.0
    %1915 = vmatpush1.msra.mxu0 %v400
    %1916 = vmatprep.subr.mxu0 0.0
    %1917 = vmatpush1.msra.mxu0 %v401
    %1918 = vmatprep.subr.mxu0 0.0
    %1919 = vmatpush1.msra.mxu0 %v402
    %1920 = vmatprep.subr.mxu0 0.0
    %1921 = vmatpush1.msra.mxu0 %v403
    %1922 = vmatprep.subr.mxu0 0.0
    %1923 = vmatpush1.msra.mxu0 %v404
    %1924 = vmatprep.subr.mxu0 0.0
    %1925 = vmatpush1.msra.mxu0 %v405
    %1926 = vmatprep.subr.mxu0 0.0
    %1927 = vmatpush1.msra.mxu0 %v406
    %1928 = vmatprep.subr.mxu0 0.0
    %1929 = vmatpush1.msra.mxu0 %v407
    %1930 = vmatprep.subr.mxu0 0.0
    %1931 = vmatpush1.msra.mxu0 %v408
    %1932 = vmatprep.subr.mxu0 0.0
    %1933 = vmatpush1.msra.mxu0 %v409
    %1934 = vmatprep.subr.mxu0 0.0
    %1935 = vmatpush1.msra.mxu0 %v410
    %1936 = vmatprep.subr.mxu0 0.0
    %1937 = vmatpush1.msra.mxu0 %v411
    %1938 = vmatprep.subr.mxu0 0.0
    %1939 = vmatpush1.msra.mxu0 %v412
    %1940 = vmatprep.subr.mxu0 0.0
    %1941 = vmatpush1.msra.mxu0 %v413
    %1942 = vmatprep.subr.mxu0 0.0
    %1943 = vmatpush1.msra.mxu0 %v414
    %1944 = vmatprep.subr.mxu0 0.0
    %1945 = vmatpush1.msra.mxu0 %v415
    %1946 = vmatprep.subr.mxu0 0.0
    %1947 = vmatpush1.msra.mxu0 %v416
    %1948 = vmatprep.subr.mxu0 0.0
    %1949 = vmatpush1.msra.mxu0 %v417
    %1950 = vmatprep.mubr.f32.mxu0 %v955
    %1951 = vmatmul.mubr.f32.gmra.mrb[0].mxu0 %v953
    %v1952 = vpop.f32.mrb[0].mxu0
    %v1953 = vadd.f32 %v1883, %v1952
    %v1954 = vpop.f32.mrb[0].mxu0
    %1955 = vdwg.mxu0
    %1956 = vmatprep.subr.mxu0 0.0
    %1957 = vmatpush1.msra.mxu0 %v418
    %1958 = vmatprep.subr.mxu0 0.0
    %1959 = vmatpush1.msra.mxu0 %v419
    %1960 = vmatprep.subr.mxu0 0.0
    %1961 = vmatpush1.msra.mxu0 %v420
    %1962 = vmatprep.subr.mxu0 0.0
    %1963 = vmatpush1.msra.mxu0 %v421
    %1964 = vmatprep.subr.mxu0 0.0
    %1965 = vmatpush1.msra.mxu0 %v422
    %1966 = vmatprep.subr.mxu0 0.0
    %1967 = vmatpush1.msra.mxu0 %v423
    %1968 = vmatprep.subr.mxu0 0.0
    %1969 = vmatpush1.msra.mxu0 %v424
    %1970 = vmatprep.subr.mxu0 0.0
    %1971 = vmatpush1.msra.mxu0 %v425
    %1972 = vmatprep.subr.mxu0 0.0
    %1973 = vmatpush1.msra.mxu0 %v426
    %1974 = vmatprep.subr.mxu0 0.0
    %1975 = vmatpush1.msra.mxu0 %v427
    %1976 = vmatprep.subr.mxu0 0.0
    %1977 = vmatpush1.msra.mxu0 %v428
    %1978 = vmatprep.subr.mxu0 0.0
    %1979 = vmatpush1.msra.mxu0 %v429
    %1980 = vmatprep.subr.mxu0 0.0
    %1981 = vmatpush1.msra.mxu0 %v430
    %1982 = vmatprep.subr.mxu0 0.0
    %1983 = vmatpush1.msra.mxu0 %v431
    %1984 = vmatprep.subr.mxu0 0.0
    %1985 = vmatpush1.msra.mxu0 %v432
    %1986 = vmatprep.subr.mxu0 0.0
    %1987 = vmatpush1.msra.mxu0 %v433
    %1988 = vmatprep.subr.mxu0 0.0
    %1989 = vmatpush1.msra.mxu0 %v434
    %1990 = vmatprep.subr.mxu0 0.0
    %1991 = vmatpush1.msra.mxu0 %v435
    %1992 = vmatprep.subr.mxu0 0.0
    %1993 = vmatpush1.msra.mxu0 %v436
    %1994 = vmatprep.subr.mxu0 0.0
    %1995 = vmatpush1.msra.mxu0 %v437
    %1996 = vmatprep.subr.mxu0 0.0
    %1997 = vmatpush1.msra.mxu0 %v438
    %1998 = vmatprep.subr.mxu0 0.0
    %1999 = vmatpush1.msra.mxu0 %v439
    %2000 = vmatprep.subr.mxu0 0.0
    %2001 = vmatpush1.msra.mxu0 %v440
    %2002 = vmatprep.subr.mxu0 0.0
    %2003 = vmatpush1.msra.mxu0 %v441
    %2004 = vmatprep.subr.mxu0 0.0
    %2005 = vmatpush1.msra.mxu0 %v442
    %2006 = vmatprep.subr.mxu0 0.0
    %2007 = vmatpush1.msra.mxu0 %v443
    %2008 = vmatprep.subr.mxu0 0.0
    %2009 = vmatpush1.msra.mxu0 %v444
    %2010 = vmatprep.subr.mxu0 0.0
    %2011 = vmatpush1.msra.mxu0 %v445
    %2012 = vmatprep.subr.mxu0 0.0
    %2013 = vmatpush1.msra.mxu0 %v446
    %2014 = vmatprep.subr.mxu0 0.0
    %2015 = vmatpush1.msra.mxu0 %v447
    %2016 = vmatprep.subr.mxu0 0.0
    %2017 = vmatpush1.msra.mxu0 %v448
    %2018 = vmatprep.subr.mxu0 0.0
    %2019 = vmatpush1.msra.mxu0 %v449
    %2020 = vmatprep.mubr.f32.mxu0 %v971
    %2021 = vmatmul.mubr.f32.gmra.mrb[0].mxu0 %v963
    %v2022 = vpop.f32.mrb[0].mxu0
    %v2023 = vadd.f32 %v1953, %v2022
    %v2024 = vpop.f32.mrb[0].mxu0
    %2025 = vdwg.mxu0
    %2026 = vmatprep.subr.mxu0 0.0
    %2027 = vmatpush1.msra.mxu0 %v450
    %2028 = vmatprep.subr.mxu0 0.0
    %2029 = vmatpush1.msra.mxu0 %v451
    %2030 = vmatprep.subr.mxu0 0.0
    %2031 = vmatpush1.msra.mxu0 %v452
    %2032 = vmatprep.subr.mxu0 0.0
    %2033 = vmatpush1.msra.mxu0 %v453
    %2034 = vmatprep.subr.mxu0 0.0
    %2035 = vmatpush1.msra.mxu0 %v454
    %2036 = vmatprep.subr.mxu0 0.0
    %2037 = vmatpush1.msra.mxu0 %v455
    %2038 = vmatprep.subr.mxu0 0.0
    %2039 = vmatpush1.msra.mxu0 %v456
    %2040 = vmatprep.subr.mxu0 0.0
    %2041 = vmatpush1.msra.mxu0 %v457
    %2042 = vmatprep.subr.mxu0 0.0
    %2043 = vmatpush1.msra.mxu0 %v458
    %2044 = vmatprep.subr.mxu0 0.0
    %2045 = vmatpush1.msra.mxu0 %v459
    %2046 = vmatprep.subr.mxu0 0.0
    %2047 = vmatpush1.msra.mxu0 %v460
    %2048 = vmatprep.subr.mxu0 0.0
    %2049 = vmatpush1.msra.mxu0 %v461
    %2050 = vmatprep.subr.mxu0 0.0
    %2051 = vmatpush1.msra.mxu0 %v462
    %2052 = vmatprep.subr.mxu0 0.0
    %2053 = vmatpush1.msra.mxu0 %v463
    %2054 = vmatprep.subr.mxu0 0.0
    %2055 = vmatpush1.msra.mxu0 %v464
    %2056 = vmatprep.subr.mxu0 0.0
    %2057 = vmatpush1.msra.mxu0 %v465
    %2058 = vmatprep.subr.mxu0 0.0
    %2059 = vmatpush1.msra.mxu0 %v466
    %2060 = vmatprep.subr.mxu0 0.0
    %2061 = vmatpush1.msra.mxu0 %v467
    %2062 = vmatprep.subr.mxu0 0.0
    %2063 = vmatpush1.msra.mxu0 %v468
    %2064 = vmatprep.subr.mxu0 0.0
    %2065 = vmatpush1.msra.mxu0 %v469
    %2066 = vmatprep.subr.mxu0 0.0
    %2067 = vmatpush1.msra.mxu0 %v470
    %2068 = vmatprep.subr.mxu0 0.0
    %2069 = vmatpush1.msra.mxu0 %v471
    %2070 = vmatprep.subr.mxu0 0.0
    %2071 = vmatpush1.msra.mxu0 %v472
    %2072 = vmatprep.subr.mxu0 0.0
    %2073 = vmatpush1.msra.mxu0 %v473
    %2074 = vmatprep.subr.mxu0 0.0
    %2075 = vmatpush1.msra.mxu0 %v474
    %2076 = vmatprep.subr.mxu0 0.0
    %2077 = vmatpush1.msra.mxu0 %v475
    %2078 = vmatprep.subr.mxu0 0.0
    %2079 = vmatpush1.msra.mxu0 %v476
    %2080 = vmatprep.subr.mxu0 0.0
    %2081 = vmatpush1.msra.mxu0 %v477
    %2082 = vmatprep.subr.mxu0 0.0
    %2083 = vmatpush1.msra.mxu0 %v478
    %2084 = vmatprep.subr.mxu0 0.0
    %2085 = vmatpush1.msra.mxu0 %v479
    %2086 = vmatprep.subr.mxu0 0.0
    %2087 = vmatpush1.msra.mxu0 %v480
    %2088 = vmatprep.subr.mxu0 0.0
    %2089 = vmatpush1.msra.mxu0 %v481
    %2090 = vmatprep.mubr.f32.mxu0 %v972
    %2091 = vmatmul.mubr.f32.gmra.mrb[0].mxu0 %v970
    %v2092 = vpop.f32.mrb[0].mxu0
    %v2093 = vadd.f32 %v2023, %v2092
    %v2094 = vpop.f32.mrb[0].mxu0
    %2095 = vdwg.mxu0
    %2096 = vmatprep.subr.mxu0 0.0
    %2097 = vmatpush1.msra.mxu0 %v482
    %2098 = vmatprep.subr.mxu0 0.0
    %2099 = vmatpush1.msra.mxu0 %v483
    %2100 = vmatprep.subr.mxu0 0.0
    %2101 = vmatpush1.msra.mxu0 %v484
    %2102 = vmatprep.subr.mxu0 0.0
    %2103 = vmatpush1.msra.mxu0 %v485
    %2104 = vmatprep.subr.mxu0 0.0
    %2105 = vmatpush1.msra.mxu0 %v486
    %2106 = vmatprep.subr.mxu0 0.0
    %2107 = vmatpush1.msra.mxu0 %v487
    %2108 = vmatprep.subr.mxu0 0.0
    %2109 = vmatpush1.msra.mxu0 %v488
    %2110 = vmatprep.subr.mxu0 0.0
    %2111 = vmatpush1.msra.mxu0 %v489
    %2112 = vmatprep.subr.mxu0 0.0
    %2113 = vmatpush1.msra.mxu0 %v490
    %2114 = vmatprep.subr.mxu0 0.0
    %2115 = vmatpush1.msra.mxu0 %v491
    %2116 = vmatprep.subr.mxu0 0.0
    %2117 = vmatpush1.msra.mxu0 %v492
    %2118 = vmatprep.subr.mxu0 0.0
    %2119 = vmatpush1.msra.mxu0 %v493
    %2120 = vmatprep.subr.mxu0 0.0
    %2121 = vmatpush1.msra.mxu0 %v494
    %2122 = vmatprep.subr.mxu0 0.0
    %2123 = vmatpush1.msra.mxu0 %v495
    %2124 = vmatprep.subr.mxu0 0.0
    %2125 = vmatpush1.msra.mxu0 %v496
    %2126 = vmatprep.subr.mxu0 0.0
    %2127 = vmatpush1.msra.mxu0 %v497
    %2128 = vmatprep.subr.mxu0 0.0
    %2129 = vmatpush1.msra.mxu0 %v498
    %2130 = vmatprep.subr.mxu0 0.0
    %2131 = vmatpush1.msra.mxu0 %v499
    %2132 = vmatprep.subr.mxu0 0.0
    %2133 = vmatpush1.msra.mxu0 %v500
    %2134 = vmatprep.subr.mxu0 0.0
    %2135 = vmatpush1.msra.mxu0 %v501
    %2136 = vmatprep.subr.mxu0 0.0
    %2137 = vmatpush1.msra.mxu0 %v502
    %2138 = vmatprep.subr.mxu0 0.0
    %2139 = vmatpush1.msra.mxu0 %v503
    %2140 = vmatprep.subr.mxu0 0.0
    %2141 = vmatpush1.msra.mxu0 %v504
    %2142 = vmatprep.subr.mxu0 0.0
    %2143 = vmatpush1.msra.mxu0 %v505
    %2144 = vmatprep.subr.mxu0 0.0
    %2145 = vmatpush1.msra.mxu0 %v506
    %2146 = vmatprep.subr.mxu0 0.0
    %2147 = vmatpush1.msra.mxu0 %v507
    %2148 = vmatprep.subr.mxu0 0.0
    %2149 = vmatpush1.msra.mxu0 %v508
    %2150 = vmatprep.subr.mxu0 0.0
    %2151 = vmatpush1.msra.mxu0 %v509
    %2152 = vmatprep.subr.mxu0 0.0
    %2153 = vmatpush1.msra.mxu0 %v510
    %2154 = vmatprep.subr.mxu0 0.0
    %2155 = vmatpush1.msra.mxu0 %v511
    %2156 = vmatprep.subr.mxu0 0.0
    %2157 = vmatpush1.msra.mxu0 %v512
    %2158 = vmatprep.subr.mxu0 0.0
    %2159 = vmatpush1.msra.mxu0 %v513
    %2160 = vmatprep.mubr.f32.mxu0 %v988
    %2161 = vmatmul.mubr.f32.gmra.mrb[0].mxu0 %v980
    %v2162 = vpop.f32.mrb[0].mxu0
    %v2163 = vadd.f32 %v2093, %v2162
    %v2164 = vpop.f32.mrb[0].mxu0
    %2165 = vdwg.mxu0
    %2166 = vmatprep.subr.mxu0 0.0
    %2167 = vmatpush1.msra.mxu0 %v514
    %2168 = vmatprep.subr.mxu0 0.0
    %2169 = vmatpush1.msra.mxu0 %v515
    %2170 = vmatprep.subr.mxu0 0.0
    %2171 = vmatpush1.msra.mxu0 %v516
    %2172 = vmatprep.subr.mxu0 0.0
    %2173 = vmatpush1.msra.mxu0 %v517
    %2174 = vmatprep.subr.mxu0 0.0
    %2175 = vmatpush1.msra.mxu0 %v518
    %2176 = vmatprep.subr.mxu0 0.0
    %2177 = vmatpush1.msra.mxu0 %v519
    %2178 = vmatprep.subr.mxu0 0.0
    %2179 = vmatpush1.msra.mxu0 %v520
    %2180 = vmatprep.subr.mxu0 0.0
    %2181 = vmatpush1.msra.mxu0 %v521
    %2182 = vmatprep.subr.mxu0 0.0
    %2183 = vmatpush1.msra.mxu0 %v522
    %2184 = vmatprep.subr.mxu0 0.0
    %2185 = vmatpush1.msra.mxu0 %v523
    %2186 = vmatprep.subr.mxu0 0.0
    %2187 = vmatpush1.msra.mxu0 %v524
    %2188 = vmatprep.subr.mxu0 0.0
    %2189 = vmatpush1.msra.mxu0 %v525
    %2190 = vmatprep.subr.mxu0 0.0
    %2191 = vmatpush1.msra.mxu0 %v526
    %2192 = vmatprep.subr.mxu0 0.0
    %2193 = vmatpush1.msra.mxu0 %v527
    %2194 = vmatprep.subr.mxu0 0.0
    %2195 = vmatpush1.msra.mxu0 %v528
    %2196 = vmatprep.subr.mxu0 0.0
    %2197 = vmatpush1.msra.mxu0 %v529
    %2198 = vmatprep.subr.mxu0 0.0
    %2199 = vmatpush1.msra.mxu0 %v530
    %2200 = vmatprep.subr.mxu0 0.0
    %2201 = vmatpush1.msra.mxu0 %v531
    %2202 = vmatprep.subr.mxu0 0.0
    %2203 = vmatpush1.msra.mxu0 %v532
    %2204 = vmatprep.subr.mxu0 0.0
    %2205 = vmatpush1.msra.mxu0 %v533
    %2206 = vmatprep.subr.mxu0 0.0
    %2207 = vmatpush1.msra.mxu0 %v534
    %2208 = vmatprep.subr.mxu0 0.0
    %2209 = vmatpush1.msra.mxu0 %v535
    %2210 = vmatprep.subr.mxu0 0.0
    %2211 = vmatpush1.msra.mxu0 %v536
    %2212 = vmatprep.subr.mxu0 0.0
    %2213 = vmatpush1.msra.mxu0 %v537
    %2214 = vmatprep.subr.mxu0 0.0
    %2215 = vmatpush1.msra.mxu0 %v538
    %2216 = vmatprep.subr.mxu0 0.0
    %2217 = vmatpush1.msra.mxu0 %v539
    %2218 = vmatprep.subr.mxu0 0.0
    %2219 = vmatpush1.msra.mxu0 %v540
    %2220 = vmatprep.subr.mxu0 0.0
    %2221 = vmatpush1.msra.mxu0 %v541
    %2222 = vmatprep.subr.mxu0 0.0
    %2223 = vmatpush1.msra.mxu0 %v542
    %2224 = vmatprep.subr.mxu0 0.0
    %2225 = vmatpush1.msra.mxu0 %v543
    %2226 = vmatprep.subr.mxu0 0.0
    %2227 = vmatpush1.msra.mxu0 %v544
    %2228 = vmatprep.subr.mxu0 0.0
    %2229 = vmatpush1.msra.mxu0 %v545
    %2230 = vmatprep.mubr.f32.mxu0 %v989
    %2231 = vmatmul.mubr.f32.gmra.mrb[0].mxu0 %v987
    %v2232 = vpop.f32.mrb[0].mxu0
    %v2233 = vadd.f32 %v2163, %v2232
    %v2234 = vpop.f32.mrb[0].mxu0
    %2235 = vdwg.mxu0
    %2236 = vmatprep.subr.mxu0 0.0
    %2237 = vmatpush1.msra.mxu0 %v546
    %2238 = vmatprep.subr.mxu0 0.0
    %2239 = vmatpush1.msra.mxu0 %v547
    %2240 = vmatprep.subr.mxu0 0.0
    %2241 = vmatpush1.msra.mxu0 %v548
    %2242 = vmatprep.subr.mxu0 0.0
    %2243 = vmatpush1.msra.mxu0 %v549
    %2244 = vmatprep.subr.mxu0 0.0
    %2245 = vmatpush1.msra.mxu0 %v550
    %2246 = vmatprep.subr.mxu0 0.0
    %2247 = vmatpush1.msra.mxu0 %v551
    %2248 = vmatprep.subr.mxu0 0.0
    %2249 = vmatpush1.msra.mxu0 %v552
    %2250 = vmatprep.subr.mxu0 0.0
    %2251 = vmatpush1.msra.mxu0 %v553
    %2252 = vmatprep.subr.mxu0 0.0
    %2253 = vmatpush1.msra.mxu0 %v554
    %2254 = vmatprep.subr.mxu0 0.0
    %2255 = vmatpush1.msra.mxu0 %v555
    %2256 = vmatprep.subr.mxu0 0.0
    %2257 = vmatpush1.msra.mxu0 %v556
    %2258 = vmatprep.subr.mxu0 0.0
    %2259 = vmatpush1.msra.mxu0 %v557
    %2260 = vmatprep.subr.mxu0 0.0
    %2261 = vmatpush1.msra.mxu0 %v558
    %2262 = vmatprep.subr.mxu0 0.0
    %2263 = vmatpush1.msra.mxu0 %v559
    %2264 = vmatprep.subr.mxu0 0.0
    %2265 = vmatpush1.msra.mxu0 %v560
    %2266 = vmatprep.subr.mxu0 0.0
    %2267 = vmatpush1.msra.mxu0 %v561
    %2268 = vmatprep.subr.mxu0 0.0
    %2269 = vmatpush1.msra.mxu0 %v562
    %2270 = vmatprep.subr.mxu0 0.0
    %2271 = vmatpush1.msra.mxu0 %v563
    %2272 = vmatprep.subr.mxu0 0.0
    %2273 = vmatpush1.msra.mxu0 %v564
    %2274 = vmatprep.subr.mxu0 0.0
    %2275 = vmatpush1.msra.mxu0 %v565
    %2276 = vmatprep.subr.mxu0 0.0
    %2277 = vmatpush1.msra.mxu0 %v566
    %2278 = vmatprep.subr.mxu0 0.0
    %2279 = vmatpush1.msra.mxu0 %v567
    %2280 = vmatprep.subr.mxu0 0.0
    %2281 = vmatpush1.msra.mxu0 %v568
    %2282 = vmatprep.subr.mxu0 0.0
    %2283 = vmatpush1.msra.mxu0 %v569
    %2284 = vmatprep.subr.mxu0 0.0
    %2285 = vmatpush1.msra.mxu0 %v570
    %2286 = vmatprep.subr.mxu0 0.0
    %2287 = vmatpush1.msra.mxu0 %v571
    %2288 = vmatprep.subr.mxu0 0.0
    %2289 = vmatpush1.msra.mxu0 %v572
    %2290 = vmatprep.subr.mxu0 0.0
    %2291 = vmatpush1.msra.mxu0 %v573
    %2292 = vmatprep.subr.mxu0 0.0
    %2293 = vmatpush1.msra.mxu0 %v574
    %2294 = vmatprep.subr.mxu0 0.0
    %2295 = vmatpush1.msra.mxu0 %v575
    %2296 = vmatprep.subr.mxu0 0.0
    %2297 = vmatpush1.msra.mxu0 %v576
    %2298 = vmatprep.subr.mxu0 0.0
    %2299 = vmatpush1.msra.mxu0 %v577
    %2300 = vmatprep.mubr.f32.mxu0 %v1005
    %2301 = vmatmul.mubr.f32.gmra.mrb[0].mxu0 %v997
    %v2302 = vpop.f32.mrb[0].mxu0
    %v2303 = vadd.f32 %v2233, %v2302
    %v2304 = vpop.f32.mrb[0].mxu0
    %2305 = vdwg.mxu0
    %2306 = vmatprep.subr.mxu0 0.0
    %2307 = vmatpush1.msra.mxu0 %v578
    %2308 = vmatprep.subr.mxu0 0.0
    %2309 = vmatpush1.msra.mxu0 %v579
    %2310 = vmatprep.subr.mxu0 0.0
    %2311 = vmatpush1.msra.mxu0 %v580
    %2312 = vmatprep.subr.mxu0 0.0
    %2313 = vmatpush1.msra.mxu0 %v581
    %2314 = vmatprep.subr.mxu0 0.0
    %2315 = vmatpush1.msra.mxu0 %v582
    %2316 = vmatprep.subr.mxu0 0.0
    %2317 = vmatpush1.msra.mxu0 %v583
    %2318 = vmatprep.subr.mxu0 0.0
    %2319 = vmatpush1.msra.mxu0 %v584
    %2320 = vmatprep.subr.mxu0 0.0
    %2321 = vmatpush1.msra.mxu0 %v585
    %2322 = vmatprep.subr.mxu0 0.0
    %2323 = vmatpush1.msra.mxu0 %v586
    %2324 = vmatprep.subr.mxu0 0.0
    %2325 = vmatpush1.msra.mxu0 %v587
    %2326 = vmatprep.subr.mxu0 0.0
    %2327 = vmatpush1.msra.mxu0 %v588
    %2328 = vmatprep.subr.mxu0 0.0
    %2329 = vmatpush1.msra.mxu0 %v589
    %2330 = vmatprep.subr.mxu0 0.0
    %2331 = vmatpush1.msra.mxu0 %v590
    %2332 = vmatprep.subr.mxu0 0.0
    %2333 = vmatpush1.msra.mxu0 %v591
    %2334 = vmatprep.subr.mxu0 0.0
    %2335 = vmatpush1.msra.mxu0 %v592
    %2336 = vmatprep.subr.mxu0 0.0
    %2337 = vmatpush1.msra.mxu0 %v593
    %2338 = vmatprep.subr.mxu0 0.0
    %2339 = vmatpush1.msra.mxu0 %v594
    %2340 = vmatprep.subr.mxu0 0.0
    %2341 = vmatpush1.msra.mxu0 %v595
    %2342 = vmatprep.subr.mxu0 0.0
    %2343 = vmatpush1.msra.mxu0 %v596
    %2344 = vmatprep.subr.mxu0 0.0
    %2345 = vmatpush1.msra.mxu0 %v597
    %2346 = vmatprep.subr.mxu0 0.0
    %2347 = vmatpush1.msra.mxu0 %v598
    %2348 = vmatprep.subr.mxu0 0.0
    %2349 = vmatpush1.msra.mxu0 %v599
    %2350 = vmatprep.subr.mxu0 0.0
    %2351 = vmatpush1.msra.mxu0 %v600
    %2352 = vmatprep.subr.mxu0 0.0
    %2353 = vmatpush1.msra.mxu0 %v601
    %2354 = vmatprep.subr.mxu0 0.0
    %2355 = vmatpush1.msra.mxu0 %v602
    %2356 = vmatprep.subr.mxu0 0.0
    %2357 = vmatpush1.msra.mxu0 %v603
    %2358 = vmatprep.subr.mxu0 0.0
    %2359 = vmatpush1.msra.mxu0 %v604
    %2360 = vmatprep.subr.mxu0 0.0
    %2361 = vmatpush1.msra.mxu0 %v605
    %2362 = vmatprep.subr.mxu0 0.0
    %2363 = vmatpush1.msra.mxu0 %v606
    %2364 = vmatprep.subr.mxu0 0.0
    %2365 = vmatpush1.msra.mxu0 %v607
    %2366 = vmatprep.subr.mxu0 0.0
    %2367 = vmatpush1.msra.mxu0 %v608
    %2368 = vmatprep.subr.mxu0 0.0
    %2369 = vmatpush1.msra.mxu0 %v609
    %2370 = vmatprep.mubr.f32.mxu0 %v1006
    %2371 = vmatmul.mubr.f32.gmra.mrb[0].mxu0 %v1004
    %v2372 = vpop.f32.mrb[0].mxu0
    %v2373 = vadd.f32 %v2303, %v2372
    %v2374 = vpop.f32.mrb[0].mxu0
    %2375 = vdwg.mxu0
    %2376 = vmatprep.subr.mxu0 0.0
    %2377 = vmatpush1.msra.mxu0 %v610
    %2378 = vmatprep.subr.mxu0 0.0
    %2379 = vmatpush1.msra.mxu0 %v611
    %2380 = vmatprep.subr.mxu0 0.0
    %2381 = vmatpush1.msra.mxu0 %v612
    %2382 = vmatprep.subr.mxu0 0.0
    %2383 = vmatpush1.msra.mxu0 %v613
    %2384 = vmatprep.subr.mxu0 0.0
    %2385 = vmatpush1.msra.mxu0 %v614
    %2386 = vmatprep.subr.mxu0 0.0
    %2387 = vmatpush1.msra.mxu0 %v615
    %2388 = vmatprep.subr.mxu0 0.0
    %2389 = vmatpush1.msra.mxu0 %v616
    %2390 = vmatprep.subr.mxu0 0.0
    %2391 = vmatpush1.msra.mxu0 %v617
    %2392 = vmatprep.subr.mxu0 0.0
    %2393 = vmatpush1.msra.mxu0 %v618
    %2394 = vmatprep.subr.mxu0 0.0
    %2395 = vmatpush1.msra.mxu0 %v619
    %2396 = vmatprep.subr.mxu0 0.0
    %2397 = vmatpush1.msra.mxu0 %v620
    %2398 = vmatprep.subr.mxu0 0.0
    %2399 = vmatpush1.msra.mxu0 %v621
    %2400 = vmatprep.subr.mxu0 0.0
    %2401 = vmatpush1.msra.mxu0 %v622
    %2402 = vmatprep.subr.mxu0 0.0
    %2403 = vmatpush1.msra.mxu0 %v623
    %2404 = vmatprep.subr.mxu0 0.0
    %2405 = vmatpush1.msra.mxu0 %v624
    %2406 = vmatprep.subr.mxu0 0.0
    %2407 = vmatpush1.msra.mxu0 %v625
    %2408 = vmatprep.subr.mxu0 0.0
    %2409 = vmatpush1.msra.mxu0 %v626
    %2410 = vmatprep.subr.mxu0 0.0
    %2411 = vmatpush1.msra.mxu0 %v627
    %2412 = vmatprep.subr.mxu0 0.0
    %2413 = vmatpush1.msra.mxu0 %v628
    %2414 = vmatprep.subr.mxu0 0.0
    %2415 = vmatpush1.msra.mxu0 %v629
    %2416 = vmatprep.subr.mxu0 0.0
    %2417 = vmatpush1.msra.mxu0 %v630
    %2418 = vmatprep.subr.mxu0 0.0
    %2419 = vmatpush1.msra.mxu0 %v631
    %2420 = vmatprep.subr.mxu0 0.0
    %2421 = vmatpush1.msra.mxu0 %v632
    %2422 = vmatprep.subr.mxu0 0.0
    %2423 = vmatpush1.msra.mxu0 %v633
    %2424 = vmatprep.subr.mxu0 0.0
    %2425 = vmatpush1.msra.mxu0 %v634
    %2426 = vmatprep.subr.mxu0 0.0
    %2427 = vmatpush1.msra.mxu0 %v635
    %2428 = vmatprep.subr.mxu0 0.0
    %2429 = vmatpush1.msra.mxu0 %v636
    %2430 = vmatprep.subr.mxu0 0.0
    %2431 = vmatpush1.msra.mxu0 %v637
    %2432 = vmatprep.subr.mxu0 0.0
    %2433 = vmatpush1.msra.mxu0 %v638
    %2434 = vmatprep.subr.mxu0 0.0
    %2435 = vmatpush1.msra.mxu0 %v639
    %2436 = vmatprep.subr.mxu0 0.0
    %2437 = vmatpush1.msra.mxu0 %v640
    %2438 = vmatprep.subr.mxu0 0.0
    %2439 = vmatpush1.msra.mxu0 %v641
    %2440 = vmatprep.mubr.f32.mxu0 %v1022
    %2441 = vmatmul.mubr.f32.gmra.mrb[0].mxu0 %v1014
    %v2442 = vpop.f32.mrb[0].mxu0
    %v2443 = vadd.f32 %v2373, %v2442
    %v2444 = vpop.f32.mrb[0].mxu0
    %2445 = vdwg.mxu0
    %2446 = vmatprep.subr.mxu0 0.0
    %2447 = vmatpush1.msra.mxu0 %v642
    %2448 = vmatprep.subr.mxu0 0.0
    %2449 = vmatpush1.msra.mxu0 %v643
    %2450 = vmatprep.subr.mxu0 0.0
    %2451 = vmatpush1.msra.mxu0 %v644
    %2452 = vmatprep.subr.mxu0 0.0
    %2453 = vmatpush1.msra.mxu0 %v645
    %2454 = vmatprep.subr.mxu0 0.0
    %2455 = vmatpush1.msra.mxu0 %v646
    %2456 = vmatprep.subr.mxu0 0.0
    %2457 = vmatpush1.msra.mxu0 %v647
    %2458 = vmatprep.subr.mxu0 0.0
    %2459 = vmatpush1.msra.mxu0 %v648
    %2460 = vmatprep.subr.mxu0 0.0
    %2461 = vmatpush1.msra.mxu0 %v649
    %2462 = vmatprep.subr.mxu0 0.0
    %2463 = vmatpush1.msra.mxu0 %v650
    %2464 = vmatprep.subr.mxu0 0.0
    %2465 = vmatpush1.msra.mxu0 %v651
    %2466 = vmatprep.subr.mxu0 0.0
    %2467 = vmatpush1.msra.mxu0 %v652
    %2468 = vmatprep.subr.mxu0 0.0
    %2469 = vmatpush1.msra.mxu0 %v653
    %2470 = vmatprep.subr.mxu0 0.0
    %2471 = vmatpush1.msra.mxu0 %v654
    %2472 = vmatprep.subr.mxu0 0.0
    %2473 = vmatpush1.msra.mxu0 %v655
    %2474 = vmatprep.subr.mxu0 0.0
    %2475 = vmatpush1.msra.mxu0 %v656
    %2476 = vmatprep.subr.mxu0 0.0
    %2477 = vmatpush1.msra.mxu0 %v657
    %2478 = vmatprep.subr.mxu0 0.0
    %2479 = vmatpush1.msra.mxu0 %v658
    %2480 = vmatprep.subr.mxu0 0.0
    %2481 = vmatpush1.msra.mxu0 %v659
    %2482 = vmatprep.subr.mxu0 0.0
    %2483 = vmatpush1.msra.mxu0 %v660
    %2484 = vmatprep.subr.mxu0 0.0
    %2485 = vmatpush1.msra.mxu0 %v661
    %2486 = vmatprep.subr.mxu0 0.0
    %2487 = vmatpush1.msra.mxu0 %v662
    %2488 = vmatprep.subr.mxu0 0.0
    %2489 = vmatpush1.msra.mxu0 %v663
    %2490 = vmatprep.subr.mxu0 0.0
    %2491 = vmatpush1.msra.mxu0 %v664
    %2492 = vmatprep.subr.mxu0 0.0
    %2493 = vmatpush1.msra.mxu0 %v665
    %2494 = vmatprep.subr.mxu0 0.0
    %2495 = vmatpush1.msra.mxu0 %v666
    %2496 = vmatprep.subr.mxu0 0.0
    %2497 = vmatpush1.msra.mxu0 %v667
    %2498 = vmatprep.subr.mxu0 0.0
    %2499 = vmatpush1.msra.mxu0 %v668
    %2500 = vmatprep.subr.mxu0 0.0
    %2501 = vmatpush1.msra.mxu0 %v669
    %2502 = vmatprep.subr.mxu0 0.0
    %2503 = vmatpush1.msra.mxu0 %v670
    %2504 = vmatprep.subr.mxu0 0.0
    %2505 = vmatpush1.msra.mxu0 %v671
    %2506 = vmatprep.subr.mxu0 0.0
    %2507 = vmatpush1.msra.mxu0 %v672
    %2508 = vmatprep.subr.mxu0 0.0
    %2509 = vmatpush1.msra.mxu0 %v673
    %2510 = vmatprep.mubr.f32.mxu0 %v1023
    %2511 = vmatmul.mubr.f32.gmra.mrb[0].mxu0 %v1021
    %v2512 = vpop.f32.mrb[0].mxu0
    %v2513 = vadd.f32 %v2443, %v2512
    %v2514 = vpop.f32.mrb[0].mxu0
    %2515 = vdwg.mxu0
    %2516 = vmatprep.subr.mxu0 0.0
    %2517 = vmatpush1.msra.mxu0 %v674
    %2518 = vmatprep.subr.mxu0 0.0
    %2519 = vmatpush1.msra.mxu0 %v675
    %2520 = vmatprep.subr.mxu0 0.0
    %2521 = vmatpush1.msra.mxu0 %v676
    %2522 = vmatprep.subr.mxu0 0.0
    %2523 = vmatpush1.msra.mxu0 %v677
    %2524 = vmatprep.subr.mxu0 0.0
    %2525 = vmatpush1.msra.mxu0 %v678
    %2526 = vmatprep.subr.mxu0 0.0
    %2527 = vmatpush1.msra.mxu0 %v679
    %2528 = vmatprep.subr.mxu0 0.0
    %2529 = vmatpush1.msra.mxu0 %v680
    %2530 = vmatprep.subr.mxu0 0.0
    %2531 = vmatpush1.msra.mxu0 %v681
    %2532 = vmatprep.subr.mxu0 0.0
    %2533 = vmatpush1.msra.mxu0 %v682
    %2534 = vmatprep.subr.mxu0 0.0
    %2535 = vmatpush1.msra.mxu0 %v683
    %2536 = vmatprep.subr.mxu0 0.0
    %2537 = vmatpush1.msra.mxu0 %v684
    %2538 = vmatprep.subr.mxu0 0.0
    %2539 = vmatpush1.msra.mxu0 %v685
    %2540 = vmatprep.subr.mxu0 0.0
    %2541 = vmatpush1.msra.mxu0 %v686
    %2542 = vmatprep.subr.mxu0 0.0
    %2543 = vmatpush1.msra.mxu0 %v687
    %2544 = vmatprep.subr.mxu0 0.0
    %2545 = vmatpush1.msra.mxu0 %v688
    %2546 = vmatprep.subr.mxu0 0.0
    %2547 = vmatpush1.msra.mxu0 %v689
    %2548 = vmatprep.subr.mxu0 0.0
    %2549 = vmatpush1.msra.mxu0 %v690
    %2550 = vmatprep.subr.mxu0 0.0
    %2551 = vmatpush1.msra.mxu0 %v691
    %2552 = vmatprep.subr.mxu0 0.0
    %2553 = vmatpush1.msra.mxu0 %v692
    %2554 = vmatprep.subr.mxu0 0.0
    %2555 = vmatpush1.msra.mxu0 %v693
    %2556 = vmatprep.subr.mxu0 0.0
    %2557 = vmatpush1.msra.mxu0 %v694
    %2558 = vmatprep.subr.mxu0 0.0
    %2559 = vmatpush1.msra.mxu0 %v695
    %2560 = vmatprep.subr.mxu0 0.0
    %2561 = vmatpush1.msra.mxu0 %v696
    %2562 = vmatprep.subr.mxu0 0.0
    %2563 = vmatpush1.msra.mxu0 %v697
    %2564 = vmatprep.subr.mxu0 0.0
    %2565 = vmatpush1.msra.mxu0 %v698
    %2566 = vmatprep.subr.mxu0 0.0
    %2567 = vmatpush1.msra.mxu0 %v699
    %2568 = vmatprep.subr.mxu0 0.0
    %2569 = vmatpush1.msra.mxu0 %v700
    %2570 = vmatprep.subr.mxu0 0.0
    %2571 = vmatpush1.msra.mxu0 %v701
    %2572 = vmatprep.subr.mxu0 0.0
    %2573 = vmatpush1.msra.mxu0 %v702
    %2574 = vmatprep.subr.mxu0 0.0
    %2575 = vmatpush1.msra.mxu0 %v703
    %2576 = vmatprep.subr.mxu0 0.0
    %2577 = vmatpush1.msra.mxu0 %v704
    %2578 = vmatprep.subr.mxu0 0.0
    %2579 = vmatpush1.msra.mxu0 %v705
    %2580 = vmatprep.mubr.f32.mxu0 %v1039
    %2581 = vmatmul.mubr.f32.gmra.mrb[0].mxu0 %v1031
    %v2582 = vpop.f32.mrb[0].mxu0
    %v2583 = vadd.f32 %v2513, %v2582
    %v2584 = vpop.f32.mrb[0].mxu0
    %2585 = vdwg.mxu0
    %2586 = vmatprep.subr.mxu0 0.0
    %2587 = vmatpush1.msra.mxu0 %v706
    %2588 = vmatprep.subr.mxu0 0.0
    %2589 = vmatpush1.msra.mxu0 %v707
    %2590 = vmatprep.subr.mxu0 0.0
    %2591 = vmatpush1.msra.mxu0 %v708
    %2592 = vmatprep.subr.mxu0 0.0
    %2593 = vmatpush1.msra.mxu0 %v709
    %2594 = vmatprep.subr.mxu0 0.0
    %2595 = vmatpush1.msra.mxu0 %v710
    %2596 = vmatprep.subr.mxu0 0.0
    %2597 = vmatpush1.msra.mxu0 %v711
    %2598 = vmatprep.subr.mxu0 0.0
    %2599 = vmatpush1.msra.mxu0 %v712
    %2600 = vmatprep.subr.mxu0 0.0
    %2601 = vmatpush1.msra.mxu0 %v713
    %2602 = vmatprep.subr.mxu0 0.0
    %2603 = vmatpush1.msra.mxu0 %v714
    %2604 = vmatprep.subr.mxu0 0.0
    %2605 = vmatpush1.msra.mxu0 %v715
    %2606 = vmatprep.subr.mxu0 0.0
    %2607 = vmatpush1.msra.mxu0 %v716
    %2608 = vmatprep.subr.mxu0 0.0
    %2609 = vmatpush1.msra.mxu0 %v717
    %2610 = vmatprep.subr.mxu0 0.0
    %2611 = vmatpush1.msra.mxu0 %v718
    %2612 = vmatprep.subr.mxu0 0.0
    %2613 = vmatpush1.msra.mxu0 %v719
    %2614 = vmatprep.subr.mxu0 0.0
    %2615 = vmatpush1.msra.mxu0 %v720
    %2616 = vmatprep.subr.mxu0 0.0
    %2617 = vmatpush1.msra.mxu0 %v721
    %2618 = vmatprep.subr.mxu0 0.0
    %2619 = vmatpush1.msra.mxu0 %v722
    %2620 = vmatprep.subr.mxu0 0.0
    %2621 = vmatpush1.msra.mxu0 %v723
    %2622 = vmatprep.subr.mxu0 0.0
    %2623 = vmatpush1.msra.mxu0 %v724
    %2624 = vmatprep.subr.mxu0 0.0
    %2625 = vmatpush1.msra.mxu0 %v725
    %2626 = vmatprep.subr.mxu0 0.0
    %2627 = vmatpush1.msra.mxu0 %v726
    %2628 = vmatprep.subr.mxu0 0.0
    %2629 = vmatpush1.msra.mxu0 %v727
    %2630 = vmatprep.subr.mxu0 0.0
    %2631 = vmatpush1.msra.mxu0 %v728
    %2632 = vmatprep.subr.mxu0 0.0
    %2633 = vmatpush1.msra.mxu0 %v729
    %2634 = vmatprep.subr.mxu0 0.0
    %2635 = vmatpush1.msra.mxu0 %v730
    %2636 = vmatprep.subr.mxu0 0.0
    %2637 = vmatpush1.msra.mxu0 %v731
    %2638 = vmatprep.subr.mxu0 0.0
    %2639 = vmatpush1.msra.mxu0 %v732
    %2640 = vmatprep.subr.mxu0 0.0
    %2641 = vmatpush1.msra.mxu0 %v733
    %2642 = vmatprep.subr.mxu0 0.0
    %2643 = vmatpush1.msra.mxu0 %v734
    %2644 = vmatprep.subr.mxu0 0.0
    %2645 = vmatpush1.msra.mxu0 %v735
    %2646 = vmatprep.subr.mxu0 0.0
    %2647 = vmatpush1.msra.mxu0 %v736
    %2648 = vmatprep.subr.mxu0 0.0
    %2649 = vmatpush1.msra.mxu0 %v737
    %2650 = vmatprep.mubr.f32.mxu0 %v1040
    %2651 = vmatmul.mubr.f32.gmra.mrb[0].mxu0 %v1038
    %v2652 = vpop.f32.mrb[0].mxu0
    %v2653 = vadd.f32 %v2583, %v2652
    %v2654 = vpop.f32.mrb[0].mxu0
    %2655 = vdwg.mxu0
    %2656 = vmatprep.subr.mxu0 0.0
    %2657 = vmatpush1.msra.mxu0 %v738
    %2658 = vmatprep.subr.mxu0 0.0
    %2659 = vmatpush1.msra.mxu0 %v739
    %2660 = vmatprep.subr.mxu0 0.0
    %2661 = vmatpush1.msra.mxu0 %v740
    %2662 = vmatprep.subr.mxu0 0.0
    %2663 = vmatpush1.msra.mxu0 %v741
    %2664 = vmatprep.subr.mxu0 0.0
    %2665 = vmatpush1.msra.mxu0 %v742
    %2666 = vmatprep.subr.mxu0 0.0
    %2667 = vmatpush1.msra.mxu0 %v743
    %2668 = vmatprep.subr.mxu0 0.0
    %2669 = vmatpush1.msra.mxu0 %v744
    %2670 = vmatprep.subr.mxu0 0.0
    %2671 = vmatpush1.msra.mxu0 %v745
    %2672 = vmatprep.subr.mxu0 0.0
    %2673 = vmatpush1.msra.mxu0 %v746
    %2674 = vmatprep.subr.mxu0 0.0
    %2675 = vmatpush1.msra.mxu0 %v747
    %2676 = vmatprep.subr.mxu0 0.0
    %2677 = vmatpush1.msra.mxu0 %v748
    %2678 = vmatprep.subr.mxu0 0.0
    %2679 = vmatpush1.msra.mxu0 %v749
    %2680 = vmatprep.subr.mxu0 0.0
    %2681 = vmatpush1.msra.mxu0 %v750
    %2682 = vmatprep.subr.mxu0 0.0
    %2683 = vmatpush1.msra.mxu0 %v751
    %2684 = vmatprep.subr.mxu0 0.0
    %2685 = vmatpush1.msra.mxu0 %v752
    %2686 = vmatprep.subr.mxu0 0.0
    %2687 = vmatpush1.msra.mxu0 %v753
    %2688 = vmatprep.subr.mxu0 0.0
    %2689 = vmatpush1.msra.mxu0 %v754
    %2690 = vmatprep.subr.mxu0 0.0
    %2691 = vmatpush1.msra.mxu0 %v755
    %2692 = vmatprep.subr.mxu0 0.0
    %2693 = vmatpush1.msra.mxu0 %v756
    %2694 = vmatprep.subr.mxu0 0.0
    %2695 = vmatpush1.msra.mxu0 %v757
    %2696 = vmatprep.subr.mxu0 0.0
    %2697 = vmatpush1.msra.mxu0 %v758
    %2698 = vmatprep.subr.mxu0 0.0
    %2699 = vmatpush1.msra.mxu0 %v759
    %2700 = vmatprep.subr.mxu0 0.0
    %2701 = vmatpush1.msra.mxu0 %v760
    %2702 = vmatprep.subr.mxu0 0.0
    %2703 = vmatpush1.msra.mxu0 %v761
    %2704 = vmatprep.subr.mxu0 0.0
    %2705 = vmatpush1.msra.mxu0 %v762
    %2706 = vmatprep.subr.mxu0 0.0
    %2707 = vmatpush1.msra.mxu0 %v763
    %2708 = vmatprep.subr.mxu0 0.0
    %2709 = vmatpush1.msra.mxu0 %v764
    %2710 = vmatprep.subr.mxu0 0.0
    %2711 = vmatpush1.msra.mxu0 %v765
    %2712 = vmatprep.subr.mxu0 0.0
    %2713 = vmatpush1.msra.mxu0 %v766
    %2714 = vmatprep.subr.mxu0 0.0
    %2715 = vmatpush1.msra.mxu0 %v767
    %2716 = vmatprep.subr.mxu0 0.0
    %2717 = vmatpush1.msra.mxu0 %v768
    %2718 = vmatprep.subr.mxu0 0.0
    %2719 = vmatpush1.msra.mxu0 %v769
    %2720 = vmatprep.mubr.f32.mxu0 %v1056
    %2721 = vmatmul.mubr.f32.gmra.mrb[0].mxu0 %v1048
    %v2722 = vpop.f32.mrb[0].mxu0
    %v2723 = vadd.f32 %v2653, %v2722
    %v2724 = vpop.f32.mrb[0].mxu0
    %2725 = vdwg.mxu0
    %2726 = vmatprep.subr.mxu0 0.0
    %2727 = vmatpush1.msra.mxu0 %v770
    %2728 = vmatprep.subr.mxu0 0.0
    %2729 = vmatpush1.msra.mxu0 %v771
    %2730 = vmatprep.subr.mxu0 0.0
    %2731 = vmatpush1.msra.mxu0 %v772
    %2732 = vmatprep.subr.mxu0 0.0
    %2733 = vmatpush1.msra.mxu0 %v773
    %2734 = vmatprep.subr.mxu0 0.0
    %2735 = vmatpush1.msra.mxu0 %v774
    %2736 = vmatprep.subr.mxu0 0.0
    %2737 = vmatpush1.msra.mxu0 %v775
    %2738 = vmatprep.subr.mxu0 0.0
    %2739 = vmatpush1.msra.mxu0 %v776
    %2740 = vmatprep.subr.mxu0 0.0
    %2741 = vmatpush1.msra.mxu0 %v777
    %2742 = vmatprep.subr.mxu0 0.0
    %2743 = vmatpush1.msra.mxu0 %v778
    %2744 = vmatprep.subr.mxu0 0.0
    %2745 = vmatpush1.msra.mxu0 %v779
    %2746 = vmatprep.subr.mxu0 0.0
    %2747 = vmatpush1.msra.mxu0 %v780
    %2748 = vmatprep.subr.mxu0 0.0
    %2749 = vmatpush1.msra.mxu0 %v781
    %2750 = vmatprep.subr.mxu0 0.0
    %2751 = vmatpush1.msra.mxu0 %v782
    %2752 = vmatprep.subr.mxu0 0.0
    %2753 = vmatpush1.msra.mxu0 %v783
    %2754 = vmatprep.subr.mxu0 0.0
    %2755 = vmatpush1.msra.mxu0 %v784
    %2756 = vmatprep.subr.mxu0 0.0
    %2757 = vmatpush1.msra.mxu0 %v785
    %2758 = vmatprep.subr.mxu0 0.0
    %2759 = vmatpush1.msra.mxu0 %v786
    %2760 = vmatprep.subr.mxu0 0.0
    %2761 = vmatpush1.msra.mxu0 %v787
    %2762 = vmatprep.subr.mxu0 0.0
    %2763 = vmatpush1.msra.mxu0 %v788
    %2764 = vmatprep.subr.mxu0 0.0
    %2765 = vmatpush1.msra.mxu0 %v789
    %2766 = vmatprep.subr.mxu0 0.0
    %2767 = vmatpush1.msra.mxu0 %v790
    %2768 = vmatprep.subr.mxu0 0.0
    %2769 = vmatpush1.msra.mxu0 %v791
    %2770 = vmatprep.subr.mxu0 0.0
    %2771 = vmatpush1.msra.mxu0 %v792
    %2772 = vmatprep.subr.mxu0 0.0
    %2773 = vmatpush1.msra.mxu0 %v793
    %2774 = vmatprep.subr.mxu0 0.0
    %2775 = vmatpush1.msra.mxu0 %v794
    %2776 = vmatprep.subr.mxu0 0.0
    %2777 = vmatpush1.msra.mxu0 %v795
    %2778 = vmatprep.subr.mxu0 0.0
    %2779 = vmatpush1.msra.mxu0 %v796
    %2780 = vmatprep.subr.mxu0 0.0
    %2781 = vmatpush1.msra.mxu0 %v797
    %2782 = vmatprep.subr.mxu0 0.0
    %2783 = vmatpush1.msra.mxu0 %v798
    %2784 = vmatprep.subr.mxu0 0.0
    %2785 = vmatpush1.msra.mxu0 %v799
    %2786 = vmatprep.subr.mxu0 0.0
    %2787 = vmatpush1.msra.mxu0 %v800
    %2788 = vmatprep.subr.mxu0 0.0
    %2789 = vmatpush1.msra.mxu0 %v801
    %2790 = vmatprep.mubr.f32.mxu0 %v1057
    %2791 = vmatmul.mubr.f32.gmra.mrb[0].mxu0 %v1055
    %v2792 = vpop.f32.mrb[0].mxu0
    %v2793 = vadd.f32 %v2723, %v2792
    %v2794 = vpop.f32.mrb[0].mxu0
    %2795 = vdwg.mxu0
    %2796 = vmatprep.subr.mxu0 0.0
    %2797 = vmatpush1.msra.mxu0 %v802
    %2798 = vmatprep.subr.mxu0 0.0
    %2799 = vmatpush1.msra.mxu0 %v803
    %2800 = vmatprep.subr.mxu0 0.0
    %2801 = vmatpush1.msra.mxu0 %v804
    %2802 = vmatprep.subr.mxu0 0.0
    %2803 = vmatpush1.msra.mxu0 %v805
    %2804 = vmatprep.subr.mxu0 0.0
    %2805 = vmatpush1.msra.mxu0 %v806
    %2806 = vmatprep.subr.mxu0 0.0
    %2807 = vmatpush1.msra.mxu0 %v807
    %2808 = vmatprep.subr.mxu0 0.0
    %2809 = vmatpush1.msra.mxu0 %v808
    %2810 = vmatprep.subr.mxu0 0.0
    %2811 = vmatpush1.msra.mxu0 %v809
    %2812 = vmatprep.subr.mxu0 0.0
    %2813 = vmatpush1.msra.mxu0 %v810
    %2814 = vmatprep.subr.mxu0 0.0
    %2815 = vmatpush1.msra.mxu0 %v811
    %2816 = vmatprep.subr.mxu0 0.0
    %2817 = vmatpush1.msra.mxu0 %v812
    %2818 = vmatprep.subr.mxu0 0.0
    %2819 = vmatpush1.msra.mxu0 %v813
    %2820 = vmatprep.subr.mxu0 0.0
    %2821 = vmatpush1.msra.mxu0 %v814
    %2822 = vmatprep.subr.mxu0 0.0
    %2823 = vmatpush1.msra.mxu0 %v815
    %2824 = vmatprep.subr.mxu0 0.0
    %2825 = vmatpush1.msra.mxu0 %v816
    %2826 = vmatprep.subr.mxu0 0.0
    %2827 = vmatpush1.msra.mxu0 %v817
    %2828 = vmatprep.subr.mxu0 0.0
    %2829 = vmatpush1.msra.mxu0 %v818
    %2830 = vmatprep.subr.mxu0 0.0
    %2831 = vmatpush1.msra.mxu0 %v819
    %2832 = vmatprep.subr.mxu0 0.0
    %2833 = vmatpush1.msra.mxu0 %v820
    %2834 = vmatprep.subr.mxu0 0.0
    %2835 = vmatpush1.msra.mxu0 %v821
    %2836 = vmatprep.subr.mxu0 0.0
    %2837 = vmatpush1.msra.mxu0 %v822
    %2838 = vmatprep.subr.mxu0 0.0
    %2839 = vmatpush1.msra.mxu0 %v823
    %2840 = vmatprep.subr.mxu0 0.0
    %2841 = vmatpush1.msra.mxu0 %v824
    %2842 = vmatprep.subr.mxu0 0.0
    %2843 = vmatpush1.msra.mxu0 %v825
    %2844 = vmatprep.subr.mxu0 0.0
    %2845 = vmatpush1.msra.mxu0 %v826
    %2846 = vmatprep.subr.mxu0 0.0
    %2847 = vmatpush1.msra.mxu0 %v827
    %2848 = vmatprep.subr.mxu0 0.0
    %2849 = vmatpush1.msra.mxu0 %v828
    %2850 = vmatprep.subr.mxu0 0.0
    %2851 = vmatpush1.msra.mxu0 %v829
    %2852 = vmatprep.subr.mxu0 0.0
    %2853 = vmatpush1.msra.mxu0 %v830
    %2854 = vmatprep.subr.mxu0 0.0
    %2855 = vmatpush1.msra.mxu0 %v831
    %2856 = vmatprep.subr.mxu0 0.0
    %2857 = vmatpush1.msra.mxu0 %v832
    %2858 = vmatprep.subr.mxu0 0.0
    %2859 = vmatpush1.msra.mxu0 %v833
    %2860 = vmatprep.mubr.f32.mxu0 %v1065
    %2861 = vmatmul.mubr.f32.gmra.mrb[0].mxu0 %v1064
    %v2862 = vpop.f32.mrb[0].mxu0
    %v2863 = vadd.f32 %v2793, %v2862
    %v2864 = vpop.f32.mrb[0].mxu0
    %2865 = vdwg.mxu0
    %v2866 = vld [vmem:[%s3] sm:$0xff]
    %v2867 = vld [vmem:[%s3 + $0x8] sm:$0xff]
    %v2868 = vld [vmem:[%s3 + $0x10] sm:$0xff]
    %v2869 = vld [vmem:[%s3 + $0x18] sm:$0xff]
    %v2870 = vld [vmem:[%s3 + $0x20] sm:$0xff]
    %v2871 = vld [vmem:[%s3 + $0x28] sm:$0xff]
    %v2872 = vld [vmem:[%s3 + $0x30] sm:$0xff]
    %v2873 = vld [vmem:[%s3 + $0x38] sm:$0xff]
    %v2874 = vld [vmem:[%s3 + $0x40] sm:$0xff]
    %v2875 = vld [vmem:[%s3 + $0x48] sm:$0xff]
    %v2876 = vld [vmem:[%s3 + $0x50] sm:$0xff]
    %v2877 = vld [vmem:[%s3 + $0x58] sm:$0xff]
    %v2878 = vld [vmem:[%s3 + $0x60] sm:$0xff]
    %v2879 = vld [vmem:[%s3 + $0x68] sm:$0xff]
    %v2880 = vld [vmem:[%s3 + $0x70] sm:$0xff]
    %v2881 = vld [vmem:[%s3 + $0x78] sm:$0xff]
    %v2882 = vld [vmem:[%s3 + $0x80] sm:$0xff]
    %v2883 = vld [vmem:[%s3 + $0x88] sm:$0xff]
    %v2884 = vld [vmem:[%s3 + $0x90] sm:$0xff]
    %v2885 = vld [vmem:[%s3 + $0x98] sm:$0xff]
    %v2886 = vld [vmem:[%s3 + $0xa0] sm:$0xff]
    %v2887 = vld [vmem:[%s3 + $0xa8] sm:$0xff]
    %v2888 = vld [vmem:[%s3 + $0xb0] sm:$0xff]
    %v2889 = vld [vmem:[%s3 + $0xb8] sm:$0xff]
    %v2890 = vld [vmem:[%s3 + $0xc0] sm:$0xff]
    %v2891 = vld [vmem:[%s3 + $0xc8] sm:$0xff]
    %v2892 = vld [vmem:[%s3 + $0xd0] sm:$0xff]
    %v2893 = vld [vmem:[%s3 + $0xd8] sm:$0xff]
    %v2894 = vld [vmem:[%s3 + $0xe0] sm:$0xff]
    %v2895 = vld [vmem:[%s3 + $0xe8] sm:$0xff]
    %v2896 = vld [vmem:[%s3 + $0xf0] sm:$0xff]
    %v2897 = vld [vmem:[%s3 + $0xf8] sm:$0xff]
    %v2898 = vld [vmem:[%s3 + $0x100] sm:$0xff]
    %v2899 = vld [vmem:[%s3 + $0x108] sm:$0xff]
    %v2900 = vld [vmem:[%s3 + $0x110] sm:$0xff]
    %v2901 = vld [vmem:[%s3 + $0x118] sm:$0xff]
    %v2902 = vld [vmem:[%s3 + $0x120] sm:$0xff]
    %v2903 = vld [vmem:[%s3 + $0x128] sm:$0xff]
    %v2904 = vld [vmem:[%s3 + $0x130] sm:$0xff]
    %v2905 = vld [vmem:[%s3 + $0x138] sm:$0xff]
    %v2906 = vld [vmem:[%s3 + $0x140] sm:$0xff]
    %v2907 = vld [vmem:[%s3 + $0x148] sm:$0xff]
    %v2908 = vld [vmem:[%s3 + $0x150] sm:$0xff]
    %v2909 = vld [vmem:[%s3 + $0x158] sm:$0xff]
    %v2910 = vld [vmem:[%s3 + $0x160] sm:$0xff]
    %v2911 = vld [vmem:[%s3 + $0x168] sm:$0xff]
    %v2912 = vld [vmem:[%s3 + $0x170] sm:$0xff]
    %v2913 = vld [vmem:[%s3 + $0x178] sm:$0xff]
    %v2914 = vld [vmem:[%s3 + $0x180] sm:$0xff]
    %v2915 = vld [vmem:[%s3 + $0x188] sm:$0xff]
    %v2916 = vld [vmem:[%s3 + $0x190] sm:$0xff]
    %v2917 = vld [vmem:[%s3 + $0x198] sm:$0xff]
    %v2918 = vld [vmem:[%s3 + $0x1a0] sm:$0xff]
    %v2919 = vld [vmem:[%s3 + $0x1a8] sm:$0xff]
    %v2920 = vld [vmem:[%s3 + $0x1b0] sm:$0xff]
    %v2921 = vld [vmem:[%s3 + $0x1b8] sm:$0xff]
    %v2922 = vld [vmem:[%s3 + $0x1c0] sm:$0xff]
    %v2923 = vld [vmem:[%s3 + $0x1c8] sm:$0xff]
    %v2924 = vld [vmem:[%s3 + $0x1d0] sm:$0xff]
    %v2925 = vld [vmem:[%s3 + $0x1d8] sm:$0xff]
    %v2926 = vld [vmem:[%s3 + $0x1e0] sm:$0xff]
    %v2927 = vld [vmem:[%s3 + $0x1e8] sm:$0xff]
    %v2928 = vld [vmem:[%s3 + $0x1f0] sm:$0xff]
    %v2929 = vld [vmem:[%s3 + $0x1f8] sm:$0xff]
    %v2930 = vld [vmem:[%s3 + $0x200] sm:$0xff]
    %v2931 = vld [vmem:[%s3 + $0x208] sm:$0xff]
    %v2932 = vld [vmem:[%s3 + $0x210] sm:$0xff]
    %v2933 = vld [vmem:[%s3 + $0x218] sm:$0xff]
    %v2934 = vld [vmem:[%s3 + $0x220] sm:$0xff]
    %v2935 = vld [vmem:[%s3 + $0x228] sm:$0xff]
    %v2936 = vld [vmem:[%s3 + $0x230] sm:$0xff]
    %v2937 = vld [vmem:[%s3 + $0x238] sm:$0xff]
    %v2938 = vld [vmem:[%s3 + $0x240] sm:$0xff]
    %v2939 = vld [vmem:[%s3 + $0x248] sm:$0xff]
    %v2940 = vld [vmem:[%s3 + $0x250] sm:$0xff]
    %v2941 = vld [vmem:[%s3 + $0x258] sm:$0xff]
    %v2942 = vld [vmem:[%s3 + $0x260] sm:$0xff]
    %v2943 = vld [vmem:[%s3 + $0x268] sm:$0xff]
    %v2944 = vld [vmem:[%s3 + $0x270] sm:$0xff]
    %v2945 = vld [vmem:[%s3 + $0x278] sm:$0xff]
    %v2946 = vld [vmem:[%s3 + $0x280] sm:$0xff]
    %v2947 = vld [vmem:[%s3 + $0x288] sm:$0xff]
    %v2948 = vld [vmem:[%s3 + $0x290] sm:$0xff]
    %v2949 = vld [vmem:[%s3 + $0x298] sm:$0xff]
    %v2950 = vld [vmem:[%s3 + $0x2a0] sm:$0xff]
    %v2951 = vld [vmem:[%s3 + $0x2a8] sm:$0xff]
    %v2952 = vld [vmem:[%s3 + $0x2b0] sm:$0xff]
    %v2953 = vld [vmem:[%s3 + $0x2b8] sm:$0xff]
    %v2954 = vld [vmem:[%s3 + $0x2c0] sm:$0xff]
    %v2955 = vld [vmem:[%s3 + $0x2c8] sm:$0xff]
    %v2956 = vld [vmem:[%s3 + $0x2d0] sm:$0xff]
    %v2957 = vld [vmem:[%s3 + $0x2d8] sm:$0xff]
    %v2958 = vld [vmem:[%s3 + $0x2e0] sm:$0xff]
    %v2959 = vld [vmem:[%s3 + $0x2e8] sm:$0xff]
    %v2960 = vld [vmem:[%s3 + $0x2f0] sm:$0xff]
    %v2961 = vld [vmem:[%s3 + $0x2f8] sm:$0xff]
    %v2962 = vld [vmem:[%s3 + $0x300] sm:$0xff]
    %v2963 = vld [vmem:[%s3 + $0x308] sm:$0xff]
    %v2964 = vld [vmem:[%s3 + $0x310] sm:$0xff]
    %v2965 = vld [vmem:[%s3 + $0x318] sm:$0xff]
    %v2966 = vld [vmem:[%s3 + $0x320] sm:$0xff]
    %v2967 = vld [vmem:[%s3 + $0x328] sm:$0xff]
    %v2968 = vld [vmem:[%s3 + $0x330] sm:$0xff]
    %v2969 = vld [vmem:[%s3 + $0x338] sm:$0xff]
    %v2970 = vld [vmem:[%s3 + $0x340] sm:$0xff]
    %v2971 = vld [vmem:[%s3 + $0x348] sm:$0xff]
    %v2972 = vld [vmem:[%s3 + $0x350] sm:$0xff]
    %v2973 = vld [vmem:[%s3 + $0x358] sm:$0xff]
    %v2974 = vld [vmem:[%s3 + $0x360] sm:$0xff]
    %v2975 = vld [vmem:[%s3 + $0x368] sm:$0xff]
    %v2976 = vld [vmem:[%s3 + $0x370] sm:$0xff]
    %v2977 = vld [vmem:[%s3 + $0x378] sm:$0xff]
    %v2978 = vld [vmem:[%s3 + $0x380] sm:$0xff]
    %v2979 = vld [vmem:[%s3 + $0x388] sm:$0xff]
    %v2980 = vld [vmem:[%s3 + $0x390] sm:$0xff]
    %v2981 = vld [vmem:[%s3 + $0x398] sm:$0xff]
    %v2982 = vld [vmem:[%s3 + $0x3a0] sm:$0xff]
    %v2983 = vld [vmem:[%s3 + $0x3a8] sm:$0xff]
    %v2984 = vld [vmem:[%s3 + $0x3b0] sm:$0xff]
    %v2985 = vld [vmem:[%s3 + $0x3b8] sm:$0xff]
    %v2986 = vld [vmem:[%s3 + $0x3c0] sm:$0xff]
    %v2987 = vld [vmem:[%s3 + $0x3c8] sm:$0xff]
    %v2988 = vld [vmem:[%s3 + $0x3d0] sm:$0xff]
    %v2989 = vld [vmem:[%s3 + $0x3d8] sm:$0xff]
    %v2990 = vld [vmem:[%s3 + $0x3e0] sm:$0xff]
    %v2991 = vld [vmem:[%s3 + $0x3e8] sm:$0xff]
    %v2992 = vld [vmem:[%s3 + $0x3f0] sm:$0xff]
    %v2993 = vld [vmem:[%s3 + $0x3f8] sm:$0xff]
    %v2994 = vld [vmem:[%s3 + $0x400] sm:$0xff]
    %v2995 = vld [vmem:[%s3 + $0x408] sm:$0xff]
    %v2996 = vld [vmem:[%s3 + $0x410] sm:$0xff]
    %v2997 = vld [vmem:[%s3 + $0x418] sm:$0xff]
    %v2998 = vld [vmem:[%s3 + $0x420] sm:$0xff]
    %v2999 = vld [vmem:[%s3 + $0x428] sm:$0xff]
    %v3000 = vld [vmem:[%s3 + $0x430] sm:$0xff]
    %v3001 = vld [vmem:[%s3 + $0x438] sm:$0xff]
    %v3002 = vld [vmem:[%s3 + $0x440] sm:$0xff]
    %v3003 = vld [vmem:[%s3 + $0x448] sm:$0xff]
    %v3004 = vld [vmem:[%s3 + $0x450] sm:$0xff]
    %v3005 = vld [vmem:[%s3 + $0x458] sm:$0xff]
    %v3006 = vld [vmem:[%s3 + $0x460] sm:$0xff]
    %v3007 = vld [vmem:[%s3 + $0x468] sm:$0xff]
    %v3008 = vld [vmem:[%s3 + $0x470] sm:$0xff]
    %v3009 = vld [vmem:[%s3 + $0x478] sm:$0xff]
    %v3010 = vld [vmem:[%s3 + $0x480] sm:$0xff]
    %v3011 = vld [vmem:[%s3 + $0x488] sm:$0xff]
    %v3012 = vld [vmem:[%s3 + $0x490] sm:$0xff]
    %v3013 = vld [vmem:[%s3 + $0x498] sm:$0xff]
    %v3014 = vld [vmem:[%s3 + $0x4a0] sm:$0xff]
    %v3015 = vld [vmem:[%s3 + $0x4a8] sm:$0xff]
    %v3016 = vld [vmem:[%s3 + $0x4b0] sm:$0xff]
    %v3017 = vld [vmem:[%s3 + $0x4b8] sm:$0xff]
    %v3018 = vld [vmem:[%s3 + $0x4c0] sm:$0xff]
    %v3019 = vld [vmem:[%s3 + $0x4c8] sm:$0xff]
    %v3020 = vld [vmem:[%s3 + $0x4d0] sm:$0xff]
    %v3021 = vld [vmem:[%s3 + $0x4d8] sm:$0xff]
    %v3022 = vld [vmem:[%s3 + $0x4e0] sm:$0xff]
    %v3023 = vld [vmem:[%s3 + $0x4e8] sm:$0xff]
    %v3024 = vld [vmem:[%s3 + $0x4f0] sm:$0xff]
    %v3025 = vld [vmem:[%s3 + $0x4f8] sm:$0xff]
    %v3026 = vld [vmem:[%s3 + $0x500] sm:$0xff]
    %v3027 = vld [vmem:[%s3 + $0x508] sm:$0xff]
    %v3028 = vld [vmem:[%s3 + $0x510] sm:$0xff]
    %v3029 = vld [vmem:[%s3 + $0x518] sm:$0xff]
    %v3030 = vld [vmem:[%s3 + $0x520] sm:$0xff]
    %v3031 = vld [vmem:[%s3 + $0x528] sm:$0xff]
    %v3032 = vld [vmem:[%s3 + $0x530] sm:$0xff]
    %v3033 = vld [vmem:[%s3 + $0x538] sm:$0xff]
    %v3034 = vld [vmem:[%s3 + $0x540] sm:$0xff]
    %v3035 = vld [vmem:[%s3 + $0x548] sm:$0xff]
    %v3036 = vld [vmem:[%s3 + $0x550] sm:$0xff]
    %v3037 = vld [vmem:[%s3 + $0x558] sm:$0xff]
    %v3038 = vld [vmem:[%s3 + $0x560] sm:$0xff]
    %v3039 = vld [vmem:[%s3 + $0x568] sm:$0xff]
    %v3040 = vld [vmem:[%s3 + $0x570] sm:$0xff]
    %v3041 = vld [vmem:[%s3 + $0x578] sm:$0xff]
    %v3042 = vld [vmem:[%s3 + $0x580] sm:$0xff]
    %v3043 = vld [vmem:[%s3 + $0x588] sm:$0xff]
    %v3044 = vld [vmem:[%s3 + $0x590] sm:$0xff]
    %v3045 = vld [vmem:[%s3 + $0x598] sm:$0xff]
    %v3046 = vld [vmem:[%s3 + $0x5a0] sm:$0xff]
    %v3047 = vld [vmem:[%s3 + $0x5a8] sm:$0xff]
    %v3048 = vld [vmem:[%s3 + $0x5b0] sm:$0xff]
    %v3049 = vld [vmem:[%s3 + $0x5b8] sm:$0xff]
    %v3050 = vld [vmem:[%s3 + $0x5c0] sm:$0xff]
    %v3051 = vld [vmem:[%s3 + $0x5c8] sm:$0xff]
    %v3052 = vld [vmem:[%s3 + $0x5d0] sm:$0xff]
    %v3053 = vld [vmem:[%s3 + $0x5d8] sm:$0xff]
    %v3054 = vld [vmem:[%s3 + $0x5e0] sm:$0xff]
    %v3055 = vld [vmem:[%s3 + $0x5e8] sm:$0xff]
    %v3056 = vld [vmem:[%s3 + $0x5f0] sm:$0xff]
    %v3057 = vld [vmem:[%s3 + $0x5f8] sm:$0xff]
    %v3058 = vld [vmem:[%s3 + $0x600] sm:$0xff]
    %v3059 = vld [vmem:[%s3 + $0x608] sm:$0xff]
    %v3060 = vld [vmem:[%s3 + $0x610] sm:$0xff]
    %v3061 = vld [vmem:[%s3 + $0x618] sm:$0xff]
    %v3062 = vld [vmem:[%s3 + $0x620] sm:$0xff]
    %v3063 = vld [vmem:[%s3 + $0x628] sm:$0xff]
    %v3064 = vld [vmem:[%s3 + $0x630] sm:$0xff]
    %v3065 = vld [vmem:[%s3 + $0x638] sm:$0xff]
    %v3066 = vld [vmem:[%s3 + $0x640] sm:$0xff]
    %v3067 = vld [vmem:[%s3 + $0x648] sm:$0xff]
    %v3068 = vld [vmem:[%s3 + $0x650] sm:$0xff]
    %v3069 = vld [vmem:[%s3 + $0x658] sm:$0xff]
    %v3070 = vld [vmem:[%s3 + $0x660] sm:$0xff]
    %v3071 = vld [vmem:[%s3 + $0x668] sm:$0xff]
    %v3072 = vld [vmem:[%s3 + $0x670] sm:$0xff]
    %v3073 = vld [vmem:[%s3 + $0x678] sm:$0xff]
    %v3074 = vld [vmem:[%s3 + $0x680] sm:$0xff]
    %v3075 = vld [vmem:[%s3 + $0x688] sm:$0xff]
    %v3076 = vld [vmem:[%s3 + $0x690] sm:$0xff]
    %v3077 = vld [vmem:[%s3 + $0x698] sm:$0xff]
    %v3078 = vld [vmem:[%s3 + $0x6a0] sm:$0xff]
    %v3079 = vld [vmem:[%s3 + $0x6a8] sm:$0xff]
    %v3080 = vld [vmem:[%s3 + $0x6b0] sm:$0xff]
    %v3081 = vld [vmem:[%s3 + $0x6b8] sm:$0xff]
    %v3082 = vld [vmem:[%s3 + $0x6c0] sm:$0xff]
    %v3083 = vld [vmem:[%s3 + $0x6c8] sm:$0xff]
    %v3084 = vld [vmem:[%s3 + $0x6d0] sm:$0xff]
    %v3085 = vld [vmem:[%s3 + $0x6d8] sm:$0xff]
    %v3086 = vld [vmem:[%s3 + $0x6e0] sm:$0xff]
    %v3087 = vld [vmem:[%s3 + $0x6e8] sm:$0xff]
    %v3088 = vld [vmem:[%s3 + $0x6f0] sm:$0xff]
    %v3089 = vld [vmem:[%s3 + $0x6f8] sm:$0xff]
    %v3090 = vld [vmem:[%s3 + $0x700] sm:$0xff]
    %v3091 = vld [vmem:[%s3 + $0x708] sm:$0xff]
    %v3092 = vld [vmem:[%s3 + $0x710] sm:$0xff]
    %v3093 = vld [vmem:[%s3 + $0x718] sm:$0xff]
    %v3094 = vld [vmem:[%s3 + $0x720] sm:$0xff]
    %v3095 = vld [vmem:[%s3 + $0x728] sm:$0xff]
    %v3096 = vld [vmem:[%s3 + $0x730] sm:$0xff]
    %v3097 = vld [vmem:[%s3 + $0x738] sm:$0xff]
    %v3098 = vld [vmem:[%s3 + $0x740] sm:$0xff]
    %v3099 = vld [vmem:[%s3 + $0x748] sm:$0xff]
    %v3100 = vld [vmem:[%s3 + $0x750] sm:$0xff]
    %v3101 = vld [vmem:[%s3 + $0x758] sm:$0xff]
    %v3102 = vld [vmem:[%s3 + $0x760] sm:$0xff]
    %v3103 = vld [vmem:[%s3 + $0x768] sm:$0xff]
    %v3104 = vld [vmem:[%s3 + $0x770] sm:$0xff]
    %v3105 = vld [vmem:[%s3 + $0x778] sm:$0xff]
    %v3106 = vld [vmem:[%s3 + $0x780] sm:$0xff]
    %v3107 = vld [vmem:[%s3 + $0x788] sm:$0xff]
    %v3108 = vld [vmem:[%s3 + $0x790] sm:$0xff]
    %v3109 = vld [vmem:[%s3 + $0x798] sm:$0xff]
    %v3110 = vld [vmem:[%s3 + $0x7a0] sm:$0xff]
    %v3111 = vld [vmem:[%s3 + $0x7a8] sm:$0xff]
    %v3112 = vld [vmem:[%s3 + $0x7b0] sm:$0xff]
    %v3113 = vld [vmem:[%s3 + $0x7b8] sm:$0xff]
    %v3114 = vld [vmem:[%s3 + $0x7c0] sm:$0xff]
    %v3115 = vld [vmem:[%s3 + $0x7c8] sm:$0xff]
    %v3116 = vld [vmem:[%s3 + $0x7d0] sm:$0xff]
    %v3117 = vld [vmem:[%s3 + $0x7d8] sm:$0xff]
    %v3118 = vld [vmem:[%s3 + $0x7e0] sm:$0xff]
    %v3119 = vld [vmem:[%s3 + $0x7e8] sm:$0xff]
    %v3120 = vld [vmem:[%s3 + $0x7f0] sm:$0xff]
    %v3121 = vld [vmem:[%s3 + $0x7f8] sm:$0xff]
    %v3122 = vld [vmem:[%s3 + $0x800] sm:$0xff]
    %v3123 = vld [vmem:[%s3 + $0x808] sm:$0xff]
    %v3124 = vld [vmem:[%s3 + $0x810] sm:$0xff]
    %v3125 = vld [vmem:[%s3 + $0x818] sm:$0xff]
    %v3126 = vld [vmem:[%s3 + $0x820] sm:$0xff]
    %v3127 = vld [vmem:[%s3 + $0x828] sm:$0xff]
    %v3128 = vld [vmem:[%s3 + $0x830] sm:$0xff]
    %v3129 = vld [vmem:[%s3 + $0x838] sm:$0xff]
    %v3130 = vld [vmem:[%s3 + $0x840] sm:$0xff]
    %v3131 = vld [vmem:[%s3 + $0x848] sm:$0xff]
    %v3132 = vld [vmem:[%s3 + $0x850] sm:$0xff]
    %v3133 = vld [vmem:[%s3 + $0x858] sm:$0xff]
    %v3134 = vld [vmem:[%s3 + $0x860] sm:$0xff]
    %v3135 = vld [vmem:[%s3 + $0x868] sm:$0xff]
    %v3136 = vld [vmem:[%s3 + $0x870] sm:$0xff]
    %v3137 = vld [vmem:[%s3 + $0x878] sm:$0xff]
    %v3138 = vld [vmem:[%s3 + $0x880] sm:$0xff]
    %v3139 = vld [vmem:[%s3 + $0x888] sm:$0xff]
    %v3140 = vld [vmem:[%s3 + $0x890] sm:$0xff]
    %v3141 = vld [vmem:[%s3 + $0x898] sm:$0xff]
    %v3142 = vld [vmem:[%s3 + $0x8a0] sm:$0xff]
    %v3143 = vld [vmem:[%s3 + $0x8a8] sm:$0xff]
    %v3144 = vld [vmem:[%s3 + $0x8b0] sm:$0xff]
    %v3145 = vld [vmem:[%s3 + $0x8b8] sm:$0xff]
    %v3146 = vld [vmem:[%s3 + $0x8c0] sm:$0xff]
    %v3147 = vld [vmem:[%s3 + $0x8c8] sm:$0xff]
    %v3148 = vld [vmem:[%s3 + $0x8d0] sm:$0xff]
    %v3149 = vld [vmem:[%s3 + $0x8d8] sm:$0xff]
    %v3150 = vld [vmem:[%s3 + $0x8e0] sm:$0xff]
    %v3151 = vld [vmem:[%s3 + $0x8e8] sm:$0xff]
    %v3152 = vld [vmem:[%s3 + $0x8f0] sm:$0xff]
    %v3153 = vld [vmem:[%s3 + $0x8f8] sm:$0xff]
    %v3154 = vld [vmem:[%s3 + $0x900] sm:$0xff]
    %v3155 = vld [vmem:[%s3 + $0x908] sm:$0xff]
    %v3156 = vld [vmem:[%s3 + $0x910] sm:$0xff]
    %v3157 = vld [vmem:[%s3 + $0x918] sm:$0xff]
    %v3158 = vld [vmem:[%s3 + $0x920] sm:$0xff]
    %v3159 = vld [vmem:[%s3 + $0x928] sm:$0xff]
    %v3160 = vld [vmem:[%s3 + $0x930] sm:$0xff]
    %v3161 = vld [vmem:[%s3 + $0x938] sm:$0xff]
    %v3162 = vld [vmem:[%s3 + $0x940] sm:$0xff]
    %v3163 = vld [vmem:[%s3 + $0x948] sm:$0xff]
    %v3164 = vld [vmem:[%s3 + $0x950] sm:$0xff]
    %v3165 = vld [vmem:[%s3 + $0x958] sm:$0xff]
    %v3166 = vld [vmem:[%s3 + $0x960] sm:$0xff]
    %v3167 = vld [vmem:[%s3 + $0x968] sm:$0xff]
    %v3168 = vld [vmem:[%s3 + $0x970] sm:$0xff]
    %v3169 = vld [vmem:[%s3 + $0x978] sm:$0xff]
    %v3170 = vld [vmem:[%s3 + $0x980] sm:$0xff]
    %v3171 = vld [vmem:[%s3 + $0x988] sm:$0xff]
    %v3172 = vld [vmem:[%s3 + $0x990] sm:$0xff]
    %v3173 = vld [vmem:[%s3 + $0x998] sm:$0xff]
    %v3174 = vld [vmem:[%s3 + $0x9a0] sm:$0xff]
    %v3175 = vld [vmem:[%s3 + $0x9a8] sm:$0xff]
    %v3176 = vld [vmem:[%s3 + $0x9b0] sm:$0xff]
    %v3177 = vld [vmem:[%s3 + $0x9b8] sm:$0xff]
    %v3178 = vld [vmem:[%s3 + $0x9c0] sm:$0xff]
    %v3179 = vld [vmem:[%s3 + $0x9c8] sm:$0xff]
    %v3180 = vld [vmem:[%s3 + $0x9d0] sm:$0xff]
    %v3181 = vld [vmem:[%s3 + $0x9d8] sm:$0xff]
    %v3182 = vld [vmem:[%s3 + $0x9e0] sm:$0xff]
    %v3183 = vld [vmem:[%s3 + $0x9e8] sm:$0xff]
    %v3184 = vld [vmem:[%s3 + $0x9f0] sm:$0xff]
    %v3185 = vld [vmem:[%s3 + $0x9f8] sm:$0xff]
    %v3186 = vld [vmem:[%s3 + $0xa00] sm:$0xff]
    %v3187 = vld [vmem:[%s3 + $0xa08] sm:$0xff]
    %v3188 = vld [vmem:[%s3 + $0xa10] sm:$0xff]
    %v3189 = vld [vmem:[%s3 + $0xa18] sm:$0xff]
    %v3190 = vld [vmem:[%s3 + $0xa20] sm:$0xff]
    %v3191 = vld [vmem:[%s3 + $0xa28] sm:$0xff]
    %v3192 = vld [vmem:[%s3 + $0xa30] sm:$0xff]
    %v3193 = vld [vmem:[%s3 + $0xa38] sm:$0xff]
    %v3194 = vld [vmem:[%s3 + $0xa40] sm:$0xff]
    %v3195 = vld [vmem:[%s3 + $0xa48] sm:$0xff]
    %v3196 = vld [vmem:[%s3 + $0xa50] sm:$0xff]
    %v3197 = vld [vmem:[%s3 + $0xa58] sm:$0xff]
    %v3198 = vld [vmem:[%s3 + $0xa60] sm:$0xff]
    %v3199 = vld [vmem:[%s3 + $0xa68] sm:$0xff]
    %v3200 = vld [vmem:[%s3 + $0xa70] sm:$0xff]
    %v3201 = vld [vmem:[%s3 + $0xa78] sm:$0xff]
    %v3202 = vld [vmem:[%s3 + $0xa80] sm:$0xff]
    %v3203 = vld [vmem:[%s3 + $0xa88] sm:$0xff]
    %v3204 = vld [vmem:[%s3 + $0xa90] sm:$0xff]
    %v3205 = vld [vmem:[%s3 + $0xa98] sm:$0xff]
    %v3206 = vld [vmem:[%s3 + $0xaa0] sm:$0xff]
    %v3207 = vld [vmem:[%s3 + $0xaa8] sm:$0xff]
    %v3208 = vld [vmem:[%s3 + $0xab0] sm:$0xff]
    %v3209 = vld [vmem:[%s3 + $0xab8] sm:$0xff]
    %v3210 = vld [vmem:[%s3 + $0xac0] sm:$0xff]
    %v3211 = vld [vmem:[%s3 + $0xac8] sm:$0xff]
    %v3212 = vld [vmem:[%s3 + $0xad0] sm:$0xff]
    %v3213 = vld [vmem:[%s3 + $0xad8] sm:$0xff]
    %v3214 = vld [vmem:[%s3 + $0xae0] sm:$0xff]
    %v3215 = vld [vmem:[%s3 + $0xae8] sm:$0xff]
    %v3216 = vld [vmem:[%s3 + $0xaf0] sm:$0xff]
    %v3217 = vld [vmem:[%s3 + $0xaf8] sm:$0xff]
    %v3218 = vld [vmem:[%s3 + $0xb00] sm:$0xff]
    %v3219 = vld [vmem:[%s3 + $0xb08] sm:$0xff]
    %v3220 = vld [vmem:[%s3 + $0xb10] sm:$0xff]
    %v3221 = vld [vmem:[%s3 + $0xb18] sm:$0xff]
    %v3222 = vld [vmem:[%s3 + $0xb20] sm:$0xff]
    %v3223 = vld [vmem:[%s3 + $0xb28] sm:$0xff]
    %v3224 = vld [vmem:[%s3 + $0xb30] sm:$0xff]
    %v3225 = vld [vmem:[%s3 + $0xb38] sm:$0xff]
    %v3226 = vld [vmem:[%s3 + $0xb40] sm:$0xff]
    %v3227 = vld [vmem:[%s3 + $0xb48] sm:$0xff]
    %v3228 = vld [vmem:[%s3 + $0xb50] sm:$0xff]
    %v3229 = vld [vmem:[%s3 + $0xb58] sm:$0xff]
    %v3230 = vld [vmem:[%s3 + $0xb60] sm:$0xff]
    %v3231 = vld [vmem:[%s3 + $0xb68] sm:$0xff]
    %v3232 = vld [vmem:[%s3 + $0xb70] sm:$0xff]
    %v3233 = vld [vmem:[%s3 + $0xb78] sm:$0xff]
    %v3234 = vld [vmem:[%s3 + $0xb80] sm:$0xff]
    %v3235 = vld [vmem:[%s3 + $0xb88] sm:$0xff]
    %v3236 = vld [vmem:[%s3 + $0xb90] sm:$0xff]
    %v3237 = vld [vmem:[%s3 + $0xb98] sm:$0xff]
    %v3238 = vld [vmem:[%s3 + $0xba0] sm:$0xff]
    %v3239 = vld [vmem:[%s3 + $0xba8] sm:$0xff]
    %v3240 = vld [vmem:[%s3 + $0xbb0] sm:$0xff]
    %v3241 = vld [vmem:[%s3 + $0xbb8] sm:$0xff]
    %v3242 = vld [vmem:[%s3 + $0xbc0] sm:$0xff]
    %v3243 = vld [vmem:[%s3 + $0xbc8] sm:$0xff]
    %v3244 = vld [vmem:[%s3 + $0xbd0] sm:$0xff]
    %v3245 = vld [vmem:[%s3 + $0xbd8] sm:$0xff]
    %v3246 = vld [vmem:[%s3 + $0xbe0] sm:$0xff]
    %v3247 = vld [vmem:[%s3 + $0xbe8] sm:$0xff]
    %v3248 = vld [vmem:[%s3 + $0xbf0] sm:$0xff]
    %v3249 = vld [vmem:[%s3 + $0xbf8] sm:$0xff]
    %v3250 = vld [vmem:[%s3 + $0xc00] sm:$0xff]
    %v3251 = vld [vmem:[%s3 + $0xc08] sm:$0xff]
    %v3252 = vld [vmem:[%s3 + $0xc10] sm:$0xff]
    %v3253 = vld [vmem:[%s3 + $0xc18] sm:$0xff]
    %v3254 = vld [vmem:[%s3 + $0xc20] sm:$0xff]
    %v3255 = vld [vmem:[%s3 + $0xc28] sm:$0xff]
    %v3256 = vld [vmem:[%s3 + $0xc30] sm:$0xff]
    %v3257 = vld [vmem:[%s3 + $0xc38] sm:$0xff]
    %v3258 = vld [vmem:[%s3 + $0xc40] sm:$0xff]
    %v3259 = vld [vmem:[%s3 + $0xc48] sm:$0xff]
    %v3260 = vld [vmem:[%s3 + $0xc50] sm:$0xff]
    %v3261 = vld [vmem:[%s3 + $0xc58] sm:$0xff]
    %v3262 = vld [vmem:[%s3 + $0xc60] sm:$0xff]
    %v3263 = vld [vmem:[%s3 + $0xc68] sm:$0xff]
    %v3264 = vld [vmem:[%s3 + $0xc70] sm:$0xff]
    %v3265 = vld [vmem:[%s3 + $0xc78] sm:$0xff]
    %v3266 = vld [vmem:[%s3 + $0xc80] sm:$0xff]
    %v3267 = vld [vmem:[%s3 + $0xc88] sm:$0xff]
    %v3268 = vld [vmem:[%s3 + $0xc90] sm:$0xff]
    %v3269 = vld [vmem:[%s3 + $0xc98] sm:$0xff]
    %v3270 = vld [vmem:[%s3 + $0xca0] sm:$0xff]
    %v3271 = vld [vmem:[%s3 + $0xca8] sm:$0xff]
    %v3272 = vld [vmem:[%s3 + $0xcb0] sm:$0xff]
    %v3273 = vld [vmem:[%s3 + $0xcb8] sm:$0xff]
    %v3274 = vld [vmem:[%s3 + $0xcc0] sm:$0xff]
    %v3275 = vld [vmem:[%s3 + $0xcc8] sm:$0xff]
    %v3276 = vld [vmem:[%s3 + $0xcd0] sm:$0xff]
    %v3277 = vld [vmem:[%s3 + $0xcd8] sm:$0xff]
    %v3278 = vld [vmem:[%s3 + $0xce0] sm:$0xff]
    %v3279 = vld [vmem:[%s3 + $0xce8] sm:$0xff]
    %v3280 = vld [vmem:[%s3 + $0xcf0] sm:$0xff]
    %v3281 = vld [vmem:[%s3 + $0xcf8] sm:$0xff]
    %v3282 = vld [vmem:[%s3 + $0xd00] sm:$0xff]
    %v3283 = vld [vmem:[%s3 + $0xd08] sm:$0xff]
    %v3284 = vld [vmem:[%s3 + $0xd10] sm:$0xff]
    %v3285 = vld [vmem:[%s3 + $0xd18] sm:$0xff]
    %v3286 = vld [vmem:[%s3 + $0xd20] sm:$0xff]
    %v3287 = vld [vmem:[%s3 + $0xd28] sm:$0xff]
    %v3288 = vld [vmem:[%s3 + $0xd30] sm:$0xff]
    %v3289 = vld [vmem:[%s3 + $0xd38] sm:$0xff]
    %v3290 = vld [vmem:[%s3 + $0xd40] sm:$0xff]
    %v3291 = vld [vmem:[%s3 + $0xd48] sm:$0xff]
    %v3292 = vld [vmem:[%s3 + $0xd50] sm:$0xff]
    %v3293 = vld [vmem:[%s3 + $0xd58] sm:$0xff]
    %v3294 = vld [vmem:[%s3 + $0xd60] sm:$0xff]
    %v3295 = vld [vmem:[%s3 + $0xd68] sm:$0xff]
    %v3296 = vld [vmem:[%s3 + $0xd70] sm:$0xff]
    %v3297 = vld [vmem:[%s3 + $0xd78] sm:$0xff]
    %v3298 = vld [vmem:[%s3 + $0xd80] sm:$0xff]
    %v3299 = vld [vmem:[%s3 + $0xd88] sm:$0xff]
    %v3300 = vld [vmem:[%s3 + $0xd90] sm:$0xff]
    %v3301 = vld [vmem:[%s3 + $0xd98] sm:$0xff]
    %v3302 = vld [vmem:[%s3 + $0xda0] sm:$0xff]
    %v3303 = vld [vmem:[%s3 + $0xda8] sm:$0xff]
    %v3304 = vld [vmem:[%s3 + $0xdb0] sm:$0xff]
    %v3305 = vld [vmem:[%s3 + $0xdb8] sm:$0xff]
    %v3306 = vld [vmem:[%s3 + $0xdc0] sm:$0xff]
    %v3307 = vld [vmem:[%s3 + $0xdc8] sm:$0xff]
    %v3308 = vld [vmem:[%s3 + $0xdd0] sm:$0xff]
    %v3309 = vld [vmem:[%s3 + $0xdd8] sm:$0xff]
    %v3310 = vld [vmem:[%s3 + $0xde0] sm:$0xff]
    %v3311 = vld [vmem:[%s3 + $0xde8] sm:$0xff]
    %v3312 = vld [vmem:[%s3 + $0xdf0] sm:$0xff]
    %v3313 = vld [vmem:[%s3 + $0xdf8] sm:$0xff]
    %v3314 = vld [vmem:[%s3 + $0xe00] sm:$0xff]
    %v3315 = vld [vmem:[%s3 + $0xe08] sm:$0xff]
    %v3316 = vld [vmem:[%s3 + $0xe10] sm:$0xff]
    %v3317 = vld [vmem:[%s3 + $0xe18] sm:$0xff]
    %v3318 = vld [vmem:[%s3 + $0xe20] sm:$0xff]
    %v3319 = vld [vmem:[%s3 + $0xe28] sm:$0xff]
    %v3320 = vld [vmem:[%s3 + $0xe30] sm:$0xff]
    %v3321 = vld [vmem:[%s3 + $0xe38] sm:$0xff]
    %v3322 = vld [vmem:[%s3 + $0xe40] sm:$0xff]
    %v3323 = vld [vmem:[%s3 + $0xe48] sm:$0xff]
    %v3324 = vld [vmem:[%s3 + $0xe50] sm:$0xff]
    %v3325 = vld [vmem:[%s3 + $0xe58] sm:$0xff]
    %v3326 = vld [vmem:[%s3 + $0xe60] sm:$0xff]
    %v3327 = vld [vmem:[%s3 + $0xe68] sm:$0xff]
    %v3328 = vld [vmem:[%s3 + $0xe70] sm:$0xff]
    %v3329 = vld [vmem:[%s3 + $0xe78] sm:$0xff]
    %v3330 = vld [vmem:[%s3 + $0xe80] sm:$0xff]
    %v3331 = vld [vmem:[%s3 + $0xe88] sm:$0xff]
    %v3332 = vld [vmem:[%s3 + $0xe90] sm:$0xff]
    %v3333 = vld [vmem:[%s3 + $0xe98] sm:$0xff]
    %v3334 = vld [vmem:[%s3 + $0xea0] sm:$0xff]
    %v3335 = vld [vmem:[%s3 + $0xea8] sm:$0xff]
    %v3336 = vld [vmem:[%s3 + $0xeb0] sm:$0xff]
    %v3337 = vld [vmem:[%s3 + $0xeb8] sm:$0xff]
    %v3338 = vld [vmem:[%s3 + $0xec0] sm:$0xff]
    %v3339 = vld [vmem:[%s3 + $0xec8] sm:$0xff]
    %v3340 = vld [vmem:[%s3 + $0xed0] sm:$0xff]
    %v3341 = vld [vmem:[%s3 + $0xed8] sm:$0xff]
    %v3342 = vld [vmem:[%s3 + $0xee0] sm:$0xff]
    %v3343 = vld [vmem:[%s3 + $0xee8] sm:$0xff]
    %v3344 = vld [vmem:[%s3 + $0xef0] sm:$0xff]
    %v3345 = vld [vmem:[%s3 + $0xef8] sm:$0xff]
    %v3346 = vld [vmem:[%s3 + $0xf00] sm:$0xff]
    %v3347 = vld [vmem:[%s3 + $0xf08] sm:$0xff]
    %v3348 = vld [vmem:[%s3 + $0xf10] sm:$0xff]
    %v3349 = vld [vmem:[%s3 + $0xf18] sm:$0xff]
    %v3350 = vld [vmem:[%s3 + $0xf20] sm:$0xff]
    %v3351 = vld [vmem:[%s3 + $0xf28] sm:$0xff]
    %v3352 = vld [vmem:[%s3 + $0xf30] sm:$0xff]
    %v3353 = vld [vmem:[%s3 + $0xf38] sm:$0xff]
    %v3354 = vld [vmem:[%s3 + $0xf40] sm:$0xff]
    %v3355 = vld [vmem:[%s3 + $0xf48] sm:$0xff]
    %v3356 = vld [vmem:[%s3 + $0xf50] sm:$0xff]
    %v3357 = vld [vmem:[%s3 + $0xf58] sm:$0xff]
    %v3358 = vld [vmem:[%s3 + $0xf60] sm:$0xff]
    %v3359 = vld [vmem:[%s3 + $0xf68] sm:$0xff]
    %v3360 = vld [vmem:[%s3 + $0xf70] sm:$0xff]
    %v3361 = vld [vmem:[%s3 + $0xf78] sm:$0xff]
    %v3362 = vld [vmem:[%s3 + $0xf80] sm:$0xff]
    %v3363 = vld [vmem:[%s3 + $0xf88] sm:$0xff]
    %v3364 = vld [vmem:[%s3 + $0xf90] sm:$0xff]
    %v3365 = vld [vmem:[%s3 + $0xf98] sm:$0xff]
    %v3366 = vld [vmem:[%s3 + $0xfa0] sm:$0xff]
    %v3367 = vld [vmem:[%s3 + $0xfa8] sm:$0xff]
    %v3368 = vld [vmem:[%s3 + $0xfb0] sm:$0xff]
    %v3369 = vld [vmem:[%s3 + $0xfb8] sm:$0xff]
    %v3370 = vld [vmem:[%s3 + $0xfc0] sm:$0xff]
    %v3371 = vld [vmem:[%s3 + $0xfc8] sm:$0xff]
    %v3372 = vld [vmem:[%s3 + $0xfd0] sm:$0xff]
    %v3373 = vld [vmem:[%s3 + $0xfd8] sm:$0xff]
    %v3374 = vld [vmem:[%s3 + $0xfe0] sm:$0xff]
    %v3375 = vld [vmem:[%s3 + $0xfe8] sm:$0xff]
    %v3376 = vld [vmem:[%s3 + $0xff0] sm:$0xff]
    %v3377 = vld [vmem:[%s3 + $0xff8] sm:$0xff]
    %v3378 = vld [vmem:[%s3 + $0x1000] sm:$0xff]
    %v3379 = vld [vmem:[%s3 + $0x1008] sm:$0xff]
    %v3380 = vld [vmem:[%s3 + $0x1010] sm:$0xff]
    %v3381 = vld [vmem:[%s3 + $0x1018] sm:$0xff]
    %v3382 = vld [vmem:[%s3 + $0x1020] sm:$0xff]
    %v3383 = vld [vmem:[%s3 + $0x1028] sm:$0xff]
    %v3384 = vld [vmem:[%s3 + $0x1030] sm:$0xff]
    %v3385 = vld [vmem:[%s3 + $0x1038] sm:$0xff]
    %v3386 = vld [vmem:[%s3 + $0x1040] sm:$0xff]
    %v3387 = vld [vmem:[%s3 + $0x1048] sm:$0xff]
    %v3388 = vld [vmem:[%s3 + $0x1050] sm:$0xff]
    %v3389 = vld [vmem:[%s3 + $0x1058] sm:$0xff]
    %v3390 = vld [vmem:[%s3 + $0x1060] sm:$0xff]
    %v3391 = vld [vmem:[%s3 + $0x1068] sm:$0xff]
    %v3392 = vld [vmem:[%s3 + $0x1070] sm:$0xff]
    %v3393 = vld [vmem:[%s3 + $0x1078] sm:$0xff]
    %v3394 = vld [vmem:[%s3 + $0x1080] sm:$0xff]
    %v3395 = vld [vmem:[%s3 + $0x1088] sm:$0xff]
    %v3396 = vld [vmem:[%s3 + $0x1090] sm:$0xff]
    %v3397 = vld [vmem:[%s3 + $0x1098] sm:$0xff]
    %v3398 = vld [vmem:[%s3 + $0x10a0] sm:$0xff]
    %v3399 = vld [vmem:[%s3 + $0x10a8] sm:$0xff]
    %v3400 = vld [vmem:[%s3 + $0x10b0] sm:$0xff]
    %v3401 = vld [vmem:[%s3 + $0x10b8] sm:$0xff]
    %v3402 = vld [vmem:[%s3 + $0x10c0] sm:$0xff]
    %v3403 = vld [vmem:[%s3 + $0x10c8] sm:$0xff]
    %v3404 = vld [vmem:[%s3 + $0x10d0] sm:$0xff]
    %v3405 = vld [vmem:[%s3 + $0x10d8] sm:$0xff]
    %v3406 = vld [vmem:[%s3 + $0x10e0] sm:$0xff]
    %v3407 = vld [vmem:[%s3 + $0x10e8] sm:$0xff]
    %v3408 = vld [vmem:[%s3 + $0x10f0] sm:$0xff]
    %v3409 = vld [vmem:[%s3 + $0x10f8] sm:$0xff]
    %v3410 = vld [vmem:[%s3 + $0x1100] sm:$0xff]
    %v3411 = vld [vmem:[%s3 + $0x1108] sm:$0xff]
    %v3412 = vld [vmem:[%s3 + $0x1110] sm:$0xff]
    %v3413 = vld [vmem:[%s3 + $0x1118] sm:$0xff]
    %v3414 = vld [vmem:[%s3 + $0x1120] sm:$0xff]
    %v3415 = vld [vmem:[%s3 + $0x1128] sm:$0xff]
    %v3416 = vld [vmem:[%s3 + $0x1130] sm:$0xff]
    %v3417 = vld [vmem:[%s3 + $0x1138] sm:$0xff]
    %v3418 = vld [vmem:[%s3 + $0x1140] sm:$0xff]
    %v3419 = vld [vmem:[%s3 + $0x1148] sm:$0xff]
    %v3420 = vld [vmem:[%s3 + $0x1150] sm:$0xff]
    %v3421 = vld [vmem:[%s3 + $0x1158] sm:$0xff]
    %v3422 = vld [vmem:[%s3 + $0x1160] sm:$0xff]
    %v3423 = vld [vmem:[%s3 + $0x1168] sm:$0xff]
    %v3424 = vld [vmem:[%s3 + $0x1170] sm:$0xff]
    %v3425 = vld [vmem:[%s3 + $0x1178] sm:$0xff]
    %v3426 = vld [vmem:[%s3 + $0x1180] sm:$0xff]
    %v3427 = vld [vmem:[%s3 + $0x1188] sm:$0xff]
    %v3428 = vld [vmem:[%s3 + $0x1190] sm:$0xff]
    %v3429 = vld [vmem:[%s3 + $0x1198] sm:$0xff]
    %v3430 = vld [vmem:[%s3 + $0x11a0] sm:$0xff]
    %v3431 = vld [vmem:[%s3 + $0x11a8] sm:$0xff]
    %v3432 = vld [vmem:[%s3 + $0x11b0] sm:$0xff]
    %v3433 = vld [vmem:[%s3 + $0x11b8] sm:$0xff]
    %v3434 = vld [vmem:[%s3 + $0x11c0] sm:$0xff]
    %v3435 = vld [vmem:[%s3 + $0x11c8] sm:$0xff]
    %v3436 = vld [vmem:[%s3 + $0x11d0] sm:$0xff]
    %v3437 = vld [vmem:[%s3 + $0x11d8] sm:$0xff]
    %v3438 = vld [vmem:[%s3 + $0x11e0] sm:$0xff]
    %v3439 = vld [vmem:[%s3 + $0x11e8] sm:$0xff]
    %v3440 = vld [vmem:[%s3 + $0x11f0] sm:$0xff]
    %v3441 = vld [vmem:[%s3 + $0x11f8] sm:$0xff]
    %v3442 = vld [vmem:[%s3 + $0x1200] sm:$0xff]
    %v3443 = vld [vmem:[%s3 + $0x1208] sm:$0xff]
    %v3444 = vld [vmem:[%s3 + $0x1210] sm:$0xff]
    %v3445 = vld [vmem:[%s3 + $0x1218] sm:$0xff]
    %v3446 = vld [vmem:[%s3 + $0x1220] sm:$0xff]
    %v3447 = vld [vmem:[%s3 + $0x1228] sm:$0xff]
    %v3448 = vld [vmem:[%s3 + $0x1230] sm:$0xff]
    %v3449 = vld [vmem:[%s3 + $0x1238] sm:$0xff]
    %v3450 = vld [vmem:[%s3 + $0x1240] sm:$0xff]
    %v3451 = vld [vmem:[%s3 + $0x1248] sm:$0xff]
    %v3452 = vld [vmem:[%s3 + $0x1250] sm:$0xff]
    %v3453 = vld [vmem:[%s3 + $0x1258] sm:$0xff]
    %v3454 = vld [vmem:[%s3 + $0x1260] sm:$0xff]
    %v3455 = vld [vmem:[%s3 + $0x1268] sm:$0xff]
    %v3456 = vld [vmem:[%s3 + $0x1270] sm:$0xff]
    %v3457 = vld [vmem:[%s3 + $0x1278] sm:$0xff]
    %v3458 = vld [vmem:[%s3 + $0x1280] sm:$0xff]
    %v3459 = vld [vmem:[%s3 + $0x1288] sm:$0xff]
    %v3460 = vld [vmem:[%s3 + $0x1290] sm:$0xff]
    %v3461 = vld [vmem:[%s3 + $0x1298] sm:$0xff]
    %v3462 = vld [vmem:[%s3 + $0x12a0] sm:$0xff]
    %v3463 = vld [vmem:[%s3 + $0x12a8] sm:$0xff]
    %v3464 = vld [vmem:[%s3 + $0x12b0] sm:$0xff]
    %v3465 = vld [vmem:[%s3 + $0x12b8] sm:$0xff]
    %v3466 = vld [vmem:[%s3 + $0x12c0] sm:$0xff]
    %v3467 = vld [vmem:[%s3 + $0x12c8] sm:$0xff]
    %v3468 = vld [vmem:[%s3 + $0x12d0] sm:$0xff]
    %v3469 = vld [vmem:[%s3 + $0x12d8] sm:$0xff]
    %v3470 = vld [vmem:[%s3 + $0x12e0] sm:$0xff]
    %v3471 = vld [vmem:[%s3 + $0x12e8] sm:$0xff]
    %v3472 = vld [vmem:[%s3 + $0x12f0] sm:$0xff]
    %v3473 = vld [vmem:[%s3 + $0x12f8] sm:$0xff]
    %v3474 = vld [vmem:[%s3 + $0x1300] sm:$0xff]
    %v3475 = vld [vmem:[%s3 + $0x1308] sm:$0xff]
    %v3476 = vld [vmem:[%s3 + $0x1310] sm:$0xff]
    %v3477 = vld [vmem:[%s3 + $0x1318] sm:$0xff]
    %v3478 = vld [vmem:[%s3 + $0x1320] sm:$0xff]
    %v3479 = vld [vmem:[%s3 + $0x1328] sm:$0xff]
    %v3480 = vld [vmem:[%s3 + $0x1330] sm:$0xff]
    %v3481 = vld [vmem:[%s3 + $0x1338] sm:$0xff]
    %v3482 = vld [vmem:[%s3 + $0x1340] sm:$0xff]
    %v3483 = vld [vmem:[%s3 + $0x1348] sm:$0xff]
    %v3484 = vld [vmem:[%s3 + $0x1350] sm:$0xff]
    %v3485 = vld [vmem:[%s3 + $0x1358] sm:$0xff]
    %v3486 = vld [vmem:[%s3 + $0x1360] sm:$0xff]
    %v3487 = vld [vmem:[%s3 + $0x1368] sm:$0xff]
    %v3488 = vld [vmem:[%s3 + $0x1370] sm:$0xff]
    %v3489 = vld [vmem:[%s3 + $0x1378] sm:$0xff]
    %v3490 = vld [vmem:[%s3 + $0x1380] sm:$0xff]
    %v3491 = vld [vmem:[%s3 + $0x1388] sm:$0xff]
    %v3492 = vld [vmem:[%s3 + $0x1390] sm:$0xff]
    %v3493 = vld [vmem:[%s3 + $0x1398] sm:$0xff]
    %v3494 = vld [vmem:[%s3 + $0x13a0] sm:$0xff]
    %v3495 = vld [vmem:[%s3 + $0x13a8] sm:$0xff]
    %v3496 = vld [vmem:[%s3 + $0x13b0] sm:$0xff]
    %v3497 = vld [vmem:[%s3 + $0x13b8] sm:$0xff]
    %v3498 = vld [vmem:[%s3 + $0x13c0] sm:$0xff]
    %v3499 = vld [vmem:[%s3 + $0x13c8] sm:$0xff]
    %v3500 = vld [vmem:[%s3 + $0x13d0] sm:$0xff]
    %v3501 = vld [vmem:[%s3 + $0x13d8] sm:$0xff]
    %v3502 = vld [vmem:[%s3 + $0x13e0] sm:$0xff]
    %v3503 = vld [vmem:[%s3 + $0x13e8] sm:$0xff]
    %v3504 = vld [vmem:[%s3 + $0x13f0] sm:$0xff]
    %v3505 = vld [vmem:[%s3 + $0x13f8] sm:$0xff]
    %v3506 = vld [vmem:[%s3 + $0x1400] sm:$0xff]
    %v3507 = vld [vmem:[%s3 + $0x1408] sm:$0xff]
    %v3508 = vld [vmem:[%s3 + $0x1410] sm:$0xff]
    %v3509 = vld [vmem:[%s3 + $0x1418] sm:$0xff]
    %v3510 = vld [vmem:[%s3 + $0x1420] sm:$0xff]
    %v3511 = vld [vmem:[%s3 + $0x1428] sm:$0xff]
    %v3512 = vld [vmem:[%s3 + $0x1430] sm:$0xff]
    %v3513 = vld [vmem:[%s3 + $0x1438] sm:$0xff]
    %v3514 = vld [vmem:[%s3 + $0x1440] sm:$0xff]
    %v3515 = vld [vmem:[%s3 + $0x1448] sm:$0xff]
    %v3516 = vld [vmem:[%s3 + $0x1450] sm:$0xff]
    %v3517 = vld [vmem:[%s3 + $0x1458] sm:$0xff]
    %v3518 = vld [vmem:[%s3 + $0x1460] sm:$0xff]
    %v3519 = vld [vmem:[%s3 + $0x1468] sm:$0xff]
    %v3520 = vld [vmem:[%s3 + $0x1470] sm:$0xff]
    %v3521 = vld [vmem:[%s3 + $0x1478] sm:$0xff]
    %v3522 = vld [vmem:[%s3 + $0x1480] sm:$0xff]
    %v3523 = vld [vmem:[%s3 + $0x1488] sm:$0xff]
    %v3524 = vld [vmem:[%s3 + $0x1490] sm:$0xff]
    %v3525 = vld [vmem:[%s3 + $0x1498] sm:$0xff]
    %v3526 = vld [vmem:[%s3 + $0x14a0] sm:$0xff]
    %v3527 = vld [vmem:[%s3 + $0x14a8] sm:$0xff]
    %v3528 = vld [vmem:[%s3 + $0x14b0] sm:$0xff]
    %v3529 = vld [vmem:[%s3 + $0x14b8] sm:$0xff]
    %v3530 = vld [vmem:[%s3 + $0x14c0] sm:$0xff]
    %v3531 = vld [vmem:[%s3 + $0x14c8] sm:$0xff]
    %v3532 = vld [vmem:[%s3 + $0x14d0] sm:$0xff]
    %v3533 = vld [vmem:[%s3 + $0x14d8] sm:$0xff]
    %v3534 = vld [vmem:[%s3 + $0x14e0] sm:$0xff]
    %v3535 = vld [vmem:[%s3 + $0x14e8] sm:$0xff]
    %v3536 = vld [vmem:[%s3 + $0x14f0] sm:$0xff]
    %v3537 = vld [vmem:[%s3 + $0x14f8] sm:$0xff]
    %v3538 = vld [vmem:[%s3 + $0x1500] sm:$0xff]
    %v3539 = vld [vmem:[%s3 + $0x1508] sm:$0xff]
    %v3540 = vld [vmem:[%s3 + $0x1510] sm:$0xff]
    %v3541 = vld [vmem:[%s3 + $0x1518] sm:$0xff]
    %v3542 = vld [vmem:[%s3 + $0x1520] sm:$0xff]
    %v3543 = vld [vmem:[%s3 + $0x1528] sm:$0xff]
    %v3544 = vld [vmem:[%s3 + $0x1530] sm:$0xff]
    %v3545 = vld [vmem:[%s3 + $0x1538] sm:$0xff]
    %v3546 = vld [vmem:[%s3 + $0x1540] sm:$0xff]
    %v3547 = vld [vmem:[%s3 + $0x1548] sm:$0xff]
    %v3548 = vld [vmem:[%s3 + $0x1550] sm:$0xff]
    %v3549 = vld [vmem:[%s3 + $0x1558] sm:$0xff]
    %v3550 = vld [vmem:[%s3 + $0x1560] sm:$0xff]
    %v3551 = vld [vmem:[%s3 + $0x1568] sm:$0xff]
    %v3552 = vld [vmem:[%s3 + $0x1570] sm:$0xff]
    %v3553 = vld [vmem:[%s3 + $0x1578] sm:$0xff]
    %v3554 = vld [vmem:[%s3 + $0x1580] sm:$0xff]
    %v3555 = vld [vmem:[%s3 + $0x1588] sm:$0xff]
    %v3556 = vld [vmem:[%s3 + $0x1590] sm:$0xff]
    %v3557 = vld [vmem:[%s3 + $0x1598] sm:$0xff]
    %v3558 = vld [vmem:[%s3 + $0x15a0] sm:$0xff]
    %v3559 = vld [vmem:[%s3 + $0x15a8] sm:$0xff]
    %v3560 = vld [vmem:[%s3 + $0x15b0] sm:$0xff]
    %v3561 = vld [vmem:[%s3 + $0x15b8] sm:$0xff]
    %v3562 = vld [vmem:[%s3 + $0x15c0] sm:$0xff]
    %v3563 = vld [vmem:[%s3 + $0x15c8] sm:$0xff]
    %v3564 = vld [vmem:[%s3 + $0x15d0] sm:$0xff]
    %v3565 = vld [vmem:[%s3 + $0x15d8] sm:$0xff]
    %v3566 = vld [vmem:[%s3 + $0x15e0] sm:$0xff]
    %v3567 = vld [vmem:[%s3 + $0x15e8] sm:$0xff]
    %v3568 = vld [vmem:[%s3 + $0x15f0] sm:$0xff]
    %v3569 = vld [vmem:[%s3 + $0x15f8] sm:$0xff]
    %v3570 = vld [vmem:[%s3 + $0x1600] sm:$0xff]
    %v3571 = vld [vmem:[%s3 + $0x1608] sm:$0xff]
    %v3572 = vld [vmem:[%s3 + $0x1610] sm:$0xff]
    %v3573 = vld [vmem:[%s3 + $0x1618] sm:$0xff]
    %v3574 = vld [vmem:[%s3 + $0x1620] sm:$0xff]
    %v3575 = vld [vmem:[%s3 + $0x1628] sm:$0xff]
    %v3576 = vld [vmem:[%s3 + $0x1630] sm:$0xff]
    %v3577 = vld [vmem:[%s3 + $0x1638] sm:$0xff]
    %v3578 = vld [vmem:[%s3 + $0x1640] sm:$0xff]
    %v3579 = vld [vmem:[%s3 + $0x1648] sm:$0xff]
    %v3580 = vld [vmem:[%s3 + $0x1650] sm:$0xff]
    %v3581 = vld [vmem:[%s3 + $0x1658] sm:$0xff]
    %v3582 = vld [vmem:[%s3 + $0x1660] sm:$0xff]
    %v3583 = vld [vmem:[%s3 + $0x1668] sm:$0xff]
    %v3584 = vld [vmem:[%s3 + $0x1670] sm:$0xff]
    %v3585 = vld [vmem:[%s3 + $0x1678] sm:$0xff]
    %v3586 = vld [vmem:[%s3 + $0x1680] sm:$0xff]
    %v3587 = vld [vmem:[%s3 + $0x1688] sm:$0xff]
    %v3588 = vld [vmem:[%s3 + $0x1690] sm:$0xff]
    %v3589 = vld [vmem:[%s3 + $0x1698] sm:$0xff]
    %v3590 = vld [vmem:[%s3 + $0x16a0] sm:$0xff]
    %v3591 = vld [vmem:[%s3 + $0x16a8] sm:$0xff]
    %v3592 = vld [vmem:[%s3 + $0x16b0] sm:$0xff]
    %v3593 = vld [vmem:[%s3 + $0x16b8] sm:$0xff]
    %v3594 = vld [vmem:[%s3 + $0x16c0] sm:$0xff]
    %v3595 = vld [vmem:[%s3 + $0x16c8] sm:$0xff]
    %v3596 = vld [vmem:[%s3 + $0x16d0] sm:$0xff]
    %v3597 = vld [vmem:[%s3 + $0x16d8] sm:$0xff]
    %v3598 = vld [vmem:[%s3 + $0x16e0] sm:$0xff]
    %v3599 = vld [vmem:[%s3 + $0x16e8] sm:$0xff]
    %v3600 = vld [vmem:[%s3 + $0x16f0] sm:$0xff]
    %v3601 = vld [vmem:[%s3 + $0x16f8] sm:$0xff]
    %v3602 = vld [vmem:[%s3 + $0x1700] sm:$0xff]
    %v3603 = vld [vmem:[%s3 + $0x1708] sm:$0xff]
    %v3604 = vld [vmem:[%s3 + $0x1710] sm:$0xff]
    %v3605 = vld [vmem:[%s3 + $0x1718] sm:$0xff]
    %v3606 = vld [vmem:[%s3 + $0x1720] sm:$0xff]
    %v3607 = vld [vmem:[%s3 + $0x1728] sm:$0xff]
    %v3608 = vld [vmem:[%s3 + $0x1730] sm:$0xff]
    %v3609 = vld [vmem:[%s3 + $0x1738] sm:$0xff]
    %v3610 = vld [vmem:[%s3 + $0x1740] sm:$0xff]
    %v3611 = vld [vmem:[%s3 + $0x1748] sm:$0xff]
    %v3612 = vld [vmem:[%s3 + $0x1750] sm:$0xff]
    %v3613 = vld [vmem:[%s3 + $0x1758] sm:$0xff]
    %v3614 = vld [vmem:[%s3 + $0x1760] sm:$0xff]
    %v3615 = vld [vmem:[%s3 + $0x1768] sm:$0xff]
    %v3616 = vld [vmem:[%s3 + $0x1770] sm:$0xff]
    %v3617 = vld [vmem:[%s3 + $0x1778] sm:$0xff]
    %v3618 = vld [vmem:[%s3 + $0x1780] sm:$0xff]
    %v3619 = vld [vmem:[%s3 + $0x1788] sm:$0xff]
    %v3620 = vld [vmem:[%s3 + $0x1790] sm:$0xff]
    %v3621 = vld [vmem:[%s3 + $0x1798] sm:$0xff]
    %v3622 = vld [vmem:[%s3 + $0x17a0] sm:$0xff]
    %v3623 = vld [vmem:[%s3 + $0x17a8] sm:$0xff]
    %v3624 = vld [vmem:[%s3 + $0x17b0] sm:$0xff]
    %v3625 = vld [vmem:[%s3 + $0x17b8] sm:$0xff]
    %v3626 = vld [vmem:[%s3 + $0x17c0] sm:$0xff]
    %v3627 = vld [vmem:[%s3 + $0x17c8] sm:$0xff]
    %v3628 = vld [vmem:[%s3 + $0x17d0] sm:$0xff]
    %v3629 = vld [vmem:[%s3 + $0x17d8] sm:$0xff]
    %v3630 = vld [vmem:[%s3 + $0x17e0] sm:$0xff]
    %v3631 = vld [vmem:[%s3 + $0x17e8] sm:$0xff]
    %v3632 = vld [vmem:[%s3 + $0x17f0] sm:$0xff]
    %v3633 = vld [vmem:[%s3 + $0x17f8] sm:$0xff]
    %v3634 = vld [vmem:[%s3 + $0x1800] sm:$0xff]
    %v3635 = vld [vmem:[%s3 + $0x1808] sm:$0xff]
    %v3636 = vld [vmem:[%s3 + $0x1810] sm:$0xff]
    %v3637 = vld [vmem:[%s3 + $0x1818] sm:$0xff]
    %v3638 = vld [vmem:[%s3 + $0x1820] sm:$0xff]
    %v3639 = vld [vmem:[%s3 + $0x1828] sm:$0xff]
    %v3640 = vld [vmem:[%s3 + $0x1830] sm:$0xff]
    %v3641 = vld [vmem:[%s3 + $0x1838] sm:$0xff]
    %v3642 = vld [vmem:[%s3 + $0x1840] sm:$0xff]
    %v3643 = vld [vmem:[%s3 + $0x1848] sm:$0xff]
    %v3644 = vld [vmem:[%s3 + $0x1850] sm:$0xff]
    %v3645 = vld [vmem:[%s3 + $0x1858] sm:$0xff]
    %v3646 = vld [vmem:[%s3 + $0x1860] sm:$0xff]
    %v3647 = vld [vmem:[%s3 + $0x1868] sm:$0xff]
    %v3648 = vld [vmem:[%s3 + $0x1870] sm:$0xff]
    %v3649 = vld [vmem:[%s3 + $0x1878] sm:$0xff]
    %v3650 = vld [vmem:[%s3 + $0x1880] sm:$0xff]
    %v3651 = vld [vmem:[%s3 + $0x1888] sm:$0xff]
    %v3652 = vld [vmem:[%s3 + $0x1890] sm:$0xff]
    %v3653 = vld [vmem:[%s3 + $0x1898] sm:$0xff]
    %v3654 = vld [vmem:[%s3 + $0x18a0] sm:$0xff]
    %v3655 = vld [vmem:[%s3 + $0x18a8] sm:$0xff]
    %v3656 = vld [vmem:[%s3 + $0x18b0] sm:$0xff]
    %v3657 = vld [vmem:[%s3 + $0x18b8] sm:$0xff]
    %v3658 = vld [vmem:[%s3 + $0x18c0] sm:$0xff]
    %v3659 = vld [vmem:[%s3 + $0x18c8] sm:$0xff]
    %v3660 = vld [vmem:[%s3 + $0x18d0] sm:$0xff]
    %v3661 = vld [vmem:[%s3 + $0x18d8] sm:$0xff]
    %v3662 = vld [vmem:[%s3 + $0x18e0] sm:$0xff]
    %v3663 = vld [vmem:[%s3 + $0x18e8] sm:$0xff]
    %v3664 = vld [vmem:[%s3 + $0x18f0] sm:$0xff]
    %v3665 = vld [vmem:[%s3 + $0x18f8] sm:$0xff]
    %v3666 = vld [vmem:[%s4] sm:$0x1]
    %v3668 = vlaneseq
    %v3669 = vshrl.u32 %v3668, 7
    %v3670 = vsub.s32 0, %v3669
    %v3671 = vrot.slane %v3666, %v3670
    %3673 = vmatprep.subr.mxu0 0.0
    %3674 = vmatpush1.msra.mxu0 %v2866
    %3675 = vmatprep.subr.mxu0 0.0
    %3676 = vmatpush1.msra.mxu0 %v2867
    %3677 = vmatprep.subr.mxu0 0.0
    %3678 = vmatpush1.msra.mxu0 %v2868
    %3679 = vmatprep.subr.mxu0 0.0
    %3680 = vmatpush1.msra.mxu0 %v2869
    %3681 = vmatprep.subr.mxu0 0.0
    %3682 = vmatpush1.msra.mxu0 %v2870
    %3683 = vmatprep.subr.mxu0 0.0
    %3684 = vmatpush1.msra.mxu0 %v2871
    %3685 = vmatprep.subr.mxu0 0.0
    %3686 = vmatpush1.msra.mxu0 %v2872
    %3687 = vmatprep.subr.mxu0 0.0
    %3688 = vmatpush1.msra.mxu0 %v2873
    %3689 = vmatprep.subr.mxu0 0.0
    %3690 = vmatpush1.msra.mxu0 %v2874
    %3691 = vmatprep.subr.mxu0 0.0
    %3692 = vmatpush1.msra.mxu0 %v2875
    %3693 = vmatprep.subr.mxu0 0.0
    %3694 = vmatpush1.msra.mxu0 %v2876
    %3695 = vmatprep.subr.mxu0 0.0
    %3696 = vmatpush1.msra.mxu0 %v2877
    %3697 = vmatprep.subr.mxu0 0.0
    %3698 = vmatpush1.msra.mxu0 %v2878
    %3699 = vmatprep.subr.mxu0 0.0
    %3700 = vmatpush1.msra.mxu0 %v2879
    %3701 = vmatprep.subr.mxu0 0.0
    %3702 = vmatpush1.msra.mxu0 %v2880
    %3703 = vmatprep.subr.mxu0 0.0
    %3704 = vmatpush1.msra.mxu0 %v2881
    %3705 = vmatprep.subr.mxu0 0.0
    %3706 = vmatpush1.msra.mxu0 %v2882
    %3707 = vmatprep.subr.mxu0 0.0
    %3708 = vmatpush1.msra.mxu0 %v2883
    %3709 = vmatprep.subr.mxu0 0.0
    %3710 = vmatpush1.msra.mxu0 %v2884
    %3711 = vmatprep.subr.mxu0 0.0
    %3712 = vmatpush1.msra.mxu0 %v2885
    %3713 = vmatprep.subr.mxu0 0.0
    %3714 = vmatpush1.msra.mxu0 %v2886
    %3715 = vmatprep.subr.mxu0 0.0
    %3716 = vmatpush1.msra.mxu0 %v2887
    %3717 = vmatprep.subr.mxu0 0.0
    %3718 = vmatpush1.msra.mxu0 %v2888
    %3719 = vmatprep.subr.mxu0 0.0
    %3720 = vmatpush1.msra.mxu0 %v2889
    %3721 = vmatprep.subr.mxu0 0.0
    %3722 = vmatpush1.msra.mxu0 %v2890
    %3723 = vmatprep.subr.mxu0 0.0
    %3724 = vmatpush1.msra.mxu0 %v2891
    %3725 = vmatprep.subr.mxu0 0.0
    %3726 = vmatpush1.msra.mxu0 %v2892
    %3727 = vmatprep.subr.mxu0 0.0
    %3728 = vmatpush1.msra.mxu0 %v2893
    %3729 = vmatprep.subr.mxu0 0.0
    %3730 = vmatpush1.msra.mxu0 %v2894
    %3731 = vmatprep.subr.mxu0 0.0
    %3732 = vmatpush1.msra.mxu0 %v2895
    %3733 = vmatprep.subr.mxu0 0.0
    %3734 = vmatpush1.msra.mxu0 %v2896
    %3735 = vmatprep.subr.mxu0 0.0
    %3736 = vmatpush1.msra.mxu0 %v2897
    %3737 = vmatprep.mubr.f32.mxu0 %v869
    %3738 = vmatmul.mubr.f32.gmra.mrb[0].mxu0 %v861
    %v3739 = vpop.f32.mrb[0].mxu0
    %v3740 = vadd.f32 %v3671, %v3739
    %v3741 = vpop.f32.mrb[0].mxu0
    %3742 = vdwg.mxu0
    %3743 = vmatprep.subr.mxu0 0.0
    %3744 = vmatpush1.msra.mxu0 %v2898
    %3745 = vmatprep.subr.mxu0 0.0
    %3746 = vmatpush1.msra.mxu0 %v2899
    %3747 = vmatprep.subr.mxu0 0.0
    %3748 = vmatpush1.msra.mxu0 %v2900
    %3749 = vmatprep.subr.mxu0 0.0
    %3750 = vmatpush1.msra.mxu0 %v2901
    %3751 = vmatprep.subr.mxu0 0.0
    %3752 = vmatpush1.msra.mxu0 %v2902
    %3753 = vmatprep.subr.mxu0 0.0
    %3754 = vmatpush1.msra.mxu0 %v2903
    %3755 = vmatprep.subr.mxu0 0.0
    %3756 = vmatpush1.msra.mxu0 %v2904
    %3757 = vmatprep.subr.mxu0 0.0
    %3758 = vmatpush1.msra.mxu0 %v2905
    %3759 = vmatprep.subr.mxu0 0.0
    %3760 = vmatpush1.msra.mxu0 %v2906
    %3761 = vmatprep.subr.mxu0 0.0
    %3762 = vmatpush1.msra.mxu0 %v2907
    %3763 = vmatprep.subr.mxu0 0.0
    %3764 = vmatpush1.msra.mxu0 %v2908
    %3765 = vmatprep.subr.mxu0 0.0
    %3766 = vmatpush1.msra.mxu0 %v2909
    %3767 = vmatprep.subr.mxu0 0.0
    %3768 = vmatpush1.msra.mxu0 %v2910
    %3769 = vmatprep.subr.mxu0 0.0
    %3770 = vmatpush1.msra.mxu0 %v2911
    %3771 = vmatprep.subr.mxu0 0.0
    %3772 = vmatpush1.msra.mxu0 %v2912
    %3773 = vmatprep.subr.mxu0 0.0
    %3774 = vmatpush1.msra.mxu0 %v2913
    %3775 = vmatprep.subr.mxu0 0.0
    %3776 = vmatpush1.msra.mxu0 %v2914
    %3777 = vmatprep.subr.mxu0 0.0
    %3778 = vmatpush1.msra.mxu0 %v2915
    %3779 = vmatprep.subr.mxu0 0.0
    %3780 = vmatpush1.msra.mxu0 %v2916
    %3781 = vmatprep.subr.mxu0 0.0
    %3782 = vmatpush1.msra.mxu0 %v2917
    %3783 = vmatprep.subr.mxu0 0.0
    %3784 = vmatpush1.msra.mxu0 %v2918
    %3785 = vmatprep.subr.mxu0 0.0
    %3786 = vmatpush1.msra.mxu0 %v2919
    %3787 = vmatprep.subr.mxu0 0.0
    %3788 = vmatpush1.msra.mxu0 %v2920
    %3789 = vmatprep.subr.mxu0 0.0
    %3790 = vmatpush1.msra.mxu0 %v2921
    %3791 = vmatprep.subr.mxu0 0.0
    %3792 = vmatpush1.msra.mxu0 %v2922
    %3793 = vmatprep.subr.mxu0 0.0
    %3794 = vmatpush1.msra.mxu0 %v2923
    %3795 = vmatprep.subr.mxu0 0.0
    %3796 = vmatpush1.msra.mxu0 %v2924
    %3797 = vmatprep.subr.mxu0 0.0
    %3798 = vmatpush1.msra.mxu0 %v2925
    %3799 = vmatprep.subr.mxu0 0.0
    %3800 = vmatpush1.msra.mxu0 %v2926
    %3801 = vmatprep.subr.mxu0 0.0
    %3802 = vmatpush1.msra.mxu0 %v2927
    %3803 = vmatprep.subr.mxu0 0.0
    %3804 = vmatpush1.msra.mxu0 %v2928
    %3805 = vmatprep.subr.mxu0 0.0
    %3806 = vmatpush1.msra.mxu0 %v2929
    %3807 = vmatprep.mubr.f32.mxu0 %v870
    %3808 = vmatmul.mubr.f32.gmra.mrb[0].mxu0 %v868
    %v3809 = vpop.f32.mrb[0].mxu0
    %v3810 = vadd.f32 %v3740, %v3809
    %v3811 = vpop.f32.mrb[0].mxu0
    %3812 = vdwg.mxu0
    %3813 = vmatprep.subr.mxu0 0.0
    %3814 = vmatpush1.msra.mxu0 %v2930
    %3815 = vmatprep.subr.mxu0 0.0
    %3816 = vmatpush1.msra.mxu0 %v2931
    %3817 = vmatprep.subr.mxu0 0.0
    %3818 = vmatpush1.msra.mxu0 %v2932
    %3819 = vmatprep.subr.mxu0 0.0
    %3820 = vmatpush1.msra.mxu0 %v2933
    %3821 = vmatprep.subr.mxu0 0.0
    %3822 = vmatpush1.msra.mxu0 %v2934
    %3823 = vmatprep.subr.mxu0 0.0
    %3824 = vmatpush1.msra.mxu0 %v2935
    %3825 = vmatprep.subr.mxu0 0.0
    %3826 = vmatpush1.msra.mxu0 %v2936
    %3827 = vmatprep.subr.mxu0 0.0
    %3828 = vmatpush1.msra.mxu0 %v2937
    %3829 = vmatprep.subr.mxu0 0.0
    %3830 = vmatpush1.msra.mxu0 %v2938
    %3831 = vmatprep.subr.mxu0 0.0
    %3832 = vmatpush1.msra.mxu0 %v2939
    %3833 = vmatprep.subr.mxu0 0.0
    %3834 = vmatpush1.msra.mxu0 %v2940
    %3835 = vmatprep.subr.mxu0 0.0
    %3836 = vmatpush1.msra.mxu0 %v2941
    %3837 = vmatprep.subr.mxu0 0.0
    %3838 = vmatpush1.msra.mxu0 %v2942
    %3839 = vmatprep.subr.mxu0 0.0
    %3840 = vmatpush1.msra.mxu0 %v2943
    %3841 = vmatprep.subr.mxu0 0.0
    %3842 = vmatpush1.msra.mxu0 %v2944
    %3843 = vmatprep.subr.mxu0 0.0
    %3844 = vmatpush1.msra.mxu0 %v2945
    %3845 = vmatprep.subr.mxu0 0.0
    %3846 = vmatpush1.msra.mxu0 %v2946
    %3847 = vmatprep.subr.mxu0 0.0
    %3848 = vmatpush1.msra.mxu0 %v2947
    %3849 = vmatprep.subr.mxu0 0.0
    %3850 = vmatpush1.msra.mxu0 %v2948
    %3851 = vmatprep.subr.mxu0 0.0
    %3852 = vmatpush1.msra.mxu0 %v2949
    %3853 = vmatprep.subr.mxu0 0.0
    %3854 = vmatpush1.msra.mxu0 %v2950
    %3855 = vmatprep.subr.mxu0 0.0
    %3856 = vmatpush1.msra.mxu0 %v2951
    %3857 = vmatprep.subr.mxu0 0.0
    %3858 = vmatpush1.msra.mxu0 %v2952
    %3859 = vmatprep.subr.mxu0 0.0
    %3860 = vmatpush1.msra.mxu0 %v2953
    %3861 = vmatprep.subr.mxu0 0.0
    %3862 = vmatpush1.msra.mxu0 %v2954
    %3863 = vmatprep.subr.mxu0 0.0
    %3864 = vmatpush1.msra.mxu0 %v2955
    %3865 = vmatprep.subr.mxu0 0.0
    %3866 = vmatpush1.msra.mxu0 %v2956
    %3867 = vmatprep.subr.mxu0 0.0
    %3868 = vmatpush1.msra.mxu0 %v2957
    %3869 = vmatprep.subr.mxu0 0.0
    %3870 = vmatpush1.msra.mxu0 %v2958
    %3871 = vmatprep.subr.mxu0 0.0
    %3872 = vmatpush1.msra.mxu0 %v2959
    %3873 = vmatprep.subr.mxu0 0.0
    %3874 = vmatpush1.msra.mxu0 %v2960
    %3875 = vmatprep.subr.mxu0 0.0
    %3876 = vmatpush1.msra.mxu0 %v2961
    %3877 = vmatprep.mubr.f32.mxu0 %v886
    %3878 = vmatmul.mubr.f32.gmra.mrb[0].mxu0 %v878
    %v3879 = vpop.f32.mrb[0].mxu0
    %v3880 = vadd.f32 %v3810, %v3879
    %v3881 = vpop.f32.mrb[0].mxu0
    %3882 = vdwg.mxu0
    %3883 = vmatprep.subr.mxu0 0.0
    %3884 = vmatpush1.msra.mxu0 %v2962
    %3885 = vmatprep.subr.mxu0 0.0
    %3886 = vmatpush1.msra.mxu0 %v2963
    %3887 = vmatprep.subr.mxu0 0.0
    %3888 = vmatpush1.msra.mxu0 %v2964
    %3889 = vmatprep.subr.mxu0 0.0
    %3890 = vmatpush1.msra.mxu0 %v2965
    %3891 = vmatprep.subr.mxu0 0.0
    %3892 = vmatpush1.msra.mxu0 %v2966
    %3893 = vmatprep.subr.mxu0 0.0
    %3894 = vmatpush1.msra.mxu0 %v2967
    %3895 = vmatprep.subr.mxu0 0.0
    %3896 = vmatpush1.msra.mxu0 %v2968
    %3897 = vmatprep.subr.mxu0 0.0
    %3898 = vmatpush1.msra.mxu0 %v2969
    %3899 = vmatprep.subr.mxu0 0.0
    %3900 = vmatpush1.msra.mxu0 %v2970
    %3901 = vmatprep.subr.mxu0 0.0
    %3902 = vmatpush1.msra.mxu0 %v2971
    %3903 = vmatprep.subr.mxu0 0.0
    %3904 = vmatpush1.msra.mxu0 %v2972
    %3905 = vmatprep.subr.mxu0 0.0
    %3906 = vmatpush1.msra.mxu0 %v2973
    %3907 = vmatprep.subr.mxu0 0.0
    %3908 = vmatpush1.msra.mxu0 %v2974
    %3909 = vmatprep.subr.mxu0 0.0
    %3910 = vmatpush1.msra.mxu0 %v2975
    %3911 = vmatprep.subr.mxu0 0.0
    %3912 = vmatpush1.msra.mxu0 %v2976
    %3913 = vmatprep.subr.mxu0 0.0
    %3914 = vmatpush1.msra.mxu0 %v2977
    %3915 = vmatprep.subr.mxu0 0.0
    %3916 = vmatpush1.msra.mxu0 %v2978
    %3917 = vmatprep.subr.mxu0 0.0
    %3918 = vmatpush1.msra.mxu0 %v2979
    %3919 = vmatprep.subr.mxu0 0.0
    %3920 = vmatpush1.msra.mxu0 %v2980
    %3921 = vmatprep.subr.mxu0 0.0
    %3922 = vmatpush1.msra.mxu0 %v2981
    %3923 = vmatprep.subr.mxu0 0.0
    %3924 = vmatpush1.msra.mxu0 %v2982
    %3925 = vmatprep.subr.mxu0 0.0
    %3926 = vmatpush1.msra.mxu0 %v2983
    %3927 = vmatprep.subr.mxu0 0.0
    %3928 = vmatpush1.msra.mxu0 %v2984
    %3929 = vmatprep.subr.mxu0 0.0
    %3930 = vmatpush1.msra.mxu0 %v2985
    %3931 = vmatprep.subr.mxu0 0.0
    %3932 = vmatpush1.msra.mxu0 %v2986
    %3933 = vmatprep.subr.mxu0 0.0
    %3934 = vmatpush1.msra.mxu0 %v2987
    %3935 = vmatprep.subr.mxu0 0.0
    %3936 = vmatpush1.msra.mxu0 %v2988
    %3937 = vmatprep.subr.mxu0 0.0
    %3938 = vmatpush1.msra.mxu0 %v2989
    %3939 = vmatprep.subr.mxu0 0.0
    %3940 = vmatpush1.msra.mxu0 %v2990
    %3941 = vmatprep.subr.mxu0 0.0
    %3942 = vmatpush1.msra.mxu0 %v2991
    %3943 = vmatprep.subr.mxu0 0.0
    %3944 = vmatpush1.msra.mxu0 %v2992
    %3945 = vmatprep.subr.mxu0 0.0
    %3946 = vmatpush1.msra.mxu0 %v2993
    %3947 = vmatprep.mubr.f32.mxu0 %v887
    %3948 = vmatmul.mubr.f32.gmra.mrb[0].mxu0 %v885
    %v3949 = vpop.f32.mrb[0].mxu0
    %v3950 = vadd.f32 %v3880, %v3949
    %v3951 = vpop.f32.mrb[0].mxu0
    %3952 = vdwg.mxu0
    %3953 = vmatprep.subr.mxu0 0.0
    %3954 = vmatpush1.msra.mxu0 %v2994
    %3955 = vmatprep.subr.mxu0 0.0
    %3956 = vmatpush1.msra.mxu0 %v2995
    %3957 = vmatprep.subr.mxu0 0.0
    %3958 = vmatpush1.msra.mxu0 %v2996
    %3959 = vmatprep.subr.mxu0 0.0
    %3960 = vmatpush1.msra.mxu0 %v2997
    %3961 = vmatprep.subr.mxu0 0.0
    %3962 = vmatpush1.msra.mxu0 %v2998
    %3963 = vmatprep.subr.mxu0 0.0
    %3964 = vmatpush1.msra.mxu0 %v2999
    %3965 = vmatprep.subr.mxu0 0.0
    %3966 = vmatpush1.msra.mxu0 %v3000
    %3967 = vmatprep.subr.mxu0 0.0
    %3968 = vmatpush1.msra.mxu0 %v3001
    %3969 = vmatprep.subr.mxu0 0.0
    %3970 = vmatpush1.msra.mxu0 %v3002
    %3971 = vmatprep.subr.mxu0 0.0
    %3972 = vmatpush1.msra.mxu0 %v3003
    %3973 = vmatprep.subr.mxu0 0.0
    %3974 = vmatpush1.msra.mxu0 %v3004
    %3975 = vmatprep.subr.mxu0 0.0
    %3976 = vmatpush1.msra.mxu0 %v3005
    %3977 = vmatprep.subr.mxu0 0.0
    %3978 = vmatpush1.msra.mxu0 %v3006
    %3979 = vmatprep.subr.mxu0 0.0
    %3980 = vmatpush1.msra.mxu0 %v3007
    %3981 = vmatprep.subr.mxu0 0.0
    %3982 = vmatpush1.msra.mxu0 %v3008
    %3983 = vmatprep.subr.mxu0 0.0
    %3984 = vmatpush1.msra.mxu0 %v3009
    %3985 = vmatprep.subr.mxu0 0.0
    %3986 = vmatpush1.msra.mxu0 %v3010
    %3987 = vmatprep.subr.mxu0 0.0
    %3988 = vmatpush1.msra.mxu0 %v3011
    %3989 = vmatprep.subr.mxu0 0.0
    %3990 = vmatpush1.msra.mxu0 %v3012
    %3991 = vmatprep.subr.mxu0 0.0
    %3992 = vmatpush1.msra.mxu0 %v3013
    %3993 = vmatprep.subr.mxu0 0.0
    %3994 = vmatpush1.msra.mxu0 %v3014
    %3995 = vmatprep.subr.mxu0 0.0
    %3996 = vmatpush1.msra.mxu0 %v3015
    %3997 = vmatprep.subr.mxu0 0.0
    %3998 = vmatpush1.msra.mxu0 %v3016
    %3999 = vmatprep.subr.mxu0 0.0
    %4000 = vmatpush1.msra.mxu0 %v3017
    %4001 = vmatprep.subr.mxu0 0.0
    %4002 = vmatpush1.msra.mxu0 %v3018
    %4003 = vmatprep.subr.mxu0 0.0
    %4004 = vmatpush1.msra.mxu0 %v3019
    %4005 = vmatprep.subr.mxu0 0.0
    %4006 = vmatpush1.msra.mxu0 %v3020
    %4007 = vmatprep.subr.mxu0 0.0
    %4008 = vmatpush1.msra.mxu0 %v3021
    %4009 = vmatprep.subr.mxu0 0.0
    %4010 = vmatpush1.msra.mxu0 %v3022
    %4011 = vmatprep.subr.mxu0 0.0
    %4012 = vmatpush1.msra.mxu0 %v3023
    %4013 = vmatprep.subr.mxu0 0.0
    %4014 = vmatpush1.msra.mxu0 %v3024
    %4015 = vmatprep.subr.mxu0 0.0
    %4016 = vmatpush1.msra.mxu0 %v3025
    %4017 = vmatprep.mubr.f32.mxu0 %v903
    %4018 = vmatmul.mubr.f32.gmra.mrb[0].mxu0 %v895
    %v4019 = vpop.f32.mrb[0].mxu0
    %v4020 = vadd.f32 %v3950, %v4019
    %v4021 = vpop.f32.mrb[0].mxu0
    %4022 = vdwg.mxu0
    %4023 = vmatprep.subr.mxu0 0.0
    %4024 = vmatpush1.msra.mxu0 %v3026
    %4025 = vmatprep.subr.mxu0 0.0
    %4026 = vmatpush1.msra.mxu0 %v3027
    %4027 = vmatprep.subr.mxu0 0.0
    %4028 = vmatpush1.msra.mxu0 %v3028
    %4029 = vmatprep.subr.mxu0 0.0
    %4030 = vmatpush1.msra.mxu0 %v3029
    %4031 = vmatprep.subr.mxu0 0.0
    %4032 = vmatpush1.msra.mxu0 %v3030
    %4033 = vmatprep.subr.mxu0 0.0
    %4034 = vmatpush1.msra.mxu0 %v3031
    %4035 = vmatprep.subr.mxu0 0.0
    %4036 = vmatpush1.msra.mxu0 %v3032
    %4037 = vmatprep.subr.mxu0 0.0
    %4038 = vmatpush1.msra.mxu0 %v3033
    %4039 = vmatprep.subr.mxu0 0.0
    %4040 = vmatpush1.msra.mxu0 %v3034
    %4041 = vmatprep.subr.mxu0 0.0
    %4042 = vmatpush1.msra.mxu0 %v3035
    %4043 = vmatprep.subr.mxu0 0.0
    %4044 = vmatpush1.msra.mxu0 %v3036
    %4045 = vmatprep.subr.mxu0 0.0
    %4046 = vmatpush1.msra.mxu0 %v3037
    %4047 = vmatprep.subr.mxu0 0.0
    %4048 = vmatpush1.msra.mxu0 %v3038
    %4049 = vmatprep.subr.mxu0 0.0
    %4050 = vmatpush1.msra.mxu0 %v3039
    %4051 = vmatprep.subr.mxu0 0.0
    %4052 = vmatpush1.msra.mxu0 %v3040
    %4053 = vmatprep.subr.mxu0 0.0
    %4054 = vmatpush1.msra.mxu0 %v3041
    %4055 = vmatprep.subr.mxu0 0.0
    %4056 = vmatpush1.msra.mxu0 %v3042
    %4057 = vmatprep.subr.mxu0 0.0
    %4058 = vmatpush1.msra.mxu0 %v3043
    %4059 = vmatprep.subr.mxu0 0.0
    %4060 = vmatpush1.msra.mxu0 %v3044
    %4061 = vmatprep.subr.mxu0 0.0
    %4062 = vmatpush1.msra.mxu0 %v3045
    %4063 = vmatprep.subr.mxu0 0.0
    %4064 = vmatpush1.msra.mxu0 %v3046
    %4065 = vmatprep.subr.mxu0 0.0
    %4066 = vmatpush1.msra.mxu0 %v3047
    %4067 = vmatprep.subr.mxu0 0.0
    %4068 = vmatpush1.msra.mxu0 %v3048
    %4069 = vmatprep.subr.mxu0 0.0
    %4070 = vmatpush1.msra.mxu0 %v3049
    %4071 = vmatprep.subr.mxu0 0.0
    %4072 = vmatpush1.msra.mxu0 %v3050
    %4073 = vmatprep.subr.mxu0 0.0
    %4074 = vmatpush1.msra.mxu0 %v3051
    %4075 = vmatprep.subr.mxu0 0.0
    %4076 = vmatpush1.msra.mxu0 %v3052
    %4077 = vmatprep.subr.mxu0 0.0
    %4078 = vmatpush1.msra.mxu0 %v3053
    %4079 = vmatprep.subr.mxu0 0.0
    %4080 = vmatpush1.msra.mxu0 %v3054
    %4081 = vmatprep.subr.mxu0 0.0
    %4082 = vmatpush1.msra.mxu0 %v3055
    %4083 = vmatprep.subr.mxu0 0.0
    %4084 = vmatpush1.msra.mxu0 %v3056
    %4085 = vmatprep.subr.mxu0 0.0
    %4086 = vmatpush1.msra.mxu0 %v3057
    %4087 = vmatprep.mubr.f32.mxu0 %v904
    %4088 = vmatmul.mubr.f32.gmra.mrb[0].mxu0 %v902
    %v4089 = vpop.f32.mrb[0].mxu0
    %v4090 = vadd.f32 %v4020, %v4089
    %v4091 = vpop.f32.mrb[0].mxu0
    %4092 = vdwg.mxu0
    %4093 = vmatprep.subr.mxu0 0.0
    %4094 = vmatpush1.msra.mxu0 %v3058
    %4095 = vmatprep.subr.mxu0 0.0
    %4096 = vmatpush1.msra.mxu0 %v3059
    %4097 = vmatprep.subr.mxu0 0.0
    %4098 = vmatpush1.msra.mxu0 %v3060
    %4099 = vmatprep.subr.mxu0 0.0
    %4100 = vmatpush1.msra.mxu0 %v3061
    %4101 = vmatprep.subr.mxu0 0.0
    %4102 = vmatpush1.msra.mxu0 %v3062
    %4103 = vmatprep.subr.mxu0 0.0
    %4104 = vmatpush1.msra.mxu0 %v3063
    %4105 = vmatprep.subr.mxu0 0.0
    %4106 = vmatpush1.msra.mxu0 %v3064
    %4107 = vmatprep.subr.mxu0 0.0
    %4108 = vmatpush1.msra.mxu0 %v3065
    %4109 = vmatprep.subr.mxu0 0.0
    %4110 = vmatpush1.msra.mxu0 %v3066
    %4111 = vmatprep.subr.mxu0 0.0
    %4112 = vmatpush1.msra.mxu0 %v3067
    %4113 = vmatprep.subr.mxu0 0.0
    %4114 = vmatpush1.msra.mxu0 %v3068
    %4115 = vmatprep.subr.mxu0 0.0
    %4116 = vmatpush1.msra.mxu0 %v3069
    %4117 = vmatprep.subr.mxu0 0.0
    %4118 = vmatpush1.msra.mxu0 %v3070
    %4119 = vmatprep.subr.mxu0 0.0
    %4120 = vmatpush1.msra.mxu0 %v3071
    %4121 = vmatprep.subr.mxu0 0.0
    %4122 = vmatpush1.msra.mxu0 %v3072
    %4123 = vmatprep.subr.mxu0 0.0
    %4124 = vmatpush1.msra.mxu0 %v3073
    %4125 = vmatprep.subr.mxu0 0.0
    %4126 = vmatpush1.msra.mxu0 %v3074
    %4127 = vmatprep.subr.mxu0 0.0
    %4128 = vmatpush1.msra.mxu0 %v3075
    %4129 = vmatprep.subr.mxu0 0.0
    %4130 = vmatpush1.msra.mxu0 %v3076
    %4131 = vmatprep.subr.mxu0 0.0
    %4132 = vmatpush1.msra.mxu0 %v3077
    %4133 = vmatprep.subr.mxu0 0.0
    %4134 = vmatpush1.msra.mxu0 %v3078
    %4135 = vmatprep.subr.mxu0 0.0
    %4136 = vmatpush1.msra.mxu0 %v3079
    %4137 = vmatprep.subr.mxu0 0.0
    %4138 = vmatpush1.msra.mxu0 %v3080
    %4139 = vmatprep.subr.mxu0 0.0
    %4140 = vmatpush1.msra.mxu0 %v3081
    %4141 = vmatprep.subr.mxu0 0.0
    %4142 = vmatpush1.msra.mxu0 %v3082
    %4143 = vmatprep.subr.mxu0 0.0
    %4144 = vmatpush1.msra.mxu0 %v3083
    %4145 = vmatprep.subr.mxu0 0.0
    %4146 = vmatpush1.msra.mxu0 %v3084
    %4147 = vmatprep.subr.mxu0 0.0
    %4148 = vmatpush1.msra.mxu0 %v3085
    %4149 = vmatprep.subr.mxu0 0.0
    %4150 = vmatpush1.msra.mxu0 %v3086
    %4151 = vmatprep.subr.mxu0 0.0
    %4152 = vmatpush1.msra.mxu0 %v3087
    %4153 = vmatprep.subr.mxu0 0.0
    %4154 = vmatpush1.msra.mxu0 %v3088
    %4155 = vmatprep.subr.mxu0 0.0
    %4156 = vmatpush1.msra.mxu0 %v3089
    %4157 = vmatprep.mubr.f32.mxu0 %v920
    %4158 = vmatmul.mubr.f32.gmra.mrb[0].mxu0 %v912
    %v4159 = vpop.f32.mrb[0].mxu0
    %v4160 = vadd.f32 %v4090, %v4159
    %v4161 = vpop.f32.mrb[0].mxu0
    %4162 = vdwg.mxu0
    %4163 = vmatprep.subr.mxu0 0.0
    %4164 = vmatpush1.msra.mxu0 %v3090
    %4165 = vmatprep.subr.mxu0 0.0
    %4166 = vmatpush1.msra.mxu0 %v3091
    %4167 = vmatprep.subr.mxu0 0.0
    %4168 = vmatpush1.msra.mxu0 %v3092
    %4169 = vmatprep.subr.mxu0 0.0
    %4170 = vmatpush1.msra.mxu0 %v3093
    %4171 = vmatprep.subr.mxu0 0.0
    %4172 = vmatpush1.msra.mxu0 %v3094
    %4173 = vmatprep.subr.mxu0 0.0
    %4174 = vmatpush1.msra.mxu0 %v3095
    %4175 = vmatprep.subr.mxu0 0.0
    %4176 = vmatpush1.msra.mxu0 %v3096
    %4177 = vmatprep.subr.mxu0 0.0
    %4178 = vmatpush1.msra.mxu0 %v3097
    %4179 = vmatprep.subr.mxu0 0.0
    %4180 = vmatpush1.msra.mxu0 %v3098
    %4181 = vmatprep.subr.mxu0 0.0
    %4182 = vmatpush1.msra.mxu0 %v3099
    %4183 = vmatprep.subr.mxu0 0.0
    %4184 = vmatpush1.msra.mxu0 %v3100
    %4185 = vmatprep.subr.mxu0 0.0
    %4186 = vmatpush1.msra.mxu0 %v3101
    %4187 = vmatprep.subr.mxu0 0.0
    %4188 = vmatpush1.msra.mxu0 %v3102
    %4189 = vmatprep.subr.mxu0 0.0
    %4190 = vmatpush1.msra.mxu0 %v3103
    %4191 = vmatprep.subr.mxu0 0.0
    %4192 = vmatpush1.msra.mxu0 %v3104
    %4193 = vmatprep.subr.mxu0 0.0
    %4194 = vmatpush1.msra.mxu0 %v3105
    %4195 = vmatprep.subr.mxu0 0.0
    %4196 = vmatpush1.msra.mxu0 %v3106
    %4197 = vmatprep.subr.mxu0 0.0
    %4198 = vmatpush1.msra.mxu0 %v3107
    %4199 = vmatprep.subr.mxu0 0.0
    %4200 = vmatpush1.msra.mxu0 %v3108
    %4201 = vmatprep.subr.mxu0 0.0
    %4202 = vmatpush1.msra.mxu0 %v3109
    %4203 = vmatprep.subr.mxu0 0.0
    %4204 = vmatpush1.msra.mxu0 %v3110
    %4205 = vmatprep.subr.mxu0 0.0
    %4206 = vmatpush1.msra.mxu0 %v3111
    %4207 = vmatprep.subr.mxu0 0.0
    %4208 = vmatpush1.msra.mxu0 %v3112
    %4209 = vmatprep.subr.mxu0 0.0
    %4210 = vmatpush1.msra.mxu0 %v3113
    %4211 = vmatprep.subr.mxu0 0.0
    %4212 = vmatpush1.msra.mxu0 %v3114
    %4213 = vmatprep.subr.mxu0 0.0
    %4214 = vmatpush1.msra.mxu0 %v3115
    %4215 = vmatprep.subr.mxu0 0.0
    %4216 = vmatpush1.msra.mxu0 %v3116
    %4217 = vmatprep.subr.mxu0 0.0
    %4218 = vmatpush1.msra.mxu0 %v3117
    %4219 = vmatprep.subr.mxu0 0.0
    %4220 = vmatpush1.msra.mxu0 %v3118
    %4221 = vmatprep.subr.mxu0 0.0
    %4222 = vmatpush1.msra.mxu0 %v3119
    %4223 = vmatprep.subr.mxu0 0.0
    %4224 = vmatpush1.msra.mxu0 %v3120
    %4225 = vmatprep.subr.mxu0 0.0
    %4226 = vmatpush1.msra.mxu0 %v3121
    %4227 = vmatprep.mubr.f32.mxu0 %v921
    %4228 = vmatmul.mubr.f32.gmra.mrb[0].mxu0 %v919
    %v4229 = vpop.f32.mrb[0].mxu0
    %v4230 = vadd.f32 %v4160, %v4229
    %v4231 = vpop.f32.mrb[0].mxu0
    %4232 = vdwg.mxu0
    %4233 = vmatprep.subr.mxu0 0.0
    %4234 = vmatpush1.msra.mxu0 %v3122
    %4235 = vmatprep.subr.mxu0 0.0
    %4236 = vmatpush1.msra.mxu0 %v3123
    %4237 = vmatprep.subr.mxu0 0.0
    %4238 = vmatpush1.msra.mxu0 %v3124
    %4239 = vmatprep.subr.mxu0 0.0
    %4240 = vmatpush1.msra.mxu0 %v3125
    %4241 = vmatprep.subr.mxu0 0.0
    %4242 = vmatpush1.msra.mxu0 %v3126
    %4243 = vmatprep.subr.mxu0 0.0
    %4244 = vmatpush1.msra.mxu0 %v3127
    %4245 = vmatprep.subr.mxu0 0.0
    %4246 = vmatpush1.msra.mxu0 %v3128
    %4247 = vmatprep.subr.mxu0 0.0
    %4248 = vmatpush1.msra.mxu0 %v3129
    %4249 = vmatprep.subr.mxu0 0.0
    %4250 = vmatpush1.msra.mxu0 %v3130
    %4251 = vmatprep.subr.mxu0 0.0
    %4252 = vmatpush1.msra.mxu0 %v3131
    %4253 = vmatprep.subr.mxu0 0.0
    %4254 = vmatpush1.msra.mxu0 %v3132
    %4255 = vmatprep.subr.mxu0 0.0
    %4256 = vmatpush1.msra.mxu0 %v3133
    %4257 = vmatprep.subr.mxu0 0.0
    %4258 = vmatpush1.msra.mxu0 %v3134
    %4259 = vmatprep.subr.mxu0 0.0
    %4260 = vmatpush1.msra.mxu0 %v3135
    %4261 = vmatprep.subr.mxu0 0.0
    %4262 = vmatpush1.msra.mxu0 %v3136
    %4263 = vmatprep.subr.mxu0 0.0
    %4264 = vmatpush1.msra.mxu0 %v3137
    %4265 = vmatprep.subr.mxu0 0.0
    %4266 = vmatpush1.msra.mxu0 %v3138
    %4267 = vmatprep.subr.mxu0 0.0
    %4268 = vmatpush1.msra.mxu0 %v3139
    %4269 = vmatprep.subr.mxu0 0.0
    %4270 = vmatpush1.msra.mxu0 %v3140
    %4271 = vmatprep.subr.mxu0 0.0
    %4272 = vmatpush1.msra.mxu0 %v3141
    %4273 = vmatprep.subr.mxu0 0.0
    %4274 = vmatpush1.msra.mxu0 %v3142
    %4275 = vmatprep.subr.mxu0 0.0
    %4276 = vmatpush1.msra.mxu0 %v3143
    %4277 = vmatprep.subr.mxu0 0.0
    %4278 = vmatpush1.msra.mxu0 %v3144
    %4279 = vmatprep.subr.mxu0 0.0
    %4280 = vmatpush1.msra.mxu0 %v3145
    %4281 = vmatprep.subr.mxu0 0.0
    %4282 = vmatpush1.msra.mxu0 %v3146
    %4283 = vmatprep.subr.mxu0 0.0
    %4284 = vmatpush1.msra.mxu0 %v3147
    %4285 = vmatprep.subr.mxu0 0.0
    %4286 = vmatpush1.msra.mxu0 %v3148
    %4287 = vmatprep.subr.mxu0 0.0
    %4288 = vmatpush1.msra.mxu0 %v3149
    %4289 = vmatprep.subr.mxu0 0.0
    %4290 = vmatpush1.msra.mxu0 %v3150
    %4291 = vmatprep.subr.mxu0 0.0
    %4292 = vmatpush1.msra.mxu0 %v3151
    %4293 = vmatprep.subr.mxu0 0.0
    %4294 = vmatpush1.msra.mxu0 %v3152
    %4295 = vmatprep.subr.mxu0 0.0
    %4296 = vmatpush1.msra.mxu0 %v3153
    %4297 = vmatprep.mubr.f32.mxu0 %v937
    %4298 = vmatmul.mubr.f32.gmra.mrb[0].mxu0 %v929
    %v4299 = vpop.f32.mrb[0].mxu0
    %v4300 = vadd.f32 %v4230, %v4299
    %v4301 = vpop.f32.mrb[0].mxu0
    %4302 = vdwg.mxu0
    %4303 = vmatprep.subr.mxu0 0.0
    %4304 = vmatpush1.msra.mxu0 %v3154
    %4305 = vmatprep.subr.mxu0 0.0
    %4306 = vmatpush1.msra.mxu0 %v3155
    %4307 = vmatprep.subr.mxu0 0.0
    %4308 = vmatpush1.msra.mxu0 %v3156
    %4309 = vmatprep.subr.mxu0 0.0
    %4310 = vmatpush1.msra.mxu0 %v3157
    %4311 = vmatprep.subr.mxu0 0.0
    %4312 = vmatpush1.msra.mxu0 %v3158
    %4313 = vmatprep.subr.mxu0 0.0
    %4314 = vmatpush1.msra.mxu0 %v3159
    %4315 = vmatprep.subr.mxu0 0.0
    %4316 = vmatpush1.msra.mxu0 %v3160
    %4317 = vmatprep.subr.mxu0 0.0
    %4318 = vmatpush1.msra.mxu0 %v3161
    %4319 = vmatprep.subr.mxu0 0.0
    %4320 = vmatpush1.msra.mxu0 %v3162
    %4321 = vmatprep.subr.mxu0 0.0
    %4322 = vmatpush1.msra.mxu0 %v3163
    %4323 = vmatprep.subr.mxu0 0.0
    %4324 = vmatpush1.msra.mxu0 %v3164
    %4325 = vmatprep.subr.mxu0 0.0
    %4326 = vmatpush1.msra.mxu0 %v3165
    %4327 = vmatprep.subr.mxu0 0.0
    %4328 = vmatpush1.msra.mxu0 %v3166
    %4329 = vmatprep.subr.mxu0 0.0
    %4330 = vmatpush1.msra.mxu0 %v3167
    %4331 = vmatprep.subr.mxu0 0.0
    %4332 = vmatpush1.msra.mxu0 %v3168
    %4333 = vmatprep.subr.mxu0 0.0
    %4334 = vmatpush1.msra.mxu0 %v3169
    %4335 = vmatprep.subr.mxu0 0.0
    %4336 = vmatpush1.msra.mxu0 %v3170
    %4337 = vmatprep.subr.mxu0 0.0
    %4338 = vmatpush1.msra.mxu0 %v3171
    %4339 = vmatprep.subr.mxu0 0.0
    %4340 = vmatpush1.msra.mxu0 %v3172
    %4341 = vmatprep.subr.mxu0 0.0
    %4342 = vmatpush1.msra.mxu0 %v3173
    %4343 = vmatprep.subr.mxu0 0.0
    %4344 = vmatpush1.msra.mxu0 %v3174
    %4345 = vmatprep.subr.mxu0 0.0
    %4346 = vmatpush1.msra.mxu0 %v3175
    %4347 = vmatprep.subr.mxu0 0.0
    %4348 = vmatpush1.msra.mxu0 %v3176
    %4349 = vmatprep.subr.mxu0 0.0
    %4350 = vmatpush1.msra.mxu0 %v3177
    %4351 = vmatprep.subr.mxu0 0.0
    %4352 = vmatpush1.msra.mxu0 %v3178
    %4353 = vmatprep.subr.mxu0 0.0
    %4354 = vmatpush1.msra.mxu0 %v3179
    %4355 = vmatprep.subr.mxu0 0.0
    %4356 = vmatpush1.msra.mxu0 %v3180
    %4357 = vmatprep.subr.mxu0 0.0
    %4358 = vmatpush1.msra.mxu0 %v3181
    %4359 = vmatprep.subr.mxu0 0.0
    %4360 = vmatpush1.msra.mxu0 %v3182
    %4361 = vmatprep.subr.mxu0 0.0
    %4362 = vmatpush1.msra.mxu0 %v3183
    %4363 = vmatprep.subr.mxu0 0.0
    %4364 = vmatpush1.msra.mxu0 %v3184
    %4365 = vmatprep.subr.mxu0 0.0
    %4366 = vmatpush1.msra.mxu0 %v3185
    %4367 = vmatprep.mubr.f32.mxu0 %v938
    %4368 = vmatmul.mubr.f32.gmra.mrb[0].mxu0 %v936
    %v4369 = vpop.f32.mrb[0].mxu0
    %v4370 = vadd.f32 %v4300, %v4369
    %v4371 = vpop.f32.mrb[0].mxu0
    %4372 = vdwg.mxu0
    %4373 = vmatprep.subr.mxu0 0.0
    %4374 = vmatpush1.msra.mxu0 %v3186
    %4375 = vmatprep.subr.mxu0 0.0
    %4376 = vmatpush1.msra.mxu0 %v3187
    %4377 = vmatprep.subr.mxu0 0.0
    %4378 = vmatpush1.msra.mxu0 %v3188
    %4379 = vmatprep.subr.mxu0 0.0
    %4380 = vmatpush1.msra.mxu0 %v3189
    %4381 = vmatprep.subr.mxu0 0.0
    %4382 = vmatpush1.msra.mxu0 %v3190
    %4383 = vmatprep.subr.mxu0 0.0
    %4384 = vmatpush1.msra.mxu0 %v3191
    %4385 = vmatprep.subr.mxu0 0.0
    %4386 = vmatpush1.msra.mxu0 %v3192
    %4387 = vmatprep.subr.mxu0 0.0
    %4388 = vmatpush1.msra.mxu0 %v3193
    %4389 = vmatprep.subr.mxu0 0.0
    %4390 = vmatpush1.msra.mxu0 %v3194
    %4391 = vmatprep.subr.mxu0 0.0
    %4392 = vmatpush1.msra.mxu0 %v3195
    %4393 = vmatprep.subr.mxu0 0.0
    %4394 = vmatpush1.msra.mxu0 %v3196
    %4395 = vmatprep.subr.mxu0 0.0
    %4396 = vmatpush1.msra.mxu0 %v3197
    %4397 = vmatprep.subr.mxu0 0.0
    %4398 = vmatpush1.msra.mxu0 %v3198
    %4399 = vmatprep.subr.mxu0 0.0
    %4400 = vmatpush1.msra.mxu0 %v3199
    %4401 = vmatprep.subr.mxu0 0.0
    %4402 = vmatpush1.msra.mxu0 %v3200
    %4403 = vmatprep.subr.mxu0 0.0
    %4404 = vmatpush1.msra.mxu0 %v3201
    %4405 = vmatprep.subr.mxu0 0.0
    %4406 = vmatpush1.msra.mxu0 %v3202
    %4407 = vmatprep.subr.mxu0 0.0
    %4408 = vmatpush1.msra.mxu0 %v3203
    %4409 = vmatprep.subr.mxu0 0.0
    %4410 = vmatpush1.msra.mxu0 %v3204
    %4411 = vmatprep.subr.mxu0 0.0
    %4412 = vmatpush1.msra.mxu0 %v3205
    %4413 = vmatprep.subr.mxu0 0.0
    %4414 = vmatpush1.msra.mxu0 %v3206
    %4415 = vmatprep.subr.mxu0 0.0
    %4416 = vmatpush1.msra.mxu0 %v3207
    %4417 = vmatprep.subr.mxu0 0.0
    %4418 = vmatpush1.msra.mxu0 %v3208
    %4419 = vmatprep.subr.mxu0 0.0
    %4420 = vmatpush1.msra.mxu0 %v3209
    %4421 = vmatprep.subr.mxu0 0.0
    %4422 = vmatpush1.msra.mxu0 %v3210
    %4423 = vmatprep.subr.mxu0 0.0
    %4424 = vmatpush1.msra.mxu0 %v3211
    %4425 = vmatprep.subr.mxu0 0.0
    %4426 = vmatpush1.msra.mxu0 %v3212
    %4427 = vmatprep.subr.mxu0 0.0
    %4428 = vmatpush1.msra.mxu0 %v3213
    %4429 = vmatprep.subr.mxu0 0.0
    %4430 = vmatpush1.msra.mxu0 %v3214
    %4431 = vmatprep.subr.mxu0 0.0
    %4432 = vmatpush1.msra.mxu0 %v3215
    %4433 = vmatprep.subr.mxu0 0.0
    %4434 = vmatpush1.msra.mxu0 %v3216
    %4435 = vmatprep.subr.mxu0 0.0
    %4436 = vmatpush1.msra.mxu0 %v3217
    %4437 = vmatprep.mubr.f32.mxu0 %v954
    %4438 = vmatmul.mubr.f32.gmra.mrb[0].mxu0 %v946
    %v4439 = vpop.f32.mrb[0].mxu0
    %v4440 = vadd.f32 %v4370, %v4439
    %v4441 = vpop.f32.mrb[0].mxu0
    %4442 = vdwg.mxu0
    %4443 = vmatprep.subr.mxu0 0.0
    %4444 = vmatpush1.msra.mxu0 %v3218
    %4445 = vmatprep.subr.mxu0 0.0
    %4446 = vmatpush1.msra.mxu0 %v3219
    %4447 = vmatprep.subr.mxu0 0.0
    %4448 = vmatpush1.msra.mxu0 %v3220
    %4449 = vmatprep.subr.mxu0 0.0
    %4450 = vmatpush1.msra.mxu0 %v3221
    %4451 = vmatprep.subr.mxu0 0.0
    %4452 = vmatpush1.msra.mxu0 %v3222
    %4453 = vmatprep.subr.mxu0 0.0
    %4454 = vmatpush1.msra.mxu0 %v3223
    %4455 = vmatprep.subr.mxu0 0.0
    %4456 = vmatpush1.msra.mxu0 %v3224
    %4457 = vmatprep.subr.mxu0 0.0
    %4458 = vmatpush1.msra.mxu0 %v3225
    %4459 = vmatprep.subr.mxu0 0.0
    %4460 = vmatpush1.msra.mxu0 %v3226
    %4461 = vmatprep.subr.mxu0 0.0
    %4462 = vmatpush1.msra.mxu0 %v3227
    %4463 = vmatprep.subr.mxu0 0.0
    %4464 = vmatpush1.msra.mxu0 %v3228
    %4465 = vmatprep.subr.mxu0 0.0
    %4466 = vmatpush1.msra.mxu0 %v3229
    %4467 = vmatprep.subr.mxu0 0.0
    %4468 = vmatpush1.msra.mxu0 %v3230
    %4469 = vmatprep.subr.mxu0 0.0
    %4470 = vmatpush1.msra.mxu0 %v3231
    %4471 = vmatprep.subr.mxu0 0.0
    %4472 = vmatpush1.msra.mxu0 %v3232
    %4473 = vmatprep.subr.mxu0 0.0
    %4474 = vmatpush1.msra.mxu0 %v3233
    %4475 = vmatprep.subr.mxu0 0.0
    %4476 = vmatpush1.msra.mxu0 %v3234
    %4477 = vmatprep.subr.mxu0 0.0
    %4478 = vmatpush1.msra.mxu0 %v3235
    %4479 = vmatprep.subr.mxu0 0.0
    %4480 = vmatpush1.msra.mxu0 %v3236
    %4481 = vmatprep.subr.mxu0 0.0
    %4482 = vmatpush1.msra.mxu0 %v3237
    %4483 = vmatprep.subr.mxu0 0.0
    %4484 = vmatpush1.msra.mxu0 %v3238
    %4485 = vmatprep.subr.mxu0 0.0
    %4486 = vmatpush1.msra.mxu0 %v3239
    %4487 = vmatprep.subr.mxu0 0.0
    %4488 = vmatpush1.msra.mxu0 %v3240
    %4489 = vmatprep.subr.mxu0 0.0
    %4490 = vmatpush1.msra.mxu0 %v3241
    %4491 = vmatprep.subr.mxu0 0.0
    %4492 = vmatpush1.msra.mxu0 %v3242
    %4493 = vmatprep.subr.mxu0 0.0
    %4494 = vmatpush1.msra.mxu0 %v3243
    %4495 = vmatprep.subr.mxu0 0.0
    %4496 = vmatpush1.msra.mxu0 %v3244
    %4497 = vmatprep.subr.mxu0 0.0
    %4498 = vmatpush1.msra.mxu0 %v3245
    %4499 = vmatprep.subr.mxu0 0.0
    %4500 = vmatpush1.msra.mxu0 %v3246
    %4501 = vmatprep.subr.mxu0 0.0
    %4502 = vmatpush1.msra.mxu0 %v3247
    %4503 = vmatprep.subr.mxu0 0.0
    %4504 = vmatpush1.msra.mxu0 %v3248
    %4505 = vmatprep.subr.mxu0 0.0
    %4506 = vmatpush1.msra.mxu0 %v3249
    %4507 = vmatprep.mubr.f32.mxu0 %v955
    %4508 = vmatmul.mubr.f32.gmra.mrb[0].mxu0 %v953
    %v4509 = vpop.f32.mrb[0].mxu0
    %v4510 = vadd.f32 %v4440, %v4509
    %v4511 = vpop.f32.mrb[0].mxu0
    %4512 = vdwg.mxu0
    %4513 = vmatprep.subr.mxu0 0.0
    %4514 = vmatpush1.msra.mxu0 %v3250
    %4515 = vmatprep.subr.mxu0 0.0
    %4516 = vmatpush1.msra.mxu0 %v3251
    %4517 = vmatprep.subr.mxu0 0.0
    %4518 = vmatpush1.msra.mxu0 %v3252
    %4519 = vmatprep.subr.mxu0 0.0
    %4520 = vmatpush1.msra.mxu0 %v3253
    %4521 = vmatprep.subr.mxu0 0.0
    %4522 = vmatpush1.msra.mxu0 %v3254
    %4523 = vmatprep.subr.mxu0 0.0
    %4524 = vmatpush1.msra.mxu0 %v3255
    %4525 = vmatprep.subr.mxu0 0.0
    %4526 = vmatpush1.msra.mxu0 %v3256
    %4527 = vmatprep.subr.mxu0 0.0
    %4528 = vmatpush1.msra.mxu0 %v3257
    %4529 = vmatprep.subr.mxu0 0.0
    %4530 = vmatpush1.msra.mxu0 %v3258
    %4531 = vmatprep.subr.mxu0 0.0
    %4532 = vmatpush1.msra.mxu0 %v3259
    %4533 = vmatprep.subr.mxu0 0.0
    %4534 = vmatpush1.msra.mxu0 %v3260
    %4535 = vmatprep.subr.mxu0 0.0
    %4536 = vmatpush1.msra.mxu0 %v3261
    %4537 = vmatprep.subr.mxu0 0.0
    %4538 = vmatpush1.msra.mxu0 %v3262
    %4539 = vmatprep.subr.mxu0 0.0
    %4540 = vmatpush1.msra.mxu0 %v3263
    %4541 = vmatprep.subr.mxu0 0.0
    %4542 = vmatpush1.msra.mxu0 %v3264
    %4543 = vmatprep.subr.mxu0 0.0
    %4544 = vmatpush1.msra.mxu0 %v3265
    %4545 = vmatprep.subr.mxu0 0.0
    %4546 = vmatpush1.msra.mxu0 %v3266
    %4547 = vmatprep.subr.mxu0 0.0
    %4548 = vmatpush1.msra.mxu0 %v3267
    %4549 = vmatprep.subr.mxu0 0.0
    %4550 = vmatpush1.msra.mxu0 %v3268
    %4551 = vmatprep.subr.mxu0 0.0
    %4552 = vmatpush1.msra.mxu0 %v3269
    %4553 = vmatprep.subr.mxu0 0.0
    %4554 = vmatpush1.msra.mxu0 %v3270
    %4555 = vmatprep.subr.mxu0 0.0
    %4556 = vmatpush1.msra.mxu0 %v3271
    %4557 = vmatprep.subr.mxu0 0.0
    %4558 = vmatpush1.msra.mxu0 %v3272
    %4559 = vmatprep.subr.mxu0 0.0
    %4560 = vmatpush1.msra.mxu0 %v3273
    %4561 = vmatprep.subr.mxu0 0.0
    %4562 = vmatpush1.msra.mxu0 %v3274
    %4563 = vmatprep.subr.mxu0 0.0
    %4564 = vmatpush1.msra.mxu0 %v3275
    %4565 = vmatprep.subr.mxu0 0.0
    %4566 = vmatpush1.msra.mxu0 %v3276
    %4567 = vmatprep.subr.mxu0 0.0
    %4568 = vmatpush1.msra.mxu0 %v3277
    %4569 = vmatprep.subr.mxu0 0.0
    %4570 = vmatpush1.msra.mxu0 %v3278
    %4571 = vmatprep.subr.mxu0 0.0
    %4572 = vmatpush1.msra.mxu0 %v3279
    %4573 = vmatprep.subr.mxu0 0.0
    %4574 = vmatpush1.msra.mxu0 %v3280
    %4575 = vmatprep.subr.mxu0 0.0
    %4576 = vmatpush1.msra.mxu0 %v3281
    %4577 = vmatprep.mubr.f32.mxu0 %v971
    %4578 = vmatmul.mubr.f32.gmra.mrb[0].mxu0 %v963
    %v4579 = vpop.f32.mrb[0].mxu0
    %v4580 = vadd.f32 %v4510, %v4579
    %v4581 = vpop.f32.mrb[0].mxu0
    %4582 = vdwg.mxu0
    %4583 = vmatprep.subr.mxu0 0.0
    %4584 = vmatpush1.msra.mxu0 %v3282
    %4585 = vmatprep.subr.mxu0 0.0
    %4586 = vmatpush1.msra.mxu0 %v3283
    %4587 = vmatprep.subr.mxu0 0.0
    %4588 = vmatpush1.msra.mxu0 %v3284
    %4589 = vmatprep.subr.mxu0 0.0
    %4590 = vmatpush1.msra.mxu0 %v3285
    %4591 = vmatprep.subr.mxu0 0.0
    %4592 = vmatpush1.msra.mxu0 %v3286
    %4593 = vmatprep.subr.mxu0 0.0
    %4594 = vmatpush1.msra.mxu0 %v3287
    %4595 = vmatprep.subr.mxu0 0.0
    %4596 = vmatpush1.msra.mxu0 %v3288
    %4597 = vmatprep.subr.mxu0 0.0
    %4598 = vmatpush1.msra.mxu0 %v3289
    %4599 = vmatprep.subr.mxu0 0.0
    %4600 = vmatpush1.msra.mxu0 %v3290
    %4601 = vmatprep.subr.mxu0 0.0
    %4602 = vmatpush1.msra.mxu0 %v3291
    %4603 = vmatprep.subr.mxu0 0.0
    %4604 = vmatpush1.msra.mxu0 %v3292
    %4605 = vmatprep.subr.mxu0 0.0
    %4606 = vmatpush1.msra.mxu0 %v3293
    %4607 = vmatprep.subr.mxu0 0.0
    %4608 = vmatpush1.msra.mxu0 %v3294
    %4609 = vmatprep.subr.mxu0 0.0
    %4610 = vmatpush1.msra.mxu0 %v3295
    %4611 = vmatprep.subr.mxu0 0.0
    %4612 = vmatpush1.msra.mxu0 %v3296
    %4613 = vmatprep.subr.mxu0 0.0
    %4614 = vmatpush1.msra.mxu0 %v3297
    %4615 = vmatprep.subr.mxu0 0.0
    %4616 = vmatpush1.msra.mxu0 %v3298
    %4617 = vmatprep.subr.mxu0 0.0
    %4618 = vmatpush1.msra.mxu0 %v3299
    %4619 = vmatprep.subr.mxu0 0.0
    %4620 = vmatpush1.msra.mxu0 %v3300
    %4621 = vmatprep.subr.mxu0 0.0
    %4622 = vmatpush1.msra.mxu0 %v3301
    %4623 = vmatprep.subr.mxu0 0.0
    %4624 = vmatpush1.msra.mxu0 %v3302
    %4625 = vmatprep.subr.mxu0 0.0
    %4626 = vmatpush1.msra.mxu0 %v3303
    %4627 = vmatprep.subr.mxu0 0.0
    %4628 = vmatpush1.msra.mxu0 %v3304
    %4629 = vmatprep.subr.mxu0 0.0
    %4630 = vmatpush1.msra.mxu0 %v3305
    %4631 = vmatprep.subr.mxu0 0.0
    %4632 = vmatpush1.msra.mxu0 %v3306
    %4633 = vmatprep.subr.mxu0 0.0
    %4634 = vmatpush1.msra.mxu0 %v3307
    %4635 = vmatprep.subr.mxu0 0.0
    %4636 = vmatpush1.msra.mxu0 %v3308
    %4637 = vmatprep.subr.mxu0 0.0
    %4638 = vmatpush1.msra.mxu0 %v3309
    %4639 = vmatprep.subr.mxu0 0.0
    %4640 = vmatpush1.msra.mxu0 %v3310
    %4641 = vmatprep.subr.mxu0 0.0
    %4642 = vmatpush1.msra.mxu0 %v3311
    %4643 = vmatprep.subr.mxu0 0.0
    %4644 = vmatpush1.msra.mxu0 %v3312
    %4645 = vmatprep.subr.mxu0 0.0
    %4646 = vmatpush1.msra.mxu0 %v3313
    %4647 = vmatprep.mubr.f32.mxu0 %v972
    %4648 = vmatmul.mubr.f32.gmra.mrb[0].mxu0 %v970
    %v4649 = vpop.f32.mrb[0].mxu0
    %v4650 = vadd.f32 %v4580, %v4649
    %v4651 = vpop.f32.mrb[0].mxu0
    %4652 = vdwg.mxu0
    %4653 = vmatprep.subr.mxu0 0.0
    %4654 = vmatpush1.msra.mxu0 %v3314
    %4655 = vmatprep.subr.mxu0 0.0
    %4656 = vmatpush1.msra.mxu0 %v3315
    %4657 = vmatprep.subr.mxu0 0.0
    %4658 = vmatpush1.msra.mxu0 %v3316
    %4659 = vmatprep.subr.mxu0 0.0
    %4660 = vmatpush1.msra.mxu0 %v3317
    %4661 = vmatprep.subr.mxu0 0.0
    %4662 = vmatpush1.msra.mxu0 %v3318
    %4663 = vmatprep.subr.mxu0 0.0
    %4664 = vmatpush1.msra.mxu0 %v3319
    %4665 = vmatprep.subr.mxu0 0.0
    %4666 = vmatpush1.msra.mxu0 %v3320
    %4667 = vmatprep.subr.mxu0 0.0
    %4668 = vmatpush1.msra.mxu0 %v3321
    %4669 = vmatprep.subr.mxu0 0.0
    %4670 = vmatpush1.msra.mxu0 %v3322
    %4671 = vmatprep.subr.mxu0 0.0
    %4672 = vmatpush1.msra.mxu0 %v3323
    %4673 = vmatprep.subr.mxu0 0.0
    %4674 = vmatpush1.msra.mxu0 %v3324
    %4675 = vmatprep.subr.mxu0 0.0
    %4676 = vmatpush1.msra.mxu0 %v3325
    %4677 = vmatprep.subr.mxu0 0.0
    %4678 = vmatpush1.msra.mxu0 %v3326
    %4679 = vmatprep.subr.mxu0 0.0
    %4680 = vmatpush1.msra.mxu0 %v3327
    %4681 = vmatprep.subr.mxu0 0.0
    %4682 = vmatpush1.msra.mxu0 %v3328
    %4683 = vmatprep.subr.mxu0 0.0
    %4684 = vmatpush1.msra.mxu0 %v3329
    %4685 = vmatprep.subr.mxu0 0.0
    %4686 = vmatpush1.msra.mxu0 %v3330
    %4687 = vmatprep.subr.mxu0 0.0
    %4688 = vmatpush1.msra.mxu0 %v3331
    %4689 = vmatprep.subr.mxu0 0.0
    %4690 = vmatpush1.msra.mxu0 %v3332
    %4691 = vmatprep.subr.mxu0 0.0
    %4692 = vmatpush1.msra.mxu0 %v3333
    %4693 = vmatprep.subr.mxu0 0.0
    %4694 = vmatpush1.msra.mxu0 %v3334
    %4695 = vmatprep.subr.mxu0 0.0
    %4696 = vmatpush1.msra.mxu0 %v3335
    %4697 = vmatprep.subr.mxu0 0.0
    %4698 = vmatpush1.msra.mxu0 %v3336
    %4699 = vmatprep.subr.mxu0 0.0
    %4700 = vmatpush1.msra.mxu0 %v3337
    %4701 = vmatprep.subr.mxu0 0.0
    %4702 = vmatpush1.msra.mxu0 %v3338
    %4703 = vmatprep.subr.mxu0 0.0
    %4704 = vmatpush1.msra.mxu0 %v3339
    %4705 = vmatprep.subr.mxu0 0.0
    %4706 = vmatpush1.msra.mxu0 %v3340
    %4707 = vmatprep.subr.mxu0 0.0
    %4708 = vmatpush1.msra.mxu0 %v3341
    %4709 = vmatprep.subr.mxu0 0.0
    %4710 = vmatpush1.msra.mxu0 %v3342
    %4711 = vmatprep.subr.mxu0 0.0
    %4712 = vmatpush1.msra.mxu0 %v3343
    %4713 = vmatprep.subr.mxu0 0.0
    %4714 = vmatpush1.msra.mxu0 %v3344
    %4715 = vmatprep.subr.mxu0 0.0
    %4716 = vmatpush1.msra.mxu0 %v3345
    %4717 = vmatprep.mubr.f32.mxu0 %v988
    %4718 = vmatmul.mubr.f32.gmra.mrb[0].mxu0 %v980
    %v4719 = vpop.f32.mrb[0].mxu0
    %v4720 = vadd.f32 %v4650, %v4719
    %v4721 = vpop.f32.mrb[0].mxu0
    %4722 = vdwg.mxu0
    %4723 = vmatprep.subr.mxu0 0.0
    %4724 = vmatpush1.msra.mxu0 %v3346
    %4725 = vmatprep.subr.mxu0 0.0
    %4726 = vmatpush1.msra.mxu0 %v3347
    %4727 = vmatprep.subr.mxu0 0.0
    %4728 = vmatpush1.msra.mxu0 %v3348
    %4729 = vmatprep.subr.mxu0 0.0
    %4730 = vmatpush1.msra.mxu0 %v3349
    %4731 = vmatprep.subr.mxu0 0.0
    %4732 = vmatpush1.msra.mxu0 %v3350
    %4733 = vmatprep.subr.mxu0 0.0
    %4734 = vmatpush1.msra.mxu0 %v3351
    %4735 = vmatprep.subr.mxu0 0.0
    %4736 = vmatpush1.msra.mxu0 %v3352
    %4737 = vmatprep.subr.mxu0 0.0
    %4738 = vmatpush1.msra.mxu0 %v3353
    %4739 = vmatprep.subr.mxu0 0.0
    %4740 = vmatpush1.msra.mxu0 %v3354
    %4741 = vmatprep.subr.mxu0 0.0
    %4742 = vmatpush1.msra.mxu0 %v3355
    %4743 = vmatprep.subr.mxu0 0.0
    %4744 = vmatpush1.msra.mxu0 %v3356
    %4745 = vmatprep.subr.mxu0 0.0
    %4746 = vmatpush1.msra.mxu0 %v3357
    %4747 = vmatprep.subr.mxu0 0.0
    %4748 = vmatpush1.msra.mxu0 %v3358
    %4749 = vmatprep.subr.mxu0 0.0
    %4750 = vmatpush1.msra.mxu0 %v3359
    %4751 = vmatprep.subr.mxu0 0.0
    %4752 = vmatpush1.msra.mxu0 %v3360
    %4753 = vmatprep.subr.mxu0 0.0
    %4754 = vmatpush1.msra.mxu0 %v3361
    %4755 = vmatprep.subr.mxu0 0.0
    %4756 = vmatpush1.msra.mxu0 %v3362
    %4757 = vmatprep.subr.mxu0 0.0
    %4758 = vmatpush1.msra.mxu0 %v3363
    %4759 = vmatprep.subr.mxu0 0.0
    %4760 = vmatpush1.msra.mxu0 %v3364
    %4761 = vmatprep.subr.mxu0 0.0
    %4762 = vmatpush1.msra.mxu0 %v3365
    %4763 = vmatprep.subr.mxu0 0.0
    %4764 = vmatpush1.msra.mxu0 %v3366
    %4765 = vmatprep.subr.mxu0 0.0
    %4766 = vmatpush1.msra.mxu0 %v3367
    %4767 = vmatprep.subr.mxu0 0.0
    %4768 = vmatpush1.msra.mxu0 %v3368
    %4769 = vmatprep.subr.mxu0 0.0
    %4770 = vmatpush1.msra.mxu0 %v3369
    %4771 = vmatprep.subr.mxu0 0.0
    %4772 = vmatpush1.msra.mxu0 %v3370
    %4773 = vmatprep.subr.mxu0 0.0
    %4774 = vmatpush1.msra.mxu0 %v3371
    %4775 = vmatprep.subr.mxu0 0.0
    %4776 = vmatpush1.msra.mxu0 %v3372
    %4777 = vmatprep.subr.mxu0 0.0
    %4778 = vmatpush1.msra.mxu0 %v3373
    %4779 = vmatprep.subr.mxu0 0.0
    %4780 = vmatpush1.msra.mxu0 %v3374
    %4781 = vmatprep.subr.mxu0 0.0
    %4782 = vmatpush1.msra.mxu0 %v3375
    %4783 = vmatprep.subr.mxu0 0.0
    %4784 = vmatpush1.msra.mxu0 %v3376
    %4785 = vmatprep.subr.mxu0 0.0
    %4786 = vmatpush1.msra.mxu0 %v3377
    %4787 = vmatprep.mubr.f32.mxu0 %v989
    %4788 = vmatmul.mubr.f32.gmra.mrb[0].mxu0 %v987
    %v4789 = vpop.f32.mrb[0].mxu0
    %v4790 = vadd.f32 %v4720, %v4789
    %v4791 = vpop.f32.mrb[0].mxu0
    %4792 = vdwg.mxu0
    %4793 = vmatprep.subr.mxu0 0.0
    %4794 = vmatpush1.msra.mxu0 %v3378
    %4795 = vmatprep.subr.mxu0 0.0
    %4796 = vmatpush1.msra.mxu0 %v3379
    %4797 = vmatprep.subr.mxu0 0.0
    %4798 = vmatpush1.msra.mxu0 %v3380
    %4799 = vmatprep.subr.mxu0 0.0
    %4800 = vmatpush1.msra.mxu0 %v3381
    %4801 = vmatprep.subr.mxu0 0.0
    %4802 = vmatpush1.msra.mxu0 %v3382
    %4803 = vmatprep.subr.mxu0 0.0
    %4804 = vmatpush1.msra.mxu0 %v3383
    %4805 = vmatprep.subr.mxu0 0.0
    %4806 = vmatpush1.msra.mxu0 %v3384
    %4807 = vmatprep.subr.mxu0 0.0
    %4808 = vmatpush1.msra.mxu0 %v3385
    %4809 = vmatprep.subr.mxu0 0.0
    %4810 = vmatpush1.msra.mxu0 %v3386
    %4811 = vmatprep.subr.mxu0 0.0
    %4812 = vmatpush1.msra.mxu0 %v3387
    %4813 = vmatprep.subr.mxu0 0.0
    %4814 = vmatpush1.msra.mxu0 %v3388
    %4815 = vmatprep.subr.mxu0 0.0
    %4816 = vmatpush1.msra.mxu0 %v3389
    %4817 = vmatprep.subr.mxu0 0.0
    %4818 = vmatpush1.msra.mxu0 %v3390
    %4819 = vmatprep.subr.mxu0 0.0
    %4820 = vmatpush1.msra.mxu0 %v3391
    %4821 = vmatprep.subr.mxu0 0.0
    %4822 = vmatpush1.msra.mxu0 %v3392
    %4823 = vmatprep.subr.mxu0 0.0
    %4824 = vmatpush1.msra.mxu0 %v3393
    %4825 = vmatprep.subr.mxu0 0.0
    %4826 = vmatpush1.msra.mxu0 %v3394
    %4827 = vmatprep.subr.mxu0 0.0
    %4828 = vmatpush1.msra.mxu0 %v3395
    %4829 = vmatprep.subr.mxu0 0.0
    %4830 = vmatpush1.msra.mxu0 %v3396
    %4831 = vmatprep.subr.mxu0 0.0
    %4832 = vmatpush1.msra.mxu0 %v3397
    %4833 = vmatprep.subr.mxu0 0.0
    %4834 = vmatpush1.msra.mxu0 %v3398
    %4835 = vmatprep.subr.mxu0 0.0
    %4836 = vmatpush1.msra.mxu0 %v3399
    %4837 = vmatprep.subr.mxu0 0.0
    %4838 = vmatpush1.msra.mxu0 %v3400
    %4839 = vmatprep.subr.mxu0 0.0
    %4840 = vmatpush1.msra.mxu0 %v3401
    %4841 = vmatprep.subr.mxu0 0.0
    %4842 = vmatpush1.msra.mxu0 %v3402
    %4843 = vmatprep.subr.mxu0 0.0
    %4844 = vmatpush1.msra.mxu0 %v3403
    %4845 = vmatprep.subr.mxu0 0.0
    %4846 = vmatpush1.msra.mxu0 %v3404
    %4847 = vmatprep.subr.mxu0 0.0
    %4848 = vmatpush1.msra.mxu0 %v3405
    %4849 = vmatprep.subr.mxu0 0.0
    %4850 = vmatpush1.msra.mxu0 %v3406
    %4851 = vmatprep.subr.mxu0 0.0
    %4852 = vmatpush1.msra.mxu0 %v3407
    %4853 = vmatprep.subr.mxu0 0.0
    %4854 = vmatpush1.msra.mxu0 %v3408
    %4855 = vmatprep.subr.mxu0 0.0
    %4856 = vmatpush1.msra.mxu0 %v3409
    %4857 = vmatprep.mubr.f32.mxu0 %v1005
    %4858 = vmatmul.mubr.f32.gmra.mrb[0].mxu0 %v997
    %v4859 = vpop.f32.mrb[0].mxu0
    %v4860 = vadd.f32 %v4790, %v4859
    %v4861 = vpop.f32.mrb[0].mxu0
    %4862 = vdwg.mxu0
    %4863 = vmatprep.subr.mxu0 0.0
    %4864 = vmatpush1.msra.mxu0 %v3410
    %4865 = vmatprep.subr.mxu0 0.0
    %4866 = vmatpush1.msra.mxu0 %v3411
    %4867 = vmatprep.subr.mxu0 0.0
    %4868 = vmatpush1.msra.mxu0 %v3412
    %4869 = vmatprep.subr.mxu0 0.0
    %4870 = vmatpush1.msra.mxu0 %v3413
    %4871 = vmatprep.subr.mxu0 0.0
    %4872 = vmatpush1.msra.mxu0 %v3414
    %4873 = vmatprep.subr.mxu0 0.0
    %4874 = vmatpush1.msra.mxu0 %v3415
    %4875 = vmatprep.subr.mxu0 0.0
    %4876 = vmatpush1.msra.mxu0 %v3416
    %4877 = vmatprep.subr.mxu0 0.0
    %4878 = vmatpush1.msra.mxu0 %v3417
    %4879 = vmatprep.subr.mxu0 0.0
    %4880 = vmatpush1.msra.mxu0 %v3418
    %4881 = vmatprep.subr.mxu0 0.0
    %4882 = vmatpush1.msra.mxu0 %v3419
    %4883 = vmatprep.subr.mxu0 0.0
    %4884 = vmatpush1.msra.mxu0 %v3420
    %4885 = vmatprep.subr.mxu0 0.0
    %4886 = vmatpush1.msra.mxu0 %v3421
    %4887 = vmatprep.subr.mxu0 0.0
    %4888 = vmatpush1.msra.mxu0 %v3422
    %4889 = vmatprep.subr.mxu0 0.0
    %4890 = vmatpush1.msra.mxu0 %v3423
    %4891 = vmatprep.subr.mxu0 0.0
    %4892 = vmatpush1.msra.mxu0 %v3424
    %4893 = vmatprep.subr.mxu0 0.0
    %4894 = vmatpush1.msra.mxu0 %v3425
    %4895 = vmatprep.subr.mxu0 0.0
    %4896 = vmatpush1.msra.mxu0 %v3426
    %4897 = vmatprep.subr.mxu0 0.0
    %4898 = vmatpush1.msra.mxu0 %v3427
    %4899 = vmatprep.subr.mxu0 0.0
    %4900 = vmatpush1.msra.mxu0 %v3428
    %4901 = vmatprep.subr.mxu0 0.0
    %4902 = vmatpush1.msra.mxu0 %v3429
    %4903 = vmatprep.subr.mxu0 0.0
    %4904 = vmatpush1.msra.mxu0 %v3430
    %4905 = vmatprep.subr.mxu0 0.0
    %4906 = vmatpush1.msra.mxu0 %v3431
    %4907 = vmatprep.subr.mxu0 0.0
    %4908 = vmatpush1.msra.mxu0 %v3432
    %4909 = vmatprep.subr.mxu0 0.0
    %4910 = vmatpush1.msra.mxu0 %v3433
    %4911 = vmatprep.subr.mxu0 0.0
    %4912 = vmatpush1.msra.mxu0 %v3434
    %4913 = vmatprep.subr.mxu0 0.0
    %4914 = vmatpush1.msra.mxu0 %v3435
    %4915 = vmatprep.subr.mxu0 0.0
    %4916 = vmatpush1.msra.mxu0 %v3436
    %4917 = vmatprep.subr.mxu0 0.0
    %4918 = vmatpush1.msra.mxu0 %v3437
    %4919 = vmatprep.subr.mxu0 0.0
    %4920 = vmatpush1.msra.mxu0 %v3438
    %4921 = vmatprep.subr.mxu0 0.0
    %4922 = vmatpush1.msra.mxu0 %v3439
    %4923 = vmatprep.subr.mxu0 0.0
    %4924 = vmatpush1.msra.mxu0 %v3440
    %4925 = vmatprep.subr.mxu0 0.0
    %4926 = vmatpush1.msra.mxu0 %v3441
    %4927 = vmatprep.mubr.f32.mxu0 %v1006
    %4928 = vmatmul.mubr.f32.gmra.mrb[0].mxu0 %v1004
    %v4929 = vpop.f32.mrb[0].mxu0
    %v4930 = vadd.f32 %v4860, %v4929
    %v4931 = vpop.f32.mrb[0].mxu0
    %4932 = vdwg.mxu0
    %4933 = vmatprep.subr.mxu0 0.0
    %4934 = vmatpush1.msra.mxu0 %v3442
    %4935 = vmatprep.subr.mxu0 0.0
    %4936 = vmatpush1.msra.mxu0 %v3443
    %4937 = vmatprep.subr.mxu0 0.0
    %4938 = vmatpush1.msra.mxu0 %v3444
    %4939 = vmatprep.subr.mxu0 0.0
    %4940 = vmatpush1.msra.mxu0 %v3445
    %4941 = vmatprep.subr.mxu0 0.0
    %4942 = vmatpush1.msra.mxu0 %v3446
    %4943 = vmatprep.subr.mxu0 0.0
    %4944 = vmatpush1.msra.mxu0 %v3447
    %4945 = vmatprep.subr.mxu0 0.0
    %4946 = vmatpush1.msra.mxu0 %v3448
    %4947 = vmatprep.subr.mxu0 0.0
    %4948 = vmatpush1.msra.mxu0 %v3449
    %4949 = vmatprep.subr.mxu0 0.0
    %4950 = vmatpush1.msra.mxu0 %v3450
    %4951 = vmatprep.subr.mxu0 0.0
    %4952 = vmatpush1.msra.mxu0 %v3451
    %4953 = vmatprep.subr.mxu0 0.0
    %4954 = vmatpush1.msra.mxu0 %v3452
    %4955 = vmatprep.subr.mxu0 0.0
    %4956 = vmatpush1.msra.mxu0 %v3453
    %4957 = vmatprep.subr.mxu0 0.0
    %4958 = vmatpush1.msra.mxu0 %v3454
    %4959 = vmatprep.subr.mxu0 0.0
    %4960 = vmatpush1.msra.mxu0 %v3455
    %4961 = vmatprep.subr.mxu0 0.0
    %4962 = vmatpush1.msra.mxu0 %v3456
    %4963 = vmatprep.subr.mxu0 0.0
    %4964 = vmatpush1.msra.mxu0 %v3457
    %4965 = vmatprep.subr.mxu0 0.0
    %4966 = vmatpush1.msra.mxu0 %v3458
    %4967 = vmatprep.subr.mxu0 0.0
    %4968 = vmatpush1.msra.mxu0 %v3459
    %4969 = vmatprep.subr.mxu0 0.0
    %4970 = vmatpush1.msra.mxu0 %v3460
    %4971 = vmatprep.subr.mxu0 0.0
    %4972 = vmatpush1.msra.mxu0 %v3461
    %4973 = vmatprep.subr.mxu0 0.0
    %4974 = vmatpush1.msra.mxu0 %v3462
    %4975 = vmatprep.subr.mxu0 0.0
    %4976 = vmatpush1.msra.mxu0 %v3463
    %4977 = vmatprep.subr.mxu0 0.0
    %4978 = vmatpush1.msra.mxu0 %v3464
    %4979 = vmatprep.subr.mxu0 0.0
    %4980 = vmatpush1.msra.mxu0 %v3465
    %4981 = vmatprep.subr.mxu0 0.0
    %4982 = vmatpush1.msra.mxu0 %v3466
    %4983 = vmatprep.subr.mxu0 0.0
    %4984 = vmatpush1.msra.mxu0 %v3467
    %4985 = vmatprep.subr.mxu0 0.0
    %4986 = vmatpush1.msra.mxu0 %v3468
    %4987 = vmatprep.subr.mxu0 0.0
    %4988 = vmatpush1.msra.mxu0 %v3469
    %4989 = vmatprep.subr.mxu0 0.0
    %4990 = vmatpush1.msra.mxu0 %v3470
    %4991 = vmatprep.subr.mxu0 0.0
    %4992 = vmatpush1.msra.mxu0 %v3471
    %4993 = vmatprep.subr.mxu0 0.0
    %4994 = vmatpush1.msra.mxu0 %v3472
    %4995 = vmatprep.subr.mxu0 0.0
    %4996 = vmatpush1.msra.mxu0 %v3473
    %4997 = vmatprep.mubr.f32.mxu0 %v1022
    %4998 = vmatmul.mubr.f32.gmra.mrb[0].mxu0 %v1014
    %v4999 = vpop.f32.mrb[0].mxu0
    %v5000 = vadd.f32 %v4930, %v4999
    %v5001 = vpop.f32.mrb[0].mxu0
    %5002 = vdwg.mxu0
    %5003 = vmatprep.subr.mxu0 0.0
    %5004 = vmatpush1.msra.mxu0 %v3474
    %5005 = vmatprep.subr.mxu0 0.0
    %5006 = vmatpush1.msra.mxu0 %v3475
    %5007 = vmatprep.subr.mxu0 0.0
    %5008 = vmatpush1.msra.mxu0 %v3476
    %5009 = vmatprep.subr.mxu0 0.0
    %5010 = vmatpush1.msra.mxu0 %v3477
    %5011 = vmatprep.subr.mxu0 0.0
    %5012 = vmatpush1.msra.mxu0 %v3478
    %5013 = vmatprep.subr.mxu0 0.0
    %5014 = vmatpush1.msra.mxu0 %v3479
    %5015 = vmatprep.subr.mxu0 0.0
    %5016 = vmatpush1.msra.mxu0 %v3480
    %5017 = vmatprep.subr.mxu0 0.0
    %5018 = vmatpush1.msra.mxu0 %v3481
    %5019 = vmatprep.subr.mxu0 0.0
    %5020 = vmatpush1.msra.mxu0 %v3482
    %5021 = vmatprep.subr.mxu0 0.0
    %5022 = vmatpush1.msra.mxu0 %v3483
    %5023 = vmatprep.subr.mxu0 0.0
    %5024 = vmatpush1.msra.mxu0 %v3484
    %5025 = vmatprep.subr.mxu0 0.0
    %5026 = vmatpush1.msra.mxu0 %v3485
    %5027 = vmatprep.subr.mxu0 0.0
    %5028 = vmatpush1.msra.mxu0 %v3486
    %5029 = vmatprep.subr.mxu0 0.0
    %5030 = vmatpush1.msra.mxu0 %v3487
    %5031 = vmatprep.subr.mxu0 0.0
    %5032 = vmatpush1.msra.mxu0 %v3488
    %5033 = vmatprep.subr.mxu0 0.0
    %5034 = vmatpush1.msra.mxu0 %v3489
    %5035 = vmatprep.subr.mxu0 0.0
    %5036 = vmatpush1.msra.mxu0 %v3490
    %5037 = vmatprep.subr.mxu0 0.0
    %5038 = vmatpush1.msra.mxu0 %v3491
    %5039 = vmatprep.subr.mxu0 0.0
    %5040 = vmatpush1.msra.mxu0 %v3492
    %5041 = vmatprep.subr.mxu0 0.0
    %5042 = vmatpush1.msra.mxu0 %v3493
    %5043 = vmatprep.subr.mxu0 0.0
    %5044 = vmatpush1.msra.mxu0 %v3494
    %5045 = vmatprep.subr.mxu0 0.0
    %5046 = vmatpush1.msra.mxu0 %v3495
    %5047 = vmatprep.subr.mxu0 0.0
    %5048 = vmatpush1.msra.mxu0 %v3496
    %5049 = vmatprep.subr.mxu0 0.0
    %5050 = vmatpush1.msra.mxu0 %v3497
    %5051 = vmatprep.subr.mxu0 0.0
    %5052 = vmatpush1.msra.mxu0 %v3498
    %5053 = vmatprep.subr.mxu0 0.0
    %5054 = vmatpush1.msra.mxu0 %v3499
    %5055 = vmatprep.subr.mxu0 0.0
    %5056 = vmatpush1.msra.mxu0 %v3500
    %5057 = vmatprep.subr.mxu0 0.0
    %5058 = vmatpush1.msra.mxu0 %v3501
    %5059 = vmatprep.subr.mxu0 0.0
    %5060 = vmatpush1.msra.mxu0 %v3502
    %5061 = vmatprep.subr.mxu0 0.0
    %5062 = vmatpush1.msra.mxu0 %v3503
    %5063 = vmatprep.subr.mxu0 0.0
    %5064 = vmatpush1.msra.mxu0 %v3504
    %5065 = vmatprep.subr.mxu0 0.0
    %5066 = vmatpush1.msra.mxu0 %v3505
    %5067 = vmatprep.mubr.f32.mxu0 %v1023
    %5068 = vmatmul.mubr.f32.gmra.mrb[0].mxu0 %v1021
    %v5069 = vpop.f32.mrb[0].mxu0
    %v5070 = vadd.f32 %v5000, %v5069
    %v5071 = vpop.f32.mrb[0].mxu0
    %5072 = vdwg.mxu0
    %5073 = vmatprep.subr.mxu0 0.0
    %5074 = vmatpush1.msra.mxu0 %v3506
    %5075 = vmatprep.subr.mxu0 0.0
    %5076 = vmatpush1.msra.mxu0 %v3507
    %5077 = vmatprep.subr.mxu0 0.0
    %5078 = vmatpush1.msra.mxu0 %v3508
    %5079 = vmatprep.subr.mxu0 0.0
    %5080 = vmatpush1.msra.mxu0 %v3509
    %5081 = vmatprep.subr.mxu0 0.0
    %5082 = vmatpush1.msra.mxu0 %v3510
    %5083 = vmatprep.subr.mxu0 0.0
    %5084 = vmatpush1.msra.mxu0 %v3511
    %5085 = vmatprep.subr.mxu0 0.0
    %5086 = vmatpush1.msra.mxu0 %v3512
    %5087 = vmatprep.subr.mxu0 0.0
    %5088 = vmatpush1.msra.mxu0 %v3513
    %5089 = vmatprep.subr.mxu0 0.0
    %5090 = vmatpush1.msra.mxu0 %v3514
    %5091 = vmatprep.subr.mxu0 0.0
    %5092 = vmatpush1.msra.mxu0 %v3515
    %5093 = vmatprep.subr.mxu0 0.0
    %5094 = vmatpush1.msra.mxu0 %v3516
    %5095 = vmatprep.subr.mxu0 0.0
    %5096 = vmatpush1.msra.mxu0 %v3517
    %5097 = vmatprep.subr.mxu0 0.0
    %5098 = vmatpush1.msra.mxu0 %v3518
    %5099 = vmatprep.subr.mxu0 0.0
    %5100 = vmatpush1.msra.mxu0 %v3519
    %5101 = vmatprep.subr.mxu0 0.0
    %5102 = vmatpush1.msra.mxu0 %v3520
    %5103 = vmatprep.subr.mxu0 0.0
    %5104 = vmatpush1.msra.mxu0 %v3521
    %5105 = vmatprep.subr.mxu0 0.0
    %5106 = vmatpush1.msra.mxu0 %v3522
    %5107 = vmatprep.subr.mxu0 0.0
    %5108 = vmatpush1.msra.mxu0 %v3523
    %5109 = vmatprep.subr.mxu0 0.0
    %5110 = vmatpush1.msra.mxu0 %v3524
    %5111 = vmatprep.subr.mxu0 0.0
    %5112 = vmatpush1.msra.mxu0 %v3525
    %5113 = vmatprep.subr.mxu0 0.0
    %5114 = vmatpush1.msra.mxu0 %v3526
    %5115 = vmatprep.subr.mxu0 0.0
    %5116 = vmatpush1.msra.mxu0 %v3527
    %5117 = vmatprep.subr.mxu0 0.0
    %5118 = vmatpush1.msra.mxu0 %v3528
    %5119 = vmatprep.subr.mxu0 0.0
    %5120 = vmatpush1.msra.mxu0 %v3529
    %5121 = vmatprep.subr.mxu0 0.0
    %5122 = vmatpush1.msra.mxu0 %v3530
    %5123 = vmatprep.subr.mxu0 0.0
    %5124 = vmatpush1.msra.mxu0 %v3531
    %5125 = vmatprep.subr.mxu0 0.0
    %5126 = vmatpush1.msra.mxu0 %v3532
    %5127 = vmatprep.subr.mxu0 0.0
    %5128 = vmatpush1.msra.mxu0 %v3533
    %5129 = vmatprep.subr.mxu0 0.0
    %5130 = vmatpush1.msra.mxu0 %v3534
    %5131 = vmatprep.subr.mxu0 0.0
    %5132 = vmatpush1.msra.mxu0 %v3535
    %5133 = vmatprep.subr.mxu0 0.0
    %5134 = vmatpush1.msra.mxu0 %v3536
    %5135 = vmatprep.subr.mxu0 0.0
    %5136 = vmatpush1.msra.mxu0 %v3537
    %5137 = vmatprep.mubr.f32.mxu0 %v1039
    %5138 = vmatmul.mubr.f32.gmra.mrb[0].mxu0 %v1031
    %v5139 = vpop.f32.mrb[0].mxu0
    %v5140 = vadd.f32 %v5070, %v5139
    %v5141 = vpop.f32.mrb[0].mxu0
    %5142 = vdwg.mxu0
    %5143 = vmatprep.subr.mxu0 0.0
    %5144 = vmatpush1.msra.mxu0 %v3538
    %5145 = vmatprep.subr.mxu0 0.0
    %5146 = vmatpush1.msra.mxu0 %v3539
    %5147 = vmatprep.subr.mxu0 0.0
    %5148 = vmatpush1.msra.mxu0 %v3540
    %5149 = vmatprep.subr.mxu0 0.0
    %5150 = vmatpush1.msra.mxu0 %v3541
    %5151 = vmatprep.subr.mxu0 0.0
    %5152 = vmatpush1.msra.mxu0 %v3542
    %5153 = vmatprep.subr.mxu0 0.0
    %5154 = vmatpush1.msra.mxu0 %v3543
    %5155 = vmatprep.subr.mxu0 0.0
    %5156 = vmatpush1.msra.mxu0 %v3544
    %5157 = vmatprep.subr.mxu0 0.0
    %5158 = vmatpush1.msra.mxu0 %v3545
    %5159 = vmatprep.subr.mxu0 0.0
    %5160 = vmatpush1.msra.mxu0 %v3546
    %5161 = vmatprep.subr.mxu0 0.0
    %5162 = vmatpush1.msra.mxu0 %v3547
    %5163 = vmatprep.subr.mxu0 0.0
    %5164 = vmatpush1.msra.mxu0 %v3548
    %5165 = vmatprep.subr.mxu0 0.0
    %5166 = vmatpush1.msra.mxu0 %v3549
    %5167 = vmatprep.subr.mxu0 0.0
    %5168 = vmatpush1.msra.mxu0 %v3550
    %5169 = vmatprep.subr.mxu0 0.0
    %5170 = vmatpush1.msra.mxu0 %v3551
    %5171 = vmatprep.subr.mxu0 0.0
    %5172 = vmatpush1.msra.mxu0 %v3552
    %5173 = vmatprep.subr.mxu0 0.0
    %5174 = vmatpush1.msra.mxu0 %v3553
    %5175 = vmatprep.subr.mxu0 0.0
    %5176 = vmatpush1.msra.mxu0 %v3554
    %5177 = vmatprep.subr.mxu0 0.0
    %5178 = vmatpush1.msra.mxu0 %v3555
    %5179 = vmatprep.subr.mxu0 0.0
    %5180 = vmatpush1.msra.mxu0 %v3556
    %5181 = vmatprep.subr.mxu0 0.0
    %5182 = vmatpush1.msra.mxu0 %v3557
    %5183 = vmatprep.subr.mxu0 0.0
    %5184 = vmatpush1.msra.mxu0 %v3558
    %5185 = vmatprep.subr.mxu0 0.0
    %5186 = vmatpush1.msra.mxu0 %v3559
    %5187 = vmatprep.subr.mxu0 0.0
    %5188 = vmatpush1.msra.mxu0 %v3560
    %5189 = vmatprep.subr.mxu0 0.0
    %5190 = vmatpush1.msra.mxu0 %v3561
    %5191 = vmatprep.subr.mxu0 0.0
    %5192 = vmatpush1.msra.mxu0 %v3562
    %5193 = vmatprep.subr.mxu0 0.0
    %5194 = vmatpush1.msra.mxu0 %v3563
    %5195 = vmatprep.subr.mxu0 0.0
    %5196 = vmatpush1.msra.mxu0 %v3564
    %5197 = vmatprep.subr.mxu0 0.0
    %5198 = vmatpush1.msra.mxu0 %v3565
    %5199 = vmatprep.subr.mxu0 0.0
    %5200 = vmatpush1.msra.mxu0 %v3566
    %5201 = vmatprep.subr.mxu0 0.0
    %5202 = vmatpush1.msra.mxu0 %v3567
    %5203 = vmatprep.subr.mxu0 0.0
    %5204 = vmatpush1.msra.mxu0 %v3568
    %5205 = vmatprep.subr.mxu0 0.0
    %5206 = vmatpush1.msra.mxu0 %v3569
    %5207 = vmatprep.mubr.f32.mxu0 %v1040
    %5208 = vmatmul.mubr.f32.gmra.mrb[0].mxu0 %v1038
    %v5209 = vpop.f32.mrb[0].mxu0
    %v5210 = vadd.f32 %v5140, %v5209
    %v5211 = vpop.f32.mrb[0].mxu0
    %5212 = vdwg.mxu0
    %5213 = vmatprep.subr.mxu0 0.0
    %5214 = vmatpush1.msra.mxu0 %v3570
    %5215 = vmatprep.subr.mxu0 0.0
    %5216 = vmatpush1.msra.mxu0 %v3571
    %5217 = vmatprep.subr.mxu0 0.0
    %5218 = vmatpush1.msra.mxu0 %v3572
    %5219 = vmatprep.subr.mxu0 0.0
    %5220 = vmatpush1.msra.mxu0 %v3573
    %5221 = vmatprep.subr.mxu0 0.0
    %5222 = vmatpush1.msra.mxu0 %v3574
    %5223 = vmatprep.subr.mxu0 0.0
    %5224 = vmatpush1.msra.mxu0 %v3575
    %5225 = vmatprep.subr.mxu0 0.0
    %5226 = vmatpush1.msra.mxu0 %v3576
    %5227 = vmatprep.subr.mxu0 0.0
    %5228 = vmatpush1.msra.mxu0 %v3577
    %5229 = vmatprep.subr.mxu0 0.0
    %5230 = vmatpush1.msra.mxu0 %v3578
    %5231 = vmatprep.subr.mxu0 0.0
    %5232 = vmatpush1.msra.mxu0 %v3579
    %5233 = vmatprep.subr.mxu0 0.0
    %5234 = vmatpush1.msra.mxu0 %v3580
    %5235 = vmatprep.subr.mxu0 0.0
    %5236 = vmatpush1.msra.mxu0 %v3581
    %5237 = vmatprep.subr.mxu0 0.0
    %5238 = vmatpush1.msra.mxu0 %v3582
    %5239 = vmatprep.subr.mxu0 0.0
    %5240 = vmatpush1.msra.mxu0 %v3583
    %5241 = vmatprep.subr.mxu0 0.0
    %5242 = vmatpush1.msra.mxu0 %v3584
    %5243 = vmatprep.subr.mxu0 0.0
    %5244 = vmatpush1.msra.mxu0 %v3585
    %5245 = vmatprep.subr.mxu0 0.0
    %5246 = vmatpush1.msra.mxu0 %v3586
    %5247 = vmatprep.subr.mxu0 0.0
    %5248 = vmatpush1.msra.mxu0 %v3587
    %5249 = vmatprep.subr.mxu0 0.0
    %5250 = vmatpush1.msra.mxu0 %v3588
    %5251 = vmatprep.subr.mxu0 0.0
    %5252 = vmatpush1.msra.mxu0 %v3589
    %5253 = vmatprep.subr.mxu0 0.0
    %5254 = vmatpush1.msra.mxu0 %v3590
    %5255 = vmatprep.subr.mxu0 0.0
    %5256 = vmatpush1.msra.mxu0 %v3591
    %5257 = vmatprep.subr.mxu0 0.0
    %5258 = vmatpush1.msra.mxu0 %v3592
    %5259 = vmatprep.subr.mxu0 0.0
    %5260 = vmatpush1.msra.mxu0 %v3593
    %5261 = vmatprep.subr.mxu0 0.0
    %5262 = vmatpush1.msra.mxu0 %v3594
    %5263 = vmatprep.subr.mxu0 0.0
    %5264 = vmatpush1.msra.mxu0 %v3595
    %5265 = vmatprep.subr.mxu0 0.0
    %5266 = vmatpush1.msra.mxu0 %v3596
    %5267 = vmatprep.subr.mxu0 0.0
    %5268 = vmatpush1.msra.mxu0 %v3597
    %5269 = vmatprep.subr.mxu0 0.0
    %5270 = vmatpush1.msra.mxu0 %v3598
    %5271 = vmatprep.subr.mxu0 0.0
    %5272 = vmatpush1.msra.mxu0 %v3599
    %5273 = vmatprep.subr.mxu0 0.0
    %5274 = vmatpush1.msra.mxu0 %v3600
    %5275 = vmatprep.subr.mxu0 0.0
    %5276 = vmatpush1.msra.mxu0 %v3601
    %5277 = vmatprep.mubr.f32.mxu0 %v1056
    %5278 = vmatmul.mubr.f32.gmra.mrb[0].mxu0 %v1048
    %v5279 = vpop.f32.mrb[0].mxu0
    %v5280 = vadd.f32 %v5210, %v5279
    %v5281 = vpop.f32.mrb[0].mxu0
    %5282 = vdwg.mxu0
    %5283 = vmatprep.subr.mxu0 0.0
    %5284 = vmatpush1.msra.mxu0 %v3602
    %5285 = vmatprep.subr.mxu0 0.0
    %5286 = vmatpush1.msra.mxu0 %v3603
    %5287 = vmatprep.subr.mxu0 0.0
    %5288 = vmatpush1.msra.mxu0 %v3604
    %5289 = vmatprep.subr.mxu0 0.0
    %5290 = vmatpush1.msra.mxu0 %v3605
    %5291 = vmatprep.subr.mxu0 0.0
    %5292 = vmatpush1.msra.mxu0 %v3606
    %5293 = vmatprep.subr.mxu0 0.0
    %5294 = vmatpush1.msra.mxu0 %v3607
    %5295 = vmatprep.subr.mxu0 0.0
    %5296 = vmatpush1.msra.mxu0 %v3608
    %5297 = vmatprep.subr.mxu0 0.0
    %5298 = vmatpush1.msra.mxu0 %v3609
    %5299 = vmatprep.subr.mxu0 0.0
    %5300 = vmatpush1.msra.mxu0 %v3610
    %5301 = vmatprep.subr.mxu0 0.0
    %5302 = vmatpush1.msra.mxu0 %v3611
    %5303 = vmatprep.subr.mxu0 0.0
    %5304 = vmatpush1.msra.mxu0 %v3612
    %5305 = vmatprep.subr.mxu0 0.0
    %5306 = vmatpush1.msra.mxu0 %v3613
    %5307 = vmatprep.subr.mxu0 0.0
    %5308 = vmatpush1.msra.mxu0 %v3614
    %5309 = vmatprep.subr.mxu0 0.0
    %5310 = vmatpush1.msra.mxu0 %v3615
    %5311 = vmatprep.subr.mxu0 0.0
    %5312 = vmatpush1.msra.mxu0 %v3616
    %5313 = vmatprep.subr.mxu0 0.0
    %5314 = vmatpush1.msra.mxu0 %v3617
    %5315 = vmatprep.subr.mxu0 0.0
    %5316 = vmatpush1.msra.mxu0 %v3618
    %5317 = vmatprep.subr.mxu0 0.0
    %5318 = vmatpush1.msra.mxu0 %v3619
    %5319 = vmatprep.subr.mxu0 0.0
    %5320 = vmatpush1.msra.mxu0 %v3620
    %5321 = vmatprep.subr.mxu0 0.0
    %5322 = vmatpush1.msra.mxu0 %v3621
    %5323 = vmatprep.subr.mxu0 0.0
    %5324 = vmatpush1.msra.mxu0 %v3622
    %5325 = vmatprep.subr.mxu0 0.0
    %5326 = vmatpush1.msra.mxu0 %v3623
    %5327 = vmatprep.subr.mxu0 0.0
    %5328 = vmatpush1.msra.mxu0 %v3624
    %5329 = vmatprep.subr.mxu0 0.0
    %5330 = vmatpush1.msra.mxu0 %v3625
    %5331 = vmatprep.subr.mxu0 0.0
    %5332 = vmatpush1.msra.mxu0 %v3626
    %5333 = vmatprep.subr.mxu0 0.0
    %5334 = vmatpush1.msra.mxu0 %v3627
    %5335 = vmatprep.subr.mxu0 0.0
    %5336 = vmatpush1.msra.mxu0 %v3628
    %5337 = vmatprep.subr.mxu0 0.0
    %5338 = vmatpush1.msra.mxu0 %v3629
    %5339 = vmatprep.subr.mxu0 0.0
    %5340 = vmatpush1.msra.mxu0 %v3630
    %5341 = vmatprep.subr.mxu0 0.0
    %5342 = vmatpush1.msra.mxu0 %v3631
    %5343 = vmatprep.subr.mxu0 0.0
    %5344 = vmatpush1.msra.mxu0 %v3632
    %5345 = vmatprep.subr.mxu0 0.0
    %5346 = vmatpush1.msra.mxu0 %v3633
    %5347 = vmatprep.mubr.f32.mxu0 %v1057
    %5348 = vmatmul.mubr.f32.gmra.mrb[0].mxu0 %v1055
    %v5349 = vpop.f32.mrb[0].mxu0
    %v5350 = vadd.f32 %v5280, %v5349
    %v5351 = vpop.f32.mrb[0].mxu0
    %5352 = vdwg.mxu0
    %5353 = vmatprep.subr.mxu0 0.0
    %5354 = vmatpush1.msra.mxu0 %v3634
    %5355 = vmatprep.subr.mxu0 0.0
    %5356 = vmatpush1.msra.mxu0 %v3635
    %5357 = vmatprep.subr.mxu0 0.0
    %5358 = vmatpush1.msra.mxu0 %v3636
    %5359 = vmatprep.subr.mxu0 0.0
    %5360 = vmatpush1.msra.mxu0 %v3637
    %5361 = vmatprep.subr.mxu0 0.0
    %5362 = vmatpush1.msra.mxu0 %v3638
    %5363 = vmatprep.subr.mxu0 0.0
    %5364 = vmatpush1.msra.mxu0 %v3639
    %5365 = vmatprep.subr.mxu0 0.0
    %5366 = vmatpush1.msra.mxu0 %v3640
    %5367 = vmatprep.subr.mxu0 0.0
    %5368 = vmatpush1.msra.mxu0 %v3641
    %5369 = vmatprep.subr.mxu0 0.0
    %5370 = vmatpush1.msra.mxu0 %v3642
    %5371 = vmatprep.subr.mxu0 0.0
    %5372 = vmatpush1.msra.mxu0 %v3643
    %5373 = vmatprep.subr.mxu0 0.0
    %5374 = vmatpush1.msra.mxu0 %v3644
    %5375 = vmatprep.subr.mxu0 0.0
    %5376 = vmatpush1.msra.mxu0 %v3645
    %5377 = vmatprep.subr.mxu0 0.0
    %5378 = vmatpush1.msra.mxu0 %v3646
    %5379 = vmatprep.subr.mxu0 0.0
    %5380 = vmatpush1.msra.mxu0 %v3647
    %5381 = vmatprep.subr.mxu0 0.0
    %5382 = vmatpush1.msra.mxu0 %v3648
    %5383 = vmatprep.subr.mxu0 0.0
    %5384 = vmatpush1.msra.mxu0 %v3649
    %5385 = vmatprep.subr.mxu0 0.0
    %5386 = vmatpush1.msra.mxu0 %v3650
    %5387 = vmatprep.subr.mxu0 0.0
    %5388 = vmatpush1.msra.mxu0 %v3651
    %5389 = vmatprep.subr.mxu0 0.0
    %5390 = vmatpush1.msra.mxu0 %v3652
    %5391 = vmatprep.subr.mxu0 0.0
    %5392 = vmatpush1.msra.mxu0 %v3653
    %5393 = vmatprep.subr.mxu0 0.0
    %5394 = vmatpush1.msra.mxu0 %v3654
    %5395 = vmatprep.subr.mxu0 0.0
    %5396 = vmatpush1.msra.mxu0 %v3655
    %5397 = vmatprep.subr.mxu0 0.0
    %5398 = vmatpush1.msra.mxu0 %v3656
    %5399 = vmatprep.subr.mxu0 0.0
    %5400 = vmatpush1.msra.mxu0 %v3657
    %5401 = vmatprep.subr.mxu0 0.0
    %5402 = vmatpush1.msra.mxu0 %v3658
    %5403 = vmatprep.subr.mxu0 0.0
    %5404 = vmatpush1.msra.mxu0 %v3659
    %5405 = vmatprep.subr.mxu0 0.0
    %5406 = vmatpush1.msra.mxu0 %v3660
    %5407 = vmatprep.subr.mxu0 0.0
    %5408 = vmatpush1.msra.mxu0 %v3661
    %5409 = vmatprep.subr.mxu0 0.0
    %5410 = vmatpush1.msra.mxu0 %v3662
    %5411 = vmatprep.subr.mxu0 0.0
    %5412 = vmatpush1.msra.mxu0 %v3663
    %5413 = vmatprep.subr.mxu0 0.0
    %5414 = vmatpush1.msra.mxu0 %v3664
    %5415 = vmatprep.subr.mxu0 0.0
    %5416 = vmatpush1.msra.mxu0 %v3665
    %5417 = vmatprep.mubr.f32.mxu0 %v1065
    %5418 = vmatmul.mubr.f32.gmra.mrb[0].mxu0 %v1064
    %v5419 = vpop.f32.mrb[0].mxu0
    %v5420 = vadd.f32 %v5350, %v5419
    %v5421 = vpop.f32.mrb[0].mxu0
    %5422 = vdwg.mxu0
    %v5423 = vmul.f32 %v2863, %v5420
    %vm5424 = vcmask 74752
    %5425 = vst.msk [vmem:[#allocation2] sm:$0x3] %vm5424, %v5423
    // Predicated region
    $region22: #{forward.5} parent=1 // pred_check
      _
    $region23: #{forward.5} parent=1 // pred_check_branch
      %5427 = sbr.rel (0) target = $region25
    $region24: #{forward.5} parent=1 // pred_region
      %s5429 = ssub.s32 32, 32
      %5430 = vsyncadd [#allocation3], %s5429
      %s5432 = sshll.u32 [#allocation2], 4
      %s5433 = int_to_ptr.vmem [resolvable:$true] %s5432
      %5435 = dma.vmem_to_hbm [thread:$0]  %s5433, 32, %s5, [#allocation3]
    $region25: #{forward.5} parent=1 // pred_fallthru
      _
    // Predicated region
    $region26: #{forward.5} parent=1 // pred_check
      _
    $region27: #{forward.5} parent=1 // pred_check_branch
      %5437 = sbr.rel (0) target = $region29
    $region28: #{forward.5} parent=1 // pred_region
      %5438 = dma.done [#allocation3], 32
    $region29: #{forward.5} parent=1 // pred_fallthru
      _
    %5439 = vsyncpa [#allocation3], 1

</llo_original>
